<compile_context>
chip_gen: v6e
topology: v6e:2x2x1
jax: 0.10.0
libtpu: 0.0.40
codegen_flags: <defaults>
</compile_context>

<pallas_src>
import numpy as np
import jax
import jax.numpy as jnp
from jax.experimental import pallas as pl
from jax.experimental.pallas import tpu as pltpu


def _make_fused_kernel(L, B, C, H, W, KH, KW, Hp, Wp, P, P_ext, pad):
    """Builds the fused 8x(conv5x5 'same' + tanh) kernel for one batch group."""
    off0 = pad * Wp + pad                                   # interior write offset
    # Window offsets in the flattened (i*Wp + j) spatial index, (kh, kw) order.
    offsets = [kh * Wp + kw for kh in range(KH) for kw in range(KW)]

    def kernel(x_ref, w_ref, b_ref, mask_ref, o_ref, act_ref):
        # x_ref   : (B, C, P_ext) bf16  zero-padded input, flat spatial in lanes
        # w_ref   : (L, C, KH*KW*C) bf16  Wmat[l, o, (kh*KW+kw)*C + c] = W[kh,kw,c,o]
        # b_ref   : (L, C, 1)  f32  per-layer bias (per output-channel row)
        # mask_ref: (1, P)     f32  1.0 where p = h*Wp + w with h < H and w < W
        # o_ref   : (B, C, P)  f32  last-layer output (channels-in-rows)
        # act_ref : (B, C, P_ext) bf16 persistent running activation (zero border)

        # Bring the padded input into the persistent VMEM scratch once.
        act_ref[...] = x_ref[...]
        mask = mask_ref[...]                                 # (1, P) f32

        for b in range(B):                                   # samples in this group
            for l in range(L):                               # layers, static unroll
                a = act_ref[b]                               # (C, P_ext) bf16

                # Window matrix: rhs[(kh*KW+kw)*C + c, p] = a[c, p + kh*Wp + kw].
                # Static lane-shift slices (XLU) of the flat activation; the
                # zero tail of the scratch makes every read in-bounds.
                rhs = jnp.concatenate([a[:, o_: o_ + P] for o_ in offsets],
                                      axis=0)                # (KH*KW*C, P) bf16

                # Single big-K matmul per layer, f32 accumulation on the MXU.
                z = jnp.dot(w_ref[l], rhs,
                            preferred_element_type=jnp.float32)   # (C, P) f32

                # Bias + tanh in f32 on lane-dense (C, P) tiles; zero out the
                # non-valid positions so the next layer's border stays 0.
                out = jnp.tanh(z + b_ref[l]) * mask          # (C, P) f32

                if l + 1 < L:
                    # Write into the interior of the padded flat scratch; the
                    # untouched zero border provides 'same' padding next layer.
                    act_ref[b, :, off0:off0 + P] = out.astype(act_ref.dtype)
                else:
                    o_ref[b] = out.astype(o_ref.dtype)

    return kernel


def _prepare_packed_params(params, C):
    """Pad channels to C, pack W as (Cout, KH*KW*C), cast matmul weights bf16."""
    ws, bs = [], []
    for w, b in params:                       # w: (KH, KW, cin, cout) HWIO
        KH, KW, cin, cout = w.shape
        wp = jnp.zeros((KH, KW, C, C), jnp.float32).at[:, :, :cin, :cout].set(w)
        bp = jnp.zeros((C,), jnp.float32).at[:cout].set(b)
        # Wmat[o, (kh*KW + kw)*C + c] = w[kh, kw, c, o]
        ws.append(jnp.transpose(wp.reshape(KH * KW * C, C)))   # (C, KH*KW*C)
        bs.append(bp.reshape(C, 1))
    w_all = jnp.stack(ws).astype(jnp.bfloat16)                  # (L, C, KH*KW*C)
    b_all = jnp.stack(bs)                                       # (L, C, 1) f32
    return w_all, b_all


@jax.jit
def net_forward(x_nchw, params):
    """Forward pass matching Net.forward. Input/output are NCHW like PyTorch."""
    N, c_in, H, W = x_nchw.shape
    KH, KW, _, n_filters = params[0][0].shape
    n_out = params[-1][0].shape[3]
    L = len(params)
    C = max(n_filters, c_in, n_out)
    pad = KH // 2
    Hp, Wp = H + 2 * pad, W + 2 * pad
    P = Hp * Wp                                    # flat padded spatial (lanes)
    P_ext = P + (KH - 1) * Wp + (KW - 1)           # + tail so window reads never wrap

    # Batch grouping: 2 grid steps when possible (both v7x TensorCores busy),
    # otherwise everything in a single step (amortize per-step overhead).
    G = 2 if (N >= 2 and N % 2 == 0) else 1
    B = N // G

    w_all, b_all = _prepare_packed_params(params, C)

    # NCHW -> channels-in-rows with flattened, zero-padded spatial in lanes (bf16).
    x = jnp.pad(x_nchw, ((0, 0), (0, C - c_in), (pad, pad), (pad, pad)))
    x = x.reshape(N, C, P)
    x = jnp.pad(x, ((0, 0), (0, 0), (0, P_ext - P))).astype(jnp.bfloat16)

    # Valid-output mask over flat positions p = h*Wp + w (h < H and w < W).
    pidx = jnp.arange(P, dtype=jnp.int32)
    mask = (((pidx // Wp) < H) & ((pidx % Wp) < W)).astype(jnp.float32).reshape(1, P)

    kernel = _make_fused_kernel(L, B, C, H, W, KH, KW, Hp, Wp, P, P_ext, pad)

    out = pl.pallas_call(
        kernel,
        out_shape=jax.ShapeDtypeStruct((N, C, P), x_nchw.dtype),
        grid_spec=pltpu.PrefetchScalarGridSpec(
            num_scalar_prefetch=0,
            grid=(G,),
            in_specs=[
                pl.BlockSpec((B, C, P_ext), lambda g: (g, 0, 0)),
                pl.BlockSpec((L, C, KH * KW * C), lambda g: (0, 0, 0)),
                pl.BlockSpec((L, C, 1), lambda g: (0, 0, 0)),
                pl.BlockSpec((1, P), lambda g: (0, 0)),
            ],
            out_specs=pl.BlockSpec((B, C, P), lambda g: (g, 0, 0)),
            scratch_shapes=[pltpu.VMEM((B, C, P_ext), jnp.bfloat16)],
        ),
        compiler_params=pltpu.CompilerParams(
            dimension_semantics=("parallel",)),
    )(x, w_all, b_all, mask)

    # (N, C, Hp*Wp) with valid data at p = h*Wp + w  ->  NCHW (N, n_out, H, W).
    return out.reshape(N, C, Hp, Wp)[:, :n_out, :H, :W]


def init_net_params(key, n_inputs, n_outputs, n_filters=32, kernel=5):
    """Deterministic init mimicking Conv2d default (uniform in +-1/sqrt(fan_in))."""
    cins = [n_inputs] + [n_filters] * 7
    couts = [n_filters] * 7 + [n_outputs]
    params = []
    for cin, cout in zip(cins, couts):
        key, k_w, k_b = jax.random.split(key, 3)
        bound = 1.0 / float(np.sqrt(cin * kernel * kernel))
        w = jax.random.uniform(k_w, (kernel, kernel, cin, cout),
                               jnp.float32, -bound, bound)   # HWIO
        b = jax.random.uniform(k_b, (cout,), jnp.float32, -bound, bound)
        params.append((w, b))
    return params


def _reference_forward(x_nchw, params):
    """Pure-JAX reference (lax.conv) for a sanity check."""
    x = x_nchw
    for w, b in params:
        w_oihw = jnp.transpose(w, (3, 2, 0, 1))
        x = jax.lax.conv_general_dilated(
            x, w_oihw, window_strides=(1, 1), padding='SAME',
            dimension_numbers=('NCHW', 'OIHW', 'NCHW'))
        x = jnp.tanh(x + b[None, :, None, None])
    return x


if __name__ == "__main__":
    key = jax.random.PRNGKey(0)
    k_x, k_p = jax.random.split(key)

    n_inputs, n_outputs = 4, 4
    x = jax.random.normal(k_x, (2, n_inputs, 16, 16), jnp.float32)  # NCHW
    params = init_net_params(k_p, n_inputs, n_outputs, n_filters=32, kernel=5)

    out = jax.block_until_ready(net_forward(x, params))

    assert out.shape == (2, n_outputs, 16, 16)
    assert bool(jnp.all(jnp.isfinite(out)))

    ref = _reference_forward(x, params)
    err = float(jnp.max(jnp.abs(out - ref)))
    assert err < 5e-2, f"max abs error vs reference too large: {err}"

    print("KERNEL_OK")
</pallas_src>

<mosaic_0001>
module attributes {stable_mosaic.version = 11 : i64} {
  func.func @kernel(%arg0: i32, %arg1: memref<1x32x484xbf16, #tpu.memory_space<vmem>>, %arg2: memref<8x32x800xbf16, #tpu.memory_space<vmem>>, %arg3: memref<8x32x1xf32, #tpu.memory_space<vmem>>, %arg4: memref<1x400xf32, #tpu.memory_space<vmem>>, %arg5: memref<1x32x400xf32, #tpu.memory_space<vmem>>, %arg6: memref<1x32x484xbf16, #tpu.memory_space<vmem>>) attributes {dimension_semantics = [#tpu.dimension_semantics<parallel>], iteration_bounds = array<i64: 2>, scalar_prefetch = 0 : i64, scratch_operands = 1 : i64, tpu.core_type = #tpu.core_type<tc>, window_params = [{transform_indices = @transform_0, window_bounds = array<i64: 1, 32, 484>}, {pipeline_mode = #tpu.pipeline_mode<synchronous>, transform_indices = @transform_1, window_bounds = array<i64: 8, 32, 800>}, {pipeline_mode = #tpu.pipeline_mode<synchronous>, transform_indices = @transform_2, window_bounds = array<i64: 8, 32, 1>}, {pipeline_mode = #tpu.pipeline_mode<synchronous>, transform_indices = @transform_3, window_bounds = array<i64: 1, 400>}, {transform_indices = @transform_4, window_bounds = array<i64: 1, 32, 400>}]} {
    %c0 = arith.constant 0 : index
    %c0_0 = arith.constant 0 : index
    %c0_1 = arith.constant 0 : index
    %0 = vector.load %arg1[%c0, %c0_0, %c0_1] : memref<1x32x484xbf16, #tpu.memory_space<vmem>>, vector<1x32x484xbf16>
    %c0_2 = arith.constant 0 : index
    %c0_3 = arith.constant 0 : index
    %c0_4 = arith.constant 0 : index
    %1 = vector.load %arg6[%c0_2, %c0_3, %c0_4] : memref<1x32x484xbf16, #tpu.memory_space<vmem>>, vector<1x32x484xbf16>
    tpu.vector_store %arg6[%c0_2, %c0_3, %c0_4], %0 {strides = array<i32>} : memref<1x32x484xbf16, #tpu.memory_space<vmem>>, vector<1x32x484xbf16>,
    %c0_5 = arith.constant 0 : index
    %c0_6 = arith.constant 0 : index
    %2 = vector.load %arg4[%c0_5, %c0_6] : memref<1x400xf32, #tpu.memory_space<vmem>>, vector<1x400xf32>
    %c0_7 = arith.constant 0 : index
    %c0_8 = arith.constant 0 : index
    %c0_9 = arith.constant 0 : index
    %3 = vector.load %arg6[%c0_7, %c0_8, %c0_9] : memref<1x32x484xbf16, #tpu.memory_space<vmem>>, vector<1x32x484xbf16>
    %4 = vector.shape_cast %3 : vector<1x32x484xbf16> to vector<32x484xbf16>
    %5 = vector.extract_strided_slice %4 {offsets = [0, 0], sizes = [32, 400], strides = [1, 1]} : vector<32x484xbf16> to vector<32x400xbf16>
    %6 = vector.extract_strided_slice %4 {offsets = [0, 1], sizes = [32, 400], strides = [1, 1]} : vector<32x484xbf16> to vector<32x400xbf16>
    %7 = vector.extract_strided_slice %4 {offsets = [0, 2], sizes = [32, 400], strides = [1, 1]} : vector<32x484xbf16> to vector<32x400xbf16>
    %8 = vector.extract_strided_slice %4 {offsets = [0, 3], sizes = [32, 400], strides = [1, 1]} : vector<32x484xbf16> to vector<32x400xbf16>
    %9 = vector.extract_strided_slice %4 {offsets = [0, 4], sizes = [32, 400], strides = [1, 1]} : vector<32x484xbf16> to vector<32x400xbf16>
    %10 = vector.extract_strided_slice %4 {offsets = [0, 20], sizes = [32, 400], strides = [1, 1]} : vector<32x484xbf16> to vector<32x400xbf16>
    %11 = vector.extract_strided_slice %4 {offsets = [0, 21], sizes = [32, 400], strides = [1, 1]} : vector<32x484xbf16> to vector<32x400xbf16>
    %12 = vector.extract_strided_slice %4 {offsets = [0, 22], sizes = [32, 400], strides = [1, 1]} : vector<32x484xbf16> to vector<32x400xbf16>
    %13 = vector.extract_strided_slice %4 {offsets = [0, 23], sizes = [32, 400], strides = [1, 1]} : vector<32x484xbf16> to vector<32x400xbf16>
    %14 = vector.extract_strided_slice %4 {offsets = [0, 24], sizes = [32, 400], strides = [1, 1]} : vector<32x484xbf16> to vector<32x400xbf16>
    %15 = vector.extract_strided_slice %4 {offsets = [0, 40], sizes = [32, 400], strides = [1, 1]} : vector<32x484xbf16> to vector<32x400xbf16>
    %16 = vector.extract_strided_slice %4 {offsets = [0, 41], sizes = [32, 400], strides = [1, 1]} : vector<32x484xbf16> to vector<32x400xbf16>
    %17 = vector.extract_strided_slice %4 {offsets = [0, 42], sizes = [32, 400], strides = [1, 1]} : vector<32x484xbf16> to vector<32x400xbf16>
    %18 = vector.extract_strided_slice %4 {offsets = [0, 43], sizes = [32, 400], strides = [1, 1]} : vector<32x484xbf16> to vector<32x400xbf16>
    %19 = vector.extract_strided_slice %4 {offsets = [0, 44], sizes = [32, 400], strides = [1, 1]} : vector<32x484xbf16> to vector<32x400xbf16>
    %20 = vector.extract_strided_slice %4 {offsets = [0, 60], sizes = [32, 400], strides = [1, 1]} : vector<32x484xbf16> to vector<32x400xbf16>
    %21 = vector.extract_strided_slice %4 {offsets = [0, 61], sizes = [32, 400], strides = [1, 1]} : vector<32x484xbf16> to vector<32x400xbf16>
    %22 = vector.extract_strided_slice %4 {offsets = [0, 62], sizes = [32, 400], strides = [1, 1]} : vector<32x484xbf16> to vector<32x400xbf16>
    %23 = vector.extract_strided_slice %4 {offsets = [0, 63], sizes = [32, 400], strides = [1, 1]} : vector<32x484xbf16> to vector<32x400xbf16>
    %24 = vector.extract_strided_slice %4 {offsets = [0, 64], sizes = [32, 400], strides = [1, 1]} : vector<32x484xbf16> to vector<32x400xbf16>
    %25 = vector.extract_strided_slice %4 {offsets = [0, 80], sizes = [32, 400], strides = [1, 1]} : vector<32x484xbf16> to vector<32x400xbf16>
    %26 = vector.extract_strided_slice %4 {offsets = [0, 81], sizes = [32, 400], strides = [1, 1]} : vector<32x484xbf16> to vector<32x400xbf16>
    %27 = vector.extract_strided_slice %4 {offsets = [0, 82], sizes = [32, 400], strides = [1, 1]} : vector<32x484xbf16> to vector<32x400xbf16>
    %28 = vector.extract_strided_slice %4 {offsets = [0, 83], sizes = [32, 400], strides = [1, 1]} : vector<32x484xbf16> to vector<32x400xbf16>
    %29 = vector.extract_strided_slice %4 {offsets = [0, 84], sizes = [32, 400], strides = [1, 1]} : vector<32x484xbf16> to vector<32x400xbf16>
    %30 = tpu.concatenate %5, %6, %7, %8, %9, %10, %11, %12, %13, %14, %15, %16, %17, %18, %19, %20 in 0 : vector<32x400xbf16>, vector<32x400xbf16>, vector<32x400xbf16>, vector<32x400xbf16>, vector<32x400xbf16>, vector<32x400xbf16>, vector<32x400xbf16>, vector<32x400xbf16>, vector<32x400xbf16>, vector<32x400xbf16>, vector<32x400xbf16>, vector<32x400xbf16>, vector<32x400xbf16>, vector<32x400xbf16>, vector<32x400xbf16>, vector<32x400xbf16> -> vector<512x400xbf16>
    %31 = tpu.concatenate %21, %22, %23, %24, %25, %26, %27, %28, %29 in 0 : vector<32x400xbf16>, vector<32x400xbf16>, vector<32x400xbf16>, vector<32x400xbf16>, vector<32x400xbf16>, vector<32x400xbf16>, vector<32x400xbf16>, vector<32x400xbf16>, vector<32x400xbf16> -> vector<288x400xbf16>
    %32 = tpu.concatenate %30, %31 in 0 : vector<512x400xbf16>, vector<288x400xbf16> -> vector<800x400xbf16>
    %c0_10 = arith.constant 0 : index
    %c0_11 = arith.constant 0 : index
    %c0_12 = arith.constant 0 : index
    %33 = vector.load %arg2[%c0_10, %c0_11, %c0_12] : memref<8x32x800xbf16, #tpu.memory_space<vmem>>, vector<1x32x800xbf16>
    %34 = vector.shape_cast %33 : vector<1x32x800xbf16> to vector<32x800xbf16>
    %cst = arith.constant dense<0.000000e+00> : vector<32x400xf32>
    %35 = tpu.matmul %34, %32, %cst {dimension_numbers = #tpu.dot_dimension_numbers<[1], [0], [0], [1], [0, 0, 1, 1], [], []>} : vector<32x800xbf16>, vector<800x400xbf16>, vector<32x400xf32> -> vector<32x400xf32>
    %c0_13 = arith.constant 0 : index
    %c0_14 = arith.constant 0 : index
    %c0_15 = arith.constant 0 : index
    %36 = vector.load %arg3[%c0_13, %c0_14, %c0_15] : memref<8x32x1xf32, #tpu.memory_space<vmem>>, vector<1x32x1xf32>
    %37 = vector.shape_cast %36 : vector<1x32x1xf32> to vector<32x1xf32>
    %38 = vector.broadcast %37 : vector<32x1xf32> to vector<32x400xf32>
    %39 = arith.addf %35, %38 : vector<32x400xf32>
    %40 = math.tanh %39 : vector<32x400xf32>
    %41 = vector.broadcast %2 : vector<1x400xf32> to vector<32x400xf32>
    %42 = arith.mulf %40, %41 : vector<32x400xf32>
    %43 = arith.truncf %42 : vector<32x400xf32> to vector<32x400xbf16>
    %c0_16 = arith.constant 0 : index
    %c0_17 = arith.constant 0 : index
    %c42 = arith.constant 42 : index
    %44 = vector.load %arg6[%c0_16, %c0_17, %c42] : memref<1x32x484xbf16, #tpu.memory_space<vmem>>, vector<1x32x400xbf16>
    %45 = vector.shape_cast %44 : vector<1x32x400xbf16> to vector<32x400xbf16>
    %46 = vector.shape_cast %43 : vector<32x400xbf16> to vector<1x32x400xbf16>
    tpu.vector_store %arg6[%c0_16, %c0_17, %c42], %46 {strides = array<i32>} : memref<1x32x484xbf16, #tpu.memory_space<vmem>>, vector<1x32x400xbf16>,
    %c0_18 = arith.constant 0 : index
    %c0_19 = arith.constant 0 : index
    %c0_20 = arith.constant 0 : index
    %47 = vector.load %arg6[%c0_18, %c0_19, %c0_20] : memref<1x32x484xbf16, #tpu.memory_space<vmem>>, vector<1x32x484xbf16>
    %48 = vector.shape_cast %47 : vector<1x32x484xbf16> to vector<32x484xbf16>
    %49 = vector.extract_strided_slice %48 {offsets = [0, 0], sizes = [32, 400], strides = [1, 1]} : vector<32x484xbf16> to vector<32x400xbf16>
    %50 = vector.extract_strided_slice %48 {offsets = [0, 1], sizes = [32, 400], strides = [1, 1]} : vector<32x484xbf16> to vector<32x400xbf16>
    %51 = vector.extract_strided_slice %48 {offsets = [0, 2], sizes = [32, 400], strides = [1, 1]} : vector<32x484xbf16> to vector<32x400xbf16>
    %52 = vector.extract_strided_slice %48 {offsets = [0, 3], sizes = [32, 400], strides = [1, 1]} : vector<32x484xbf16> to vector<32x400xbf16>
    %53 = vector.extract_strided_slice %48 {offsets = [0, 4], sizes = [32, 400], strides = [1, 1]} : vector<32x484xbf16> to vector<32x400xbf16>
    %54 = vector.extract_strided_slice %48 {offsets = [0, 20], sizes = [32, 400], strides = [1, 1]} : vector<32x484xbf16> to vector<32x400xbf16>
    %55 = vector.extract_strided_slice %48 {offsets = [0, 21], sizes = [32, 400], strides = [1, 1]} : vector<32x484xbf16> to vector<32x400xbf16>
    %56 = vector.extract_strided_slice %48 {offsets = [0, 22], sizes = [32, 400], strides = [1, 1]} : vector<32x484xbf16> to vector<32x400xbf16>
    %57 = vector.extract_strided_slice %48 {offsets = [0, 23], sizes = [32, 400], strides = [1, 1]} : vector<32x484xbf16> to vector<32x400xbf16>
    %58 = vector.extract_strided_slice %48 {offsets = [0, 24], sizes = [32, 400], strides = [1, 1]} : vector<32x484xbf16> to vector<32x400xbf16>
    %59 = vector.extract_strided_slice %48 {offsets = [0, 40], sizes = [32, 400], strides = [1, 1]} : vector<32x484xbf16> to vector<32x400xbf16>
    %60 = vector.extract_strided_slice %48 {offsets = [0, 41], sizes = [32, 400], strides = [1, 1]} : vector<32x484xbf16> to vector<32x400xbf16>
    %61 = vector.extract_strided_slice %48 {offsets = [0, 42], sizes = [32, 400], strides = [1, 1]} : vector<32x484xbf16> to vector<32x400xbf16>
    %62 = vector.extract_strided_slice %48 {offsets = [0, 43], sizes = [32, 400], strides = [1, 1]} : vector<32x484xbf16> to vector<32x400xbf16>
    %63 = vector.extract_strided_slice %48 {offsets = [0, 44], sizes = [32, 400], strides = [1, 1]} : vector<32x484xbf16> to vector<32x400xbf16>
    %64 = vector.extract_strided_slice %48 {offsets = [0, 60], sizes = [32, 400], strides = [1, 1]} : vector<32x484xbf16> to vector<32x400xbf16>
    %65 = vector.extract_strided_slice %48 {offsets = [0, 61], sizes = [32, 400], strides = [1, 1]} : vector<32x484xbf16> to vector<32x400xbf16>
    %66 = vector.extract_strided_slice %48 {offsets = [0, 62], sizes = [32, 400], strides = [1, 1]} : vector<32x484xbf16> to vector<32x400xbf16>
    %67 = vector.extract_strided_slice %48 {offsets = [0, 63], sizes = [32, 400], strides = [1, 1]} : vector<32x484xbf16> to vector<32x400xbf16>
    %68 = vector.extract_strided_slice %48 {offsets = [0, 64], sizes = [32, 400], strides = [1, 1]} : vector<32x484xbf16> to vector<32x400xbf16>
    %69 = vector.extract_strided_slice %48 {offsets = [0, 80], sizes = [32, 400], strides = [1, 1]} : vector<32x484xbf16> to vector<32x400xbf16>
    %70 = vector.extract_strided_slice %48 {offsets = [0, 81], sizes = [32, 400], strides = [1, 1]} : vector<32x484xbf16> to vector<32x400xbf16>
    %71 = vector.extract_strided_slice %48 {offsets = [0, 82], sizes = [32, 400], strides = [1, 1]} : vector<32x484xbf16> to vector<32x400xbf16>
    %72 = vector.extract_strided_slice %48 {offsets = [0, 83], sizes = [32, 400], strides = [1, 1]} : vector<32x484xbf16> to vector<32x400xbf16>
    %73 = vector.extract_strided_slice %48 {offsets = [0, 84], sizes = [32, 400], strides = [1, 1]} : vector<32x484xbf16> to vector<32x400xbf16>
    %74 = tpu.concatenate %49, %50, %51, %52, %53, %54, %55, %56, %57, %58, %59, %60, %61, %62, %63, %64 in 0 : vector<32x400xbf16>, vector<32x400xbf16>, vector<32x400xbf16>, vector<32x400xbf16>, vector<32x400xbf16>, vector<32x400xbf16>, vector<32x400xbf16>, vector<32x400xbf16>, vector<32x400xbf16>, vector<32x400xbf16>, vector<32x400xbf16>, vector<32x400xbf16>, vector<32x400xbf16>, vector<32x400xbf16>, vector<32x400xbf16>, vector<32x400xbf16> -> vector<512x400xbf16>
    %75 = tpu.concatenate %65, %66, %67, %68, %69, %70, %71, %72, %73 in 0 : vector<32x400xbf16>, vector<32x400xbf16>, vector<32x400xbf16>, vector<32x400xbf16>, vector<32x400xbf16>, vector<32x400xbf16>, vector<32x400xbf16>, vector<32x400xbf16>, vector<32x400xbf16> -> vector<288x400xbf16>
    %76 = tpu.concatenate %74, %75 in 0 : vector<512x400xbf16>, vector<288x400xbf16> -> vector<800x400xbf16>
    %c1 = arith.constant 1 : index
    %c0_21 = arith.constant 0 : index
    %c0_22 = arith.constant 0 : index
    %77 = vector.load %arg2[%c1, %c0_21, %c0_22] : memref<8x32x800xbf16, #tpu.memory_space<vmem>>, vector<1x32x800xbf16>
    %78 = vector.shape_cast %77 : vector<1x32x800xbf16> to vector<32x800xbf16>
    %cst_23 = arith.constant dense<0.000000e+00> : vector<32x400xf32>
    %79 = tpu.matmul %78, %76, %cst_23 {dimension_numbers = #tpu.dot_dimension_numbers<[1], [0], [0], [1], [0, 0, 1, 1], [], []>} : vector<32x800xbf16>, vector<800x400xbf16>, vector<32x400xf32> -> vector<32x400xf32>
    %c1_24 = arith.constant 1 : index
    %c0_25 = arith.constant 0 : index
    %c0_26 = arith.constant 0 : index
    %80 = vector.load %arg3[%c1_24, %c0_25, %c0_26] : memref<8x32x1xf32, #tpu.memory_space<vmem>>, vector<1x32x1xf32>
    %81 = vector.shape_cast %80 : vector<1x32x1xf32> to vector<32x1xf32>
    %82 = vector.broadcast %81 : vector<32x1xf32> to vector<32x400xf32>
    %83 = arith.addf %79, %82 : vector<32x400xf32>
    %84 = math.tanh %83 : vector<32x400xf32>
    %85 = vector.broadcast %2 : vector<1x400xf32> to vector<32x400xf32>
    %86 = arith.mulf %84, %85 : vector<32x400xf32>
    %87 = arith.truncf %86 : vector<32x400xf32> to vector<32x400xbf16>
    %c0_27 = arith.constant 0 : index
    %c0_28 = arith.constant 0 : index
    %c42_29 = arith.constant 42 : index
    %88 = vector.load %arg6[%c0_27, %c0_28, %c42_29] : memref<1x32x484xbf16, #tpu.memory_space<vmem>>, vector<1x32x400xbf16>
    %89 = vector.shape_cast %88 : vector<1x32x400xbf16> to vector<32x400xbf16>
    %90 = vector.shape_cast %87 : vector<32x400xbf16> to vector<1x32x400xbf16>
    tpu.vector_store %arg6[%c0_27, %c0_28, %c42_29], %90 {strides = array<i32>} : memref<1x32x484xbf16, #tpu.memory_space<vmem>>, vector<1x32x400xbf16>,
    %c0_30 = arith.constant 0 : index
    %c0_31 = arith.constant 0 : index
    %c0_32 = arith.constant 0 : index
    %91 = vector.load %arg6[%c0_30, %c0_31, %c0_32] : memref<1x32x484xbf16, #tpu.memory_space<vmem>>, vector<1x32x484xbf16>
    %92 = vector.shape_cast %91 : vector<1x32x484xbf16> to vector<32x484xbf16>
    %93 = vector.extract_strided_slice %92 {offsets = [0, 0], sizes = [32, 400], strides = [1, 1]} : vector<32x484xbf16> to vector<32x400xbf16>
    %94 = vector.extract_strided_slice %92 {offsets = [0, 1], sizes = [32, 400], strides = [1, 1]} : vector<32x484xbf16> to vector<32x400xbf16>
    %95 = vector.extract_strided_slice %92 {offsets = [0, 2], sizes = [32, 400], strides = [1, 1]} : vector<32x484xbf16> to vector<32x400xbf16>
    %96 = vector.extract_strided_slice %92 {offsets = [0, 3], sizes = [32, 400], strides = [1, 1]} : vector<32x484xbf16> to vector<32x400xbf16>
    %97 = vector.extract_strided_slice %92 {offsets = [0, 4], sizes = [32, 400], strides = [1, 1]} : vector<32x484xbf16> to vector<32x400xbf16>
    %98 = vector.extract_strided_slice %92 {offsets = [0, 20], sizes = [32, 400], strides = [1, 1]} : vector<32x484xbf16> to vector<32x400xbf16>
    %99 = vector.extract_strided_slice %92 {offsets = [0, 21], sizes = [32, 400], strides = [1, 1]} : vector<32x484xbf16> to vector<32x400xbf16>
    %100 = vector.extract_strided_slice %92 {offsets = [0, 22], sizes = [32, 400], strides = [1, 1]} : vector<32x484xbf16> to vector<32x400xbf16>
    %101 = vector.extract_strided_slice %92 {offsets = [0, 23], sizes = [32, 400], strides = [1, 1]} : vector<32x484xbf16> to vector<32x400xbf16>
    %102 = vector.extract_strided_slice %92 {offsets = [0, 24], sizes = [32, 400], strides = [1, 1]} : vector<32x484xbf16> to vector<32x400xbf16>
    %103 = vector.extract_strided_slice %92 {offsets = [0, 40], sizes = [32, 400], strides = [1, 1]} : vector<32x484xbf16> to vector<32x400xbf16>
    %104 = vector.extract_strided_slice %92 {offsets = [0, 41], sizes = [32, 400], strides = [1, 1]} : vector<32x484xbf16> to vector<32x400xbf16>
    %105 = vector.extract_strided_slice %92 {offsets = [0, 42], sizes = [32, 400], strides = [1, 1]} : vector<32x484xbf16> to vector<32x400xbf16>
    %106 = vector.extract_strided_slice %92 {offsets = [0, 43], sizes = [32, 400], strides = [1, 1]} : vector<32x484xbf16> to vector<32x400xbf16>
    %107 = vector.extract_strided_slice %92 {offsets = [0, 44], sizes = [32, 400], strides = [1, 1]} : vector<32x484xbf16> to vector<32x400xbf16>
    %108 = vector.extract_strided_slice %92 {offsets = [0, 60], sizes = [32, 400], strides = [1, 1]} : vector<32x484xbf16> to vector<32x400xbf16>
    %109 = vector.extract_strided_slice %92 {offsets = [0, 61], sizes = [32, 400], strides = [1, 1]} : vector<32x484xbf16> to vector<32x400xbf16>
    %110 = vector.extract_strided_slice %92 {offsets = [0, 62], sizes = [32, 400], strides = [1, 1]} : vector<32x484xbf16> to vector<32x400xbf16>
    %111 = vector.extract_strided_slice %92 {offsets = [0, 63], sizes = [32, 400], strides = [1, 1]} : vector<32x484xbf16> to vector<32x400xbf16>
    %112 = vector.extract_strided_slice %92 {offsets = [0, 64], sizes = [32, 400], strides = [1, 1]} : vector<32x484xbf16> to vector<32x400xbf16>
    %113 = vector.extract_strided_slice %92 {offsets = [0, 80], sizes = [32, 400], strides = [1, 1]} : vector<32x484xbf16> to vector<32x400xbf16>
    %114 = vector.extract_strided_slice %92 {offsets = [0, 81], sizes = [32, 400], strides = [1, 1]} : vector<32x484xbf16> to vector<32x400xbf16>
    %115 = vector.extract_strided_slice %92 {offsets = [0, 82], sizes = [32, 400], strides = [1, 1]} : vector<32x484xbf16> to vector<32x400xbf16>
    %116 = vector.extract_strided_slice %92 {offsets = [0, 83], sizes = [32, 400], strides = [1, 1]} : vector<32x484xbf16> to vector<32x400xbf16>
    %117 = vector.extract_strided_slice %92 {offsets = [0, 84], sizes = [32, 400], strides = [1, 1]} : vector<32x484xbf16> to vector<32x400xbf16>
    %118 = tpu.concatenate %93, %94, %95, %96, %97, %98, %99, %100, %101, %102, %103, %104, %105, %106, %107, %108 in 0 : vector<32x400xbf16>, vector<32x400xbf16>, vector<32x400xbf16>, vector<32x400xbf16>, vector<32x400xbf16>, vector<32x400xbf16>, vector<32x400xbf16>, vector<32x400xbf16>, vector<32x400xbf16>, vector<32x400xbf16>, vector<32x400xbf16>, vector<32x400xbf16>, vector<32x400xbf16>, vector<32x400xbf16>, vector<32x400xbf16>, vector<32x400xbf16> -> vector<512x400xbf16>
    %119 = tpu.concatenate %109, %110, %111, %112, %113, %114, %115, %116, %117 in 0 : vector<32x400xbf16>, vector<32x400xbf16>, vector<32x400xbf16>, vector<32x400xbf16>, vector<32x400xbf16>, vector<32x400xbf16>, vector<32x400xbf16>, vector<32x400xbf16>, vector<32x400xbf16> -> vector<288x400xbf16>
    %120 = tpu.concatenate %118, %119 in 0 : vector<512x400xbf16>, vector<288x400xbf16> -> vector<800x400xbf16>
    %c2 = arith.constant 2 : index
    %c0_33 = arith.constant 0 : index
    %c0_34 = arith.constant 0 : index
    %121 = vector.load %arg2[%c2, %c0_33, %c0_34] : memref<8x32x800xbf16, #tpu.memory_space<vmem>>, vector<1x32x800xbf16>
    %122 = vector.shape_cast %121 : vector<1x32x800xbf16> to vector<32x800xbf16>
    %cst_35 = arith.constant dense<0.000000e+00> : vector<32x400xf32>
    %123 = tpu.matmul %122, %120, %cst_35 {dimension_numbers = #tpu.dot_dimension_numbers<[1], [0], [0], [1], [0, 0, 1, 1], [], []>} : vector<32x800xbf16>, vector<800x400xbf16>, vector<32x400xf32> -> vector<32x400xf32>
    %c2_36 = arith.constant 2 : index
    %c0_37 = arith.constant 0 : index
    %c0_38 = arith.constant 0 : index
    %124 = vector.load %arg3[%c2_36, %c0_37, %c0_38] : memref<8x32x1xf32, #tpu.memory_space<vmem>>, vector<1x32x1xf32>
    %125 = vector.shape_cast %124 : vector<1x32x1xf32> to vector<32x1xf32>
    %126 = vector.broadcast %125 : vector<32x1xf32> to vector<32x400xf32>
    %127 = arith.addf %123, %126 : vector<32x400xf32>
    %128 = math.tanh %127 : vector<32x400xf32>
    %129 = vector.broadcast %2 : vector<1x400xf32> to vector<32x400xf32>
    %130 = arith.mulf %128, %129 : vector<32x400xf32>
    %131 = arith.truncf %130 : vector<32x400xf32> to vector<32x400xbf16>
    %c0_39 = arith.constant 0 : index
    %c0_40 = arith.constant 0 : index
    %c42_41 = arith.constant 42 : index
    %132 = vector.load %arg6[%c0_39, %c0_40, %c42_41] : memref<1x32x484xbf16, #tpu.memory_space<vmem>>, vector<1x32x400xbf16>
    %133 = vector.shape_cast %132 : vector<1x32x400xbf16> to vector<32x400xbf16>
    %134 = vector.shape_cast %131 : vector<32x400xbf16> to vector<1x32x400xbf16>
    tpu.vector_store %arg6[%c0_39, %c0_40, %c42_41], %134 {strides = array<i32>} : memref<1x32x484xbf16, #tpu.memory_space<vmem>>, vector<1x32x400xbf16>,
    %c0_42 = arith.constant 0 : index
    %c0_43 = arith.constant 0 : index
    %c0_44 = arith.constant 0 : index
    %135 = vector.load %arg6[%c0_42, %c0_43, %c0_44] : memref<1x32x484xbf16, #tpu.memory_space<vmem>>, vector<1x32x484xbf16>
    %136 = vector.shape_cast %135 : vector<1x32x484xbf16> to vector<32x484xbf16>
    %137 = vector.extract_strided_slice %136 {offsets = [0, 0], sizes = [32, 400], strides = [1, 1]} : vector<32x484xbf16> to vector<32x400xbf16>
    %138 = vector.extract_strided_slice %136 {offsets = [0, 1], sizes = [32, 400], strides = [1, 1]} : vector<32x484xbf16> to vector<32x400xbf16>
    %139 = vector.extract_strided_slice %136 {offsets = [0, 2], sizes = [32, 400], strides = [1, 1]} : vector<32x484xbf16> to vector<32x400xbf16>
    %140 = vector.extract_strided_slice %136 {offsets = [0, 3], sizes = [32, 400], strides = [1, 1]} : vector<32x484xbf16> to vector<32x400xbf16>
    %141 = vector.extract_strided_slice %136 {offsets = [0, 4], sizes = [32, 400], strides = [1, 1]} : vector<32x484xbf16> to vector<32x400xbf16>
    %142 = vector.extract_strided_slice %136 {offsets = [0, 20], sizes = [32, 400], strides = [1, 1]} : vector<32x484xbf16> to vector<32x400xbf16>
    %143 = vector.extract_strided_slice %136 {offsets = [0, 21], sizes = [32, 400], strides = [1, 1]} : vector<32x484xbf16> to vector<32x400xbf16>
    %144 = vector.extract_strided_slice %136 {offsets = [0, 22], sizes = [32, 400], strides = [1, 1]} : vector<32x484xbf16> to vector<32x400xbf16>
    %145 = vector.extract_strided_slice %136 {offsets = [0, 23], sizes = [32, 400], strides = [1, 1]} : vector<32x484xbf16> to vector<32x400xbf16>
    %146 = vector.extract_strided_slice %136 {offsets = [0, 24], sizes = [32, 400], strides = [1, 1]} : vector<32x484xbf16> to vector<32x400xbf16>
    %147 = vector.extract_strided_slice %136 {offsets = [0, 40], sizes = [32, 400], strides = [1, 1]} : vector<32x484xbf16> to vector<32x400xbf16>
    %148 = vector.extract_strided_slice %136 {offsets = [0, 41], sizes = [32, 400], strides = [1, 1]} : vector<32x484xbf16> to vector<32x400xbf16>
    %149 = vector.extract_strided_slice %136 {offsets = [0, 42], sizes = [32, 400], strides = [1, 1]} : vector<32x484xbf16> to vector<32x400xbf16>
    %150 = vector.extract_strided_slice %136 {offsets = [0, 43], sizes = [32, 400], strides = [1, 1]} : vector<32x484xbf16> to vector<32x400xbf16>
    %151 = vector.extract_strided_slice %136 {offsets = [0, 44], sizes = [32, 400], strides = [1, 1]} : vector<32x484xbf16> to vector<32x400xbf16>
    %152 = vector.extract_strided_slice %136 {offsets = [0, 60], sizes = [32, 400], strides = [1, 1]} : vector<32x484xbf16> to vector<32x400xbf16>
    %153 = vector.extract_strided_slice %136 {offsets = [0, 61], sizes = [32, 400], strides = [1, 1]} : vector<32x484xbf16> to vector<32x400xbf16>
    %154 = vector.extract_strided_slice %136 {offsets = [0, 62], sizes = [32, 400], strides = [1, 1]} : vector<32x484xbf16> to vector<32x400xbf16>
    %155 = vector.extract_strided_slice %136 {offsets = [0, 63], sizes = [32, 400], strides = [1, 1]} : vector<32x484xbf16> to vector<32x400xbf16>
    %156 = vector.extract_strided_slice %136 {offsets = [0, 64], sizes = [32, 400], strides = [1, 1]} : vector<32x484xbf16> to vector<32x400xbf16>
    %157 = vector.extract_strided_slice %136 {offsets = [0, 80], sizes = [32, 400], strides = [1, 1]} : vector<32x484xbf16> to vector<32x400xbf16>
    %158 = vector.extract_strided_slice %136 {offsets = [0, 81], sizes = [32, 400], strides = [1, 1]} : vector<32x484xbf16> to vector<32x400xbf16>
    %159 = vector.extract_strided_slice %136 {offsets = [0, 82], sizes = [32, 400], strides = [1, 1]} : vector<32x484xbf16> to vector<32x400xbf16>
    %160 = vector.extract_strided_slice %136 {offsets = [0, 83], sizes = [32, 400], strides = [1, 1]} : vector<32x484xbf16> to vector<32x400xbf16>
    %161 = vector.extract_strided_slice %136 {offsets = [0, 84], sizes = [32, 400], strides = [1, 1]} : vector<32x484xbf16> to vector<32x400xbf16>
    %162 = tpu.concatenate %137, %138, %139, %140, %141, %142, %143, %144, %145, %146, %147, %148, %149, %150, %151, %152 in 0 : vector<32x400xbf16>, vector<32x400xbf16>, vector<32x400xbf16>, vector<32x400xbf16>, vector<32x400xbf16>, vector<32x400xbf16>, vector<32x400xbf16>, vector<32x400xbf16>, vector<32x400xbf16>, vector<32x400xbf16>, vector<32x400xbf16>, vector<32x400xbf16>, vector<32x400xbf16>, vector<32x400xbf16>, vector<32x400xbf16>, vector<32x400xbf16> -> vector<512x400xbf16>
    %163 = tpu.concatenate %153, %154, %155, %156, %157, %158, %159, %160, %161 in 0 : vector<32x400xbf16>, vector<32x400xbf16>, vector<32x400xbf16>, vector<32x400xbf16>, vector<32x400xbf16>, vector<32x400xbf16>, vector<32x400xbf16>, vector<32x400xbf16>, vector<32x400xbf16> -> vector<288x400xbf16>
    %164 = tpu.concatenate %162, %163 in 0 : vector<512x400xbf16>, vector<288x400xbf16> -> vector<800x400xbf16>
    %c3 = arith.constant 3 : index
    %c0_45 = arith.constant 0 : index
    %c0_46 = arith.constant 0 : index
    %165 = vector.load %arg2[%c3, %c0_45, %c0_46] : memref<8x32x800xbf16, #tpu.memory_space<vmem>>, vector<1x32x800xbf16>
    %166 = vector.shape_cast %165 : vector<1x32x800xbf16> to vector<32x800xbf16>
    %cst_47 = arith.constant dense<0.000000e+00> : vector<32x400xf32>
    %167 = tpu.matmul %166, %164, %cst_47 {dimension_numbers = #tpu.dot_dimension_numbers<[1], [0], [0], [1], [0, 0, 1, 1], [], []>} : vector<32x800xbf16>, vector<800x400xbf16>, vector<32x400xf32> -> vector<32x400xf32>
    %c3_48 = arith.constant 3 : index
    %c0_49 = arith.constant 0 : index
    %c0_50 = arith.constant 0 : index
    %168 = vector.load %arg3[%c3_48, %c0_49, %c0_50] : memref<8x32x1xf32, #tpu.memory_space<vmem>>, vector<1x32x1xf32>
    %169 = vector.shape_cast %168 : vector<1x32x1xf32> to vector<32x1xf32>
    %170 = vector.broadcast %169 : vector<32x1xf32> to vector<32x400xf32>
    %171 = arith.addf %167, %170 : vector<32x400xf32>
    %172 = math.tanh %171 : vector<32x400xf32>
    %173 = vector.broadcast %2 : vector<1x400xf32> to vector<32x400xf32>
    %174 = arith.mulf %172, %173 : vector<32x400xf32>
    %175 = arith.truncf %174 : vector<32x400xf32> to vector<32x400xbf16>
    %c0_51 = arith.constant 0 : index
    %c0_52 = arith.constant 0 : index
    %c42_53 = arith.constant 42 : index
    %176 = vector.load %arg6[%c0_51, %c0_52, %c42_53] : memref<1x32x484xbf16, #tpu.memory_space<vmem>>, vector<1x32x400xbf16>
    %177 = vector.shape_cast %176 : vector<1x32x400xbf16> to vector<32x400xbf16>
    %178 = vector.shape_cast %175 : vector<32x400xbf16> to vector<1x32x400xbf16>
    tpu.vector_store %arg6[%c0_51, %c0_52, %c42_53], %178 {strides = array<i32>} : memref<1x32x484xbf16, #tpu.memory_space<vmem>>, vector<1x32x400xbf16>,
    %c0_54 = arith.constant 0 : index
    %c0_55 = arith.constant 0 : index
    %c0_56 = arith.constant 0 : index
    %179 = vector.load %arg6[%c0_54, %c0_55, %c0_56] : memref<1x32x484xbf16, #tpu.memory_space<vmem>>, vector<1x32x484xbf16>
    %180 = vector.shape_cast %179 : vector<1x32x484xbf16> to vector<32x484xbf16>
    %181 = vector.extract_strided_slice %180 {offsets = [0, 0], sizes = [32, 400], strides = [1, 1]} : vector<32x484xbf16> to vector<32x400xbf16>
    %182 = vector.extract_strided_slice %180 {offsets = [0, 1], sizes = [32, 400], strides = [1, 1]} : vector<32x484xbf16> to vector<32x400xbf16>
    %183 = vector.extract_strided_slice %180 {offsets = [0, 2], sizes = [32, 400], strides = [1, 1]} : vector<32x484xbf16> to vector<32x400xbf16>
    %184 = vector.extract_strided_slice %180 {offsets = [0, 3], sizes = [32, 400], strides = [1, 1]} : vector<32x484xbf16> to vector<32x400xbf16>
    %185 = vector.extract_strided_slice %180 {offsets = [0, 4], sizes = [32, 400], strides = [1, 1]} : vector<32x484xbf16> to vector<32x400xbf16>
    %186 = vector.extract_strided_slice %180 {offsets = [0, 20], sizes = [32, 400], strides = [1, 1]} : vector<32x484xbf16> to vector<32x400xbf16>
    %187 = vector.extract_strided_slice %180 {offsets = [0, 21], sizes = [32, 400], strides = [1, 1]} : vector<32x484xbf16> to vector<32x400xbf16>
    %188 = vector.extract_strided_slice %180 {offsets = [0, 22], sizes = [32, 400], strides = [1, 1]} : vector<32x484xbf16> to vector<32x400xbf16>
    %189 = vector.extract_strided_slice %180 {offsets = [0, 23], sizes = [32, 400], strides = [1, 1]} : vector<32x484xbf16> to vector<32x400xbf16>
    %190 = vector.extract_strided_slice %180 {offsets = [0, 24], sizes = [32, 400], strides = [1, 1]} : vector<32x484xbf16> to vector<32x400xbf16>
    %191 = vector.extract_strided_slice %180 {offsets = [0, 40], sizes = [32, 400], strides = [1, 1]} : vector<32x484xbf16> to vector<32x400xbf16>
    %192 = vector.extract_strided_slice %180 {offsets = [0, 41], sizes = [32, 400], strides = [1, 1]} : vector<32x484xbf16> to vector<32x400xbf16>
    %193 = vector.extract_strided_slice %180 {offsets = [0, 42], sizes = [32, 400], strides = [1, 1]} : vector<32x484xbf16> to vector<32x400xbf16>
    %194 = vector.extract_strided_slice %180 {offsets = [0, 43], sizes = [32, 400], strides = [1, 1]} : vector<32x484xbf16> to vector<32x400xbf16>
    %195 = vector.extract_strided_slice %180 {offsets = [0, 44], sizes = [32, 400], strides = [1, 1]} : vector<32x484xbf16> to vector<32x400xbf16>
    %196 = vector.extract_strided_slice %180 {offsets = [0, 60], sizes = [32, 400], strides = [1, 1]} : vector<32x484xbf16> to vector<32x400xbf16>
    %197 = vector.extract_strided_slice %180 {offsets = [0, 61], sizes = [32, 400], strides = [1, 1]} : vector<32x484xbf16> to vector<32x400xbf16>
    %198 = vector.extract_strided_slice %180 {offsets = [0, 62], sizes = [32, 400], strides = [1, 1]} : vector<32x484xbf16> to vector<32x400xbf16>
    %199 = vector.extract_strided_slice %180 {offsets = [0, 63], sizes = [32, 400], strides = [1, 1]} : vector<32x484xbf16> to vector<32x400xbf16>
    %200 = vector.extract_strided_slice %180 {offsets = [0, 64], sizes = [32, 400], strides = [1, 1]} : vector<32x484xbf16> to vector<32x400xbf16>
    %201 = vector.extract_strided_slice %180 {offsets = [0, 80], sizes = [32, 400], strides = [1, 1]} : vector<32x484xbf16> to vector<32x400xbf16>
    %202 = vector.extract_strided_slice %180 {offsets = [0, 81], sizes = [32, 400], strides = [1, 1]} : vector<32x484xbf16> to vector<32x400xbf16>
    %203 = vector.extract_strided_slice %180 {offsets = [0, 82], sizes = [32, 400], strides = [1, 1]} : vector<32x484xbf16> to vector<32x400xbf16>
    %204 = vector.extract_strided_slice %180 {offsets = [0, 83], sizes = [32, 400], strides = [1, 1]} : vector<32x484xbf16> to vector<32x400xbf16>
    %205 = vector.extract_strided_slice %180 {offsets = [0, 84], sizes = [32, 400], strides = [1, 1]} : vector<32x484xbf16> to vector<32x400xbf16>
    %206 = tpu.concatenate %181, %182, %183, %184, %185, %186, %187, %188, %189, %190, %191, %192, %193, %194, %195, %196 in 0 : vector<32x400xbf16>, vector<32x400xbf16>, vector<32x400xbf16>, vector<32x400xbf16>, vector<32x400xbf16>, vector<32x400xbf16>, vector<32x400xbf16>, vector<32x400xbf16>, vector<32x400xbf16>, vector<32x400xbf16>, vector<32x400xbf16>, vector<32x400xbf16>, vector<32x400xbf16>, vector<32x400xbf16>, vector<32x400xbf16>, vector<32x400xbf16> -> vector<512x400xbf16>
    %207 = tpu.concatenate %197, %198, %199, %200, %201, %202, %203, %204, %205 in 0 : vector<32x400xbf16>, vector<32x400xbf16>, vector<32x400xbf16>, vector<32x400xbf16>, vector<32x400xbf16>, vector<32x400xbf16>, vector<32x400xbf16>, vector<32x400xbf16>, vector<32x400xbf16> -> vector<288x400xbf16>
    %208 = tpu.concatenate %206, %207 in 0 : vector<512x400xbf16>, vector<288x400xbf16> -> vector<800x400xbf16>
    %c4 = arith.constant 4 : index
    %c0_57 = arith.constant 0 : index
    %c0_58 = arith.constant 0 : index
    %209 = vector.load %arg2[%c4, %c0_57, %c0_58] : memref<8x32x800xbf16, #tpu.memory_space<vmem>>, vector<1x32x800xbf16>
    %210 = vector.shape_cast %209 : vector<1x32x800xbf16> to vector<32x800xbf16>
    %cst_59 = arith.constant dense<0.000000e+00> : vector<32x400xf32>
    %211 = tpu.matmul %210, %208, %cst_59 {dimension_numbers = #tpu.dot_dimension_numbers<[1], [0], [0], [1], [0, 0, 1, 1], [], []>} : vector<32x800xbf16>, vector<800x400xbf16>, vector<32x400xf32> -> vector<32x400xf32>
    %c4_60 = arith.constant 4 : index
    %c0_61 = arith.constant 0 : index
    %c0_62 = arith.constant 0 : index
    %212 = vector.load %arg3[%c4_60, %c0_61, %c0_62] : memref<8x32x1xf32, #tpu.memory_space<vmem>>, vector<1x32x1xf32>
    %213 = vector.shape_cast %212 : vector<1x32x1xf32> to vector<32x1xf32>
    %214 = vector.broadcast %213 : vector<32x1xf32> to vector<32x400xf32>
    %215 = arith.addf %211, %214 : vector<32x400xf32>
    %216 = math.tanh %215 : vector<32x400xf32>
    %217 = vector.broadcast %2 : vector<1x400xf32> to vector<32x400xf32>
    %218 = arith.mulf %216, %217 : vector<32x400xf32>
    %219 = arith.truncf %218 : vector<32x400xf32> to vector<32x400xbf16>
    %c0_63 = arith.constant 0 : index
    %c0_64 = arith.constant 0 : index
    %c42_65 = arith.constant 42 : index
    %220 = vector.load %arg6[%c0_63, %c0_64, %c42_65] : memref<1x32x484xbf16, #tpu.memory_space<vmem>>, vector<1x32x400xbf16>
    %221 = vector.shape_cast %220 : vector<1x32x400xbf16> to vector<32x400xbf16>
    %222 = vector.shape_cast %219 : vector<32x400xbf16> to vector<1x32x400xbf16>
    tpu.vector_store %arg6[%c0_63, %c0_64, %c42_65], %222 {strides = array<i32>} : memref<1x32x484xbf16, #tpu.memory_space<vmem>>, vector<1x32x400xbf16>,
    %c0_66 = arith.constant 0 : index
    %c0_67 = arith.constant 0 : index
    %c0_68 = arith.constant 0 : index
    %223 = vector.load %arg6[%c0_66, %c0_67, %c0_68] : memref<1x32x484xbf16, #tpu.memory_space<vmem>>, vector<1x32x484xbf16>
    %224 = vector.shape_cast %223 : vector<1x32x484xbf16> to vector<32x484xbf16>
    %225 = vector.extract_strided_slice %224 {offsets = [0, 0], sizes = [32, 400], strides = [1, 1]} : vector<32x484xbf16> to vector<32x400xbf16>
    %226 = vector.extract_strided_slice %224 {offsets = [0, 1], sizes = [32, 400], strides = [1, 1]} : vector<32x484xbf16> to vector<32x400xbf16>
    %227 = vector.extract_strided_slice %224 {offsets = [0, 2], sizes = [32, 400], strides = [1, 1]} : vector<32x484xbf16> to vector<32x400xbf16>
    %228 = vector.extract_strided_slice %224 {offsets = [0, 3], sizes = [32, 400], strides = [1, 1]} : vector<32x484xbf16> to vector<32x400xbf16>
    %229 = vector.extract_strided_slice %224 {offsets = [0, 4], sizes = [32, 400], strides = [1, 1]} : vector<32x484xbf16> to vector<32x400xbf16>
    %230 = vector.extract_strided_slice %224 {offsets = [0, 20], sizes = [32, 400], strides = [1, 1]} : vector<32x484xbf16> to vector<32x400xbf16>
    %231 = vector.extract_strided_slice %224 {offsets = [0, 21], sizes = [32, 400], strides = [1, 1]} : vector<32x484xbf16> to vector<32x400xbf16>
    %232 = vector.extract_strided_slice %224 {offsets = [0, 22], sizes = [32, 400], strides = [1, 1]} : vector<32x484xbf16> to vector<32x400xbf16>
    %233 = vector.extract_strided_slice %224 {offsets = [0, 23], sizes = [32, 400], strides = [1, 1]} : vector<32x484xbf16> to vector<32x400xbf16>
    %234 = vector.extract_strided_slice %224 {offsets = [0, 24], sizes = [32, 400], strides = [1, 1]} : vector<32x484xbf16> to vector<32x400xbf16>
    %235 = vector.extract_strided_slice %224 {offsets = [0, 40], sizes = [32, 400], strides = [1, 1]} : vector<32x484xbf16> to vector<32x400xbf16>
    %236 = vector.extract_strided_slice %224 {offsets = [0, 41], sizes = [32, 400], strides = [1, 1]} : vector<32x484xbf16> to vector<32x400xbf16>
    %237 = vector.extract_strided_slice %224 {offsets = [0, 42], sizes = [32, 400], strides = [1, 1]} : vector<32x484xbf16> to vector<32x400xbf16>
    %238 = vector.extract_strided_slice %224 {offsets = [0, 43], sizes = [32, 400], strides = [1, 1]} : vector<32x484xbf16> to vector<32x400xbf16>
    %239 = vector.extract_strided_slice %224 {offsets = [0, 44], sizes = [32, 400], strides = [1, 1]} : vector<32x484xbf16> to vector<32x400xbf16>
    %240 = vector.extract_strided_slice %224 {offsets = [0, 60], sizes = [32, 400], strides = [1, 1]} : vector<32x484xbf16> to vector<32x400xbf16>
    %241 = vector.extract_strided_slice %224 {offsets = [0, 61], sizes = [32, 400], strides = [1, 1]} : vector<32x484xbf16> to vector<32x400xbf16>
    %242 = vector.extract_strided_slice %224 {offsets = [0, 62], sizes = [32, 400], strides = [1, 1]} : vector<32x484xbf16> to vector<32x400xbf16>
    %243 = vector.extract_strided_slice %224 {offsets = [0, 63], sizes = [32, 400], strides = [1, 1]} : vector<32x484xbf16> to vector<32x400xbf16>
    %244 = vector.extract_strided_slice %224 {offsets = [0, 64], sizes = [32, 400], strides = [1, 1]} : vector<32x484xbf16> to vector<32x400xbf16>
    %245 = vector.extract_strided_slice %224 {offsets = [0, 80], sizes = [32, 400], strides = [1, 1]} : vector<32x484xbf16> to vector<32x400xbf16>
    %246 = vector.extract_strided_slice %224 {offsets = [0, 81], sizes = [32, 400], strides = [1, 1]} : vector<32x484xbf16> to vector<32x400xbf16>
    %247 = vector.extract_strided_slice %224 {offsets = [0, 82], sizes = [32, 400], strides = [1, 1]} : vector<32x484xbf16> to vector<32x400xbf16>
    %248 = vector.extract_strided_slice %224 {offsets = [0, 83], sizes = [32, 400], strides = [1, 1]} : vector<32x484xbf16> to vector<32x400xbf16>
    %249 = vector.extract_strided_slice %224 {offsets = [0, 84], sizes = [32, 400], strides = [1, 1]} : vector<32x484xbf16> to vector<32x400xbf16>
    %250 = tpu.concatenate %225, %226, %227, %228, %229, %230, %231, %232, %233, %234, %235, %236, %237, %238, %239, %240 in 0 : vector<32x400xbf16>, vector<32x400xbf16>, vector<32x400xbf16>, vector<32x400xbf16>, vector<32x400xbf16>, vector<32x400xbf16>, vector<32x400xbf16>, vector<32x400xbf16>, vector<32x400xbf16>, vector<32x400xbf16>, vector<32x400xbf16>, vector<32x400xbf16>, vector<32x400xbf16>, vector<32x400xbf16>, vector<32x400xbf16>, vector<32x400xbf16> -> vector<512x400xbf16>
    %251 = tpu.concatenate %241, %242, %243, %244, %245, %246, %247, %248, %249 in 0 : vector<32x400xbf16>, vector<32x400xbf16>, vector<32x400xbf16>, vector<32x400xbf16>, vector<32x400xbf16>, vector<32x400xbf16>, vector<32x400xbf16>, vector<32x400xbf16>, vector<32x400xbf16> -> vector<288x400xbf16>
    %252 = tpu.concatenate %250, %251 in 0 : vector<512x400xbf16>, vector<288x400xbf16> -> vector<800x400xbf16>
    %c5 = arith.constant 5 : index
    %c0_69 = arith.constant 0 : index
    %c0_70 = arith.constant 0 : index
    %253 = vector.load %arg2[%c5, %c0_69, %c0_70] : memref<8x32x800xbf16, #tpu.memory_space<vmem>>, vector<1x32x800xbf16>
    %254 = vector.shape_cast %253 : vector<1x32x800xbf16> to vector<32x800xbf16>
    %cst_71 = arith.constant dense<0.000000e+00> : vector<32x400xf32>
    %255 = tpu.matmul %254, %252, %cst_71 {dimension_numbers = #tpu.dot_dimension_numbers<[1], [0], [0], [1], [0, 0, 1, 1], [], []>} : vector<32x800xbf16>, vector<800x400xbf16>, vector<32x400xf32> -> vector<32x400xf32>
    %c5_72 = arith.constant 5 : index
    %c0_73 = arith.constant 0 : index
    %c0_74 = arith.constant 0 : index
    %256 = vector.load %arg3[%c5_72, %c0_73, %c0_74] : memref<8x32x1xf32, #tpu.memory_space<vmem>>, vector<1x32x1xf32>
    %257 = vector.shape_cast %256 : vector<1x32x1xf32> to vector<32x1xf32>
    %258 = vector.broadcast %257 : vector<32x1xf32> to vector<32x400xf32>
    %259 = arith.addf %255, %258 : vector<32x400xf32>
    %260 = math.tanh %259 : vector<32x400xf32>
    %261 = vector.broadcast %2 : vector<1x400xf32> to vector<32x400xf32>
    %262 = arith.mulf %260, %261 : vector<32x400xf32>
    %263 = arith.truncf %262 : vector<32x400xf32> to vector<32x400xbf16>
    %c0_75 = arith.constant 0 : index
    %c0_76 = arith.constant 0 : index
    %c42_77 = arith.constant 42 : index
    %264 = vector.load %arg6[%c0_75, %c0_76, %c42_77] : memref<1x32x484xbf16, #tpu.memory_space<vmem>>, vector<1x32x400xbf16>
    %265 = vector.shape_cast %264 : vector<1x32x400xbf16> to vector<32x400xbf16>
    %266 = vector.shape_cast %263 : vector<32x400xbf16> to vector<1x32x400xbf16>
    tpu.vector_store %arg6[%c0_75, %c0_76, %c42_77], %266 {strides = array<i32>} : memref<1x32x484xbf16, #tpu.memory_space<vmem>>, vector<1x32x400xbf16>,
    %c0_78 = arith.constant 0 : index
    %c0_79 = arith.constant 0 : index
    %c0_80 = arith.constant 0 : index
    %267 = vector.load %arg6[%c0_78, %c0_79, %c0_80] : memref<1x32x484xbf16, #tpu.memory_space<vmem>>, vector<1x32x484xbf16>
    %268 = vector.shape_cast %267 : vector<1x32x484xbf16> to vector<32x484xbf16>
    %269 = vector.extract_strided_slice %268 {offsets = [0, 0], sizes = [32, 400], strides = [1, 1]} : vector<32x484xbf16> to vector<32x400xbf16>
    %270 = vector.extract_strided_slice %268 {offsets = [0, 1], sizes = [32, 400], strides = [1, 1]} : vector<32x484xbf16> to vector<32x400xbf16>
    %271 = vector.extract_strided_slice %268 {offsets = [0, 2], sizes = [32, 400], strides = [1, 1]} : vector<32x484xbf16> to vector<32x400xbf16>
    %272 = vector.extract_strided_slice %268 {offsets = [0, 3], sizes = [32, 400], strides = [1, 1]} : vector<32x484xbf16> to vector<32x400xbf16>
    %273 = vector.extract_strided_slice %268 {offsets = [0, 4], sizes = [32, 400], strides = [1, 1]} : vector<32x484xbf16> to vector<32x400xbf16>
    %274 = vector.extract_strided_slice %268 {offsets = [0, 20], sizes = [32, 400], strides = [1, 1]} : vector<32x484xbf16> to vector<32x400xbf16>
    %275 = vector.extract_strided_slice %268 {offsets = [0, 21], sizes = [32, 400], strides = [1, 1]} : vector<32x484xbf16> to vector<32x400xbf16>
    %276 = vector.extract_strided_slice %268 {offsets = [0, 22], sizes = [32, 400], strides = [1, 1]} : vector<32x484xbf16> to vector<32x400xbf16>
    %277 = vector.extract_strided_slice %268 {offsets = [0, 23], sizes = [32, 400], strides = [1, 1]} : vector<32x484xbf16> to vector<32x400xbf16>
    %278 = vector.extract_strided_slice %268 {offsets = [0, 24], sizes = [32, 400], strides = [1, 1]} : vector<32x484xbf16> to vector<32x400xbf16>
    %279 = vector.extract_strided_slice %268 {offsets = [0, 40], sizes = [32, 400], strides = [1, 1]} : vector<32x484xbf16> to vector<32x400xbf16>
    %280 = vector.extract_strided_slice %268 {offsets = [0, 41], sizes = [32, 400], strides = [1, 1]} : vector<32x484xbf16> to vector<32x400xbf16>
    %281 = vector.extract_strided_slice %268 {offsets = [0, 42], sizes = [32, 400], strides = [1, 1]} : vector<32x484xbf16> to vector<32x400xbf16>
    %282 = vector.extract_strided_slice %268 {offsets = [0, 43], sizes = [32, 400], strides = [1, 1]} : vector<32x484xbf16> to vector<32x400xbf16>
    %283 = vector.extract_strided_slice %268 {offsets = [0, 44], sizes = [32, 400], strides = [1, 1]} : vector<32x484xbf16> to vector<32x400xbf16>
    %284 = vector.extract_strided_slice %268 {offsets = [0, 60], sizes = [32, 400], strides = [1, 1]} : vector<32x484xbf16> to vector<32x400xbf16>
    %285 = vector.extract_strided_slice %268 {offsets = [0, 61], sizes = [32, 400], strides = [1, 1]} : vector<32x484xbf16> to vector<32x400xbf16>
    %286 = vector.extract_strided_slice %268 {offsets = [0, 62], sizes = [32, 400], strides = [1, 1]} : vector<32x484xbf16> to vector<32x400xbf16>
    %287 = vector.extract_strided_slice %268 {offsets = [0, 63], sizes = [32, 400], strides = [1, 1]} : vector<32x484xbf16> to vector<32x400xbf16>
    %288 = vector.extract_strided_slice %268 {offsets = [0, 64], sizes = [32, 400], strides = [1, 1]} : vector<32x484xbf16> to vector<32x400xbf16>
    %289 = vector.extract_strided_slice %268 {offsets = [0, 80], sizes = [32, 400], strides = [1, 1]} : vector<32x484xbf16> to vector<32x400xbf16>
    %290 = vector.extract_strided_slice %268 {offsets = [0, 81], sizes = [32, 400], strides = [1, 1]} : vector<32x484xbf16> to vector<32x400xbf16>
    %291 = vector.extract_strided_slice %268 {offsets = [0, 82], sizes = [32, 400], strides = [1, 1]} : vector<32x484xbf16> to vector<32x400xbf16>
    %292 = vector.extract_strided_slice %268 {offsets = [0, 83], sizes = [32, 400], strides = [1, 1]} : vector<32x484xbf16> to vector<32x400xbf16>
    %293 = vector.extract_strided_slice %268 {offsets = [0, 84], sizes = [32, 400], strides = [1, 1]} : vector<32x484xbf16> to vector<32x400xbf16>
    %294 = tpu.concatenate %269, %270, %271, %272, %273, %274, %275, %276, %277, %278, %279, %280, %281, %282, %283, %284 in 0 : vector<32x400xbf16>, vector<32x400xbf16>, vector<32x400xbf16>, vector<32x400xbf16>, vector<32x400xbf16>, vector<32x400xbf16>, vector<32x400xbf16>, vector<32x400xbf16>, vector<32x400xbf16>, vector<32x400xbf16>, vector<32x400xbf16>, vector<32x400xbf16>, vector<32x400xbf16>, vector<32x400xbf16>, vector<32x400xbf16>, vector<32x400xbf16> -> vector<512x400xbf16>
    %295 = tpu.concatenate %285, %286, %287, %288, %289, %290, %291, %292, %293 in 0 : vector<32x400xbf16>, vector<32x400xbf16>, vector<32x400xbf16>, vector<32x400xbf16>, vector<32x400xbf16>, vector<32x400xbf16>, vector<32x400xbf16>, vector<32x400xbf16>, vector<32x400xbf16> -> vector<288x400xbf16>
    %296 = tpu.concatenate %294, %295 in 0 : vector<512x400xbf16>, vector<288x400xbf16> -> vector<800x400xbf16>
    %c6 = arith.constant 6 : index
    %c0_81 = arith.constant 0 : index
    %c0_82 = arith.constant 0 : index
    %297 = vector.load %arg2[%c6, %c0_81, %c0_82] : memref<8x32x800xbf16, #tpu.memory_space<vmem>>, vector<1x32x800xbf16>
    %298 = vector.shape_cast %297 : vector<1x32x800xbf16> to vector<32x800xbf16>
    %cst_83 = arith.constant dense<0.000000e+00> : vector<32x400xf32>
    %299 = tpu.matmul %298, %296, %cst_83 {dimension_numbers = #tpu.dot_dimension_numbers<[1], [0], [0], [1], [0, 0, 1, 1], [], []>} : vector<32x800xbf16>, vector<800x400xbf16>, vector<32x400xf32> -> vector<32x400xf32>
    %c6_84 = arith.constant 6 : index
    %c0_85 = arith.constant 0 : index
    %c0_86 = arith.constant 0 : index
    %300 = vector.load %arg3[%c6_84, %c0_85, %c0_86] : memref<8x32x1xf32, #tpu.memory_space<vmem>>, vector<1x32x1xf32>
    %301 = vector.shape_cast %300 : vector<1x32x1xf32> to vector<32x1xf32>
    %302 = vector.broadcast %301 : vector<32x1xf32> to vector<32x400xf32>
    %303 = arith.addf %299, %302 : vector<32x400xf32>
    %304 = math.tanh %303 : vector<32x400xf32>
    %305 = vector.broadcast %2 : vector<1x400xf32> to vector<32x400xf32>
    %306 = arith.mulf %304, %305 : vector<32x400xf32>
    %307 = arith.truncf %306 : vector<32x400xf32> to vector<32x400xbf16>
    %c0_87 = arith.constant 0 : index
    %c0_88 = arith.constant 0 : index
    %c42_89 = arith.constant 42 : index
    %308 = vector.load %arg6[%c0_87, %c0_88, %c42_89] : memref<1x32x484xbf16, #tpu.memory_space<vmem>>, vector<1x32x400xbf16>
    %309 = vector.shape_cast %308 : vector<1x32x400xbf16> to vector<32x400xbf16>
    %310 = vector.shape_cast %307 : vector<32x400xbf16> to vector<1x32x400xbf16>
    tpu.vector_store %arg6[%c0_87, %c0_88, %c42_89], %310 {strides = array<i32>} : memref<1x32x484xbf16, #tpu.memory_space<vmem>>, vector<1x32x400xbf16>,
    %c0_90 = arith.constant 0 : index
    %c0_91 = arith.constant 0 : index
    %c0_92 = arith.constant 0 : index
    %311 = vector.load %arg6[%c0_90, %c0_91, %c0_92] : memref<1x32x484xbf16, #tpu.memory_space<vmem>>, vector<1x32x484xbf16>
    %312 = vector.shape_cast %311 : vector<1x32x484xbf16> to vector<32x484xbf16>
    %313 = vector.extract_strided_slice %312 {offsets = [0, 0], sizes = [32, 400], strides = [1, 1]} : vector<32x484xbf16> to vector<32x400xbf16>
    %314 = vector.extract_strided_slice %312 {offsets = [0, 1], sizes = [32, 400], strides = [1, 1]} : vector<32x484xbf16> to vector<32x400xbf16>
    %315 = vector.extract_strided_slice %312 {offsets = [0, 2], sizes = [32, 400], strides = [1, 1]} : vector<32x484xbf16> to vector<32x400xbf16>
    %316 = vector.extract_strided_slice %312 {offsets = [0, 3], sizes = [32, 400], strides = [1, 1]} : vector<32x484xbf16> to vector<32x400xbf16>
    %317 = vector.extract_strided_slice %312 {offsets = [0, 4], sizes = [32, 400], strides = [1, 1]} : vector<32x484xbf16> to vector<32x400xbf16>
    %318 = vector.extract_strided_slice %312 {offsets = [0, 20], sizes = [32, 400], strides = [1, 1]} : vector<32x484xbf16> to vector<32x400xbf16>
    %319 = vector.extract_strided_slice %312 {offsets = [0, 21], sizes = [32, 400], strides = [1, 1]} : vector<32x484xbf16> to vector<32x400xbf16>
    %320 = vector.extract_strided_slice %312 {offsets = [0, 22], sizes = [32, 400], strides = [1, 1]} : vector<32x484xbf16> to vector<32x400xbf16>
    %321 = vector.extract_strided_slice %312 {offsets = [0, 23], sizes = [32, 400], strides = [1, 1]} : vector<32x484xbf16> to vector<32x400xbf16>
    %322 = vector.extract_strided_slice %312 {offsets = [0, 24], sizes = [32, 400], strides = [1, 1]} : vector<32x484xbf16> to vector<32x400xbf16>
    %323 = vector.extract_strided_slice %312 {offsets = [0, 40], sizes = [32, 400], strides = [1, 1]} : vector<32x484xbf16> to vector<32x400xbf16>
    %324 = vector.extract_strided_slice %312 {offsets = [0, 41], sizes = [32, 400], strides = [1, 1]} : vector<32x484xbf16> to vector<32x400xbf16>
    %325 = vector.extract_strided_slice %312 {offsets = [0, 42], sizes = [32, 400], strides = [1, 1]} : vector<32x484xbf16> to vector<32x400xbf16>
    %326 = vector.extract_strided_slice %312 {offsets = [0, 43], sizes = [32, 400], strides = [1, 1]} : vector<32x484xbf16> to vector<32x400xbf16>
    %327 = vector.extract_strided_slice %312 {offsets = [0, 44], sizes = [32, 400], strides = [1, 1]} : vector<32x484xbf16> to vector<32x400xbf16>
    %328 = vector.extract_strided_slice %312 {offsets = [0, 60], sizes = [32, 400], strides = [1, 1]} : vector<32x484xbf16> to vector<32x400xbf16>
    %329 = vector.extract_strided_slice %312 {offsets = [0, 61], sizes = [32, 400], strides = [1, 1]} : vector<32x484xbf16> to vector<32x400xbf16>
    %330 = vector.extract_strided_slice %312 {offsets = [0, 62], sizes = [32, 400], strides = [1, 1]} : vector<32x484xbf16> to vector<32x400xbf16>
    %331 = vector.extract_strided_slice %312 {offsets = [0, 63], sizes = [32, 400], strides = [1, 1]} : vector<32x484xbf16> to vector<32x400xbf16>
    %332 = vector.extract_strided_slice %312 {offsets = [0, 64], sizes = [32, 400], strides = [1, 1]} : vector<32x484xbf16> to vector<32x400xbf16>
    %333 = vector.extract_strided_slice %312 {offsets = [0, 80], sizes = [32, 400], strides = [1, 1]} : vector<32x484xbf16> to vector<32x400xbf16>
    %334 = vector.extract_strided_slice %312 {offsets = [0, 81], sizes = [32, 400], strides = [1, 1]} : vector<32x484xbf16> to vector<32x400xbf16>
    %335 = vector.extract_strided_slice %312 {offsets = [0, 82], sizes = [32, 400], strides = [1, 1]} : vector<32x484xbf16> to vector<32x400xbf16>
    %336 = vector.extract_strided_slice %312 {offsets = [0, 83], sizes = [32, 400], strides = [1, 1]} : vector<32x484xbf16> to vector<32x400xbf16>
    %337 = vector.extract_strided_slice %312 {offsets = [0, 84], sizes = [32, 400], strides = [1, 1]} : vector<32x484xbf16> to vector<32x400xbf16>
    %338 = tpu.concatenate %313, %314, %315, %316, %317, %318, %319, %320, %321, %322, %323, %324, %325, %326, %327, %328 in 0 : vector<32x400xbf16>, vector<32x400xbf16>, vector<32x400xbf16>, vector<32x400xbf16>, vector<32x400xbf16>, vector<32x400xbf16>, vector<32x400xbf16>, vector<32x400xbf16>, vector<32x400xbf16>, vector<32x400xbf16>, vector<32x400xbf16>, vector<32x400xbf16>, vector<32x400xbf16>, vector<32x400xbf16>, vector<32x400xbf16>, vector<32x400xbf16> -> vector<512x400xbf16>
    %339 = tpu.concatenate %329, %330, %331, %332, %333, %334, %335, %336, %337 in 0 : vector<32x400xbf16>, vector<32x400xbf16>, vector<32x400xbf16>, vector<32x400xbf16>, vector<32x400xbf16>, vector<32x400xbf16>, vector<32x400xbf16>, vector<32x400xbf16>, vector<32x400xbf16> -> vector<288x400xbf16>
    %340 = tpu.concatenate %338, %339 in 0 : vector<512x400xbf16>, vector<288x400xbf16> -> vector<800x400xbf16>
    %c7 = arith.constant 7 : index
    %c0_93 = arith.constant 0 : index
    %c0_94 = arith.constant 0 : index
    %341 = vector.load %arg2[%c7, %c0_93, %c0_94] : memref<8x32x800xbf16, #tpu.memory_space<vmem>>, vector<1x32x800xbf16>
    %342 = vector.shape_cast %341 : vector<1x32x800xbf16> to vector<32x800xbf16>
    %cst_95 = arith.constant dense<0.000000e+00> : vector<32x400xf32>
    %343 = tpu.matmul %342, %340, %cst_95 {dimension_numbers = #tpu.dot_dimension_numbers<[1], [0], [0], [1], [0, 0, 1, 1], [], []>} : vector<32x800xbf16>, vector<800x400xbf16>, vector<32x400xf32> -> vector<32x400xf32>
    %c7_96 = arith.constant 7 : index
    %c0_97 = arith.constant 0 : index
    %c0_98 = arith.constant 0 : index
    %344 = vector.load %arg3[%c7_96, %c0_97, %c0_98] : memref<8x32x1xf32, #tpu.memory_space<vmem>>, vector<1x32x1xf32>
    %345 = vector.shape_cast %344 : vector<1x32x1xf32> to vector<32x1xf32>
    %346 = vector.broadcast %345 : vector<32x1xf32> to vector<32x400xf32>
    %347 = arith.addf %343, %346 : vector<32x400xf32>
    %348 = math.tanh %347 : vector<32x400xf32>
    %349 = vector.broadcast %2 : vector<1x400xf32> to vector<32x400xf32>
    %350 = arith.mulf %348, %349 : vector<32x400xf32>
    %c0_99 = arith.constant 0 : index
    %c0_100 = arith.constant 0 : index
    %c0_101 = arith.constant 0 : index
    %351 = vector.load %arg5[%c0_99, %c0_100, %c0_101] : memref<1x32x400xf32, #tpu.memory_space<vmem>>, vector<1x32x400xf32>
    %352 = vector.shape_cast %351 : vector<1x32x400xf32> to vector<32x400xf32>
    %353 = vector.shape_cast %350 : vector<32x400xf32> to vector<1x32x400xf32>
    tpu.vector_store %arg5[%c0_99, %c0_100, %c0_101], %353 {strides = array<i32>} : memref<1x32x400xf32, #tpu.memory_space<vmem>>, vector<1x32x400xf32>,
    return
  }
  func.func @transform_0(%arg0: i32) -> (i32, i32, i32) {
    %c0_i32 = arith.constant 0 : i32
    %c0_i32_0 = arith.constant 0 : i32
    %c0_i32_1 = arith.constant 0 : i32
    return %arg0, %c0_i32, %c0_i32_0 : i32, i32, i32
  }
  func.func @transform_1(%arg0: i32) -> (i32, i32, i32) {
    %c0_i32 = arith.constant 0 : i32
    %c0_i32_0 = arith.constant 0 : i32
    %c0_i32_1 = arith.constant 0 : i32
    %c0_i32_2 = arith.constant 0 : i32
    return %c0_i32, %c0_i32_0, %c0_i32_1 : i32, i32, i32
  }
  func.func @transform_2(%arg0: i32) -> (i32, i32, i32) {
    %c0_i32 = arith.constant 0 : i32
    %c0_i32_0 = arith.constant 0 : i32
    %c0_i32_1 = arith.constant 0 : i32
    %c0_i32_2 = arith.constant 0 : i32
    return %c0_i32, %c0_i32_0, %c0_i32_1 : i32, i32, i32
  }
  func.func @transform_3(%arg0: i32) -> (i32, i32) {
    %c0_i32 = arith.constant 0 : i32
    %c0_i32_0 = arith.constant 0 : i32
    %c0_i32_1 = arith.constant 0 : i32
    return %c0_i32, %c0_i32_0 : i32, i32
  }
  func.func @transform_4(%arg0: i32) -> (i32, i32, i32) {
    %c0_i32 = arith.constant 0 : i32
    %c0_i32_0 = arith.constant 0 : i32
    %c0_i32_1 = arith.constant 0 : i32
    return %arg0, %c0_i32, %c0_i32_0 : i32, i32, i32
  }
}

</mosaic_0001>

<llo_original>
// kernel: net_forward.1
$region0: #{net_forward.1}
  #allocation0 [shape = 'u32[]', space=smem, size = 0x4, offset = 0x4, fixed_abs, tag = 'smem constant byte address 0x4 - core index']
  #allocation1 [shape = 'u32[144,128]{1,0:T(1,128)}', space=vmem, size = 0x12000, scoped, tag = 'internal scratch']
  #allocation2 [shape = 'bf16[1,32,484]{2,1,0:T(8,128)(2,1)}', space=vmem, size = 0x8000, scoped, tag = 'scratch operand']
  %s0 = inlined_call_operand.vmem [shape: bf16[2,32,484], index: 0, kind: input, shape index: {}]
  %s1 = inlined_call_operand.vmem [shape: bf16[8,32,800], index: 1, kind: input, shape index: {}]
  %s2 = inlined_call_operand.vmem [shape: f32[8,32,1], index: 2, kind: input, shape index: {}]
  %s3 = inlined_call_operand.vmem [shape: f32[1,400], index: 3, kind: input, shape index: {}]
  %s4 = inlined_call_operand.vmem [shape: f32[2,32,400], index: 4, kind: output, shape index: {}]
  %s5 = sld [smem:[#allocation0]]
  $region49: #{net_forward.1} parent=0
    _
  %s7 = ssub.s32 1, %s5
  %s8 = scalar_select 0, %s7, %s5
  loop: start=0, step=1, limit=4
  $region2: #{net_forward.1} parent=0 // loop_pre_header
    _
  $region3: #{net_forward.1} parent=0 // loop_header
    %s10 = sphi 0, %s14
    %p11 = scmp.ge.s32.totalorder %s10, 4
    %s20 = sphi 0, %s22
    %s23 = sphi 0, %s20
    %s24 = sphi 0, %s23
    %s40 = sphi 0, %s24
    %s44 = sphi 0, %s44
    %s46 = sphi 0, %s44
    %s47 = sphi 0, %s46
    %s61 = sphi 0, %s47
    %s65 = sphi 0, %s65
    %s67 = sphi 0, %s65
    %s68 = sphi 0, %s67
    %s82 = sphi 0, %s68
    %s86 = sphi 0, %s86
    %s88 = sphi 0, %s86
    %s89 = sphi 0, %s88
    %s103 = sphi 0, %s89
    %s109 = sphi 0, %s111
    %s112 = sphi 0, %s109
    %s113 = sphi 0, %s112
    %s129 = sphi 0, %s113
  $region4: #{net_forward.1} parent=0 // loop_header_branch
    %13 = sbr.rel (%p11) target = $region8
  $region5: #{net_forward.1} parent=0 // loop_body
    %s15 = ssub.s32 %s10, 1
    %s16 = ssub.s32 %s10, 2
    %s17 = sadd.s32 %s10, 1
    %s18 = ssub.s32 %s10, %s17
    %p19 = scmp.eq.s32.totalorder %s18, 0
    %s21 = sadd.s32 %s20, 1
    %s22 = scalar_select %p19, %s20, %s21
    %p25 = pneg %p19
    %p26 = scmp.eq.s32.totalorder %s10, 1
    %p27 = por %p25, %p26
    %p28 = scmp.ne.s32.totalorder %s20, %s23
    %p29 = scmp.eq.s32.totalorder %s10, 0
    %p30 = por %p28, %p29
    %p31 = scmp.ne.s32.totalorder %s20, %s23
    %p32 = scmp.eq.s32.totalorder %s15, 1
    %p33 = por %p31, %p32
    %p34 = scmp.ne.s32.totalorder %s23, %s24
    %p35 = scmp.eq.s32.totalorder %s15, 0
    %p36 = por %p34, %p35
    %p37 = scmp.ne.s32.totalorder %s23, %s24
    %p38 = scmp.eq.s32.totalorder %s16, 1
    %p39 = por %p37, %p38
    %p41 = scmp.ne.s32.totalorder %s24, %s40
    %p42 = scmp.eq.s32.totalorder %s16, 0
    %p43 = por %p41, %p42
    %s45 = sadd.s32 %s44, 1
    %p48 = scmp.eq.s32.totalorder %s10, 1
    %p49 = scmp.ne.s32.totalorder %s44, %s46
    %p50 = scmp.eq.s32.totalorder %s10, 0
    %p51 = por %p49, %p50
    %p52 = scmp.ne.s32.totalorder %s44, %s46
    %p53 = scmp.eq.s32.totalorder %s15, 1
    %p54 = por %p52, %p53
    %p55 = scmp.ne.s32.totalorder %s46, %s47
    %p56 = scmp.eq.s32.totalorder %s15, 0
    %p57 = por %p55, %p56
    %p58 = scmp.ne.s32.totalorder %s46, %s47
    %p59 = scmp.eq.s32.totalorder %s16, 1
    %p60 = por %p58, %p59
    %p62 = scmp.ne.s32.totalorder %s47, %s61
    %p63 = scmp.eq.s32.totalorder %s16, 0
    %p64 = por %p62, %p63
    %s66 = sadd.s32 %s65, 1
    %p69 = scmp.eq.s32.totalorder %s10, 1
    %p70 = scmp.ne.s32.totalorder %s65, %s67
    %p71 = scmp.eq.s32.totalorder %s10, 0
    %p72 = por %p70, %p71
    %p73 = scmp.ne.s32.totalorder %s65, %s67
    %p74 = scmp.eq.s32.totalorder %s15, 1
    %p75 = por %p73, %p74
    %p76 = scmp.ne.s32.totalorder %s67, %s68
    %p77 = scmp.eq.s32.totalorder %s15, 0
    %p78 = por %p76, %p77
    %p79 = scmp.ne.s32.totalorder %s67, %s68
    %p80 = scmp.eq.s32.totalorder %s16, 1
    %p81 = por %p79, %p80
    %p83 = scmp.ne.s32.totalorder %s68, %s82
    %p84 = scmp.eq.s32.totalorder %s16, 0
    %p85 = por %p83, %p84
    %s87 = sadd.s32 %s86, 1
    %p90 = scmp.eq.s32.totalorder %s10, 1
    %p91 = scmp.ne.s32.totalorder %s86, %s88
    %p92 = scmp.eq.s32.totalorder %s10, 0
    %p93 = por %p91, %p92
    %p94 = scmp.ne.s32.totalorder %s86, %s88
    %p95 = scmp.eq.s32.totalorder %s15, 1
    %p96 = por %p94, %p95
    %p97 = scmp.ne.s32.totalorder %s88, %s89
    %p98 = scmp.eq.s32.totalorder %s15, 0
    %p99 = por %p97, %p98
    %p100 = scmp.ne.s32.totalorder %s88, %s89
    %p101 = scmp.eq.s32.totalorder %s16, 1
    %p102 = por %p100, %p101
    %p104 = scmp.ne.s32.totalorder %s89, %s103
    %p105 = scmp.eq.s32.totalorder %s16, 0
    %p106 = por %p104, %p105
    %s107 = ssub.s32 %s10, %s17
    %p108 = scmp.eq.s32.totalorder %s107, 0
    %s110 = sadd.s32 %s109, 1
    %s111 = scalar_select %p108, %s109, %s110
    %p114 = pneg %p108
    %p115 = scmp.eq.s32.totalorder %s10, 1
    %p116 = por %p114, %p115
    %p117 = scmp.ne.s32.totalorder %s109, %s112
    %p118 = scmp.eq.s32.totalorder %s10, 0
    %p119 = por %p117, %p118
    %p120 = scmp.ne.s32.totalorder %s109, %s112
    %p121 = scmp.eq.s32.totalorder %s15, 1
    %p122 = por %p120, %p121
    %p123 = scmp.ne.s32.totalorder %s112, %s113
    %p124 = scmp.eq.s32.totalorder %s15, 0
    %p125 = por %p123, %p124
    %p126 = scmp.ne.s32.totalorder %s112, %s113
    %p127 = scmp.eq.s32.totalorder %s16, 1
    %p128 = por %p126, %p127
    %p130 = scmp.ne.s32.totalorder %s113, %s129
    %p131 = scmp.eq.s32.totalorder %s16, 0
    %p132 = por %p130, %p131
    %p133 = scmp.le.s32.totalorder 1, %s10
    %p134 = scmp.lt.s32.totalorder %s10, 3
    %p135 = pnand %p133, %p134
    %p136 = pneg %p135
    // Predicated region
    $region9: #{net_forward.1} parent=5 // pred_check
      _
    $region10: #{net_forward.1} parent=5 // pred_check_branch
      %138 = sbr.rel (%p135) target = $region12
    $region11: #{net_forward.1} parent=5 // pred_region
      %s139 = ssub.s32 %s10, 1
      // Predicated region
      $region13: #{net_forward.1} parent=11 // pred_check
        %p140 = pneg %p57
      $region14: #{net_forward.1} parent=11 // pred_check_branch
        %142 = sbr.rel (%p140) target = $region16
      $region15: #{net_forward.1} parent=11 // pred_region
        _
      $region16: #{net_forward.1} parent=11 // pred_fallthru
        _
      // Predicated region
      $region17: #{net_forward.1} parent=11 // pred_check
        %p143 = pneg %p78
      $region18: #{net_forward.1} parent=11 // pred_check_branch
        %145 = sbr.rel (%p143) target = $region20
      $region19: #{net_forward.1} parent=11 // pred_region
        _
      $region20: #{net_forward.1} parent=11 // pred_fallthru
        _
      // Predicated region
      $region21: #{net_forward.1} parent=11 // pred_check
        %p146 = pneg %p99
      $region22: #{net_forward.1} parent=11 // pred_check_branch
        %148 = sbr.rel (%p146) target = $region24
      $region23: #{net_forward.1} parent=11 // pred_region
        _
      $region24: #{net_forward.1} parent=11 // pred_fallthru
        _
    $region12: #{net_forward.1} parent=5 // pred_fallthru
      _
    %p149 = scmp.lt.s32.totalorder %s10, 2
    // Predicated region
    $region25: #{net_forward.1} parent=5 // pred_check
      %p150 = pneg %p149
    $region26: #{net_forward.1} parent=5 // pred_check_branch
      %152 = sbr.rel (%p150) target = $region28
    $region27: #{net_forward.1} parent=5 // pred_region
      // Predicated region
      $region29: #{net_forward.1} parent=27 // pred_check
        %p153 = pneg %p30
      $region30: #{net_forward.1} parent=27 // pred_check_branch
        %155 = sbr.rel (%p153) target = $region32
      $region31: #{net_forward.1} parent=27 // pred_region
        %p156 = scmp.lt.s32.totalorder %s10, 1
        %s157 = scalar_select %p156, %s10, 1
        %s158 = smul.addr %s157, 16
        %s159 = smul.addr %s158, 4
        %s160 = scalar_lea.vmem %s0, %s159
      $region32: #{net_forward.1} parent=27 // pred_fallthru
        _
    $region28: #{net_forward.1} parent=5 // pred_fallthru
      _
    %p161 = scmp.le.s32.totalorder 1, %s10
    %p162 = scmp.lt.s32.totalorder %s10, 3
    %p163 = pnand %p161, %p162
    %p164 = pneg %p163
    // Predicated region
    $region33: #{net_forward.1} parent=5 // pred_check
      _
    $region34: #{net_forward.1} parent=5 // pred_check_branch
      %166 = sbr.rel (%p163) target = $region36
    $region35: #{net_forward.1} parent=5 // pred_region
      %s167 = ssub.s32 %s10, 1
      %p168 = scmp.lt.s32.totalorder %s15, 1
      %s169 = scalar_select %p168, %s15, 1
      %s170 = smul.addr %s169, 16
      %s171 = smul.addr %s170, 4
      %s172 = scalar_lea.vmem %s0, %s171
      %p173 = pneg %p36
      %p174 = pneg %p33
      %p175 = pneg %p57
      %p176 = pneg %p54
      %p177 = pneg %p78
      %p178 = pneg %p75
      %p179 = pneg %p99
      %p180 = pneg %p96
      %p181 = pneg %p125
      %p182 = pneg %p122
      %p183 = scmp.lt.s32.totalorder %s15, 1
      %s184 = scalar_select %p183, %s15, 1
      %s185 = smul.addr %s184, 16
      %s186 = smul.addr %s185, 8
      %s187 = scalar_lea.vmem %s4, %s186
      %p188 = scmp.lt.s32.totalorder %s15, 1
      %s189 = scalar_select %p188, %s15, 1
      %s190 = smul.addr %s189, 16
      %s191 = smul.addr %s190, 4
      %s192 = scalar_lea.vmem %s0, %s191
      %p193 = scmp.lt.s32.totalorder %s15, 1
      %s194 = scalar_select %p193, %s15, 1
      %s195 = smul.addr %s194, 16
      %s196 = smul.addr %s195, 8
      %s197 = scalar_lea.vmem %s4, %s196
      %v199 = vld [vmem:[%s192] sm:$0xff]
      %v200 = vld [vmem:[%s192 + $0x8] sm:$0xff]
      %v201 = vld [vmem:[%s192 + $0x10] sm:$0xff]
      %v202 = vld [vmem:[%s192 + $0x18] sm:$0xff]
      %v203 = vld [vmem:[%s192 + $0x20] sm:$0xff]
      %v204 = vld [vmem:[%s192 + $0x28] sm:$0xff]
      %v205 = vld [vmem:[%s192 + $0x30] sm:$0xff]
      %v206 = vld [vmem:[%s192 + $0x38] sm:$0xff]
      %207 = vst [vmem:[#allocation2] sm:$0xff] %v199
      %vm208 = vcmask 1043456
      %vm209 = vcmask 818180
      %vm210 = vmor %vm209, %vm208
      %211 = vst.msk [vmem:[#allocation2 + $0x8] sm:$0xff] %vm210, %v200
      %212 = vst [vmem:[#allocation2 + $0x10] sm:$0xff] %v201
      %213 = vst.msk [vmem:[#allocation2 + $0x18] sm:$0xff] %vm210, %v202
      %214 = vst [vmem:[#allocation2 + $0x20] sm:$0xff] %v203
      %215 = vst.msk [vmem:[#allocation2 + $0x28] sm:$0xff] %vm210, %v204
      %216 = vst [vmem:[#allocation2 + $0x30] sm:$0xff] %v205
      %217 = vst.msk [vmem:[#allocation2 + $0x38] sm:$0xff] %vm210, %v206
      %v218 = vld [vmem:[%s3] sm:$0xf]
      %v219 = vld [vmem:[#allocation2] sm:$0xff]
      %v220 = vld [vmem:[#allocation2 + $0x8] sm:$0xff]
      %v221 = vld [vmem:[#allocation2 + $0x10] sm:$0xff]
      %v222 = vld [vmem:[#allocation2 + $0x18] sm:$0xff]
      %v223 = vld [vmem:[#allocation2 + $0x20] sm:$0xff]
      %v224 = vld [vmem:[#allocation2 + $0x28] sm:$0xff]
      %v225 = vld [vmem:[#allocation2 + $0x30] sm:$0xff]
      %v226 = vld [vmem:[#allocation2 + $0x38] sm:$0xff]
      %v235 = vunpack.c.l.b16 %v219
      %v236 = vunpack.c.h.b16 %v219
      %v237 = vunpack.c.l.b16 %v220
      %v238 = vunpack.c.h.b16 %v220
      %v239 = vunpack.c.l.b16 %v221
      %v240 = vunpack.c.h.b16 %v221
      %v241 = vunpack.c.l.b16 %v222
      %v242 = vunpack.c.h.b16 %v222
      %v243 = vunpack.c.l.b16 %v223
      %v244 = vunpack.c.h.b16 %v223
      %v245 = vunpack.c.l.b16 %v224
      %v246 = vunpack.c.h.b16 %v224
      %v247 = vunpack.c.l.b16 %v225
      %v248 = vunpack.c.h.b16 %v225
      %v249 = vunpack.c.l.b16 %v226
      %v250 = vunpack.c.h.b16 %v226
      %v251 = vpack.c.b16 %v239, %v235
      %v252 = vpack.c.b16 %v240, %v236
      %v253 = vpack.c.b16 %v241, %v237
      %v254 = vpack.c.b16 %v242, %v238
      %v255 = vpack.c.b16 %v247, %v243
      %v256 = vpack.c.b16 %v248, %v244
      %v257 = vpack.c.b16 %v249, %v245
      %v258 = vpack.c.b16 %v250, %v246
      %267 = vrot.lane.b32.xlu0 %v251, 127
      %v268 = vpop.permute.xlu0 %267
      %269 = vrot.lane.b32.xlu0 %v252, 127
      %v270 = vpop.permute.xlu0 %269
      %271 = vrot.lane.b32.xlu0 %v253, 127
      %v272 = vpop.permute.xlu0 %271
      %273 = vrot.lane.b32.xlu0 %v254, 127
      %v274 = vpop.permute.xlu0 %273
      %275 = vrot.lane.b32.xlu0 %v255, 127
      %v276 = vpop.permute.xlu0 %275
      %277 = vrot.lane.b32.xlu0 %v256, 127
      %v278 = vpop.permute.xlu0 %277
      %279 = vrot.lane.b32.xlu0 %v257, 127
      %v280 = vpop.permute.xlu0 %279
      %281 = vrot.lane.b32.xlu0 %v258, 127
      %v282 = vpop.permute.xlu0 %281
      %vm283 = vcmask 1039360
      %v284 = vsel %vm283, %v268, %v270
      %v285 = vsel %vm283, %v270, %v272
      %v286 = vsel %vm283, %v272, %v274
      %v287 = vsel %vm283, %v276, %v278
      %v288 = vsel %vm283, %v278, %v280
      %v289 = vsel %vm283, %v280, %v282
      %298 = vrot.lane.b32.xlu0 %v251, 126
      %v299 = vpop.permute.xlu0 %298
      %300 = vrot.lane.b32.xlu0 %v252, 126
      %v301 = vpop.permute.xlu0 %300
      %302 = vrot.lane.b32.xlu0 %v253, 126
      %v303 = vpop.permute.xlu0 %302
      %304 = vrot.lane.b32.xlu0 %v254, 126
      %v305 = vpop.permute.xlu0 %304
      %306 = vrot.lane.b32.xlu0 %v255, 126
      %v307 = vpop.permute.xlu0 %306
      %308 = vrot.lane.b32.xlu0 %v256, 126
      %v309 = vpop.permute.xlu0 %308
      %310 = vrot.lane.b32.xlu0 %v257, 126
      %v311 = vpop.permute.xlu0 %310
      %312 = vrot.lane.b32.xlu0 %v258, 126
      %v313 = vpop.permute.xlu0 %312
      %vm314 = vcmask 1031168
      %v315 = vsel %vm314, %v299, %v301
      %v316 = vsel %vm314, %v301, %v303
      %v317 = vsel %vm314, %v303, %v305
      %v318 = vsel %vm314, %v307, %v309
      %v319 = vsel %vm314, %v309, %v311
      %v320 = vsel %vm314, %v311, %v313
      %329 = vrot.lane.b32.xlu0 %v251, 125
      %v330 = vpop.permute.xlu0 %329
      %331 = vrot.lane.b32.xlu0 %v252, 125
      %v332 = vpop.permute.xlu0 %331
      %333 = vrot.lane.b32.xlu0 %v253, 125
      %v334 = vpop.permute.xlu0 %333
      %335 = vrot.lane.b32.xlu0 %v254, 125
      %v336 = vpop.permute.xlu0 %335
      %337 = vrot.lane.b32.xlu0 %v255, 125
      %v338 = vpop.permute.xlu0 %337
      %339 = vrot.lane.b32.xlu0 %v256, 125
      %v340 = vpop.permute.xlu0 %339
      %341 = vrot.lane.b32.xlu0 %v257, 125
      %v342 = vpop.permute.xlu0 %341
      %343 = vrot.lane.b32.xlu0 %v258, 125
      %v344 = vpop.permute.xlu0 %343
      %vm345 = vcmask 1022976
      %v346 = vsel %vm345, %v330, %v332
      %v347 = vsel %vm345, %v332, %v334
      %v348 = vsel %vm345, %v334, %v336
      %v349 = vsel %vm345, %v338, %v340
      %v350 = vsel %vm345, %v340, %v342
      %v351 = vsel %vm345, %v342, %v344
      %360 = vrot.lane.b32.xlu0 %v251, 124
      %v361 = vpop.permute.xlu0 %360
      %362 = vrot.lane.b32.xlu0 %v252, 124
      %v363 = vpop.permute.xlu0 %362
      %364 = vrot.lane.b32.xlu0 %v253, 124
      %v365 = vpop.permute.xlu0 %364
      %366 = vrot.lane.b32.xlu0 %v254, 124
      %v367 = vpop.permute.xlu0 %366
      %368 = vrot.lane.b32.xlu0 %v255, 124
      %v369 = vpop.permute.xlu0 %368
      %370 = vrot.lane.b32.xlu0 %v256, 124
      %v371 = vpop.permute.xlu0 %370
      %372 = vrot.lane.b32.xlu0 %v257, 124
      %v373 = vpop.permute.xlu0 %372
      %374 = vrot.lane.b32.xlu0 %v258, 124
      %v375 = vpop.permute.xlu0 %374
      %vm376 = vcmask 1014784
      %v377 = vsel %vm376, %v361, %v363
      %v378 = vsel %vm376, %v363, %v365
      %v379 = vsel %vm376, %v365, %v367
      %v380 = vsel %vm376, %v369, %v371
      %v381 = vsel %vm376, %v371, %v373
      %v382 = vsel %vm376, %v373, %v375
      %391 = vrot.lane.b32.xlu0 %v251, 108
      %v392 = vpop.permute.xlu0 %391
      %393 = vrot.lane.b32.xlu0 %v252, 108
      %v394 = vpop.permute.xlu0 %393
      %395 = vrot.lane.b32.xlu0 %v253, 108
      %v396 = vpop.permute.xlu0 %395
      %397 = vrot.lane.b32.xlu0 %v254, 108
      %v398 = vpop.permute.xlu0 %397
      %399 = vrot.lane.b32.xlu0 %v255, 108
      %v400 = vpop.permute.xlu0 %399
      %401 = vrot.lane.b32.xlu0 %v256, 108
      %v402 = vpop.permute.xlu0 %401
      %403 = vrot.lane.b32.xlu0 %v257, 108
      %v404 = vpop.permute.xlu0 %403
      %405 = vrot.lane.b32.xlu0 %v258, 108
      %v406 = vpop.permute.xlu0 %405
      %vm407 = vcmask 883712
      %v408 = vsel %vm407, %v392, %v394
      %v409 = vsel %vm407, %v394, %v396
      %v410 = vsel %vm407, %v396, %v398
      %v411 = vsel %vm407, %v400, %v402
      %v412 = vsel %vm407, %v402, %v404
      %v413 = vsel %vm407, %v404, %v406
      %422 = vrot.lane.b32.xlu0 %v251, 107
      %v423 = vpop.permute.xlu0 %422
      %424 = vrot.lane.b32.xlu0 %v252, 107
      %v425 = vpop.permute.xlu0 %424
      %426 = vrot.lane.b32.xlu0 %v253, 107
      %v427 = vpop.permute.xlu0 %426
      %428 = vrot.lane.b32.xlu0 %v254, 107
      %v429 = vpop.permute.xlu0 %428
      %430 = vrot.lane.b32.xlu0 %v255, 107
      %v431 = vpop.permute.xlu0 %430
      %432 = vrot.lane.b32.xlu0 %v256, 107
      %v433 = vpop.permute.xlu0 %432
      %434 = vrot.lane.b32.xlu0 %v257, 107
      %v435 = vpop.permute.xlu0 %434
      %436 = vrot.lane.b32.xlu0 %v258, 107
      %v437 = vpop.permute.xlu0 %436
      %vm438 = vcmask 875520
      %v439 = vsel %vm438, %v423, %v425
      %v440 = vsel %vm438, %v425, %v427
      %v441 = vsel %vm438, %v427, %v429
      %v442 = vsel %vm438, %v431, %v433
      %v443 = vsel %vm438, %v433, %v435
      %v444 = vsel %vm438, %v435, %v437
      %453 = vrot.lane.b32.xlu0 %v251, 106
      %v454 = vpop.permute.xlu0 %453
      %455 = vrot.lane.b32.xlu0 %v252, 106
      %v456 = vpop.permute.xlu0 %455
      %457 = vrot.lane.b32.xlu0 %v253, 106
      %v458 = vpop.permute.xlu0 %457
      %459 = vrot.lane.b32.xlu0 %v254, 106
      %v460 = vpop.permute.xlu0 %459
      %461 = vrot.lane.b32.xlu0 %v255, 106
      %v462 = vpop.permute.xlu0 %461
      %463 = vrot.lane.b32.xlu0 %v256, 106
      %v464 = vpop.permute.xlu0 %463
      %465 = vrot.lane.b32.xlu0 %v257, 106
      %v466 = vpop.permute.xlu0 %465
      %467 = vrot.lane.b32.xlu0 %v258, 106
      %v468 = vpop.permute.xlu0 %467
      %vm469 = vcmask 867328
      %v470 = vsel %vm469, %v454, %v456
      %v471 = vsel %vm469, %v456, %v458
      %v472 = vsel %vm469, %v458, %v460
      %v473 = vsel %vm469, %v462, %v464
      %v474 = vsel %vm469, %v464, %v466
      %v475 = vsel %vm469, %v466, %v468
      %484 = vrot.lane.b32.xlu0 %v251, 105
      %v485 = vpop.permute.xlu0 %484
      %486 = vrot.lane.b32.xlu0 %v252, 105
      %v487 = vpop.permute.xlu0 %486
      %488 = vrot.lane.b32.xlu0 %v253, 105
      %v489 = vpop.permute.xlu0 %488
      %490 = vrot.lane.b32.xlu0 %v254, 105
      %v491 = vpop.permute.xlu0 %490
      %492 = vrot.lane.b32.xlu0 %v255, 105
      %v493 = vpop.permute.xlu0 %492
      %494 = vrot.lane.b32.xlu0 %v256, 105
      %v495 = vpop.permute.xlu0 %494
      %496 = vrot.lane.b32.xlu0 %v257, 105
      %v497 = vpop.permute.xlu0 %496
      %498 = vrot.lane.b32.xlu0 %v258, 105
      %v499 = vpop.permute.xlu0 %498
      %vm500 = vcmask 859136
      %v501 = vsel %vm500, %v485, %v487
      %v502 = vsel %vm500, %v487, %v489
      %v503 = vsel %vm500, %v489, %v491
      %v504 = vsel %vm500, %v493, %v495
      %v505 = vsel %vm500, %v495, %v497
      %v506 = vsel %vm500, %v497, %v499
      %515 = vrot.lane.b32.xlu0 %v251, 104
      %v516 = vpop.permute.xlu0 %515
      %517 = vrot.lane.b32.xlu0 %v252, 104
      %v518 = vpop.permute.xlu0 %517
      %519 = vrot.lane.b32.xlu0 %v253, 104
      %v520 = vpop.permute.xlu0 %519
      %521 = vrot.lane.b32.xlu0 %v254, 104
      %v522 = vpop.permute.xlu0 %521
      %523 = vrot.lane.b32.xlu0 %v255, 104
      %v524 = vpop.permute.xlu0 %523
      %525 = vrot.lane.b32.xlu0 %v256, 104
      %v526 = vpop.permute.xlu0 %525
      %527 = vrot.lane.b32.xlu0 %v257, 104
      %v528 = vpop.permute.xlu0 %527
      %529 = vrot.lane.b32.xlu0 %v258, 104
      %v530 = vpop.permute.xlu0 %529
      %vm531 = vcmask 850944
      %v532 = vsel %vm531, %v516, %v518
      %v533 = vsel %vm531, %v518, %v520
      %v534 = vsel %vm531, %v520, %v522
      %v535 = vsel %vm531, %v524, %v526
      %v536 = vsel %vm531, %v526, %v528
      %v537 = vsel %vm531, %v528, %v530
      %546 = vrot.lane.b32.xlu0 %v251, 88
      %v547 = vpop.permute.xlu0 %546
      %548 = vrot.lane.b32.xlu0 %v252, 88
      %v549 = vpop.permute.xlu0 %548
      %550 = vrot.lane.b32.xlu0 %v253, 88
      %v551 = vpop.permute.xlu0 %550
      %552 = vrot.lane.b32.xlu0 %v254, 88
      %v553 = vpop.permute.xlu0 %552
      %554 = vrot.lane.b32.xlu0 %v255, 88
      %v555 = vpop.permute.xlu0 %554
      %556 = vrot.lane.b32.xlu0 %v256, 88
      %v557 = vpop.permute.xlu0 %556
      %558 = vrot.lane.b32.xlu0 %v257, 88
      %v559 = vpop.permute.xlu0 %558
      %560 = vrot.lane.b32.xlu0 %v258, 88
      %v561 = vpop.permute.xlu0 %560
      %vm562 = vcmask 719872
      %v563 = vsel %vm562, %v547, %v549
      %v564 = vsel %vm562, %v549, %v551
      %v565 = vsel %vm562, %v551, %v553
      %v566 = vsel %vm562, %v555, %v557
      %v567 = vsel %vm562, %v557, %v559
      %v568 = vsel %vm562, %v559, %v561
      %577 = vrot.lane.b32.xlu0 %v251, 87
      %v578 = vpop.permute.xlu0 %577
      %579 = vrot.lane.b32.xlu0 %v252, 87
      %v580 = vpop.permute.xlu0 %579
      %581 = vrot.lane.b32.xlu0 %v253, 87
      %v582 = vpop.permute.xlu0 %581
      %583 = vrot.lane.b32.xlu0 %v254, 87
      %v584 = vpop.permute.xlu0 %583
      %585 = vrot.lane.b32.xlu0 %v255, 87
      %v586 = vpop.permute.xlu0 %585
      %587 = vrot.lane.b32.xlu0 %v256, 87
      %v588 = vpop.permute.xlu0 %587
      %589 = vrot.lane.b32.xlu0 %v257, 87
      %v590 = vpop.permute.xlu0 %589
      %591 = vrot.lane.b32.xlu0 %v258, 87
      %v592 = vpop.permute.xlu0 %591
      %vm593 = vcmask 711680
      %v594 = vsel %vm593, %v578, %v580
      %v595 = vsel %vm593, %v580, %v582
      %v596 = vsel %vm593, %v582, %v584
      %v597 = vsel %vm593, %v586, %v588
      %v598 = vsel %vm593, %v588, %v590
      %v599 = vsel %vm593, %v590, %v592
      %608 = vrot.lane.b32.xlu0 %v251, 86
      %v609 = vpop.permute.xlu0 %608
      %610 = vrot.lane.b32.xlu0 %v252, 86
      %v611 = vpop.permute.xlu0 %610
      %612 = vrot.lane.b32.xlu0 %v253, 86
      %v613 = vpop.permute.xlu0 %612
      %614 = vrot.lane.b32.xlu0 %v254, 86
      %v615 = vpop.permute.xlu0 %614
      %616 = vrot.lane.b32.xlu0 %v255, 86
      %v617 = vpop.permute.xlu0 %616
      %618 = vrot.lane.b32.xlu0 %v256, 86
      %v619 = vpop.permute.xlu0 %618
      %620 = vrot.lane.b32.xlu0 %v257, 86
      %v621 = vpop.permute.xlu0 %620
      %622 = vrot.lane.b32.xlu0 %v258, 86
      %v623 = vpop.permute.xlu0 %622
      %vm624 = vcmask 703488
      %v625 = vsel %vm624, %v609, %v611
      %v626 = vsel %vm624, %v611, %v613
      %v627 = vsel %vm624, %v613, %v615
      %v628 = vsel %vm624, %v617, %v619
      %v629 = vsel %vm624, %v619, %v621
      %v630 = vsel %vm624, %v621, %v623
      %639 = vrot.lane.b32.xlu0 %v251, 85
      %v640 = vpop.permute.xlu0 %639
      %641 = vrot.lane.b32.xlu0 %v252, 85
      %v642 = vpop.permute.xlu0 %641
      %643 = vrot.lane.b32.xlu0 %v253, 85
      %v644 = vpop.permute.xlu0 %643
      %645 = vrot.lane.b32.xlu0 %v254, 85
      %v646 = vpop.permute.xlu0 %645
      %647 = vrot.lane.b32.xlu0 %v255, 85
      %v648 = vpop.permute.xlu0 %647
      %649 = vrot.lane.b32.xlu0 %v256, 85
      %v650 = vpop.permute.xlu0 %649
      %651 = vrot.lane.b32.xlu0 %v257, 85
      %v652 = vpop.permute.xlu0 %651
      %653 = vrot.lane.b32.xlu0 %v258, 85
      %v654 = vpop.permute.xlu0 %653
      %vm655 = vcmask 695296
      %v656 = vsel %vm655, %v640, %v642
      %v657 = vsel %vm655, %v642, %v644
      %v658 = vsel %vm655, %v644, %v646
      %v659 = vsel %vm655, %v648, %v650
      %v660 = vsel %vm655, %v650, %v652
      %v661 = vsel %vm655, %v652, %v654
      %670 = vrot.lane.b32.xlu0 %v251, 84
      %v671 = vpop.permute.xlu0 %670
      %672 = vrot.lane.b32.xlu0 %v252, 84
      %v673 = vpop.permute.xlu0 %672
      %674 = vrot.lane.b32.xlu0 %v253, 84
      %v675 = vpop.permute.xlu0 %674
      %676 = vrot.lane.b32.xlu0 %v254, 84
      %v677 = vpop.permute.xlu0 %676
      %678 = vrot.lane.b32.xlu0 %v255, 84
      %v679 = vpop.permute.xlu0 %678
      %680 = vrot.lane.b32.xlu0 %v256, 84
      %v681 = vpop.permute.xlu0 %680
      %682 = vrot.lane.b32.xlu0 %v257, 84
      %v683 = vpop.permute.xlu0 %682
      %684 = vrot.lane.b32.xlu0 %v258, 84
      %v685 = vpop.permute.xlu0 %684
      %vm686 = vcmask 687104
      %v687 = vsel %vm686, %v671, %v673
      %v688 = vsel %vm686, %v673, %v675
      %v689 = vsel %vm686, %v675, %v677
      %v690 = vsel %vm686, %v679, %v681
      %v691 = vsel %vm686, %v681, %v683
      %v692 = vsel %vm686, %v683, %v685
      %701 = vrot.lane.b32.xlu0 %v251, 68
      %v702 = vpop.permute.xlu0 %701
      %703 = vrot.lane.b32.xlu0 %v252, 68
      %v704 = vpop.permute.xlu0 %703
      %705 = vrot.lane.b32.xlu0 %v253, 68
      %v706 = vpop.permute.xlu0 %705
      %707 = vrot.lane.b32.xlu0 %v254, 68
      %v708 = vpop.permute.xlu0 %707
      %709 = vrot.lane.b32.xlu0 %v255, 68
      %v710 = vpop.permute.xlu0 %709
      %711 = vrot.lane.b32.xlu0 %v256, 68
      %v712 = vpop.permute.xlu0 %711
      %713 = vrot.lane.b32.xlu0 %v257, 68
      %v714 = vpop.permute.xlu0 %713
      %715 = vrot.lane.b32.xlu0 %v258, 68
      %v716 = vpop.permute.xlu0 %715
      %vm717 = vcmask 556032
      %v718 = vsel %vm717, %v702, %v704
      %v719 = vsel %vm717, %v704, %v706
      %v720 = vsel %vm717, %v706, %v708
      %v721 = vsel %vm717, %v710, %v712
      %v722 = vsel %vm717, %v712, %v714
      %v723 = vsel %vm717, %v714, %v716
      %732 = vrot.lane.b32.xlu0 %v251, 109
      %v733 = vpop.permute.xlu0 %732
      %734 = vrot.lane.b32.xlu0 %v252, 109
      %v735 = vpop.permute.xlu0 %734
      %736 = vrot.lane.b32.xlu0 %v253, 109
      %v737 = vpop.permute.xlu0 %736
      %738 = vrot.lane.b32.xlu0 %v254, 109
      %v739 = vpop.permute.xlu0 %738
      %740 = vrot.lane.b32.xlu0 %v255, 109
      %v741 = vpop.permute.xlu0 %740
      %742 = vrot.lane.b32.xlu0 %v256, 109
      %v743 = vpop.permute.xlu0 %742
      %744 = vrot.lane.b32.xlu0 %v257, 109
      %v745 = vpop.permute.xlu0 %744
      %746 = vrot.lane.b32.xlu0 %v258, 109
      %v747 = vpop.permute.xlu0 %746
      %vm748 = vcmask 891904
      %v749 = vsel %vm748, %v733, %v735
      %v750 = vsel %vm748, %v735, %v737
      %v751 = vsel %vm748, %v737, %v739
      %v752 = vsel %vm748, %v741, %v743
      %v753 = vsel %vm748, %v743, %v745
      %v754 = vsel %vm748, %v745, %v747
      %755 = vrot.lane.b32.xlu0 %v251, 67
      %v756 = vpop.permute.xlu0 %755
      %757 = vrot.lane.b32.xlu0 %v252, 67
      %v758 = vpop.permute.xlu0 %757
      %759 = vrot.lane.b32.xlu0 %v253, 67
      %v760 = vpop.permute.xlu0 %759
      %761 = vrot.lane.b32.xlu0 %v254, 67
      %v762 = vpop.permute.xlu0 %761
      %763 = vrot.lane.b32.xlu0 %v255, 67
      %v764 = vpop.permute.xlu0 %763
      %765 = vrot.lane.b32.xlu0 %v256, 67
      %v766 = vpop.permute.xlu0 %765
      %767 = vrot.lane.b32.xlu0 %v257, 67
      %v768 = vpop.permute.xlu0 %767
      %769 = vrot.lane.b32.xlu0 %v258, 67
      %v770 = vpop.permute.xlu0 %769
      %771 = vrot.lane.b32.xlu0 %v284, 67
      %v772 = vpop.permute.xlu0 %771
      %773 = vrot.lane.b32.xlu0 %v285, 67
      %v774 = vpop.permute.xlu0 %773
      %775 = vrot.lane.b32.xlu0 %v286, 67
      %v776 = vpop.permute.xlu0 %775
      %777 = vrot.lane.b32.xlu0 %v274, 67
      %v778 = vpop.permute.xlu0 %777
      %779 = vrot.lane.b32.xlu0 %v287, 67
      %v780 = vpop.permute.xlu0 %779
      %781 = vrot.lane.b32.xlu0 %v288, 67
      %v782 = vpop.permute.xlu0 %781
      %783 = vrot.lane.b32.xlu0 %v289, 67
      %v784 = vpop.permute.xlu0 %783
      %785 = vrot.lane.b32.xlu0 %v282, 67
      %v786 = vpop.permute.xlu0 %785
      %787 = vrot.lane.b32.xlu0 %v315, 67
      %v788 = vpop.permute.xlu0 %787
      %789 = vrot.lane.b32.xlu0 %v316, 67
      %v790 = vpop.permute.xlu0 %789
      %791 = vrot.lane.b32.xlu0 %v317, 67
      %v792 = vpop.permute.xlu0 %791
      %793 = vrot.lane.b32.xlu0 %v305, 67
      %v794 = vpop.permute.xlu0 %793
      %795 = vrot.lane.b32.xlu0 %v318, 67
      %v796 = vpop.permute.xlu0 %795
      %797 = vrot.lane.b32.xlu0 %v319, 67
      %v798 = vpop.permute.xlu0 %797
      %799 = vrot.lane.b32.xlu0 %v320, 67
      %v800 = vpop.permute.xlu0 %799
      %801 = vrot.lane.b32.xlu0 %v313, 67
      %v802 = vpop.permute.xlu0 %801
      %803 = vrot.lane.b32.xlu0 %v346, 67
      %v804 = vpop.permute.xlu0 %803
      %805 = vrot.lane.b32.xlu0 %v347, 67
      %v806 = vpop.permute.xlu0 %805
      %807 = vrot.lane.b32.xlu0 %v348, 67
      %v808 = vpop.permute.xlu0 %807
      %809 = vrot.lane.b32.xlu0 %v336, 67
      %v810 = vpop.permute.xlu0 %809
      %811 = vrot.lane.b32.xlu0 %v349, 67
      %v812 = vpop.permute.xlu0 %811
      %813 = vrot.lane.b32.xlu0 %v350, 67
      %v814 = vpop.permute.xlu0 %813
      %815 = vrot.lane.b32.xlu0 %v351, 67
      %v816 = vpop.permute.xlu0 %815
      %817 = vrot.lane.b32.xlu0 %v344, 67
      %v818 = vpop.permute.xlu0 %817
      %819 = vrot.lane.b32.xlu0 %v749, 67
      %v820 = vpop.permute.xlu0 %819
      %821 = vrot.lane.b32.xlu0 %v750, 67
      %v822 = vpop.permute.xlu0 %821
      %823 = vrot.lane.b32.xlu0 %v751, 67
      %v824 = vpop.permute.xlu0 %823
      %825 = vrot.lane.b32.xlu0 %v739, 67
      %v826 = vpop.permute.xlu0 %825
      %827 = vrot.lane.b32.xlu0 %v752, 67
      %v828 = vpop.permute.xlu0 %827
      %829 = vrot.lane.b32.xlu0 %v753, 67
      %v830 = vpop.permute.xlu0 %829
      %831 = vrot.lane.b32.xlu0 %v754, 67
      %v832 = vpop.permute.xlu0 %831
      %833 = vrot.lane.b32.xlu0 %v747, 67
      %v834 = vpop.permute.xlu0 %833
      %835 = vrot.lane.b32.xlu0 %v408, 67
      %v836 = vpop.permute.xlu0 %835
      %837 = vrot.lane.b32.xlu0 %v409, 67
      %v838 = vpop.permute.xlu0 %837
      %839 = vrot.lane.b32.xlu0 %v410, 67
      %v840 = vpop.permute.xlu0 %839
      %841 = vrot.lane.b32.xlu0 %v398, 67
      %v842 = vpop.permute.xlu0 %841
      %843 = vrot.lane.b32.xlu0 %v411, 67
      %v844 = vpop.permute.xlu0 %843
      %845 = vrot.lane.b32.xlu0 %v412, 67
      %v846 = vpop.permute.xlu0 %845
      %847 = vrot.lane.b32.xlu0 %v413, 67
      %v848 = vpop.permute.xlu0 %847
      %849 = vrot.lane.b32.xlu0 %v406, 67
      %v850 = vpop.permute.xlu0 %849
      %851 = vrot.lane.b32.xlu0 %v439, 67
      %v852 = vpop.permute.xlu0 %851
      %853 = vrot.lane.b32.xlu0 %v440, 67
      %v854 = vpop.permute.xlu0 %853
      %855 = vrot.lane.b32.xlu0 %v441, 67
      %v856 = vpop.permute.xlu0 %855
      %857 = vrot.lane.b32.xlu0 %v429, 67
      %v858 = vpop.permute.xlu0 %857
      %859 = vrot.lane.b32.xlu0 %v442, 67
      %v860 = vpop.permute.xlu0 %859
      %861 = vrot.lane.b32.xlu0 %v443, 67
      %v862 = vpop.permute.xlu0 %861
      %863 = vrot.lane.b32.xlu0 %v444, 67
      %v864 = vpop.permute.xlu0 %863
      %865 = vrot.lane.b32.xlu0 %v437, 67
      %v866 = vpop.permute.xlu0 %865
      %867 = vrot.lane.b32.xlu0 %v470, 67
      %v868 = vpop.permute.xlu0 %867
      %869 = vrot.lane.b32.xlu0 %v471, 67
      %v870 = vpop.permute.xlu0 %869
      %871 = vrot.lane.b32.xlu0 %v472, 67
      %v872 = vpop.permute.xlu0 %871
      %873 = vrot.lane.b32.xlu0 %v460, 67
      %v874 = vpop.permute.xlu0 %873
      %875 = vrot.lane.b32.xlu0 %v473, 67
      %v876 = vpop.permute.xlu0 %875
      %877 = vrot.lane.b32.xlu0 %v474, 67
      %v878 = vpop.permute.xlu0 %877
      %879 = vrot.lane.b32.xlu0 %v475, 67
      %v880 = vpop.permute.xlu0 %879
      %881 = vrot.lane.b32.xlu0 %v468, 67
      %v882 = vpop.permute.xlu0 %881
      %883 = vrot.lane.b32.xlu0 %v501, 67
      %v884 = vpop.permute.xlu0 %883
      %885 = vrot.lane.b32.xlu0 %v502, 67
      %v886 = vpop.permute.xlu0 %885
      %887 = vrot.lane.b32.xlu0 %v503, 67
      %v888 = vpop.permute.xlu0 %887
      %889 = vrot.lane.b32.xlu0 %v491, 67
      %v890 = vpop.permute.xlu0 %889
      %891 = vrot.lane.b32.xlu0 %v504, 67
      %v892 = vpop.permute.xlu0 %891
      %893 = vrot.lane.b32.xlu0 %v505, 67
      %v894 = vpop.permute.xlu0 %893
      %895 = vrot.lane.b32.xlu0 %v506, 67
      %v896 = vpop.permute.xlu0 %895
      %897 = vrot.lane.b32.xlu0 %v499, 67
      %v898 = vpop.permute.xlu0 %897
      %vm899 = vcmask 547840
      %v900 = vsel %vm899, %v756, %v758
      %v901 = vsel %vm899, %v758, %v760
      %v902 = vsel %vm899, %v760, %v762
      %v903 = vsel %vm899, %v764, %v766
      %v904 = vsel %vm899, %v766, %v768
      %v905 = vsel %vm899, %v768, %v770
      %v906 = vsel %vm899, %v772, %v774
      %v907 = vsel %vm899, %v774, %v776
      %v908 = vsel %vm899, %v776, %v778
      %v909 = vsel %vm899, %v780, %v782
      %v910 = vsel %vm899, %v782, %v784
      %v911 = vsel %vm899, %v784, %v786
      %v912 = vsel %vm899, %v788, %v790
      %v913 = vsel %vm899, %v790, %v792
      %v914 = vsel %vm899, %v792, %v794
      %v915 = vsel %vm899, %v796, %v798
      %v916 = vsel %vm899, %v798, %v800
      %v917 = vsel %vm899, %v800, %v802
      %v918 = vsel %vm899, %v804, %v806
      %v919 = vsel %vm899, %v806, %v808
      %v920 = vsel %vm899, %v808, %v810
      %v921 = vsel %vm899, %v812, %v814
      %v922 = vsel %vm899, %v814, %v816
      %v923 = vsel %vm899, %v816, %v818
      %v924 = vsel %vm899, %v820, %v822
      %v925 = vsel %vm899, %v822, %v824
      %v926 = vsel %vm899, %v824, %v826
      %v927 = vsel %vm899, %v828, %v830
      %v928 = vsel %vm899, %v830, %v832
      %v929 = vsel %vm899, %v832, %v834
      %v930 = vsel %vm899, %v836, %v838
      %v931 = vsel %vm899, %v838, %v840
      %v932 = vsel %vm899, %v840, %v842
      %v933 = vsel %vm899, %v844, %v846
      %v934 = vsel %vm899, %v846, %v848
      %v935 = vsel %vm899, %v848, %v850
      %v936 = vsel %vm899, %v852, %v854
      %v937 = vsel %vm899, %v854, %v856
      %v938 = vsel %vm899, %v856, %v858
      %v939 = vsel %vm899, %v860, %v862
      %v940 = vsel %vm899, %v862, %v864
      %v941 = vsel %vm899, %v864, %v866
      %v942 = vsel %vm899, %v868, %v870
      %v943 = vsel %vm899, %v870, %v872
      %v944 = vsel %vm899, %v872, %v874
      %v945 = vsel %vm899, %v876, %v878
      %v946 = vsel %vm899, %v878, %v880
      %v947 = vsel %vm899, %v880, %v882
      %v948 = vsel %vm899, %v884, %v886
      %v949 = vsel %vm899, %v886, %v888
      %v950 = vsel %vm899, %v888, %v890
      %v951 = vsel %vm899, %v892, %v894
      %v952 = vsel %vm899, %v894, %v896
      %v953 = vsel %vm899, %v896, %v898
      %v1026 = vld [vmem:[%s1] sm:$0xff]
      %v1027 = vld [vmem:[%s1 + $0x8] sm:$0xff]
      %v1028 = vld [vmem:[%s1 + $0x10] sm:$0xff]
      %v1029 = vld [vmem:[%s1 + $0x18] sm:$0xf]
      %v1030 = vld [vmem:[%s1 + $0x1c] sm:$0xff]
      %v1031 = vld [vmem:[%s1 + $0x24] sm:$0xff]
      %v1032 = vld [vmem:[%s1 + $0x2c] sm:$0xff]
      %v1033 = vld [vmem:[%s1 + $0x34] sm:$0xf]
      %v1034 = vld [vmem:[%s1 + $0x38] sm:$0xff]
      %v1035 = vld [vmem:[%s1 + $0x40] sm:$0xff]
      %v1036 = vld [vmem:[%s1 + $0x48] sm:$0xff]
      %v1037 = vld [vmem:[%s1 + $0x50] sm:$0xf]
      %v1038 = vld [vmem:[%s1 + $0x54] sm:$0xff]
      %v1039 = vld [vmem:[%s1 + $0x5c] sm:$0xff]
      %v1040 = vld [vmem:[%s1 + $0x64] sm:$0xff]
      %v1041 = vld [vmem:[%s1 + $0x6c] sm:$0xf]
      %v1042 = vld [vmem:[%s2] sm:$0xff]
      %v1043 = vld [vmem:[%s2 + $0x8] sm:$0xff]
      %v1044 = vld [vmem:[%s2 + $0x10] sm:$0xff]
      %v1045 = vld [vmem:[%s2 + $0x18] sm:$0xff]
      %1047 = vset.pattern.permute.xlu0 0
      %1048 = vperm.xlu0 %1047, %v1042
      %v1049 = vpop.permute.xlu0 %1048
      %1052 = vset.pattern.permute.xlu0 0
      %1053 = vperm.xlu0 %1052, %v1043
      %v1054 = vpop.permute.xlu0 %1053
      %1057 = vset.pattern.permute.xlu0 0
      %1058 = vperm.xlu0 %1057, %v1044
      %v1059 = vpop.permute.xlu0 %1058
      %1062 = vset.pattern.permute.xlu0 0
      %1063 = vperm.xlu0 %1062, %v1045
      %v1064 = vpop.permute.xlu0 %1063
      %v1082 = vunpack.c.l.b16 %v1026
      %v1083 = vunpack.c.h.b16 %v1026
      %v1084 = vunpack.c.l.b16 %v1027
      %v1085 = vunpack.c.h.b16 %v1027
      %v1086 = vunpack.c.l.b16 %v1028
      %v1087 = vunpack.c.h.b16 %v1028
      %v1088 = vunpack.c.l.b16 %v1029
      %v1089 = vunpack.c.l.b16 %v1030
      %v1090 = vunpack.c.h.b16 %v1030
      %v1091 = vunpack.c.l.b16 %v1031
      %v1092 = vunpack.c.h.b16 %v1031
      %v1093 = vunpack.c.l.b16 %v1032
      %v1094 = vunpack.c.h.b16 %v1032
      %v1095 = vunpack.c.l.b16 %v1033
      %v1096 = vunpack.c.l.b16 %v1034
      %v1097 = vunpack.c.h.b16 %v1034
      %v1098 = vunpack.c.l.b16 %v1035
      %v1099 = vunpack.c.h.b16 %v1035
      %v1100 = vunpack.c.l.b16 %v1036
      %v1101 = vunpack.c.h.b16 %v1036
      %v1102 = vunpack.c.l.b16 %v1037
      %v1103 = vunpack.c.l.b16 %v1038
      %v1104 = vunpack.c.h.b16 %v1038
      %v1105 = vunpack.c.l.b16 %v1039
      %v1106 = vunpack.c.h.b16 %v1039
      %v1107 = vunpack.c.l.b16 %v1040
      %v1108 = vunpack.c.h.b16 %v1040
      %v1109 = vunpack.c.l.b16 %v1041
      %v1110 = vpack.c.b16 %v1089, %v1082
      %v1111 = vpack.c.b16 %v1090, %v1083
      %v1112 = vpack.c.b16 %v1091, %v1084
      %v1113 = vpack.c.b16 %v1092, %v1085
      %v1114 = vpack.c.b16 %v1093, %v1086
      %v1115 = vpack.c.b16 %v1094, %v1087
      %v1116 = vpack.c.b16 %v1095, %v1088
      %v1117 = vpack.c.b16 %v1103, %v1096
      %v1118 = vpack.c.b16 %v1104, %v1097
      %v1119 = vpack.c.b16 %v1105, %v1098
      %v1120 = vpack.c.b16 %v1106, %v1099
      %v1121 = vpack.c.b16 %v1107, %v1100
      %v1122 = vpack.c.b16 %v1108, %v1101
      %v1123 = vpack.c.b16 %v1109, %v1102
      %vm1136 = vcmask 261120
      %v1138 = vsel %vm1136, %v1116, 0
      %v1141 = vsel %vm1136, %v1123, 0
      %1143 = vmatprep.subr.bf16.mxu0 %v350
      %1144 = vmatpush1.bf16.msra.mxu0 %v349
      %1145 = vmatprep.subr.bf16.mxu0 %v347
      %1146 = vmatpush1.bf16.msra.mxu0 %v346
      %1147 = vmatprep.subr.bf16.mxu0 %v319
      %1148 = vmatpush1.bf16.msra.mxu0 %v318
      %1149 = vmatprep.subr.bf16.mxu0 %v316
      %1150 = vmatpush1.bf16.msra.mxu0 %v315
      %1151 = vmatprep.subr.bf16.mxu0 %v288
      %1152 = vmatpush1.bf16.msra.mxu0 %v287
      %1153 = vmatprep.subr.bf16.mxu0 %v285
      %1154 = vmatpush1.bf16.msra.mxu0 %v284
      %1155 = vmatprep.subr.bf16.mxu0 %v256
      %1156 = vmatpush1.bf16.msra.mxu0 %v255
      %1157 = vmatprep.subr.bf16.mxu0 %v252
      %1158 = vmatpush1.bf16.msra.mxu0 %v251
      %1159 = vmatprep.subr.bf16.mxu0 %v474
      %1160 = vmatpush2.bf16.msra.mxu0 %v473
      %1161 = vmatprep.subr.bf16.mxu0 %v471
      %1162 = vmatpush2.bf16.msra.mxu0 %v470
      %1163 = vmatprep.subr.bf16.mxu0 %v443
      %1164 = vmatpush2.bf16.msra.mxu0 %v442
      %1165 = vmatprep.subr.bf16.mxu0 %v440
      %1166 = vmatpush2.bf16.msra.mxu0 %v439
      %1167 = vmatprep.subr.bf16.mxu0 %v412
      %1168 = vmatpush2.bf16.msra.mxu0 %v411
      %1169 = vmatprep.subr.bf16.mxu0 %v409
      %1170 = vmatpush2.bf16.msra.mxu0 %v408
      %1171 = vmatprep.subr.bf16.mxu0 %v381
      %1172 = vmatpush2.bf16.msra.mxu0 %v380
      %1173 = vmatprep.subr.bf16.mxu0 %v378
      %1174 = vmatpush2.bf16.msra.mxu0 %v377
      %1175 = vmatprep.mubr.bf16.mxu0 %v1111
      %1176 = vmatmul.mubr.bf16.gmra.mxu0 %v1110
      %v1177 = vpop.f32.mrf.mxu0
      %v1178 = vadd.f32 %v1049, %v1177
      %v1179 = vpop.f32.mrf.mxu0
      %v1180 = vadd.f32 %v1049, %v1179
      %v1181 = vpop.f32.mrf.mxu0
      %v1182 = vadd.f32 %v1054, %v1181
      %v1183 = vpop.f32.mrf.mxu0
      %v1184 = vadd.f32 %v1054, %v1183
      %1185 = vmatprep.mubr.bf16.mxu0 %v1118
      %1186 = vmatmul.mubr.bf16.gmra.mxu0 %v1117
      %v1187 = vpop.f32.mrf.mxu0
      %v1188 = vadd.f32 %v1059, %v1187
      %v1189 = vpop.f32.mrf.mxu0
      %v1190 = vadd.f32 %v1059, %v1189
      %v1191 = vpop.f32.mrf.mxu0
      %v1192 = vadd.f32 %v1064, %v1191
      %v1193 = vpop.f32.mrf.mxu0
      %v1194 = vadd.f32 %v1064, %v1193
      %1195 = vdwg.mxu0
      %1196 = vmatprep.subr.bf16.mxu0 %v598
      %1197 = vmatpush1.bf16.msra.mxu0 %v597
      %1198 = vmatprep.subr.bf16.mxu0 %v595
      %1199 = vmatpush1.bf16.msra.mxu0 %v594
      %1200 = vmatprep.subr.bf16.mxu0 %v567
      %1201 = vmatpush1.bf16.msra.mxu0 %v566
      %1202 = vmatprep.subr.bf16.mxu0 %v564
      %1203 = vmatpush1.bf16.msra.mxu0 %v563
      %1204 = vmatprep.subr.bf16.mxu0 %v536
      %1205 = vmatpush1.bf16.msra.mxu0 %v535
      %1206 = vmatprep.subr.bf16.mxu0 %v533
      %1207 = vmatpush1.bf16.msra.mxu0 %v532
      %1208 = vmatprep.subr.bf16.mxu0 %v505
      %1209 = vmatpush1.bf16.msra.mxu0 %v504
      %1210 = vmatprep.subr.bf16.mxu0 %v502
      %1211 = vmatpush1.bf16.msra.mxu0 %v501
      %1212 = vmatprep.subr.bf16.mxu0 %v722
      %1213 = vmatpush2.bf16.msra.mxu0 %v721
      %1214 = vmatprep.subr.bf16.mxu0 %v719
      %1215 = vmatpush2.bf16.msra.mxu0 %v718
      %1216 = vmatprep.subr.bf16.mxu0 %v691
      %1217 = vmatpush2.bf16.msra.mxu0 %v690
      %1218 = vmatprep.subr.bf16.mxu0 %v688
      %1219 = vmatpush2.bf16.msra.mxu0 %v687
      %1220 = vmatprep.subr.bf16.mxu0 %v660
      %1221 = vmatpush2.bf16.msra.mxu0 %v659
      %1222 = vmatprep.subr.bf16.mxu0 %v657
      %1223 = vmatpush2.bf16.msra.mxu0 %v656
      %1224 = vmatprep.subr.bf16.mxu0 %v629
      %1225 = vmatpush2.bf16.msra.mxu0 %v628
      %1226 = vmatprep.subr.bf16.mxu0 %v626
      %1227 = vmatpush2.bf16.msra.mxu0 %v625
      %1228 = vmatprep.mubr.bf16.mxu0 %v1113
      %1229 = vmatmul.mubr.bf16.gmra.mxu0 %v1112
      %v1230 = vpop.f32.mrf.mxu0
      %v1231 = vadd.f32 %v1178, %v1230
      %v1232 = vpop.f32.mrf.mxu0
      %v1233 = vadd.f32 %v1180, %v1232
      %v1234 = vpop.f32.mrf.mxu0
      %v1235 = vadd.f32 %v1182, %v1234
      %v1236 = vpop.f32.mrf.mxu0
      %v1237 = vadd.f32 %v1184, %v1236
      %1238 = vmatprep.mubr.bf16.mxu0 %v1120
      %1239 = vmatmul.mubr.bf16.gmra.mxu0 %v1119
      %v1240 = vpop.f32.mrf.mxu0
      %v1241 = vadd.f32 %v1188, %v1240
      %v1242 = vpop.f32.mrf.mxu0
      %v1243 = vadd.f32 %v1190, %v1242
      %v1244 = vpop.f32.mrf.mxu0
      %v1245 = vadd.f32 %v1192, %v1244
      %v1246 = vpop.f32.mrf.mxu0
      %v1247 = vadd.f32 %v1194, %v1246
      %1248 = vdwg.mxu0
      %1249 = vmatprep.subr.bf16.mxu0 %v922
      %1250 = vmatpush1.bf16.msra.mxu0 %v921
      %1251 = vmatprep.subr.bf16.mxu0 %v919
      %1252 = vmatpush1.bf16.msra.mxu0 %v918
      %1253 = vmatprep.subr.bf16.mxu0 %v916
      %1254 = vmatpush1.bf16.msra.mxu0 %v915
      %1255 = vmatprep.subr.bf16.mxu0 %v913
      %1256 = vmatpush1.bf16.msra.mxu0 %v912
      %1257 = vmatprep.subr.bf16.mxu0 %v910
      %1258 = vmatpush1.bf16.msra.mxu0 %v909
      %1259 = vmatprep.subr.bf16.mxu0 %v907
      %1260 = vmatpush1.bf16.msra.mxu0 %v906
      %1261 = vmatprep.subr.bf16.mxu0 %v904
      %1262 = vmatpush1.bf16.msra.mxu0 %v903
      %1263 = vmatprep.subr.bf16.mxu0 %v901
      %1264 = vmatpush1.bf16.msra.mxu0 %v900
      %1265 = vmatprep.subr.bf16.mxu0 %v946
      %1266 = vmatpush2.bf16.msra.mxu0 %v945
      %1267 = vmatprep.subr.bf16.mxu0 %v943
      %1268 = vmatpush2.bf16.msra.mxu0 %v942
      %1269 = vmatprep.subr.bf16.mxu0 %v940
      %1270 = vmatpush2.bf16.msra.mxu0 %v939
      %1271 = vmatprep.subr.bf16.mxu0 %v937
      %1272 = vmatpush2.bf16.msra.mxu0 %v936
      %1273 = vmatprep.subr.bf16.mxu0 %v934
      %1274 = vmatpush2.bf16.msra.mxu0 %v933
      %1275 = vmatprep.subr.bf16.mxu0 %v931
      %1276 = vmatpush2.bf16.msra.mxu0 %v930
      %1277 = vmatprep.subr.bf16.mxu0 %v928
      %1278 = vmatpush2.bf16.msra.mxu0 %v927
      %1279 = vmatprep.subr.bf16.mxu0 %v925
      %1280 = vmatpush2.bf16.msra.mxu0 %v924
      %1281 = vmatprep.mubr.bf16.mxu0 %v1115
      %1282 = vmatmul.mubr.bf16.gmra.mxu0 %v1114
      %v1283 = vpop.f32.mrf.mxu0
      %v1284 = vadd.f32 %v1231, %v1283
      %v1285 = vpop.f32.mrf.mxu0
      %v1286 = vadd.f32 %v1233, %v1285
      %v1287 = vpop.f32.mrf.mxu0
      %v1288 = vadd.f32 %v1235, %v1287
      %v1289 = vpop.f32.mrf.mxu0
      %v1290 = vadd.f32 %v1237, %v1289
      %1291 = vmatprep.mubr.bf16.mxu0 %v1122
      %1292 = vmatmul.mubr.bf16.gmra.mxu0 %v1121
      %v1293 = vpop.f32.mrf.mxu0
      %v1294 = vadd.f32 %v1241, %v1293
      %v1295 = vpop.f32.mrf.mxu0
      %v1296 = vadd.f32 %v1243, %v1295
      %v1297 = vpop.f32.mrf.mxu0
      %v1298 = vadd.f32 %v1245, %v1297
      %v1299 = vpop.f32.mrf.mxu0
      %v1300 = vadd.f32 %v1247, %v1299
      %1301 = vdwg.mxu0
      %1302 = vmatprep.subr.bf16.mxu0 0
      %1303 = vmatpush1.bf16.msra.mxu0 0
      %1304 = vmatprep.subr.bf16.mxu0 0
      %1305 = vmatpush1.bf16.msra.mxu0 0
      %1306 = vmatprep.subr.bf16.mxu0 0
      %1307 = vmatpush1.bf16.msra.mxu0 0
      %1308 = vmatprep.subr.bf16.mxu0 0
      %1309 = vmatpush1.bf16.msra.mxu0 0
      %1310 = vmatprep.subr.bf16.mxu0 0
      %1311 = vmatpush1.bf16.msra.mxu0 0
      %1312 = vmatprep.subr.bf16.mxu0 0
      %1313 = vmatpush1.bf16.msra.mxu0 0
      %1314 = vmatprep.subr.bf16.mxu0 %v952
      %1315 = vmatpush1.bf16.msra.mxu0 %v951
      %1316 = vmatprep.subr.bf16.mxu0 %v949
      %1317 = vmatpush1.bf16.msra.mxu0 %v948
      %1318 = vmatprep.subr.bf16.mxu0 0
      %1319 = vmatpush2.bf16.msra.mxu0 0
      %1320 = vmatprep.subr.bf16.mxu0 0
      %1321 = vmatpush2.bf16.msra.mxu0 0
      %1322 = vmatprep.subr.bf16.mxu0 0
      %1323 = vmatpush2.bf16.msra.mxu0 0
      %1324 = vmatprep.subr.bf16.mxu0 0
      %1325 = vmatpush2.bf16.msra.mxu0 0
      %1326 = vmatprep.subr.bf16.mxu0 0
      %1327 = vmatpush2.bf16.msra.mxu0 0
      %1328 = vmatprep.subr.bf16.mxu0 0
      %1329 = vmatpush2.bf16.msra.mxu0 0
      %1330 = vmatprep.subr.bf16.mxu0 0
      %1331 = vmatpush2.bf16.msra.mxu0 0
      %1332 = vmatprep.subr.bf16.mxu0 0
      %1333 = vmatpush2.bf16.msra.mxu0 0
      %1334 = vmatprep.mubr.bf16.mxu0 0
      %1335 = vmatmul.mubr.bf16.gmra.mxu0 %v1138
      %v1336 = vpop.f32.mrf.mxu0
      %v1337 = vadd.f32 %v1284, %v1336
      %v1338 = vpop.f32.mrf.mxu0
      %v1339 = vadd.f32 %v1286, %v1338
      %v1340 = vpop.f32.mrf.mxu0
      %v1341 = vadd.f32 %v1288, %v1340
      %v1342 = vpop.f32.mrf.mxu0
      %v1343 = vadd.f32 %v1290, %v1342
      %1344 = vmatprep.mubr.bf16.mxu0 0
      %1345 = vmatmul.mubr.bf16.gmra.mxu0 %v1141
      %v1346 = vpop.f32.mrf.mxu0
      %v1347 = vadd.f32 %v1294, %v1346
      %v1348 = vpop.f32.mrf.mxu0
      %v1349 = vadd.f32 %v1296, %v1348
      %v1350 = vpop.f32.mrf.mxu0
      %v1351 = vadd.f32 %v1298, %v1350
      %v1352 = vpop.f32.mrf.mxu0
      %v1353 = vadd.f32 %v1300, %v1352
      %1354 = vdwg.mxu0
      %1355 = vmatprep.subr.bf16.mxu0 %v344
      %1356 = vmatpush1.bf16.msra.mxu0 %v351
      %1357 = vmatprep.subr.bf16.mxu0 %v336
      %1358 = vmatpush1.bf16.msra.mxu0 %v348
      %1359 = vmatprep.subr.bf16.mxu0 %v313
      %1360 = vmatpush1.bf16.msra.mxu0 %v320
      %1361 = vmatprep.subr.bf16.mxu0 %v305
      %1362 = vmatpush1.bf16.msra.mxu0 %v317
      %1363 = vmatprep.subr.bf16.mxu0 %v282
      %1364 = vmatpush1.bf16.msra.mxu0 %v289
      %1365 = vmatprep.subr.bf16.mxu0 %v274
      %1366 = vmatpush1.bf16.msra.mxu0 %v286
      %1367 = vmatprep.subr.bf16.mxu0 %v258
      %1368 = vmatpush1.bf16.msra.mxu0 %v257
      %1369 = vmatprep.subr.bf16.mxu0 %v254
      %1370 = vmatpush1.bf16.msra.mxu0 %v253
      %1371 = vmatprep.subr.bf16.mxu0 %v468
      %1372 = vmatpush2.bf16.msra.mxu0 %v475
      %1373 = vmatprep.subr.bf16.mxu0 %v460
      %1374 = vmatpush2.bf16.msra.mxu0 %v472
      %1375 = vmatprep.subr.bf16.mxu0 %v437
      %1376 = vmatpush2.bf16.msra.mxu0 %v444
      %1377 = vmatprep.subr.bf16.mxu0 %v429
      %1378 = vmatpush2.bf16.msra.mxu0 %v441
      %1379 = vmatprep.subr.bf16.mxu0 %v406
      %1380 = vmatpush2.bf16.msra.mxu0 %v413
      %1381 = vmatprep.subr.bf16.mxu0 %v398
      %1382 = vmatpush2.bf16.msra.mxu0 %v410
      %1383 = vmatprep.subr.bf16.mxu0 %v375
      %1384 = vmatpush2.bf16.msra.mxu0 %v382
      %1385 = vmatprep.subr.bf16.mxu0 %v367
      %1386 = vmatpush2.bf16.msra.mxu0 %v379
      %1387 = vmatprep.mubr.bf16.mxu0 %v1111
      %1388 = vmatmul.mubr.bf16.gmra.mxu0 %v1110
      %v1389 = vpop.f32.mrf.mxu0
      %v1390 = vadd.f32 %v1049, %v1389
      %v1391 = vpop.f32.mrf.mxu0
      %v1392 = vadd.f32 %v1049, %v1391
      %v1393 = vpop.f32.mrf.mxu0
      %v1394 = vadd.f32 %v1054, %v1393
      %v1395 = vpop.f32.mrf.mxu0
      %v1396 = vadd.f32 %v1054, %v1395
      %1397 = vmatprep.mubr.bf16.mxu0 %v1118
      %1398 = vmatmul.mubr.bf16.gmra.mxu0 %v1117
      %v1399 = vpop.f32.mrf.mxu0
      %v1400 = vadd.f32 %v1059, %v1399
      %v1401 = vpop.f32.mrf.mxu0
      %v1402 = vadd.f32 %v1059, %v1401
      %v1403 = vpop.f32.mrf.mxu0
      %v1404 = vadd.f32 %v1064, %v1403
      %v1405 = vpop.f32.mrf.mxu0
      %v1406 = vadd.f32 %v1064, %v1405
      %1407 = vdwg.mxu0
      %1408 = vmatprep.subr.bf16.mxu0 %v592
      %1409 = vmatpush1.bf16.msra.mxu0 %v599
      %1410 = vmatprep.subr.bf16.mxu0 %v584
      %1411 = vmatpush1.bf16.msra.mxu0 %v596
      %1412 = vmatprep.subr.bf16.mxu0 %v561
      %1413 = vmatpush1.bf16.msra.mxu0 %v568
      %1414 = vmatprep.subr.bf16.mxu0 %v553
      %1415 = vmatpush1.bf16.msra.mxu0 %v565
      %1416 = vmatprep.subr.bf16.mxu0 %v530
      %1417 = vmatpush1.bf16.msra.mxu0 %v537
      %1418 = vmatprep.subr.bf16.mxu0 %v522
      %1419 = vmatpush1.bf16.msra.mxu0 %v534
      %1420 = vmatprep.subr.bf16.mxu0 %v499
      %1421 = vmatpush1.bf16.msra.mxu0 %v506
      %1422 = vmatprep.subr.bf16.mxu0 %v491
      %1423 = vmatpush1.bf16.msra.mxu0 %v503
      %1424 = vmatprep.subr.bf16.mxu0 %v716
      %1425 = vmatpush2.bf16.msra.mxu0 %v723
      %1426 = vmatprep.subr.bf16.mxu0 %v708
      %1427 = vmatpush2.bf16.msra.mxu0 %v720
      %1428 = vmatprep.subr.bf16.mxu0 %v685
      %1429 = vmatpush2.bf16.msra.mxu0 %v692
      %1430 = vmatprep.subr.bf16.mxu0 %v677
      %1431 = vmatpush2.bf16.msra.mxu0 %v689
      %1432 = vmatprep.subr.bf16.mxu0 %v654
      %1433 = vmatpush2.bf16.msra.mxu0 %v661
      %1434 = vmatprep.subr.bf16.mxu0 %v646
      %1435 = vmatpush2.bf16.msra.mxu0 %v658
      %1436 = vmatprep.subr.bf16.mxu0 %v623
      %1437 = vmatpush2.bf16.msra.mxu0 %v630
      %1438 = vmatprep.subr.bf16.mxu0 %v615
      %1439 = vmatpush2.bf16.msra.mxu0 %v627
      %1440 = vmatprep.mubr.bf16.mxu0 %v1113
      %1441 = vmatmul.mubr.bf16.gmra.mxu0 %v1112
      %v1442 = vpop.f32.mrf.mxu0
      %v1443 = vadd.f32 %v1390, %v1442
      %v1444 = vpop.f32.mrf.mxu0
      %v1445 = vadd.f32 %v1392, %v1444
      %v1446 = vpop.f32.mrf.mxu0
      %v1447 = vadd.f32 %v1394, %v1446
      %v1448 = vpop.f32.mrf.mxu0
      %v1449 = vadd.f32 %v1396, %v1448
      %1450 = vmatprep.mubr.bf16.mxu0 %v1120
      %1451 = vmatmul.mubr.bf16.gmra.mxu0 %v1119
      %v1452 = vpop.f32.mrf.mxu0
      %v1453 = vadd.f32 %v1400, %v1452
      %v1454 = vpop.f32.mrf.mxu0
      %v1455 = vadd.f32 %v1402, %v1454
      %v1456 = vpop.f32.mrf.mxu0
      %v1457 = vadd.f32 %v1404, %v1456
      %v1458 = vpop.f32.mrf.mxu0
      %v1459 = vadd.f32 %v1406, %v1458
      %1460 = vdwg.mxu0
      %1461 = vmatprep.subr.bf16.mxu0 %v818
      %1462 = vmatpush1.bf16.msra.mxu0 %v923
      %1463 = vmatprep.subr.bf16.mxu0 %v810
      %1464 = vmatpush1.bf16.msra.mxu0 %v920
      %1465 = vmatprep.subr.bf16.mxu0 %v802
      %1466 = vmatpush1.bf16.msra.mxu0 %v917
      %1467 = vmatprep.subr.bf16.mxu0 %v794
      %1468 = vmatpush1.bf16.msra.mxu0 %v914
      %1469 = vmatprep.subr.bf16.mxu0 %v786
      %1470 = vmatpush1.bf16.msra.mxu0 %v911
      %1471 = vmatprep.subr.bf16.mxu0 %v778
      %1472 = vmatpush1.bf16.msra.mxu0 %v908
      %1473 = vmatprep.subr.bf16.mxu0 %v770
      %1474 = vmatpush1.bf16.msra.mxu0 %v905
      %1475 = vmatprep.subr.bf16.mxu0 %v762
      %1476 = vmatpush1.bf16.msra.mxu0 %v902
      %1477 = vmatprep.subr.bf16.mxu0 %v882
      %1478 = vmatpush2.bf16.msra.mxu0 %v947
      %1479 = vmatprep.subr.bf16.mxu0 %v874
      %1480 = vmatpush2.bf16.msra.mxu0 %v944
      %1481 = vmatprep.subr.bf16.mxu0 %v866
      %1482 = vmatpush2.bf16.msra.mxu0 %v941
      %1483 = vmatprep.subr.bf16.mxu0 %v858
      %1484 = vmatpush2.bf16.msra.mxu0 %v938
      %1485 = vmatprep.subr.bf16.mxu0 %v850
      %1486 = vmatpush2.bf16.msra.mxu0 %v935
      %1487 = vmatprep.subr.bf16.mxu0 %v842
      %1488 = vmatpush2.bf16.msra.mxu0 %v932
      %1489 = vmatprep.subr.bf16.mxu0 %v834
      %1490 = vmatpush2.bf16.msra.mxu0 %v929
      %1491 = vmatprep.subr.bf16.mxu0 %v826
      %1492 = vmatpush2.bf16.msra.mxu0 %v926
      %1493 = vmatprep.mubr.bf16.mxu0 %v1115
      %1494 = vmatmul.mubr.bf16.gmra.mxu0 %v1114
      %v1495 = vpop.f32.mrf.mxu0
      %v1496 = vadd.f32 %v1443, %v1495
      %v1497 = vpop.f32.mrf.mxu0
      %v1498 = vadd.f32 %v1445, %v1497
      %v1499 = vpop.f32.mrf.mxu0
      %v1500 = vadd.f32 %v1447, %v1499
      %v1501 = vpop.f32.mrf.mxu0
      %v1502 = vadd.f32 %v1449, %v1501
      %1503 = vmatprep.mubr.bf16.mxu0 %v1122
      %1504 = vmatmul.mubr.bf16.gmra.mxu0 %v1121
      %v1505 = vpop.f32.mrf.mxu0
      %v1506 = vadd.f32 %v1453, %v1505
      %v1507 = vpop.f32.mrf.mxu0
      %v1508 = vadd.f32 %v1455, %v1507
      %v1509 = vpop.f32.mrf.mxu0
      %v1510 = vadd.f32 %v1457, %v1509
      %v1511 = vpop.f32.mrf.mxu0
      %v1512 = vadd.f32 %v1459, %v1511
      %1513 = vdwg.mxu0
      %1514 = vmatprep.subr.bf16.mxu0 0
      %1515 = vmatpush1.bf16.msra.mxu0 0
      %1516 = vmatprep.subr.bf16.mxu0 0
      %1517 = vmatpush1.bf16.msra.mxu0 0
      %1518 = vmatprep.subr.bf16.mxu0 0
      %1519 = vmatpush1.bf16.msra.mxu0 0
      %1520 = vmatprep.subr.bf16.mxu0 0
      %1521 = vmatpush1.bf16.msra.mxu0 0
      %1522 = vmatprep.subr.bf16.mxu0 0
      %1523 = vmatpush1.bf16.msra.mxu0 0
      %1524 = vmatprep.subr.bf16.mxu0 0
      %1525 = vmatpush1.bf16.msra.mxu0 0
      %1526 = vmatprep.subr.bf16.mxu0 %v898
      %1527 = vmatpush1.bf16.msra.mxu0 %v953
      %1528 = vmatprep.subr.bf16.mxu0 %v890
      %1529 = vmatpush1.bf16.msra.mxu0 %v950
      %1530 = vmatprep.subr.bf16.mxu0 0
      %1531 = vmatpush2.bf16.msra.mxu0 0
      %1532 = vmatprep.subr.bf16.mxu0 0
      %1533 = vmatpush2.bf16.msra.mxu0 0
      %1534 = vmatprep.subr.bf16.mxu0 0
      %1535 = vmatpush2.bf16.msra.mxu0 0
      %1536 = vmatprep.subr.bf16.mxu0 0
      %1537 = vmatpush2.bf16.msra.mxu0 0
      %1538 = vmatprep.subr.bf16.mxu0 0
      %1539 = vmatpush2.bf16.msra.mxu0 0
      %1540 = vmatprep.subr.bf16.mxu0 0
      %1541 = vmatpush2.bf16.msra.mxu0 0
      %1542 = vmatprep.subr.bf16.mxu0 0
      %1543 = vmatpush2.bf16.msra.mxu0 0
      %1544 = vmatprep.subr.bf16.mxu0 0
      %1545 = vmatpush2.bf16.msra.mxu0 0
      %1546 = vmatprep.mubr.bf16.mxu0 0
      %1547 = vmatmul.mubr.bf16.gmra.mxu0 %v1138
      %v1548 = vpop.f32.mrf.mxu0
      %v1549 = vadd.f32 %v1496, %v1548
      %v1550 = vpop.f32.mrf.mxu0
      %v1551 = vadd.f32 %v1498, %v1550
      %v1552 = vpop.f32.mrf.mxu0
      %v1553 = vadd.f32 %v1500, %v1552
      %v1554 = vpop.f32.mrf.mxu0
      %v1555 = vadd.f32 %v1502, %v1554
      %1556 = vmatprep.mubr.bf16.mxu0 0
      %1557 = vmatmul.mubr.bf16.gmra.mxu0 %v1141
      %v1558 = vpop.f32.mrf.mxu0
      %v1559 = vadd.f32 %v1506, %v1558
      %v1560 = vpop.f32.mrf.mxu0
      %v1561 = vadd.f32 %v1508, %v1560
      %v1562 = vpop.f32.mrf.mxu0
      %v1563 = vadd.f32 %v1510, %v1562
      %v1564 = vpop.f32.mrf.mxu0
      %v1565 = vadd.f32 %v1512, %v1564
      %1566 = vdwg.mxu0
      %v1567 = vtanh.pop %v1337
      %v1568 = vtanh.pop %v1339
      %v1569 = vtanh.pop %v1549
      %v1570 = vtanh.pop %v1551
      %v1571 = vtanh.pop %v1341
      %v1572 = vtanh.pop %v1343
      %v1573 = vtanh.pop %v1553
      %v1574 = vtanh.pop %v1555
      %v1575 = vtanh.pop %v1347
      %v1576 = vtanh.pop %v1349
      %v1577 = vtanh.pop %v1559
      %v1578 = vtanh.pop %v1561
      %v1579 = vtanh.pop %v1351
      %v1580 = vtanh.pop %v1353
      %v1581 = vtanh.pop %v1563
      %v1582 = vtanh.pop %v1565
      %v1584 = vlaneseq
      %v1585 = vshrl.u32 %v1584, 7
      %v1586 = vsub.s32 0, %v1585
      %v1587 = vrot.slane %v218, %v1586
      %v1588 = vlaneseq
      %v1589 = vshrl.u32 %v1588, 7
      %v1590 = vsub.s32 1, %v1589
      %v1591 = vrot.slane %v218, %v1590
      %v1592 = vlaneseq
      %v1593 = vshrl.u32 %v1592, 7
      %v1594 = vsub.s32 2, %v1593
      %v1595 = vrot.slane %v218, %v1594
      %v1596 = vlaneseq
      %v1597 = vshrl.u32 %v1596, 7
      %v1598 = vsub.s32 3, %v1597
      %v1599 = vrot.slane %v218, %v1598
      %v1604 = vmul.f32 %v1567, %v1587
      %v1605 = vmul.f32 %v1568, %v1591
      %v1606 = vmul.f32 %v1569, %v1595
      %v1607 = vmul.f32 %v1570, %v1599
      %v1608 = vmul.f32 %v1571, %v1587
      %v1609 = vmul.f32 %v1572, %v1591
      %v1610 = vmul.f32 %v1573, %v1595
      %v1611 = vmul.f32 %v1574, %v1599
      %v1612 = vmul.f32 %v1575, %v1587
      %v1613 = vmul.f32 %v1576, %v1591
      %v1614 = vmul.f32 %v1577, %v1595
      %v1615 = vmul.f32 %v1578, %v1599
      %v1616 = vmul.f32 %v1579, %v1587
      %v1617 = vmul.f32 %v1580, %v1591
      %v1618 = vmul.f32 %v1581, %v1595
      %v1619 = vmul.f32 %v1582, %v1599
      %v1620 = vpack.c.bf16 %v1608, %v1604
      %v1621 = vpack.c.bf16 %v1609, %v1605
      %v1622 = vpack.c.bf16 %v1610, %v1606
      %v1623 = vpack.c.bf16 %v1611, %v1607
      %v1624 = vpack.c.bf16 %v1616, %v1612
      %v1625 = vpack.c.bf16 %v1617, %v1613
      %v1626 = vpack.c.bf16 %v1618, %v1614
      %v1627 = vpack.c.bf16 %v1619, %v1615
      %v1636 = vunpack.c.l.b16 %v1620
      %v1637 = vunpack.c.l.b16 %v1621
      %v1638 = vunpack.c.l.b16 %v1622
      %v1639 = vunpack.c.l.b16 %v1623
      %v1640 = vunpack.c.h.b16 %v1620
      %v1641 = vunpack.c.h.b16 %v1621
      %v1642 = vunpack.c.h.b16 %v1622
      %v1643 = vunpack.c.h.b16 %v1623
      %v1644 = vunpack.c.l.b16 %v1624
      %v1645 = vunpack.c.l.b16 %v1625
      %v1646 = vunpack.c.l.b16 %v1626
      %v1647 = vunpack.c.l.b16 %v1627
      %v1648 = vunpack.c.h.b16 %v1624
      %v1649 = vunpack.c.h.b16 %v1625
      %v1650 = vunpack.c.h.b16 %v1626
      %v1651 = vunpack.c.h.b16 %v1627
      %v1652 = vpack.c.b16 %v1637, %v1636
      %v1653 = vpack.c.b16 %v1639, %v1638
      %v1654 = vpack.c.b16 %v1641, %v1640
      %v1655 = vpack.c.b16 %v1643, %v1642
      %v1656 = vpack.c.b16 %v1645, %v1644
      %v1657 = vpack.c.b16 %v1647, %v1646
      %v1658 = vpack.c.b16 %v1649, %v1648
      %v1659 = vpack.c.b16 %v1651, %v1650
      %1660 = vrot.lane.b32.xlu0 %v1652, 42
      %v1661 = vpop.permute.xlu0 %1660
      %1662 = vrot.lane.b32.xlu0 %v1653, 42
      %v1663 = vpop.permute.xlu0 %1662
      %1664 = vrot.lane.b32.xlu0 %v1654, 42
      %v1665 = vpop.permute.xlu0 %1664
      %1666 = vrot.lane.b32.xlu0 %v1655, 42
      %v1667 = vpop.permute.xlu0 %1666
      %1668 = vrot.lane.b32.xlu0 %v1656, 42
      %v1669 = vpop.permute.xlu0 %1668
      %1670 = vrot.lane.b32.xlu0 %v1657, 42
      %v1671 = vpop.permute.xlu0 %1670
      %1672 = vrot.lane.b32.xlu0 %v1658, 42
      %v1673 = vpop.permute.xlu0 %1672
      %1674 = vrot.lane.b32.xlu0 %v1659, 42
      %v1675 = vpop.permute.xlu0 %1674
      %v1676 = vrot.slane %v1661, 4
      %v1677 = vrot.slane %v1663, 4
      %v1678 = vrot.slane %v1665, 4
      %v1679 = vrot.slane %v1667, 4
      %v1680 = vrot.slane %v1669, 4
      %v1681 = vrot.slane %v1671, 4
      %v1682 = vrot.slane %v1673, 4
      %v1683 = vrot.slane %v1675, 4
      %vm1684 = vcmask 343040
      %v1685 = vsel %vm1684, %v1676, %v1661
      %vm1686 = vcmask 1043456
      %v1687 = vsel %vm1686, %v1676, %v1677
      %v1688 = vsel %vm1684, %v1687, %v1663
      %v1689 = vsel %vm1684, %v1678, %v1665
      %v1690 = vsel %vm1686, %v1678, %v1679
      %v1691 = vsel %vm1684, %v1690, %v1667
      %v1692 = vsel %vm1684, %v1680, %v1669
      %v1693 = vsel %vm1686, %v1680, %v1681
      %v1694 = vsel %vm1684, %v1693, %v1671
      %v1695 = vsel %vm1684, %v1682, %v1673
      %v1696 = vsel %vm1686, %v1682, %v1683
      %v1697 = vsel %vm1684, %v1696, %v1675
      %vm1706 = vcmask 1043792
      %vm1707 = vcmask 1047556
      %vm1708 = vmor %vm1707, %vm1706
      %1709 = vst.msk [vmem:[#allocation2] sm:$0xff] %vm1708, %v1685
      %vm1710 = vcmask 474116
      %vm1711 = vmor %vm1710, %vm208
      %1712 = vst.msk [vmem:[#allocation2 + $0x8] sm:$0xff] %vm1711, %v1688
      %1713 = vst.msk [vmem:[#allocation2 + $0x10] sm:$0xff] %vm1708, %v1689
      %1714 = vst.msk [vmem:[#allocation2 + $0x18] sm:$0xff] %vm1711, %v1691
      %1715 = vst.msk [vmem:[#allocation2 + $0x20] sm:$0xff] %vm1708, %v1692
      %1716 = vst.msk [vmem:[#allocation2 + $0x28] sm:$0xff] %vm1711, %v1694
      %1717 = vst.msk [vmem:[#allocation2 + $0x30] sm:$0xff] %vm1708, %v1695
      %1718 = vst.msk [vmem:[#allocation2 + $0x38] sm:$0xff] %vm1711, %v1697
      %v1719 = vld [vmem:[#allocation2] sm:$0xff]
      %v1720 = vld [vmem:[#allocation2 + $0x8] sm:$0xff]
      %v1721 = vld [vmem:[#allocation2 + $0x10] sm:$0xff]
      %v1722 = vld [vmem:[#allocation2 + $0x18] sm:$0xff]
      %v1723 = vld [vmem:[#allocation2 + $0x20] sm:$0xff]
      %v1724 = vld [vmem:[#allocation2 + $0x28] sm:$0xff]
      %v1725 = vld [vmem:[#allocation2 + $0x30] sm:$0xff]
      %v1726 = vld [vmem:[#allocation2 + $0x38] sm:$0xff]
      %v1735 = vunpack.c.l.b16 %v1719
      %v1736 = vunpack.c.h.b16 %v1719
      %v1737 = vunpack.c.l.b16 %v1720
      %v1738 = vunpack.c.h.b16 %v1720
      %v1739 = vunpack.c.l.b16 %v1721
      %v1740 = vunpack.c.h.b16 %v1721
      %v1741 = vunpack.c.l.b16 %v1722
      %v1742 = vunpack.c.h.b16 %v1722
      %v1743 = vunpack.c.l.b16 %v1723
      %v1744 = vunpack.c.h.b16 %v1723
      %v1745 = vunpack.c.l.b16 %v1724
      %v1746 = vunpack.c.h.b16 %v1724
      %v1747 = vunpack.c.l.b16 %v1725
      %v1748 = vunpack.c.h.b16 %v1725
      %v1749 = vunpack.c.l.b16 %v1726
      %v1750 = vunpack.c.h.b16 %v1726
      %v1751 = vpack.c.b16 %v1739, %v1735
      %v1752 = vpack.c.b16 %v1740, %v1736
      %v1753 = vpack.c.b16 %v1741, %v1737
      %v1754 = vpack.c.b16 %v1742, %v1738
      %v1755 = vpack.c.b16 %v1747, %v1743
      %v1756 = vpack.c.b16 %v1748, %v1744
      %v1757 = vpack.c.b16 %v1749, %v1745
      %v1758 = vpack.c.b16 %v1750, %v1746
      %1767 = vrot.lane.b32.xlu0 %v1751, 127
      %v1768 = vpop.permute.xlu0 %1767
      %1769 = vrot.lane.b32.xlu0 %v1752, 127
      %v1770 = vpop.permute.xlu0 %1769
      %1771 = vrot.lane.b32.xlu0 %v1753, 127
      %v1772 = vpop.permute.xlu0 %1771
      %1773 = vrot.lane.b32.xlu0 %v1754, 127
      %v1774 = vpop.permute.xlu0 %1773
      %1775 = vrot.lane.b32.xlu0 %v1755, 127
      %v1776 = vpop.permute.xlu0 %1775
      %1777 = vrot.lane.b32.xlu0 %v1756, 127
      %v1778 = vpop.permute.xlu0 %1777
      %1779 = vrot.lane.b32.xlu0 %v1757, 127
      %v1780 = vpop.permute.xlu0 %1779
      %1781 = vrot.lane.b32.xlu0 %v1758, 127
      %v1782 = vpop.permute.xlu0 %1781
      %v1783 = vsel %vm283, %v1768, %v1770
      %v1784 = vsel %vm283, %v1770, %v1772
      %v1785 = vsel %vm283, %v1772, %v1774
      %v1786 = vsel %vm283, %v1776, %v1778
      %v1787 = vsel %vm283, %v1778, %v1780
      %v1788 = vsel %vm283, %v1780, %v1782
      %1797 = vrot.lane.b32.xlu0 %v1751, 126
      %v1798 = vpop.permute.xlu0 %1797
      %1799 = vrot.lane.b32.xlu0 %v1752, 126
      %v1800 = vpop.permute.xlu0 %1799
      %1801 = vrot.lane.b32.xlu0 %v1753, 126
      %v1802 = vpop.permute.xlu0 %1801
      %1803 = vrot.lane.b32.xlu0 %v1754, 126
      %v1804 = vpop.permute.xlu0 %1803
      %1805 = vrot.lane.b32.xlu0 %v1755, 126
      %v1806 = vpop.permute.xlu0 %1805
      %1807 = vrot.lane.b32.xlu0 %v1756, 126
      %v1808 = vpop.permute.xlu0 %1807
      %1809 = vrot.lane.b32.xlu0 %v1757, 126
      %v1810 = vpop.permute.xlu0 %1809
      %1811 = vrot.lane.b32.xlu0 %v1758, 126
      %v1812 = vpop.permute.xlu0 %1811
      %v1813 = vsel %vm314, %v1798, %v1800
      %v1814 = vsel %vm314, %v1800, %v1802
      %v1815 = vsel %vm314, %v1802, %v1804
      %v1816 = vsel %vm314, %v1806, %v1808
      %v1817 = vsel %vm314, %v1808, %v1810
      %v1818 = vsel %vm314, %v1810, %v1812
      %1827 = vrot.lane.b32.xlu0 %v1751, 125
      %v1828 = vpop.permute.xlu0 %1827
      %1829 = vrot.lane.b32.xlu0 %v1752, 125
      %v1830 = vpop.permute.xlu0 %1829
      %1831 = vrot.lane.b32.xlu0 %v1753, 125
      %v1832 = vpop.permute.xlu0 %1831
      %1833 = vrot.lane.b32.xlu0 %v1754, 125
      %v1834 = vpop.permute.xlu0 %1833
      %1835 = vrot.lane.b32.xlu0 %v1755, 125
      %v1836 = vpop.permute.xlu0 %1835
      %1837 = vrot.lane.b32.xlu0 %v1756, 125
      %v1838 = vpop.permute.xlu0 %1837
      %1839 = vrot.lane.b32.xlu0 %v1757, 125
      %v1840 = vpop.permute.xlu0 %1839
      %1841 = vrot.lane.b32.xlu0 %v1758, 125
      %v1842 = vpop.permute.xlu0 %1841
      %v1843 = vsel %vm345, %v1828, %v1830
      %v1844 = vsel %vm345, %v1830, %v1832
      %v1845 = vsel %vm345, %v1832, %v1834
      %v1846 = vsel %vm345, %v1836, %v1838
      %v1847 = vsel %vm345, %v1838, %v1840
      %v1848 = vsel %vm345, %v1840, %v1842
      %1857 = vrot.lane.b32.xlu0 %v1751, 124
      %v1858 = vpop.permute.xlu0 %1857
      %1859 = vrot.lane.b32.xlu0 %v1752, 124
      %v1860 = vpop.permute.xlu0 %1859
      %1861 = vrot.lane.b32.xlu0 %v1753, 124
      %v1862 = vpop.permute.xlu0 %1861
      %1863 = vrot.lane.b32.xlu0 %v1754, 124
      %v1864 = vpop.permute.xlu0 %1863
      %1865 = vrot.lane.b32.xlu0 %v1755, 124
      %v1866 = vpop.permute.xlu0 %1865
      %1867 = vrot.lane.b32.xlu0 %v1756, 124
      %v1868 = vpop.permute.xlu0 %1867
      %1869 = vrot.lane.b32.xlu0 %v1757, 124
      %v1870 = vpop.permute.xlu0 %1869
      %1871 = vrot.lane.b32.xlu0 %v1758, 124
      %v1872 = vpop.permute.xlu0 %1871
      %v1873 = vsel %vm376, %v1858, %v1860
      %v1874 = vsel %vm376, %v1860, %v1862
      %v1875 = vsel %vm376, %v1862, %v1864
      %v1876 = vsel %vm376, %v1866, %v1868
      %v1877 = vsel %vm376, %v1868, %v1870
      %v1878 = vsel %vm376, %v1870, %v1872
      %1887 = vrot.lane.b32.xlu0 %v1751, 108
      %v1888 = vpop.permute.xlu0 %1887
      %1889 = vrot.lane.b32.xlu0 %v1752, 108
      %v1890 = vpop.permute.xlu0 %1889
      %1891 = vrot.lane.b32.xlu0 %v1753, 108
      %v1892 = vpop.permute.xlu0 %1891
      %1893 = vrot.lane.b32.xlu0 %v1754, 108
      %v1894 = vpop.permute.xlu0 %1893
      %1895 = vrot.lane.b32.xlu0 %v1755, 108
      %v1896 = vpop.permute.xlu0 %1895
      %1897 = vrot.lane.b32.xlu0 %v1756, 108
      %v1898 = vpop.permute.xlu0 %1897
      %1899 = vrot.lane.b32.xlu0 %v1757, 108
      %v1900 = vpop.permute.xlu0 %1899
      %1901 = vrot.lane.b32.xlu0 %v1758, 108
      %v1902 = vpop.permute.xlu0 %1901
      %v1903 = vsel %vm407, %v1888, %v1890
      %v1904 = vsel %vm407, %v1890, %v1892
      %v1905 = vsel %vm407, %v1892, %v1894
      %v1906 = vsel %vm407, %v1896, %v1898
      %v1907 = vsel %vm407, %v1898, %v1900
      %v1908 = vsel %vm407, %v1900, %v1902
      %1917 = vrot.lane.b32.xlu0 %v1751, 107
      %v1918 = vpop.permute.xlu0 %1917
      %1919 = vrot.lane.b32.xlu0 %v1752, 107
      %v1920 = vpop.permute.xlu0 %1919
      %1921 = vrot.lane.b32.xlu0 %v1753, 107
      %v1922 = vpop.permute.xlu0 %1921
      %1923 = vrot.lane.b32.xlu0 %v1754, 107
      %v1924 = vpop.permute.xlu0 %1923
      %1925 = vrot.lane.b32.xlu0 %v1755, 107
      %v1926 = vpop.permute.xlu0 %1925
      %1927 = vrot.lane.b32.xlu0 %v1756, 107
      %v1928 = vpop.permute.xlu0 %1927
      %1929 = vrot.lane.b32.xlu0 %v1757, 107
      %v1930 = vpop.permute.xlu0 %1929
      %1931 = vrot.lane.b32.xlu0 %v1758, 107
      %v1932 = vpop.permute.xlu0 %1931
      %v1933 = vsel %vm438, %v1918, %v1920
      %v1934 = vsel %vm438, %v1920, %v1922
      %v1935 = vsel %vm438, %v1922, %v1924
      %v1936 = vsel %vm438, %v1926, %v1928
      %v1937 = vsel %vm438, %v1928, %v1930
      %v1938 = vsel %vm438, %v1930, %v1932
      %1947 = vrot.lane.b32.xlu0 %v1751, 106
      %v1948 = vpop.permute.xlu0 %1947
      %1949 = vrot.lane.b32.xlu0 %v1752, 106
      %v1950 = vpop.permute.xlu0 %1949
      %1951 = vrot.lane.b32.xlu0 %v1753, 106
      %v1952 = vpop.permute.xlu0 %1951
      %1953 = vrot.lane.b32.xlu0 %v1754, 106
      %v1954 = vpop.permute.xlu0 %1953
      %1955 = vrot.lane.b32.xlu0 %v1755, 106
      %v1956 = vpop.permute.xlu0 %1955
      %1957 = vrot.lane.b32.xlu0 %v1756, 106
      %v1958 = vpop.permute.xlu0 %1957
      %1959 = vrot.lane.b32.xlu0 %v1757, 106
      %v1960 = vpop.permute.xlu0 %1959
      %1961 = vrot.lane.b32.xlu0 %v1758, 106
      %v1962 = vpop.permute.xlu0 %1961
      %v1963 = vsel %vm469, %v1948, %v1950
      %v1964 = vsel %vm469, %v1950, %v1952
      %v1965 = vsel %vm469, %v1952, %v1954
      %v1966 = vsel %vm469, %v1956, %v1958
      %v1967 = vsel %vm469, %v1958, %v1960
      %v1968 = vsel %vm469, %v1960, %v1962
      %1977 = vrot.lane.b32.xlu0 %v1751, 105
      %v1978 = vpop.permute.xlu0 %1977
      %1979 = vrot.lane.b32.xlu0 %v1752, 105
      %v1980 = vpop.permute.xlu0 %1979
      %1981 = vrot.lane.b32.xlu0 %v1753, 105
      %v1982 = vpop.permute.xlu0 %1981
      %1983 = vrot.lane.b32.xlu0 %v1754, 105
      %v1984 = vpop.permute.xlu0 %1983
      %1985 = vrot.lane.b32.xlu0 %v1755, 105
      %v1986 = vpop.permute.xlu0 %1985
      %1987 = vrot.lane.b32.xlu0 %v1756, 105
      %v1988 = vpop.permute.xlu0 %1987
      %1989 = vrot.lane.b32.xlu0 %v1757, 105
      %v1990 = vpop.permute.xlu0 %1989
      %1991 = vrot.lane.b32.xlu0 %v1758, 105
      %v1992 = vpop.permute.xlu0 %1991
      %v1993 = vsel %vm500, %v1978, %v1980
      %v1994 = vsel %vm500, %v1980, %v1982
      %v1995 = vsel %vm500, %v1982, %v1984
      %v1996 = vsel %vm500, %v1986, %v1988
      %v1997 = vsel %vm500, %v1988, %v1990
      %v1998 = vsel %vm500, %v1990, %v1992
      %2007 = vrot.lane.b32.xlu0 %v1751, 104
      %v2008 = vpop.permute.xlu0 %2007
      %2009 = vrot.lane.b32.xlu0 %v1752, 104
      %v2010 = vpop.permute.xlu0 %2009
      %2011 = vrot.lane.b32.xlu0 %v1753, 104
      %v2012 = vpop.permute.xlu0 %2011
      %2013 = vrot.lane.b32.xlu0 %v1754, 104
      %v2014 = vpop.permute.xlu0 %2013
      %2015 = vrot.lane.b32.xlu0 %v1755, 104
      %v2016 = vpop.permute.xlu0 %2015
      %2017 = vrot.lane.b32.xlu0 %v1756, 104
      %v2018 = vpop.permute.xlu0 %2017
      %2019 = vrot.lane.b32.xlu0 %v1757, 104
      %v2020 = vpop.permute.xlu0 %2019
      %2021 = vrot.lane.b32.xlu0 %v1758, 104
      %v2022 = vpop.permute.xlu0 %2021
      %v2023 = vsel %vm531, %v2008, %v2010
      %v2024 = vsel %vm531, %v2010, %v2012
      %v2025 = vsel %vm531, %v2012, %v2014
      %v2026 = vsel %vm531, %v2016, %v2018
      %v2027 = vsel %vm531, %v2018, %v2020
      %v2028 = vsel %vm531, %v2020, %v2022
      %2037 = vrot.lane.b32.xlu0 %v1751, 88
      %v2038 = vpop.permute.xlu0 %2037
      %2039 = vrot.lane.b32.xlu0 %v1752, 88
      %v2040 = vpop.permute.xlu0 %2039
      %2041 = vrot.lane.b32.xlu0 %v1753, 88
      %v2042 = vpop.permute.xlu0 %2041
      %2043 = vrot.lane.b32.xlu0 %v1754, 88
      %v2044 = vpop.permute.xlu0 %2043
      %2045 = vrot.lane.b32.xlu0 %v1755, 88
      %v2046 = vpop.permute.xlu0 %2045
      %2047 = vrot.lane.b32.xlu0 %v1756, 88
      %v2048 = vpop.permute.xlu0 %2047
      %2049 = vrot.lane.b32.xlu0 %v1757, 88
      %v2050 = vpop.permute.xlu0 %2049
      %2051 = vrot.lane.b32.xlu0 %v1758, 88
      %v2052 = vpop.permute.xlu0 %2051
      %v2053 = vsel %vm562, %v2038, %v2040
      %v2054 = vsel %vm562, %v2040, %v2042
      %v2055 = vsel %vm562, %v2042, %v2044
      %v2056 = vsel %vm562, %v2046, %v2048
      %v2057 = vsel %vm562, %v2048, %v2050
      %v2058 = vsel %vm562, %v2050, %v2052
      %2067 = vrot.lane.b32.xlu0 %v1751, 87
      %v2068 = vpop.permute.xlu0 %2067
      %2069 = vrot.lane.b32.xlu0 %v1752, 87
      %v2070 = vpop.permute.xlu0 %2069
      %2071 = vrot.lane.b32.xlu0 %v1753, 87
      %v2072 = vpop.permute.xlu0 %2071
      %2073 = vrot.lane.b32.xlu0 %v1754, 87
      %v2074 = vpop.permute.xlu0 %2073
      %2075 = vrot.lane.b32.xlu0 %v1755, 87
      %v2076 = vpop.permute.xlu0 %2075
      %2077 = vrot.lane.b32.xlu0 %v1756, 87
      %v2078 = vpop.permute.xlu0 %2077
      %2079 = vrot.lane.b32.xlu0 %v1757, 87
      %v2080 = vpop.permute.xlu0 %2079
      %2081 = vrot.lane.b32.xlu0 %v1758, 87
      %v2082 = vpop.permute.xlu0 %2081
      %v2083 = vsel %vm593, %v2068, %v2070
      %v2084 = vsel %vm593, %v2070, %v2072
      %v2085 = vsel %vm593, %v2072, %v2074
      %v2086 = vsel %vm593, %v2076, %v2078
      %v2087 = vsel %vm593, %v2078, %v2080
      %v2088 = vsel %vm593, %v2080, %v2082
      %2097 = vrot.lane.b32.xlu0 %v1751, 86
      %v2098 = vpop.permute.xlu0 %2097
      %2099 = vrot.lane.b32.xlu0 %v1752, 86
      %v2100 = vpop.permute.xlu0 %2099
      %2101 = vrot.lane.b32.xlu0 %v1753, 86
      %v2102 = vpop.permute.xlu0 %2101
      %2103 = vrot.lane.b32.xlu0 %v1754, 86
      %v2104 = vpop.permute.xlu0 %2103
      %2105 = vrot.lane.b32.xlu0 %v1755, 86
      %v2106 = vpop.permute.xlu0 %2105
      %2107 = vrot.lane.b32.xlu0 %v1756, 86
      %v2108 = vpop.permute.xlu0 %2107
      %2109 = vrot.lane.b32.xlu0 %v1757, 86
      %v2110 = vpop.permute.xlu0 %2109
      %2111 = vrot.lane.b32.xlu0 %v1758, 86
      %v2112 = vpop.permute.xlu0 %2111
      %v2113 = vsel %vm624, %v2098, %v2100
      %v2114 = vsel %vm624, %v2100, %v2102
      %v2115 = vsel %vm624, %v2102, %v2104
      %v2116 = vsel %vm624, %v2106, %v2108
      %v2117 = vsel %vm624, %v2108, %v2110
      %v2118 = vsel %vm624, %v2110, %v2112
      %2127 = vrot.lane.b32.xlu0 %v1751, 85
      %v2128 = vpop.permute.xlu0 %2127
      %2129 = vrot.lane.b32.xlu0 %v1752, 85
      %v2130 = vpop.permute.xlu0 %2129
      %2131 = vrot.lane.b32.xlu0 %v1753, 85
      %v2132 = vpop.permute.xlu0 %2131
      %2133 = vrot.lane.b32.xlu0 %v1754, 85
      %v2134 = vpop.permute.xlu0 %2133
      %2135 = vrot.lane.b32.xlu0 %v1755, 85
      %v2136 = vpop.permute.xlu0 %2135
      %2137 = vrot.lane.b32.xlu0 %v1756, 85
      %v2138 = vpop.permute.xlu0 %2137
      %2139 = vrot.lane.b32.xlu0 %v1757, 85
      %v2140 = vpop.permute.xlu0 %2139
      %2141 = vrot.lane.b32.xlu0 %v1758, 85
      %v2142 = vpop.permute.xlu0 %2141
      %v2143 = vsel %vm655, %v2128, %v2130
      %v2144 = vsel %vm655, %v2130, %v2132
      %v2145 = vsel %vm655, %v2132, %v2134
      %v2146 = vsel %vm655, %v2136, %v2138
      %v2147 = vsel %vm655, %v2138, %v2140
      %v2148 = vsel %vm655, %v2140, %v2142
      %2157 = vrot.lane.b32.xlu0 %v1751, 84
      %v2158 = vpop.permute.xlu0 %2157
      %2159 = vrot.lane.b32.xlu0 %v1752, 84
      %v2160 = vpop.permute.xlu0 %2159
      %2161 = vrot.lane.b32.xlu0 %v1753, 84
      %v2162 = vpop.permute.xlu0 %2161
      %2163 = vrot.lane.b32.xlu0 %v1754, 84
      %v2164 = vpop.permute.xlu0 %2163
      %2165 = vrot.lane.b32.xlu0 %v1755, 84
      %v2166 = vpop.permute.xlu0 %2165
      %2167 = vrot.lane.b32.xlu0 %v1756, 84
      %v2168 = vpop.permute.xlu0 %2167
      %2169 = vrot.lane.b32.xlu0 %v1757, 84
      %v2170 = vpop.permute.xlu0 %2169
      %2171 = vrot.lane.b32.xlu0 %v1758, 84
      %v2172 = vpop.permute.xlu0 %2171
      %v2173 = vsel %vm686, %v2158, %v2160
      %v2174 = vsel %vm686, %v2160, %v2162
      %v2175 = vsel %vm686, %v2162, %v2164
      %v2176 = vsel %vm686, %v2166, %v2168
      %v2177 = vsel %vm686, %v2168, %v2170
      %v2178 = vsel %vm686, %v2170, %v2172
      %2187 = vrot.lane.b32.xlu0 %v1751, 68
      %v2188 = vpop.permute.xlu0 %2187
      %2189 = vrot.lane.b32.xlu0 %v1752, 68
      %v2190 = vpop.permute.xlu0 %2189
      %2191 = vrot.lane.b32.xlu0 %v1753, 68
      %v2192 = vpop.permute.xlu0 %2191
      %2193 = vrot.lane.b32.xlu0 %v1754, 68
      %v2194 = vpop.permute.xlu0 %2193
      %2195 = vrot.lane.b32.xlu0 %v1755, 68
      %v2196 = vpop.permute.xlu0 %2195
      %2197 = vrot.lane.b32.xlu0 %v1756, 68
      %v2198 = vpop.permute.xlu0 %2197
      %2199 = vrot.lane.b32.xlu0 %v1757, 68
      %v2200 = vpop.permute.xlu0 %2199
      %2201 = vrot.lane.b32.xlu0 %v1758, 68
      %v2202 = vpop.permute.xlu0 %2201
      %v2203 = vsel %vm717, %v2188, %v2190
      %v2204 = vsel %vm717, %v2190, %v2192
      %v2205 = vsel %vm717, %v2192, %v2194
      %v2206 = vsel %vm717, %v2196, %v2198
      %v2207 = vsel %vm717, %v2198, %v2200
      %v2208 = vsel %vm717, %v2200, %v2202
      %2217 = vrot.lane.b32.xlu0 %v1751, 109
      %v2218 = vpop.permute.xlu0 %2217
      %2219 = vrot.lane.b32.xlu0 %v1752, 109
      %v2220 = vpop.permute.xlu0 %2219
      %2221 = vrot.lane.b32.xlu0 %v1753, 109
      %v2222 = vpop.permute.xlu0 %2221
      %2223 = vrot.lane.b32.xlu0 %v1754, 109
      %v2224 = vpop.permute.xlu0 %2223
      %2225 = vrot.lane.b32.xlu0 %v1755, 109
      %v2226 = vpop.permute.xlu0 %2225
      %2227 = vrot.lane.b32.xlu0 %v1756, 109
      %v2228 = vpop.permute.xlu0 %2227
      %2229 = vrot.lane.b32.xlu0 %v1757, 109
      %v2230 = vpop.permute.xlu0 %2229
      %2231 = vrot.lane.b32.xlu0 %v1758, 109
      %v2232 = vpop.permute.xlu0 %2231
      %v2233 = vsel %vm748, %v2218, %v2220
      %v2234 = vsel %vm748, %v2220, %v2222
      %v2235 = vsel %vm748, %v2222, %v2224
      %v2236 = vsel %vm748, %v2226, %v2228
      %v2237 = vsel %vm748, %v2228, %v2230
      %v2238 = vsel %vm748, %v2230, %v2232
      %2239 = vrot.lane.b32.xlu0 %v1751, 67
      %v2240 = vpop.permute.xlu0 %2239
      %2241 = vrot.lane.b32.xlu0 %v1752, 67
      %v2242 = vpop.permute.xlu0 %2241
      %2243 = vrot.lane.b32.xlu0 %v1753, 67
      %v2244 = vpop.permute.xlu0 %2243
      %2245 = vrot.lane.b32.xlu0 %v1754, 67
      %v2246 = vpop.permute.xlu0 %2245
      %2247 = vrot.lane.b32.xlu0 %v1755, 67
      %v2248 = vpop.permute.xlu0 %2247
      %2249 = vrot.lane.b32.xlu0 %v1756, 67
      %v2250 = vpop.permute.xlu0 %2249
      %2251 = vrot.lane.b32.xlu0 %v1757, 67
      %v2252 = vpop.permute.xlu0 %2251
      %2253 = vrot.lane.b32.xlu0 %v1758, 67
      %v2254 = vpop.permute.xlu0 %2253
      %2255 = vrot.lane.b32.xlu0 %v1783, 67
      %v2256 = vpop.permute.xlu0 %2255
      %2257 = vrot.lane.b32.xlu0 %v1784, 67
      %v2258 = vpop.permute.xlu0 %2257
      %2259 = vrot.lane.b32.xlu0 %v1785, 67
      %v2260 = vpop.permute.xlu0 %2259
      %2261 = vrot.lane.b32.xlu0 %v1774, 67
      %v2262 = vpop.permute.xlu0 %2261
      %2263 = vrot.lane.b32.xlu0 %v1786, 67
      %v2264 = vpop.permute.xlu0 %2263
      %2265 = vrot.lane.b32.xlu0 %v1787, 67
      %v2266 = vpop.permute.xlu0 %2265
      %2267 = vrot.lane.b32.xlu0 %v1788, 67
      %v2268 = vpop.permute.xlu0 %2267
      %2269 = vrot.lane.b32.xlu0 %v1782, 67
      %v2270 = vpop.permute.xlu0 %2269
      %2271 = vrot.lane.b32.xlu0 %v1813, 67
      %v2272 = vpop.permute.xlu0 %2271
      %2273 = vrot.lane.b32.xlu0 %v1814, 67
      %v2274 = vpop.permute.xlu0 %2273
      %2275 = vrot.lane.b32.xlu0 %v1815, 67
      %v2276 = vpop.permute.xlu0 %2275
      %2277 = vrot.lane.b32.xlu0 %v1804, 67
      %v2278 = vpop.permute.xlu0 %2277
      %2279 = vrot.lane.b32.xlu0 %v1816, 67
      %v2280 = vpop.permute.xlu0 %2279
      %2281 = vrot.lane.b32.xlu0 %v1817, 67
      %v2282 = vpop.permute.xlu0 %2281
      %2283 = vrot.lane.b32.xlu0 %v1818, 67
      %v2284 = vpop.permute.xlu0 %2283
      %2285 = vrot.lane.b32.xlu0 %v1812, 67
      %v2286 = vpop.permute.xlu0 %2285
      %2287 = vrot.lane.b32.xlu0 %v1843, 67
      %v2288 = vpop.permute.xlu0 %2287
      %2289 = vrot.lane.b32.xlu0 %v1844, 67
      %v2290 = vpop.permute.xlu0 %2289
      %2291 = vrot.lane.b32.xlu0 %v1845, 67
      %v2292 = vpop.permute.xlu0 %2291
      %2293 = vrot.lane.b32.xlu0 %v1834, 67
      %v2294 = vpop.permute.xlu0 %2293
      %2295 = vrot.lane.b32.xlu0 %v1846, 67
      %v2296 = vpop.permute.xlu0 %2295
      %2297 = vrot.lane.b32.xlu0 %v1847, 67
      %v2298 = vpop.permute.xlu0 %2297
      %2299 = vrot.lane.b32.xlu0 %v1848, 67
      %v2300 = vpop.permute.xlu0 %2299
      %2301 = vrot.lane.b32.xlu0 %v1842, 67
      %v2302 = vpop.permute.xlu0 %2301
      %2303 = vrot.lane.b32.xlu0 %v2233, 67
      %v2304 = vpop.permute.xlu0 %2303
      %2305 = vrot.lane.b32.xlu0 %v2234, 67
      %v2306 = vpop.permute.xlu0 %2305
      %2307 = vrot.lane.b32.xlu0 %v2235, 67
      %v2308 = vpop.permute.xlu0 %2307
      %2309 = vrot.lane.b32.xlu0 %v2224, 67
      %v2310 = vpop.permute.xlu0 %2309
      %2311 = vrot.lane.b32.xlu0 %v2236, 67
      %v2312 = vpop.permute.xlu0 %2311
      %2313 = vrot.lane.b32.xlu0 %v2237, 67
      %v2314 = vpop.permute.xlu0 %2313
      %2315 = vrot.lane.b32.xlu0 %v2238, 67
      %v2316 = vpop.permute.xlu0 %2315
      %2317 = vrot.lane.b32.xlu0 %v2232, 67
      %v2318 = vpop.permute.xlu0 %2317
      %2319 = vrot.lane.b32.xlu0 %v1903, 67
      %v2320 = vpop.permute.xlu0 %2319
      %2321 = vrot.lane.b32.xlu0 %v1904, 67
      %v2322 = vpop.permute.xlu0 %2321
      %2323 = vrot.lane.b32.xlu0 %v1905, 67
      %v2324 = vpop.permute.xlu0 %2323
      %2325 = vrot.lane.b32.xlu0 %v1894, 67
      %v2326 = vpop.permute.xlu0 %2325
      %2327 = vrot.lane.b32.xlu0 %v1906, 67
      %v2328 = vpop.permute.xlu0 %2327
      %2329 = vrot.lane.b32.xlu0 %v1907, 67
      %v2330 = vpop.permute.xlu0 %2329
      %2331 = vrot.lane.b32.xlu0 %v1908, 67
      %v2332 = vpop.permute.xlu0 %2331
      %2333 = vrot.lane.b32.xlu0 %v1902, 67
      %v2334 = vpop.permute.xlu0 %2333
      %2335 = vrot.lane.b32.xlu0 %v1933, 67
      %v2336 = vpop.permute.xlu0 %2335
      %2337 = vrot.lane.b32.xlu0 %v1934, 67
      %v2338 = vpop.permute.xlu0 %2337
      %2339 = vrot.lane.b32.xlu0 %v1935, 67
      %v2340 = vpop.permute.xlu0 %2339
      %2341 = vrot.lane.b32.xlu0 %v1924, 67
      %v2342 = vpop.permute.xlu0 %2341
      %2343 = vrot.lane.b32.xlu0 %v1936, 67
      %v2344 = vpop.permute.xlu0 %2343
      %2345 = vrot.lane.b32.xlu0 %v1937, 67
      %v2346 = vpop.permute.xlu0 %2345
      %2347 = vrot.lane.b32.xlu0 %v1938, 67
      %v2348 = vpop.permute.xlu0 %2347
      %2349 = vrot.lane.b32.xlu0 %v1932, 67
      %v2350 = vpop.permute.xlu0 %2349
      %2351 = vrot.lane.b32.xlu0 %v1963, 67
      %v2352 = vpop.permute.xlu0 %2351
      %2353 = vrot.lane.b32.xlu0 %v1964, 67
      %v2354 = vpop.permute.xlu0 %2353
      %2355 = vrot.lane.b32.xlu0 %v1965, 67
      %v2356 = vpop.permute.xlu0 %2355
      %2357 = vrot.lane.b32.xlu0 %v1954, 67
      %v2358 = vpop.permute.xlu0 %2357
      %2359 = vrot.lane.b32.xlu0 %v1966, 67
      %v2360 = vpop.permute.xlu0 %2359
      %2361 = vrot.lane.b32.xlu0 %v1967, 67
      %v2362 = vpop.permute.xlu0 %2361
      %2363 = vrot.lane.b32.xlu0 %v1968, 67
      %v2364 = vpop.permute.xlu0 %2363
      %2365 = vrot.lane.b32.xlu0 %v1962, 67
      %v2366 = vpop.permute.xlu0 %2365
      %2367 = vrot.lane.b32.xlu0 %v1993, 67
      %v2368 = vpop.permute.xlu0 %2367
      %2369 = vrot.lane.b32.xlu0 %v1994, 67
      %v2370 = vpop.permute.xlu0 %2369
      %2371 = vrot.lane.b32.xlu0 %v1995, 67
      %v2372 = vpop.permute.xlu0 %2371
      %2373 = vrot.lane.b32.xlu0 %v1984, 67
      %v2374 = vpop.permute.xlu0 %2373
      %2375 = vrot.lane.b32.xlu0 %v1996, 67
      %v2376 = vpop.permute.xlu0 %2375
      %2377 = vrot.lane.b32.xlu0 %v1997, 67
      %v2378 = vpop.permute.xlu0 %2377
      %2379 = vrot.lane.b32.xlu0 %v1998, 67
      %v2380 = vpop.permute.xlu0 %2379
      %2381 = vrot.lane.b32.xlu0 %v1992, 67
      %v2382 = vpop.permute.xlu0 %2381
      %v2383 = vsel %vm899, %v2240, %v2242
      %v2384 = vsel %vm899, %v2242, %v2244
      %v2385 = vsel %vm899, %v2244, %v2246
      %v2386 = vsel %vm899, %v2248, %v2250
      %v2387 = vsel %vm899, %v2250, %v2252
      %v2388 = vsel %vm899, %v2252, %v2254
      %v2389 = vsel %vm899, %v2256, %v2258
      %v2390 = vsel %vm899, %v2258, %v2260
      %v2391 = vsel %vm899, %v2260, %v2262
      %v2392 = vsel %vm899, %v2264, %v2266
      %v2393 = vsel %vm899, %v2266, %v2268
      %v2394 = vsel %vm899, %v2268, %v2270
      %v2395 = vsel %vm899, %v2272, %v2274
      %v2396 = vsel %vm899, %v2274, %v2276
      %v2397 = vsel %vm899, %v2276, %v2278
      %v2398 = vsel %vm899, %v2280, %v2282
      %v2399 = vsel %vm899, %v2282, %v2284
      %v2400 = vsel %vm899, %v2284, %v2286
      %v2401 = vsel %vm899, %v2288, %v2290
      %v2402 = vsel %vm899, %v2290, %v2292
      %v2403 = vsel %vm899, %v2292, %v2294
      %v2404 = vsel %vm899, %v2296, %v2298
      %v2405 = vsel %vm899, %v2298, %v2300
      %v2406 = vsel %vm899, %v2300, %v2302
      %v2407 = vsel %vm899, %v2304, %v2306
      %v2408 = vsel %vm899, %v2306, %v2308
      %v2409 = vsel %vm899, %v2308, %v2310
      %v2410 = vsel %vm899, %v2312, %v2314
      %v2411 = vsel %vm899, %v2314, %v2316
      %v2412 = vsel %vm899, %v2316, %v2318
      %v2413 = vsel %vm899, %v2320, %v2322
      %v2414 = vsel %vm899, %v2322, %v2324
      %v2415 = vsel %vm899, %v2324, %v2326
      %v2416 = vsel %vm899, %v2328, %v2330
      %v2417 = vsel %vm899, %v2330, %v2332
      %v2418 = vsel %vm899, %v2332, %v2334
      %v2419 = vsel %vm899, %v2336, %v2338
      %v2420 = vsel %vm899, %v2338, %v2340
      %v2421 = vsel %vm899, %v2340, %v2342
      %v2422 = vsel %vm899, %v2344, %v2346
      %v2423 = vsel %vm899, %v2346, %v2348
      %v2424 = vsel %vm899, %v2348, %v2350
      %v2425 = vsel %vm899, %v2352, %v2354
      %v2426 = vsel %vm899, %v2354, %v2356
      %v2427 = vsel %vm899, %v2356, %v2358
      %v2428 = vsel %vm899, %v2360, %v2362
      %v2429 = vsel %vm899, %v2362, %v2364
      %v2430 = vsel %vm899, %v2364, %v2366
      %v2431 = vsel %vm899, %v2368, %v2370
      %v2432 = vsel %vm899, %v2370, %v2372
      %v2433 = vsel %vm899, %v2372, %v2374
      %v2434 = vsel %vm899, %v2376, %v2378
      %v2435 = vsel %vm899, %v2378, %v2380
      %v2436 = vsel %vm899, %v2380, %v2382
      %s2509 = scalar_lea.vmem %s1, 112
      %v2510 = vld [vmem:[%s2509] sm:$0xff]
      %v2511 = vld [vmem:[%s2509 + $0x8] sm:$0xff]
      %v2512 = vld [vmem:[%s2509 + $0x10] sm:$0xff]
      %v2513 = vld [vmem:[%s2509 + $0x18] sm:$0xf]
      %v2514 = vld [vmem:[%s2509 + $0x1c] sm:$0xff]
      %v2515 = vld [vmem:[%s2509 + $0x24] sm:$0xff]
      %v2516 = vld [vmem:[%s2509 + $0x2c] sm:$0xff]
      %v2517 = vld [vmem:[%s2509 + $0x34] sm:$0xf]
      %v2518 = vld [vmem:[%s2509 + $0x38] sm:$0xff]
      %v2519 = vld [vmem:[%s2509 + $0x40] sm:$0xff]
      %v2520 = vld [vmem:[%s2509 + $0x48] sm:$0xff]
      %v2521 = vld [vmem:[%s2509 + $0x50] sm:$0xf]
      %v2522 = vld [vmem:[%s2509 + $0x54] sm:$0xff]
      %v2523 = vld [vmem:[%s2509 + $0x5c] sm:$0xff]
      %v2524 = vld [vmem:[%s2509 + $0x64] sm:$0xff]
      %v2525 = vld [vmem:[%s2509 + $0x6c] sm:$0xf]
      %s2526 = scalar_lea.vmem %s2, 32
      %v2527 = vld [vmem:[%s2526] sm:$0xff]
      %v2528 = vld [vmem:[%s2526 + $0x8] sm:$0xff]
      %v2529 = vld [vmem:[%s2526 + $0x10] sm:$0xff]
      %v2530 = vld [vmem:[%s2526 + $0x18] sm:$0xff]
      %2532 = vset.pattern.permute.xlu0 0
      %2533 = vperm.xlu0 %2532, %v2527
      %v2534 = vpop.permute.xlu0 %2533
      %2537 = vset.pattern.permute.xlu0 0
      %2538 = vperm.xlu0 %2537, %v2528
      %v2539 = vpop.permute.xlu0 %2538
      %2542 = vset.pattern.permute.xlu0 0
      %2543 = vperm.xlu0 %2542, %v2529
      %v2544 = vpop.permute.xlu0 %2543
      %2547 = vset.pattern.permute.xlu0 0
      %2548 = vperm.xlu0 %2547, %v2530
      %v2549 = vpop.permute.xlu0 %2548
      %v2567 = vunpack.c.l.b16 %v2510
      %v2568 = vunpack.c.h.b16 %v2510
      %v2569 = vunpack.c.l.b16 %v2511
      %v2570 = vunpack.c.h.b16 %v2511
      %v2571 = vunpack.c.l.b16 %v2512
      %v2572 = vunpack.c.h.b16 %v2512
      %v2573 = vunpack.c.l.b16 %v2513
      %v2574 = vunpack.c.l.b16 %v2514
      %v2575 = vunpack.c.h.b16 %v2514
      %v2576 = vunpack.c.l.b16 %v2515
      %v2577 = vunpack.c.h.b16 %v2515
      %v2578 = vunpack.c.l.b16 %v2516
      %v2579 = vunpack.c.h.b16 %v2516
      %v2580 = vunpack.c.l.b16 %v2517
      %v2581 = vunpack.c.l.b16 %v2518
      %v2582 = vunpack.c.h.b16 %v2518
      %v2583 = vunpack.c.l.b16 %v2519
      %v2584 = vunpack.c.h.b16 %v2519
      %v2585 = vunpack.c.l.b16 %v2520
      %v2586 = vunpack.c.h.b16 %v2520
      %v2587 = vunpack.c.l.b16 %v2521
      %v2588 = vunpack.c.l.b16 %v2522
      %v2589 = vunpack.c.h.b16 %v2522
      %v2590 = vunpack.c.l.b16 %v2523
      %v2591 = vunpack.c.h.b16 %v2523
      %v2592 = vunpack.c.l.b16 %v2524
      %v2593 = vunpack.c.h.b16 %v2524
      %v2594 = vunpack.c.l.b16 %v2525
      %v2595 = vpack.c.b16 %v2574, %v2567
      %v2596 = vpack.c.b16 %v2575, %v2568
      %v2597 = vpack.c.b16 %v2576, %v2569
      %v2598 = vpack.c.b16 %v2577, %v2570
      %v2599 = vpack.c.b16 %v2578, %v2571
      %v2600 = vpack.c.b16 %v2579, %v2572
      %v2601 = vpack.c.b16 %v2580, %v2573
      %v2602 = vpack.c.b16 %v2588, %v2581
      %v2603 = vpack.c.b16 %v2589, %v2582
      %v2604 = vpack.c.b16 %v2590, %v2583
      %v2605 = vpack.c.b16 %v2591, %v2584
      %v2606 = vpack.c.b16 %v2592, %v2585
      %v2607 = vpack.c.b16 %v2593, %v2586
      %v2608 = vpack.c.b16 %v2594, %v2587
      %v2622 = vsel %vm1136, %v2601, 0
      %v2625 = vsel %vm1136, %v2608, 0
      %2627 = vmatprep.subr.bf16.mxu0 %v1847
      %2628 = vmatpush1.bf16.msra.mxu0 %v1846
      %2629 = vmatprep.subr.bf16.mxu0 %v1844
      %2630 = vmatpush1.bf16.msra.mxu0 %v1843
      %2631 = vmatprep.subr.bf16.mxu0 %v1817
      %2632 = vmatpush1.bf16.msra.mxu0 %v1816
      %2633 = vmatprep.subr.bf16.mxu0 %v1814
      %2634 = vmatpush1.bf16.msra.mxu0 %v1813
      %2635 = vmatprep.subr.bf16.mxu0 %v1787
      %2636 = vmatpush1.bf16.msra.mxu0 %v1786
      %2637 = vmatprep.subr.bf16.mxu0 %v1784
      %2638 = vmatpush1.bf16.msra.mxu0 %v1783
      %2639 = vmatprep.subr.bf16.mxu0 %v1756
      %2640 = vmatpush1.bf16.msra.mxu0 %v1755
      %2641 = vmatprep.subr.bf16.mxu0 %v1752
      %2642 = vmatpush1.bf16.msra.mxu0 %v1751
      %2643 = vmatprep.subr.bf16.mxu0 %v1967
      %2644 = vmatpush2.bf16.msra.mxu0 %v1966
      %2645 = vmatprep.subr.bf16.mxu0 %v1964
      %2646 = vmatpush2.bf16.msra.mxu0 %v1963
      %2647 = vmatprep.subr.bf16.mxu0 %v1937
      %2648 = vmatpush2.bf16.msra.mxu0 %v1936
      %2649 = vmatprep.subr.bf16.mxu0 %v1934
      %2650 = vmatpush2.bf16.msra.mxu0 %v1933
      %2651 = vmatprep.subr.bf16.mxu0 %v1907
      %2652 = vmatpush2.bf16.msra.mxu0 %v1906
      %2653 = vmatprep.subr.bf16.mxu0 %v1904
      %2654 = vmatpush2.bf16.msra.mxu0 %v1903
      %2655 = vmatprep.subr.bf16.mxu0 %v1877
      %2656 = vmatpush2.bf16.msra.mxu0 %v1876
      %2657 = vmatprep.subr.bf16.mxu0 %v1874
      %2658 = vmatpush2.bf16.msra.mxu0 %v1873
      %2659 = vmatprep.mubr.bf16.mxu0 %v2596
      %2660 = vmatmul.mubr.bf16.gmra.mxu0 %v2595
      %v2661 = vpop.f32.mrf.mxu0
      %v2662 = vadd.f32 %v2534, %v2661
      %v2663 = vpop.f32.mrf.mxu0
      %v2664 = vadd.f32 %v2534, %v2663
      %v2665 = vpop.f32.mrf.mxu0
      %v2666 = vadd.f32 %v2539, %v2665
      %v2667 = vpop.f32.mrf.mxu0
      %v2668 = vadd.f32 %v2539, %v2667
      %2669 = vmatprep.mubr.bf16.mxu0 %v2603
      %2670 = vmatmul.mubr.bf16.gmra.mxu0 %v2602
      %v2671 = vpop.f32.mrf.mxu0
      %v2672 = vadd.f32 %v2544, %v2671
      %v2673 = vpop.f32.mrf.mxu0
      %v2674 = vadd.f32 %v2544, %v2673
      %v2675 = vpop.f32.mrf.mxu0
      %v2676 = vadd.f32 %v2549, %v2675
      %v2677 = vpop.f32.mrf.mxu0
      %v2678 = vadd.f32 %v2549, %v2677
      %2679 = vdwg.mxu0
      %2680 = vmatprep.subr.bf16.mxu0 %v2087
      %2681 = vmatpush1.bf16.msra.mxu0 %v2086
      %2682 = vmatprep.subr.bf16.mxu0 %v2084
      %2683 = vmatpush1.bf16.msra.mxu0 %v2083
      %2684 = vmatprep.subr.bf16.mxu0 %v2057
      %2685 = vmatpush1.bf16.msra.mxu0 %v2056
      %2686 = vmatprep.subr.bf16.mxu0 %v2054
      %2687 = vmatpush1.bf16.msra.mxu0 %v2053
      %2688 = vmatprep.subr.bf16.mxu0 %v2027
      %2689 = vmatpush1.bf16.msra.mxu0 %v2026
      %2690 = vmatprep.subr.bf16.mxu0 %v2024
      %2691 = vmatpush1.bf16.msra.mxu0 %v2023
      %2692 = vmatprep.subr.bf16.mxu0 %v1997
      %2693 = vmatpush1.bf16.msra.mxu0 %v1996
      %2694 = vmatprep.subr.bf16.mxu0 %v1994
      %2695 = vmatpush1.bf16.msra.mxu0 %v1993
      %2696 = vmatprep.subr.bf16.mxu0 %v2207
      %2697 = vmatpush2.bf16.msra.mxu0 %v2206
      %2698 = vmatprep.subr.bf16.mxu0 %v2204
      %2699 = vmatpush2.bf16.msra.mxu0 %v2203
      %2700 = vmatprep.subr.bf16.mxu0 %v2177
      %2701 = vmatpush2.bf16.msra.mxu0 %v2176
      %2702 = vmatprep.subr.bf16.mxu0 %v2174
      %2703 = vmatpush2.bf16.msra.mxu0 %v2173
      %2704 = vmatprep.subr.bf16.mxu0 %v2147
      %2705 = vmatpush2.bf16.msra.mxu0 %v2146
      %2706 = vmatprep.subr.bf16.mxu0 %v2144
      %2707 = vmatpush2.bf16.msra.mxu0 %v2143
      %2708 = vmatprep.subr.bf16.mxu0 %v2117
      %2709 = vmatpush2.bf16.msra.mxu0 %v2116
      %2710 = vmatprep.subr.bf16.mxu0 %v2114
      %2711 = vmatpush2.bf16.msra.mxu0 %v2113
      %2712 = vmatprep.mubr.bf16.mxu0 %v2598
      %2713 = vmatmul.mubr.bf16.gmra.mxu0 %v2597
      %v2714 = vpop.f32.mrf.mxu0
      %v2715 = vadd.f32 %v2662, %v2714
      %v2716 = vpop.f32.mrf.mxu0
      %v2717 = vadd.f32 %v2664, %v2716
      %v2718 = vpop.f32.mrf.mxu0
      %v2719 = vadd.f32 %v2666, %v2718
      %v2720 = vpop.f32.mrf.mxu0
      %v2721 = vadd.f32 %v2668, %v2720
      %2722 = vmatprep.mubr.bf16.mxu0 %v2605
      %2723 = vmatmul.mubr.bf16.gmra.mxu0 %v2604
      %v2724 = vpop.f32.mrf.mxu0
      %v2725 = vadd.f32 %v2672, %v2724
      %v2726 = vpop.f32.mrf.mxu0
      %v2727 = vadd.f32 %v2674, %v2726
      %v2728 = vpop.f32.mrf.mxu0
      %v2729 = vadd.f32 %v2676, %v2728
      %v2730 = vpop.f32.mrf.mxu0
      %v2731 = vadd.f32 %v2678, %v2730
      %2732 = vdwg.mxu0
      %2733 = vmatprep.subr.bf16.mxu0 %v2405
      %2734 = vmatpush1.bf16.msra.mxu0 %v2404
      %2735 = vmatprep.subr.bf16.mxu0 %v2402
      %2736 = vmatpush1.bf16.msra.mxu0 %v2401
      %2737 = vmatprep.subr.bf16.mxu0 %v2399
      %2738 = vmatpush1.bf16.msra.mxu0 %v2398
      %2739 = vmatprep.subr.bf16.mxu0 %v2396
      %2740 = vmatpush1.bf16.msra.mxu0 %v2395
      %2741 = vmatprep.subr.bf16.mxu0 %v2393
      %2742 = vmatpush1.bf16.msra.mxu0 %v2392
      %2743 = vmatprep.subr.bf16.mxu0 %v2390
      %2744 = vmatpush1.bf16.msra.mxu0 %v2389
      %2745 = vmatprep.subr.bf16.mxu0 %v2387
      %2746 = vmatpush1.bf16.msra.mxu0 %v2386
      %2747 = vmatprep.subr.bf16.mxu0 %v2384
      %2748 = vmatpush1.bf16.msra.mxu0 %v2383
      %2749 = vmatprep.subr.bf16.mxu0 %v2429
      %2750 = vmatpush2.bf16.msra.mxu0 %v2428
      %2751 = vmatprep.subr.bf16.mxu0 %v2426
      %2752 = vmatpush2.bf16.msra.mxu0 %v2425
      %2753 = vmatprep.subr.bf16.mxu0 %v2423
      %2754 = vmatpush2.bf16.msra.mxu0 %v2422
      %2755 = vmatprep.subr.bf16.mxu0 %v2420
      %2756 = vmatpush2.bf16.msra.mxu0 %v2419
      %2757 = vmatprep.subr.bf16.mxu0 %v2417
      %2758 = vmatpush2.bf16.msra.mxu0 %v2416
      %2759 = vmatprep.subr.bf16.mxu0 %v2414
      %2760 = vmatpush2.bf16.msra.mxu0 %v2413
      %2761 = vmatprep.subr.bf16.mxu0 %v2411
      %2762 = vmatpush2.bf16.msra.mxu0 %v2410
      %2763 = vmatprep.subr.bf16.mxu0 %v2408
      %2764 = vmatpush2.bf16.msra.mxu0 %v2407
      %2765 = vmatprep.mubr.bf16.mxu0 %v2600
      %2766 = vmatmul.mubr.bf16.gmra.mxu0 %v2599
      %v2767 = vpop.f32.mrf.mxu0
      %v2768 = vadd.f32 %v2715, %v2767
      %v2769 = vpop.f32.mrf.mxu0
      %v2770 = vadd.f32 %v2717, %v2769
      %v2771 = vpop.f32.mrf.mxu0
      %v2772 = vadd.f32 %v2719, %v2771
      %v2773 = vpop.f32.mrf.mxu0
      %v2774 = vadd.f32 %v2721, %v2773
      %2775 = vmatprep.mubr.bf16.mxu0 %v2607
      %2776 = vmatmul.mubr.bf16.gmra.mxu0 %v2606
      %v2777 = vpop.f32.mrf.mxu0
      %v2778 = vadd.f32 %v2725, %v2777
      %v2779 = vpop.f32.mrf.mxu0
      %v2780 = vadd.f32 %v2727, %v2779
      %v2781 = vpop.f32.mrf.mxu0
      %v2782 = vadd.f32 %v2729, %v2781
      %v2783 = vpop.f32.mrf.mxu0
      %v2784 = vadd.f32 %v2731, %v2783
      %2785 = vdwg.mxu0
      %2786 = vmatprep.subr.bf16.mxu0 0
      %2787 = vmatpush1.bf16.msra.mxu0 0
      %2788 = vmatprep.subr.bf16.mxu0 0
      %2789 = vmatpush1.bf16.msra.mxu0 0
      %2790 = vmatprep.subr.bf16.mxu0 0
      %2791 = vmatpush1.bf16.msra.mxu0 0
      %2792 = vmatprep.subr.bf16.mxu0 0
      %2793 = vmatpush1.bf16.msra.mxu0 0
      %2794 = vmatprep.subr.bf16.mxu0 0
      %2795 = vmatpush1.bf16.msra.mxu0 0
      %2796 = vmatprep.subr.bf16.mxu0 0
      %2797 = vmatpush1.bf16.msra.mxu0 0
      %2798 = vmatprep.subr.bf16.mxu0 %v2435
      %2799 = vmatpush1.bf16.msra.mxu0 %v2434
      %2800 = vmatprep.subr.bf16.mxu0 %v2432
      %2801 = vmatpush1.bf16.msra.mxu0 %v2431
      %2802 = vmatprep.subr.bf16.mxu0 0
      %2803 = vmatpush2.bf16.msra.mxu0 0
      %2804 = vmatprep.subr.bf16.mxu0 0
      %2805 = vmatpush2.bf16.msra.mxu0 0
      %2806 = vmatprep.subr.bf16.mxu0 0
      %2807 = vmatpush2.bf16.msra.mxu0 0
      %2808 = vmatprep.subr.bf16.mxu0 0
      %2809 = vmatpush2.bf16.msra.mxu0 0
      %2810 = vmatprep.subr.bf16.mxu0 0
      %2811 = vmatpush2.bf16.msra.mxu0 0
      %2812 = vmatprep.subr.bf16.mxu0 0
      %2813 = vmatpush2.bf16.msra.mxu0 0
      %2814 = vmatprep.subr.bf16.mxu0 0
      %2815 = vmatpush2.bf16.msra.mxu0 0
      %2816 = vmatprep.subr.bf16.mxu0 0
      %2817 = vmatpush2.bf16.msra.mxu0 0
      %2818 = vmatprep.mubr.bf16.mxu0 0
      %2819 = vmatmul.mubr.bf16.gmra.mxu0 %v2622
      %v2820 = vpop.f32.mrf.mxu0
      %v2821 = vadd.f32 %v2768, %v2820
      %v2822 = vpop.f32.mrf.mxu0
      %v2823 = vadd.f32 %v2770, %v2822
      %v2824 = vpop.f32.mrf.mxu0
      %v2825 = vadd.f32 %v2772, %v2824
      %v2826 = vpop.f32.mrf.mxu0
      %v2827 = vadd.f32 %v2774, %v2826
      %2828 = vmatprep.mubr.bf16.mxu0 0
      %2829 = vmatmul.mubr.bf16.gmra.mxu0 %v2625
      %v2830 = vpop.f32.mrf.mxu0
      %v2831 = vadd.f32 %v2778, %v2830
      %v2832 = vpop.f32.mrf.mxu0
      %v2833 = vadd.f32 %v2780, %v2832
      %v2834 = vpop.f32.mrf.mxu0
      %v2835 = vadd.f32 %v2782, %v2834
      %v2836 = vpop.f32.mrf.mxu0
      %v2837 = vadd.f32 %v2784, %v2836
      %2838 = vdwg.mxu0
      %2839 = vmatprep.subr.bf16.mxu0 %v1842
      %2840 = vmatpush1.bf16.msra.mxu0 %v1848
      %2841 = vmatprep.subr.bf16.mxu0 %v1834
      %2842 = vmatpush1.bf16.msra.mxu0 %v1845
      %2843 = vmatprep.subr.bf16.mxu0 %v1812
      %2844 = vmatpush1.bf16.msra.mxu0 %v1818
      %2845 = vmatprep.subr.bf16.mxu0 %v1804
      %2846 = vmatpush1.bf16.msra.mxu0 %v1815
      %2847 = vmatprep.subr.bf16.mxu0 %v1782
      %2848 = vmatpush1.bf16.msra.mxu0 %v1788
      %2849 = vmatprep.subr.bf16.mxu0 %v1774
      %2850 = vmatpush1.bf16.msra.mxu0 %v1785
      %2851 = vmatprep.subr.bf16.mxu0 %v1758
      %2852 = vmatpush1.bf16.msra.mxu0 %v1757
      %2853 = vmatprep.subr.bf16.mxu0 %v1754
      %2854 = vmatpush1.bf16.msra.mxu0 %v1753
      %2855 = vmatprep.subr.bf16.mxu0 %v1962
      %2856 = vmatpush2.bf16.msra.mxu0 %v1968
      %2857 = vmatprep.subr.bf16.mxu0 %v1954
      %2858 = vmatpush2.bf16.msra.mxu0 %v1965
      %2859 = vmatprep.subr.bf16.mxu0 %v1932
      %2860 = vmatpush2.bf16.msra.mxu0 %v1938
      %2861 = vmatprep.subr.bf16.mxu0 %v1924
      %2862 = vmatpush2.bf16.msra.mxu0 %v1935
      %2863 = vmatprep.subr.bf16.mxu0 %v1902
      %2864 = vmatpush2.bf16.msra.mxu0 %v1908
      %2865 = vmatprep.subr.bf16.mxu0 %v1894
      %2866 = vmatpush2.bf16.msra.mxu0 %v1905
      %2867 = vmatprep.subr.bf16.mxu0 %v1872
      %2868 = vmatpush2.bf16.msra.mxu0 %v1878
      %2869 = vmatprep.subr.bf16.mxu0 %v1864
      %2870 = vmatpush2.bf16.msra.mxu0 %v1875
      %2871 = vmatprep.mubr.bf16.mxu0 %v2596
      %2872 = vmatmul.mubr.bf16.gmra.mxu0 %v2595
      %v2873 = vpop.f32.mrf.mxu0
      %v2874 = vadd.f32 %v2534, %v2873
      %v2875 = vpop.f32.mrf.mxu0
      %v2876 = vadd.f32 %v2534, %v2875
      %v2877 = vpop.f32.mrf.mxu0
      %v2878 = vadd.f32 %v2539, %v2877
      %v2879 = vpop.f32.mrf.mxu0
      %v2880 = vadd.f32 %v2539, %v2879
      %2881 = vmatprep.mubr.bf16.mxu0 %v2603
      %2882 = vmatmul.mubr.bf16.gmra.mxu0 %v2602
      %v2883 = vpop.f32.mrf.mxu0
      %v2884 = vadd.f32 %v2544, %v2883
      %v2885 = vpop.f32.mrf.mxu0
      %v2886 = vadd.f32 %v2544, %v2885
      %v2887 = vpop.f32.mrf.mxu0
      %v2888 = vadd.f32 %v2549, %v2887
      %v2889 = vpop.f32.mrf.mxu0
      %v2890 = vadd.f32 %v2549, %v2889
      %2891 = vdwg.mxu0
      %2892 = vmatprep.subr.bf16.mxu0 %v2082
      %2893 = vmatpush1.bf16.msra.mxu0 %v2088
      %2894 = vmatprep.subr.bf16.mxu0 %v2074
      %2895 = vmatpush1.bf16.msra.mxu0 %v2085
      %2896 = vmatprep.subr.bf16.mxu0 %v2052
      %2897 = vmatpush1.bf16.msra.mxu0 %v2058
      %2898 = vmatprep.subr.bf16.mxu0 %v2044
      %2899 = vmatpush1.bf16.msra.mxu0 %v2055
      %2900 = vmatprep.subr.bf16.mxu0 %v2022
      %2901 = vmatpush1.bf16.msra.mxu0 %v2028
      %2902 = vmatprep.subr.bf16.mxu0 %v2014
      %2903 = vmatpush1.bf16.msra.mxu0 %v2025
      %2904 = vmatprep.subr.bf16.mxu0 %v1992
      %2905 = vmatpush1.bf16.msra.mxu0 %v1998
      %2906 = vmatprep.subr.bf16.mxu0 %v1984
      %2907 = vmatpush1.bf16.msra.mxu0 %v1995
      %2908 = vmatprep.subr.bf16.mxu0 %v2202
      %2909 = vmatpush2.bf16.msra.mxu0 %v2208
      %2910 = vmatprep.subr.bf16.mxu0 %v2194
      %2911 = vmatpush2.bf16.msra.mxu0 %v2205
      %2912 = vmatprep.subr.bf16.mxu0 %v2172
      %2913 = vmatpush2.bf16.msra.mxu0 %v2178
      %2914 = vmatprep.subr.bf16.mxu0 %v2164
      %2915 = vmatpush2.bf16.msra.mxu0 %v2175
      %2916 = vmatprep.subr.bf16.mxu0 %v2142
      %2917 = vmatpush2.bf16.msra.mxu0 %v2148
      %2918 = vmatprep.subr.bf16.mxu0 %v2134
      %2919 = vmatpush2.bf16.msra.mxu0 %v2145
      %2920 = vmatprep.subr.bf16.mxu0 %v2112
      %2921 = vmatpush2.bf16.msra.mxu0 %v2118
      %2922 = vmatprep.subr.bf16.mxu0 %v2104
      %2923 = vmatpush2.bf16.msra.mxu0 %v2115
      %2924 = vmatprep.mubr.bf16.mxu0 %v2598
      %2925 = vmatmul.mubr.bf16.gmra.mxu0 %v2597
      %v2926 = vpop.f32.mrf.mxu0
      %v2927 = vadd.f32 %v2874, %v2926
      %v2928 = vpop.f32.mrf.mxu0
      %v2929 = vadd.f32 %v2876, %v2928
      %v2930 = vpop.f32.mrf.mxu0
      %v2931 = vadd.f32 %v2878, %v2930
      %v2932 = vpop.f32.mrf.mxu0
      %v2933 = vadd.f32 %v2880, %v2932
      %2934 = vmatprep.mubr.bf16.mxu0 %v2605
      %2935 = vmatmul.mubr.bf16.gmra.mxu0 %v2604
      %v2936 = vpop.f32.mrf.mxu0
      %v2937 = vadd.f32 %v2884, %v2936
      %v2938 = vpop.f32.mrf.mxu0
      %v2939 = vadd.f32 %v2886, %v2938
      %v2940 = vpop.f32.mrf.mxu0
      %v2941 = vadd.f32 %v2888, %v2940
      %v2942 = vpop.f32.mrf.mxu0
      %v2943 = vadd.f32 %v2890, %v2942
      %2944 = vdwg.mxu0
      %2945 = vmatprep.subr.bf16.mxu0 %v2302
      %2946 = vmatpush1.bf16.msra.mxu0 %v2406
      %2947 = vmatprep.subr.bf16.mxu0 %v2294
      %2948 = vmatpush1.bf16.msra.mxu0 %v2403
      %2949 = vmatprep.subr.bf16.mxu0 %v2286
      %2950 = vmatpush1.bf16.msra.mxu0 %v2400
      %2951 = vmatprep.subr.bf16.mxu0 %v2278
      %2952 = vmatpush1.bf16.msra.mxu0 %v2397
      %2953 = vmatprep.subr.bf16.mxu0 %v2270
      %2954 = vmatpush1.bf16.msra.mxu0 %v2394
      %2955 = vmatprep.subr.bf16.mxu0 %v2262
      %2956 = vmatpush1.bf16.msra.mxu0 %v2391
      %2957 = vmatprep.subr.bf16.mxu0 %v2254
      %2958 = vmatpush1.bf16.msra.mxu0 %v2388
      %2959 = vmatprep.subr.bf16.mxu0 %v2246
      %2960 = vmatpush1.bf16.msra.mxu0 %v2385
      %2961 = vmatprep.subr.bf16.mxu0 %v2366
      %2962 = vmatpush2.bf16.msra.mxu0 %v2430
      %2963 = vmatprep.subr.bf16.mxu0 %v2358
      %2964 = vmatpush2.bf16.msra.mxu0 %v2427
      %2965 = vmatprep.subr.bf16.mxu0 %v2350
      %2966 = vmatpush2.bf16.msra.mxu0 %v2424
      %2967 = vmatprep.subr.bf16.mxu0 %v2342
      %2968 = vmatpush2.bf16.msra.mxu0 %v2421
      %2969 = vmatprep.subr.bf16.mxu0 %v2334
      %2970 = vmatpush2.bf16.msra.mxu0 %v2418
      %2971 = vmatprep.subr.bf16.mxu0 %v2326
      %2972 = vmatpush2.bf16.msra.mxu0 %v2415
      %2973 = vmatprep.subr.bf16.mxu0 %v2318
      %2974 = vmatpush2.bf16.msra.mxu0 %v2412
      %2975 = vmatprep.subr.bf16.mxu0 %v2310
      %2976 = vmatpush2.bf16.msra.mxu0 %v2409
      %2977 = vmatprep.mubr.bf16.mxu0 %v2600
      %2978 = vmatmul.mubr.bf16.gmra.mxu0 %v2599
      %v2979 = vpop.f32.mrf.mxu0
      %v2980 = vadd.f32 %v2927, %v2979
      %v2981 = vpop.f32.mrf.mxu0
      %v2982 = vadd.f32 %v2929, %v2981
      %v2983 = vpop.f32.mrf.mxu0
      %v2984 = vadd.f32 %v2931, %v2983
      %v2985 = vpop.f32.mrf.mxu0
      %v2986 = vadd.f32 %v2933, %v2985
      %2987 = vmatprep.mubr.bf16.mxu0 %v2607
      %2988 = vmatmul.mubr.bf16.gmra.mxu0 %v2606
      %v2989 = vpop.f32.mrf.mxu0
      %v2990 = vadd.f32 %v2937, %v2989
      %v2991 = vpop.f32.mrf.mxu0
      %v2992 = vadd.f32 %v2939, %v2991
      %v2993 = vpop.f32.mrf.mxu0
      %v2994 = vadd.f32 %v2941, %v2993
      %v2995 = vpop.f32.mrf.mxu0
      %v2996 = vadd.f32 %v2943, %v2995
      %2997 = vdwg.mxu0
      %2998 = vmatprep.subr.bf16.mxu0 0
      %2999 = vmatpush1.bf16.msra.mxu0 0
      %3000 = vmatprep.subr.bf16.mxu0 0
      %3001 = vmatpush1.bf16.msra.mxu0 0
      %3002 = vmatprep.subr.bf16.mxu0 0
      %3003 = vmatpush1.bf16.msra.mxu0 0
      %3004 = vmatprep.subr.bf16.mxu0 0
      %3005 = vmatpush1.bf16.msra.mxu0 0
      %3006 = vmatprep.subr.bf16.mxu0 0
      %3007 = vmatpush1.bf16.msra.mxu0 0
      %3008 = vmatprep.subr.bf16.mxu0 0
      %3009 = vmatpush1.bf16.msra.mxu0 0
      %3010 = vmatprep.subr.bf16.mxu0 %v2382
      %3011 = vmatpush1.bf16.msra.mxu0 %v2436
      %3012 = vmatprep.subr.bf16.mxu0 %v2374
      %3013 = vmatpush1.bf16.msra.mxu0 %v2433
      %3014 = vmatprep.subr.bf16.mxu0 0
      %3015 = vmatpush2.bf16.msra.mxu0 0
      %3016 = vmatprep.subr.bf16.mxu0 0
      %3017 = vmatpush2.bf16.msra.mxu0 0
      %3018 = vmatprep.subr.bf16.mxu0 0
      %3019 = vmatpush2.bf16.msra.mxu0 0
      %3020 = vmatprep.subr.bf16.mxu0 0
      %3021 = vmatpush2.bf16.msra.mxu0 0
      %3022 = vmatprep.subr.bf16.mxu0 0
      %3023 = vmatpush2.bf16.msra.mxu0 0
      %3024 = vmatprep.subr.bf16.mxu0 0
      %3025 = vmatpush2.bf16.msra.mxu0 0
      %3026 = vmatprep.subr.bf16.mxu0 0
      %3027 = vmatpush2.bf16.msra.mxu0 0
      %3028 = vmatprep.subr.bf16.mxu0 0
      %3029 = vmatpush2.bf16.msra.mxu0 0
      %3030 = vmatprep.mubr.bf16.mxu0 0
      %3031 = vmatmul.mubr.bf16.gmra.mxu0 %v2622
      %v3032 = vpop.f32.mrf.mxu0
      %v3033 = vadd.f32 %v2980, %v3032
      %v3034 = vpop.f32.mrf.mxu0
      %v3035 = vadd.f32 %v2982, %v3034
      %v3036 = vpop.f32.mrf.mxu0
      %v3037 = vadd.f32 %v2984, %v3036
      %v3038 = vpop.f32.mrf.mxu0
      %v3039 = vadd.f32 %v2986, %v3038
      %3040 = vmatprep.mubr.bf16.mxu0 0
      %3041 = vmatmul.mubr.bf16.gmra.mxu0 %v2625
      %v3042 = vpop.f32.mrf.mxu0
      %v3043 = vadd.f32 %v2990, %v3042
      %v3044 = vpop.f32.mrf.mxu0
      %v3045 = vadd.f32 %v2992, %v3044
      %v3046 = vpop.f32.mrf.mxu0
      %v3047 = vadd.f32 %v2994, %v3046
      %v3048 = vpop.f32.mrf.mxu0
      %v3049 = vadd.f32 %v2996, %v3048
      %3050 = vdwg.mxu0
      %v3051 = vtanh.pop %v2821
      %v3052 = vtanh.pop %v2823
      %v3053 = vtanh.pop %v3033
      %v3054 = vtanh.pop %v3035
      %v3055 = vtanh.pop %v2825
      %v3056 = vtanh.pop %v2827
      %v3057 = vtanh.pop %v3037
      %v3058 = vtanh.pop %v3039
      %v3059 = vtanh.pop %v2831
      %v3060 = vtanh.pop %v2833
      %v3061 = vtanh.pop %v3043
      %v3062 = vtanh.pop %v3045
      %v3063 = vtanh.pop %v2835
      %v3064 = vtanh.pop %v2837
      %v3065 = vtanh.pop %v3047
      %v3066 = vtanh.pop %v3049
      %v3067 = vmul.f32 %v3051, %v1587
      %v3068 = vmul.f32 %v3052, %v1591
      %v3069 = vmul.f32 %v3053, %v1595
      %v3070 = vmul.f32 %v3054, %v1599
      %v3071 = vmul.f32 %v3055, %v1587
      %v3072 = vmul.f32 %v3056, %v1591
      %v3073 = vmul.f32 %v3057, %v1595
      %v3074 = vmul.f32 %v3058, %v1599
      %v3075 = vmul.f32 %v3059, %v1587
      %v3076 = vmul.f32 %v3060, %v1591
      %v3077 = vmul.f32 %v3061, %v1595
      %v3078 = vmul.f32 %v3062, %v1599
      %v3079 = vmul.f32 %v3063, %v1587
      %v3080 = vmul.f32 %v3064, %v1591
      %v3081 = vmul.f32 %v3065, %v1595
      %v3082 = vmul.f32 %v3066, %v1599
      %v3083 = vpack.c.bf16 %v3071, %v3067
      %v3084 = vpack.c.bf16 %v3072, %v3068
      %v3085 = vpack.c.bf16 %v3073, %v3069
      %v3086 = vpack.c.bf16 %v3074, %v3070
      %v3087 = vpack.c.bf16 %v3079, %v3075
      %v3088 = vpack.c.bf16 %v3080, %v3076
      %v3089 = vpack.c.bf16 %v3081, %v3077
      %v3090 = vpack.c.bf16 %v3082, %v3078
      %v3099 = vunpack.c.l.b16 %v3083
      %v3100 = vunpack.c.l.b16 %v3084
      %v3101 = vunpack.c.l.b16 %v3085
      %v3102 = vunpack.c.l.b16 %v3086
      %v3103 = vunpack.c.h.b16 %v3083
      %v3104 = vunpack.c.h.b16 %v3084
      %v3105 = vunpack.c.h.b16 %v3085
      %v3106 = vunpack.c.h.b16 %v3086
      %v3107 = vunpack.c.l.b16 %v3087
      %v3108 = vunpack.c.l.b16 %v3088
      %v3109 = vunpack.c.l.b16 %v3089
      %v3110 = vunpack.c.l.b16 %v3090
      %v3111 = vunpack.c.h.b16 %v3087
      %v3112 = vunpack.c.h.b16 %v3088
      %v3113 = vunpack.c.h.b16 %v3089
      %v3114 = vunpack.c.h.b16 %v3090
      %v3115 = vpack.c.b16 %v3100, %v3099
      %v3116 = vpack.c.b16 %v3102, %v3101
      %v3117 = vpack.c.b16 %v3104, %v3103
      %v3118 = vpack.c.b16 %v3106, %v3105
      %v3119 = vpack.c.b16 %v3108, %v3107
      %v3120 = vpack.c.b16 %v3110, %v3109
      %v3121 = vpack.c.b16 %v3112, %v3111
      %v3122 = vpack.c.b16 %v3114, %v3113
      %3123 = vrot.lane.b32.xlu0 %v3115, 42
      %v3124 = vpop.permute.xlu0 %3123
      %3125 = vrot.lane.b32.xlu0 %v3116, 42
      %v3126 = vpop.permute.xlu0 %3125
      %3127 = vrot.lane.b32.xlu0 %v3117, 42
      %v3128 = vpop.permute.xlu0 %3127
      %3129 = vrot.lane.b32.xlu0 %v3118, 42
      %v3130 = vpop.permute.xlu0 %3129
      %3131 = vrot.lane.b32.xlu0 %v3119, 42
      %v3132 = vpop.permute.xlu0 %3131
      %3133 = vrot.lane.b32.xlu0 %v3120, 42
      %v3134 = vpop.permute.xlu0 %3133
      %3135 = vrot.lane.b32.xlu0 %v3121, 42
      %v3136 = vpop.permute.xlu0 %3135
      %3137 = vrot.lane.b32.xlu0 %v3122, 42
      %v3138 = vpop.permute.xlu0 %3137
      %v3139 = vrot.slane %v3124, 4
      %v3140 = vrot.slane %v3126, 4
      %v3141 = vrot.slane %v3128, 4
      %v3142 = vrot.slane %v3130, 4
      %v3143 = vrot.slane %v3132, 4
      %v3144 = vrot.slane %v3134, 4
      %v3145 = vrot.slane %v3136, 4
      %v3146 = vrot.slane %v3138, 4
      %v3147 = vsel %vm1684, %v3139, %v3124
      %v3148 = vsel %vm1686, %v3139, %v3140
      %v3149 = vsel %vm1684, %v3148, %v3126
      %v3150 = vsel %vm1684, %v3141, %v3128
      %v3151 = vsel %vm1686, %v3141, %v3142
      %v3152 = vsel %vm1684, %v3151, %v3130
      %v3153 = vsel %vm1684, %v3143, %v3132
      %v3154 = vsel %vm1686, %v3143, %v3144
      %v3155 = vsel %vm1684, %v3154, %v3134
      %v3156 = vsel %vm1684, %v3145, %v3136
      %v3157 = vsel %vm1686, %v3145, %v3146
      %v3158 = vsel %vm1684, %v3157, %v3138
      %3167 = vst.msk [vmem:[#allocation2] sm:$0xff] %vm1708, %v3147
      %3168 = vst.msk [vmem:[#allocation2 + $0x8] sm:$0xff] %vm1711, %v3149
      %3169 = vst.msk [vmem:[#allocation2 + $0x10] sm:$0xff] %vm1708, %v3150
      %3170 = vst.msk [vmem:[#allocation2 + $0x18] sm:$0xff] %vm1711, %v3152
      %3171 = vst.msk [vmem:[#allocation2 + $0x20] sm:$0xff] %vm1708, %v3153
      %3172 = vst.msk [vmem:[#allocation2 + $0x28] sm:$0xff] %vm1711, %v3155
      %3173 = vst.msk [vmem:[#allocation2 + $0x30] sm:$0xff] %vm1708, %v3156
      %3174 = vst.msk [vmem:[#allocation2 + $0x38] sm:$0xff] %vm1711, %v3158
      %v3175 = vld [vmem:[#allocation2] sm:$0xff]
      %v3176 = vld [vmem:[#allocation2 + $0x8] sm:$0xff]
      %v3177 = vld [vmem:[#allocation2 + $0x10] sm:$0xff]
      %v3178 = vld [vmem:[#allocation2 + $0x18] sm:$0xff]
      %v3179 = vld [vmem:[#allocation2 + $0x20] sm:$0xff]
      %v3180 = vld [vmem:[#allocation2 + $0x28] sm:$0xff]
      %v3181 = vld [vmem:[#allocation2 + $0x30] sm:$0xff]
      %v3182 = vld [vmem:[#allocation2 + $0x38] sm:$0xff]
      %v3191 = vunpack.c.l.b16 %v3175
      %v3192 = vunpack.c.h.b16 %v3175
      %v3193 = vunpack.c.l.b16 %v3176
      %v3194 = vunpack.c.h.b16 %v3176
      %v3195 = vunpack.c.l.b16 %v3177
      %v3196 = vunpack.c.h.b16 %v3177
      %v3197 = vunpack.c.l.b16 %v3178
      %v3198 = vunpack.c.h.b16 %v3178
      %v3199 = vunpack.c.l.b16 %v3179
      %v3200 = vunpack.c.h.b16 %v3179
      %v3201 = vunpack.c.l.b16 %v3180
      %v3202 = vunpack.c.h.b16 %v3180
      %v3203 = vunpack.c.l.b16 %v3181
      %v3204 = vunpack.c.h.b16 %v3181
      %v3205 = vunpack.c.l.b16 %v3182
      %v3206 = vunpack.c.h.b16 %v3182
      %v3207 = vpack.c.b16 %v3195, %v3191
      %v3208 = vpack.c.b16 %v3196, %v3192
      %v3209 = vpack.c.b16 %v3197, %v3193
      %v3210 = vpack.c.b16 %v3198, %v3194
      %v3211 = vpack.c.b16 %v3203, %v3199
      %v3212 = vpack.c.b16 %v3204, %v3200
      %v3213 = vpack.c.b16 %v3205, %v3201
      %v3214 = vpack.c.b16 %v3206, %v3202
      %3223 = vrot.lane.b32.xlu0 %v3207, 127
      %v3224 = vpop.permute.xlu0 %3223
      %3225 = vrot.lane.b32.xlu0 %v3208, 127
      %v3226 = vpop.permute.xlu0 %3225
      %3227 = vrot.lane.b32.xlu0 %v3209, 127
      %v3228 = vpop.permute.xlu0 %3227
      %3229 = vrot.lane.b32.xlu0 %v3210, 127
      %v3230 = vpop.permute.xlu0 %3229
      %3231 = vrot.lane.b32.xlu0 %v3211, 127
      %v3232 = vpop.permute.xlu0 %3231
      %3233 = vrot.lane.b32.xlu0 %v3212, 127
      %v3234 = vpop.permute.xlu0 %3233
      %3235 = vrot.lane.b32.xlu0 %v3213, 127
      %v3236 = vpop.permute.xlu0 %3235
      %3237 = vrot.lane.b32.xlu0 %v3214, 127
      %v3238 = vpop.permute.xlu0 %3237
      %v3239 = vsel %vm283, %v3224, %v3226
      %v3240 = vsel %vm283, %v3226, %v3228
      %v3241 = vsel %vm283, %v3228, %v3230
      %v3242 = vsel %vm283, %v3232, %v3234
      %v3243 = vsel %vm283, %v3234, %v3236
      %v3244 = vsel %vm283, %v3236, %v3238
      %3253 = vrot.lane.b32.xlu0 %v3207, 126
      %v3254 = vpop.permute.xlu0 %3253
      %3255 = vrot.lane.b32.xlu0 %v3208, 126
      %v3256 = vpop.permute.xlu0 %3255
      %3257 = vrot.lane.b32.xlu0 %v3209, 126
      %v3258 = vpop.permute.xlu0 %3257
      %3259 = vrot.lane.b32.xlu0 %v3210, 126
      %v3260 = vpop.permute.xlu0 %3259
      %3261 = vrot.lane.b32.xlu0 %v3211, 126
      %v3262 = vpop.permute.xlu0 %3261
      %3263 = vrot.lane.b32.xlu0 %v3212, 126
      %v3264 = vpop.permute.xlu0 %3263
      %3265 = vrot.lane.b32.xlu0 %v3213, 126
      %v3266 = vpop.permute.xlu0 %3265
      %3267 = vrot.lane.b32.xlu0 %v3214, 126
      %v3268 = vpop.permute.xlu0 %3267
      %v3269 = vsel %vm314, %v3254, %v3256
      %v3270 = vsel %vm314, %v3256, %v3258
      %v3271 = vsel %vm314, %v3258, %v3260
      %v3272 = vsel %vm314, %v3262, %v3264
      %v3273 = vsel %vm314, %v3264, %v3266
      %v3274 = vsel %vm314, %v3266, %v3268
      %3283 = vrot.lane.b32.xlu0 %v3207, 125
      %v3284 = vpop.permute.xlu0 %3283
      %3285 = vrot.lane.b32.xlu0 %v3208, 125
      %v3286 = vpop.permute.xlu0 %3285
      %3287 = vrot.lane.b32.xlu0 %v3209, 125
      %v3288 = vpop.permute.xlu0 %3287
      %3289 = vrot.lane.b32.xlu0 %v3210, 125
      %v3290 = vpop.permute.xlu0 %3289
      %3291 = vrot.lane.b32.xlu0 %v3211, 125
      %v3292 = vpop.permute.xlu0 %3291
      %3293 = vrot.lane.b32.xlu0 %v3212, 125
      %v3294 = vpop.permute.xlu0 %3293
      %3295 = vrot.lane.b32.xlu0 %v3213, 125
      %v3296 = vpop.permute.xlu0 %3295
      %3297 = vrot.lane.b32.xlu0 %v3214, 125
      %v3298 = vpop.permute.xlu0 %3297
      %v3299 = vsel %vm345, %v3284, %v3286
      %v3300 = vsel %vm345, %v3286, %v3288
      %v3301 = vsel %vm345, %v3288, %v3290
      %v3302 = vsel %vm345, %v3292, %v3294
      %v3303 = vsel %vm345, %v3294, %v3296
      %v3304 = vsel %vm345, %v3296, %v3298
      %3313 = vrot.lane.b32.xlu0 %v3207, 124
      %v3314 = vpop.permute.xlu0 %3313
      %3315 = vrot.lane.b32.xlu0 %v3208, 124
      %v3316 = vpop.permute.xlu0 %3315
      %3317 = vrot.lane.b32.xlu0 %v3209, 124
      %v3318 = vpop.permute.xlu0 %3317
      %3319 = vrot.lane.b32.xlu0 %v3210, 124
      %v3320 = vpop.permute.xlu0 %3319
      %3321 = vrot.lane.b32.xlu0 %v3211, 124
      %v3322 = vpop.permute.xlu0 %3321
      %3323 = vrot.lane.b32.xlu0 %v3212, 124
      %v3324 = vpop.permute.xlu0 %3323
      %3325 = vrot.lane.b32.xlu0 %v3213, 124
      %v3326 = vpop.permute.xlu0 %3325
      %3327 = vrot.lane.b32.xlu0 %v3214, 124
      %v3328 = vpop.permute.xlu0 %3327
      %v3329 = vsel %vm376, %v3314, %v3316
      %v3330 = vsel %vm376, %v3316, %v3318
      %v3331 = vsel %vm376, %v3318, %v3320
      %v3332 = vsel %vm376, %v3322, %v3324
      %v3333 = vsel %vm376, %v3324, %v3326
      %v3334 = vsel %vm376, %v3326, %v3328
      %3343 = vrot.lane.b32.xlu0 %v3207, 108
      %v3344 = vpop.permute.xlu0 %3343
      %3345 = vrot.lane.b32.xlu0 %v3208, 108
      %v3346 = vpop.permute.xlu0 %3345
      %3347 = vrot.lane.b32.xlu0 %v3209, 108
      %v3348 = vpop.permute.xlu0 %3347
      %3349 = vrot.lane.b32.xlu0 %v3210, 108
      %v3350 = vpop.permute.xlu0 %3349
      %3351 = vrot.lane.b32.xlu0 %v3211, 108
      %v3352 = vpop.permute.xlu0 %3351
      %3353 = vrot.lane.b32.xlu0 %v3212, 108
      %v3354 = vpop.permute.xlu0 %3353
      %3355 = vrot.lane.b32.xlu0 %v3213, 108
      %v3356 = vpop.permute.xlu0 %3355
      %3357 = vrot.lane.b32.xlu0 %v3214, 108
      %v3358 = vpop.permute.xlu0 %3357
      %v3359 = vsel %vm407, %v3344, %v3346
      %v3360 = vsel %vm407, %v3346, %v3348
      %v3361 = vsel %vm407, %v3348, %v3350
      %v3362 = vsel %vm407, %v3352, %v3354
      %v3363 = vsel %vm407, %v3354, %v3356
      %v3364 = vsel %vm407, %v3356, %v3358
      %3373 = vrot.lane.b32.xlu0 %v3207, 107
      %v3374 = vpop.permute.xlu0 %3373
      %3375 = vrot.lane.b32.xlu0 %v3208, 107
      %v3376 = vpop.permute.xlu0 %3375
      %3377 = vrot.lane.b32.xlu0 %v3209, 107
      %v3378 = vpop.permute.xlu0 %3377
      %3379 = vrot.lane.b32.xlu0 %v3210, 107
      %v3380 = vpop.permute.xlu0 %3379
      %3381 = vrot.lane.b32.xlu0 %v3211, 107
      %v3382 = vpop.permute.xlu0 %3381
      %3383 = vrot.lane.b32.xlu0 %v3212, 107
      %v3384 = vpop.permute.xlu0 %3383
      %3385 = vrot.lane.b32.xlu0 %v3213, 107
      %v3386 = vpop.permute.xlu0 %3385
      %3387 = vrot.lane.b32.xlu0 %v3214, 107
      %v3388 = vpop.permute.xlu0 %3387
      %v3389 = vsel %vm438, %v3374, %v3376
      %v3390 = vsel %vm438, %v3376, %v3378
      %v3391 = vsel %vm438, %v3378, %v3380
      %v3392 = vsel %vm438, %v3382, %v3384
      %v3393 = vsel %vm438, %v3384, %v3386
      %v3394 = vsel %vm438, %v3386, %v3388
      %3403 = vrot.lane.b32.xlu0 %v3207, 106
      %v3404 = vpop.permute.xlu0 %3403
      %3405 = vrot.lane.b32.xlu0 %v3208, 106
      %v3406 = vpop.permute.xlu0 %3405
      %3407 = vrot.lane.b32.xlu0 %v3209, 106
      %v3408 = vpop.permute.xlu0 %3407
      %3409 = vrot.lane.b32.xlu0 %v3210, 106
      %v3410 = vpop.permute.xlu0 %3409
      %3411 = vrot.lane.b32.xlu0 %v3211, 106
      %v3412 = vpop.permute.xlu0 %3411
      %3413 = vrot.lane.b32.xlu0 %v3212, 106
      %v3414 = vpop.permute.xlu0 %3413
      %3415 = vrot.lane.b32.xlu0 %v3213, 106
      %v3416 = vpop.permute.xlu0 %3415
      %3417 = vrot.lane.b32.xlu0 %v3214, 106
      %v3418 = vpop.permute.xlu0 %3417
      %v3419 = vsel %vm469, %v3404, %v3406
      %v3420 = vsel %vm469, %v3406, %v3408
      %v3421 = vsel %vm469, %v3408, %v3410
      %v3422 = vsel %vm469, %v3412, %v3414
      %v3423 = vsel %vm469, %v3414, %v3416
      %v3424 = vsel %vm469, %v3416, %v3418
      %3433 = vrot.lane.b32.xlu0 %v3207, 105
      %v3434 = vpop.permute.xlu0 %3433
      %3435 = vrot.lane.b32.xlu0 %v3208, 105
      %v3436 = vpop.permute.xlu0 %3435
      %3437 = vrot.lane.b32.xlu0 %v3209, 105
      %v3438 = vpop.permute.xlu0 %3437
      %3439 = vrot.lane.b32.xlu0 %v3210, 105
      %v3440 = vpop.permute.xlu0 %3439
      %3441 = vrot.lane.b32.xlu0 %v3211, 105
      %v3442 = vpop.permute.xlu0 %3441
      %3443 = vrot.lane.b32.xlu0 %v3212, 105
      %v3444 = vpop.permute.xlu0 %3443
      %3445 = vrot.lane.b32.xlu0 %v3213, 105
      %v3446 = vpop.permute.xlu0 %3445
      %3447 = vrot.lane.b32.xlu0 %v3214, 105
      %v3448 = vpop.permute.xlu0 %3447
      %v3449 = vsel %vm500, %v3434, %v3436
      %v3450 = vsel %vm500, %v3436, %v3438
      %v3451 = vsel %vm500, %v3438, %v3440
      %v3452 = vsel %vm500, %v3442, %v3444
      %v3453 = vsel %vm500, %v3444, %v3446
      %v3454 = vsel %vm500, %v3446, %v3448
      %3463 = vrot.lane.b32.xlu0 %v3207, 104
      %v3464 = vpop.permute.xlu0 %3463
      %3465 = vrot.lane.b32.xlu0 %v3208, 104
      %v3466 = vpop.permute.xlu0 %3465
      %3467 = vrot.lane.b32.xlu0 %v3209, 104
      %v3468 = vpop.permute.xlu0 %3467
      %3469 = vrot.lane.b32.xlu0 %v3210, 104
      %v3470 = vpop.permute.xlu0 %3469
      %3471 = vrot.lane.b32.xlu0 %v3211, 104
      %v3472 = vpop.permute.xlu0 %3471
      %3473 = vrot.lane.b32.xlu0 %v3212, 104
      %v3474 = vpop.permute.xlu0 %3473
      %3475 = vrot.lane.b32.xlu0 %v3213, 104
      %v3476 = vpop.permute.xlu0 %3475
      %3477 = vrot.lane.b32.xlu0 %v3214, 104
      %v3478 = vpop.permute.xlu0 %3477
      %v3479 = vsel %vm531, %v3464, %v3466
      %v3480 = vsel %vm531, %v3466, %v3468
      %v3481 = vsel %vm531, %v3468, %v3470
      %v3482 = vsel %vm531, %v3472, %v3474
      %v3483 = vsel %vm531, %v3474, %v3476
      %v3484 = vsel %vm531, %v3476, %v3478
      %3493 = vrot.lane.b32.xlu0 %v3207, 88
      %v3494 = vpop.permute.xlu0 %3493
      %3495 = vrot.lane.b32.xlu0 %v3208, 88
      %v3496 = vpop.permute.xlu0 %3495
      %3497 = vrot.lane.b32.xlu0 %v3209, 88
      %v3498 = vpop.permute.xlu0 %3497
      %3499 = vrot.lane.b32.xlu0 %v3210, 88
      %v3500 = vpop.permute.xlu0 %3499
      %3501 = vrot.lane.b32.xlu0 %v3211, 88
      %v3502 = vpop.permute.xlu0 %3501
      %3503 = vrot.lane.b32.xlu0 %v3212, 88
      %v3504 = vpop.permute.xlu0 %3503
      %3505 = vrot.lane.b32.xlu0 %v3213, 88
      %v3506 = vpop.permute.xlu0 %3505
      %3507 = vrot.lane.b32.xlu0 %v3214, 88
      %v3508 = vpop.permute.xlu0 %3507
      %v3509 = vsel %vm562, %v3494, %v3496
      %v3510 = vsel %vm562, %v3496, %v3498
      %v3511 = vsel %vm562, %v3498, %v3500
      %v3512 = vsel %vm562, %v3502, %v3504
      %v3513 = vsel %vm562, %v3504, %v3506
      %v3514 = vsel %vm562, %v3506, %v3508
      %3523 = vrot.lane.b32.xlu0 %v3207, 87
      %v3524 = vpop.permute.xlu0 %3523
      %3525 = vrot.lane.b32.xlu0 %v3208, 87
      %v3526 = vpop.permute.xlu0 %3525
      %3527 = vrot.lane.b32.xlu0 %v3209, 87
      %v3528 = vpop.permute.xlu0 %3527
      %3529 = vrot.lane.b32.xlu0 %v3210, 87
      %v3530 = vpop.permute.xlu0 %3529
      %3531 = vrot.lane.b32.xlu0 %v3211, 87
      %v3532 = vpop.permute.xlu0 %3531
      %3533 = vrot.lane.b32.xlu0 %v3212, 87
      %v3534 = vpop.permute.xlu0 %3533
      %3535 = vrot.lane.b32.xlu0 %v3213, 87
      %v3536 = vpop.permute.xlu0 %3535
      %3537 = vrot.lane.b32.xlu0 %v3214, 87
      %v3538 = vpop.permute.xlu0 %3537
      %v3539 = vsel %vm593, %v3524, %v3526
      %v3540 = vsel %vm593, %v3526, %v3528
      %v3541 = vsel %vm593, %v3528, %v3530
      %v3542 = vsel %vm593, %v3532, %v3534
      %v3543 = vsel %vm593, %v3534, %v3536
      %v3544 = vsel %vm593, %v3536, %v3538
      %3553 = vrot.lane.b32.xlu0 %v3207, 86
      %v3554 = vpop.permute.xlu0 %3553
      %3555 = vrot.lane.b32.xlu0 %v3208, 86
      %v3556 = vpop.permute.xlu0 %3555
      %3557 = vrot.lane.b32.xlu0 %v3209, 86
      %v3558 = vpop.permute.xlu0 %3557
      %3559 = vrot.lane.b32.xlu0 %v3210, 86
      %v3560 = vpop.permute.xlu0 %3559
      %3561 = vrot.lane.b32.xlu0 %v3211, 86
      %v3562 = vpop.permute.xlu0 %3561
      %3563 = vrot.lane.b32.xlu0 %v3212, 86
      %v3564 = vpop.permute.xlu0 %3563
      %3565 = vrot.lane.b32.xlu0 %v3213, 86
      %v3566 = vpop.permute.xlu0 %3565
      %3567 = vrot.lane.b32.xlu0 %v3214, 86
      %v3568 = vpop.permute.xlu0 %3567
      %v3569 = vsel %vm624, %v3554, %v3556
      %v3570 = vsel %vm624, %v3556, %v3558
      %v3571 = vsel %vm624, %v3558, %v3560
      %v3572 = vsel %vm624, %v3562, %v3564
      %v3573 = vsel %vm624, %v3564, %v3566
      %v3574 = vsel %vm624, %v3566, %v3568
      %3583 = vrot.lane.b32.xlu0 %v3207, 85
      %v3584 = vpop.permute.xlu0 %3583
      %3585 = vrot.lane.b32.xlu0 %v3208, 85
      %v3586 = vpop.permute.xlu0 %3585
      %3587 = vrot.lane.b32.xlu0 %v3209, 85
      %v3588 = vpop.permute.xlu0 %3587
      %3589 = vrot.lane.b32.xlu0 %v3210, 85
      %v3590 = vpop.permute.xlu0 %3589
      %3591 = vrot.lane.b32.xlu0 %v3211, 85
      %v3592 = vpop.permute.xlu0 %3591
      %3593 = vrot.lane.b32.xlu0 %v3212, 85
      %v3594 = vpop.permute.xlu0 %3593
      %3595 = vrot.lane.b32.xlu0 %v3213, 85
      %v3596 = vpop.permute.xlu0 %3595
      %3597 = vrot.lane.b32.xlu0 %v3214, 85
      %v3598 = vpop.permute.xlu0 %3597
      %v3599 = vsel %vm655, %v3584, %v3586
      %v3600 = vsel %vm655, %v3586, %v3588
      %v3601 = vsel %vm655, %v3588, %v3590
      %v3602 = vsel %vm655, %v3592, %v3594
      %v3603 = vsel %vm655, %v3594, %v3596
      %v3604 = vsel %vm655, %v3596, %v3598
      %3613 = vrot.lane.b32.xlu0 %v3207, 84
      %v3614 = vpop.permute.xlu0 %3613
      %3615 = vrot.lane.b32.xlu0 %v3208, 84
      %v3616 = vpop.permute.xlu0 %3615
      %3617 = vrot.lane.b32.xlu0 %v3209, 84
      %v3618 = vpop.permute.xlu0 %3617
      %3619 = vrot.lane.b32.xlu0 %v3210, 84
      %v3620 = vpop.permute.xlu0 %3619
      %3621 = vrot.lane.b32.xlu0 %v3211, 84
      %v3622 = vpop.permute.xlu0 %3621
      %3623 = vrot.lane.b32.xlu0 %v3212, 84
      %v3624 = vpop.permute.xlu0 %3623
      %3625 = vrot.lane.b32.xlu0 %v3213, 84
      %v3626 = vpop.permute.xlu0 %3625
      %3627 = vrot.lane.b32.xlu0 %v3214, 84
      %v3628 = vpop.permute.xlu0 %3627
      %v3629 = vsel %vm686, %v3614, %v3616
      %v3630 = vsel %vm686, %v3616, %v3618
      %v3631 = vsel %vm686, %v3618, %v3620
      %v3632 = vsel %vm686, %v3622, %v3624
      %v3633 = vsel %vm686, %v3624, %v3626
      %v3634 = vsel %vm686, %v3626, %v3628
      %3643 = vrot.lane.b32.xlu0 %v3207, 68
      %v3644 = vpop.permute.xlu0 %3643
      %3645 = vrot.lane.b32.xlu0 %v3208, 68
      %v3646 = vpop.permute.xlu0 %3645
      %3647 = vrot.lane.b32.xlu0 %v3209, 68
      %v3648 = vpop.permute.xlu0 %3647
      %3649 = vrot.lane.b32.xlu0 %v3210, 68
      %v3650 = vpop.permute.xlu0 %3649
      %3651 = vrot.lane.b32.xlu0 %v3211, 68
      %v3652 = vpop.permute.xlu0 %3651
      %3653 = vrot.lane.b32.xlu0 %v3212, 68
      %v3654 = vpop.permute.xlu0 %3653
      %3655 = vrot.lane.b32.xlu0 %v3213, 68
      %v3656 = vpop.permute.xlu0 %3655
      %3657 = vrot.lane.b32.xlu0 %v3214, 68
      %v3658 = vpop.permute.xlu0 %3657
      %v3659 = vsel %vm717, %v3644, %v3646
      %v3660 = vsel %vm717, %v3646, %v3648
      %v3661 = vsel %vm717, %v3648, %v3650
      %v3662 = vsel %vm717, %v3652, %v3654
      %v3663 = vsel %vm717, %v3654, %v3656
      %v3664 = vsel %vm717, %v3656, %v3658
      %3673 = vrot.lane.b32.xlu0 %v3207, 109
      %v3674 = vpop.permute.xlu0 %3673
      %3675 = vrot.lane.b32.xlu0 %v3208, 109
      %v3676 = vpop.permute.xlu0 %3675
      %3677 = vrot.lane.b32.xlu0 %v3209, 109
      %v3678 = vpop.permute.xlu0 %3677
      %3679 = vrot.lane.b32.xlu0 %v3210, 109
      %v3680 = vpop.permute.xlu0 %3679
      %3681 = vrot.lane.b32.xlu0 %v3211, 109
      %v3682 = vpop.permute.xlu0 %3681
      %3683 = vrot.lane.b32.xlu0 %v3212, 109
      %v3684 = vpop.permute.xlu0 %3683
      %3685 = vrot.lane.b32.xlu0 %v3213, 109
      %v3686 = vpop.permute.xlu0 %3685
      %3687 = vrot.lane.b32.xlu0 %v3214, 109
      %v3688 = vpop.permute.xlu0 %3687
      %v3689 = vsel %vm748, %v3674, %v3676
      %v3690 = vsel %vm748, %v3676, %v3678
      %v3691 = vsel %vm748, %v3678, %v3680
      %v3692 = vsel %vm748, %v3682, %v3684
      %v3693 = vsel %vm748, %v3684, %v3686
      %v3694 = vsel %vm748, %v3686, %v3688
      %3695 = vrot.lane.b32.xlu0 %v3207, 67
      %v3696 = vpop.permute.xlu0 %3695
      %3697 = vrot.lane.b32.xlu0 %v3208, 67
      %v3698 = vpop.permute.xlu0 %3697
      %3699 = vrot.lane.b32.xlu0 %v3209, 67
      %v3700 = vpop.permute.xlu0 %3699
      %3701 = vrot.lane.b32.xlu0 %v3210, 67
      %v3702 = vpop.permute.xlu0 %3701
      %3703 = vrot.lane.b32.xlu0 %v3211, 67
      %v3704 = vpop.permute.xlu0 %3703
      %3705 = vrot.lane.b32.xlu0 %v3212, 67
      %v3706 = vpop.permute.xlu0 %3705
      %3707 = vrot.lane.b32.xlu0 %v3213, 67
      %v3708 = vpop.permute.xlu0 %3707
      %3709 = vrot.lane.b32.xlu0 %v3214, 67
      %v3710 = vpop.permute.xlu0 %3709
      %3711 = vrot.lane.b32.xlu0 %v3239, 67
      %v3712 = vpop.permute.xlu0 %3711
      %3713 = vrot.lane.b32.xlu0 %v3240, 67
      %v3714 = vpop.permute.xlu0 %3713
      %3715 = vrot.lane.b32.xlu0 %v3241, 67
      %v3716 = vpop.permute.xlu0 %3715
      %3717 = vrot.lane.b32.xlu0 %v3230, 67
      %v3718 = vpop.permute.xlu0 %3717
      %3719 = vrot.lane.b32.xlu0 %v3242, 67
      %v3720 = vpop.permute.xlu0 %3719
      %3721 = vrot.lane.b32.xlu0 %v3243, 67
      %v3722 = vpop.permute.xlu0 %3721
      %3723 = vrot.lane.b32.xlu0 %v3244, 67
      %v3724 = vpop.permute.xlu0 %3723
      %3725 = vrot.lane.b32.xlu0 %v3238, 67
      %v3726 = vpop.permute.xlu0 %3725
      %3727 = vrot.lane.b32.xlu0 %v3269, 67
      %v3728 = vpop.permute.xlu0 %3727
      %3729 = vrot.lane.b32.xlu0 %v3270, 67
      %v3730 = vpop.permute.xlu0 %3729
      %3731 = vrot.lane.b32.xlu0 %v3271, 67
      %v3732 = vpop.permute.xlu0 %3731
      %3733 = vrot.lane.b32.xlu0 %v3260, 67
      %v3734 = vpop.permute.xlu0 %3733
      %3735 = vrot.lane.b32.xlu0 %v3272, 67
      %v3736 = vpop.permute.xlu0 %3735
      %3737 = vrot.lane.b32.xlu0 %v3273, 67
      %v3738 = vpop.permute.xlu0 %3737
      %3739 = vrot.lane.b32.xlu0 %v3274, 67
      %v3740 = vpop.permute.xlu0 %3739
      %3741 = vrot.lane.b32.xlu0 %v3268, 67
      %v3742 = vpop.permute.xlu0 %3741
      %3743 = vrot.lane.b32.xlu0 %v3299, 67
      %v3744 = vpop.permute.xlu0 %3743
      %3745 = vrot.lane.b32.xlu0 %v3300, 67
      %v3746 = vpop.permute.xlu0 %3745
      %3747 = vrot.lane.b32.xlu0 %v3301, 67
      %v3748 = vpop.permute.xlu0 %3747
      %3749 = vrot.lane.b32.xlu0 %v3290, 67
      %v3750 = vpop.permute.xlu0 %3749
      %3751 = vrot.lane.b32.xlu0 %v3302, 67
      %v3752 = vpop.permute.xlu0 %3751
      %3753 = vrot.lane.b32.xlu0 %v3303, 67
      %v3754 = vpop.permute.xlu0 %3753
      %3755 = vrot.lane.b32.xlu0 %v3304, 67
      %v3756 = vpop.permute.xlu0 %3755
      %3757 = vrot.lane.b32.xlu0 %v3298, 67
      %v3758 = vpop.permute.xlu0 %3757
      %3759 = vrot.lane.b32.xlu0 %v3689, 67
      %v3760 = vpop.permute.xlu0 %3759
      %3761 = vrot.lane.b32.xlu0 %v3690, 67
      %v3762 = vpop.permute.xlu0 %3761
      %3763 = vrot.lane.b32.xlu0 %v3691, 67
      %v3764 = vpop.permute.xlu0 %3763
      %3765 = vrot.lane.b32.xlu0 %v3680, 67
      %v3766 = vpop.permute.xlu0 %3765
      %3767 = vrot.lane.b32.xlu0 %v3692, 67
      %v3768 = vpop.permute.xlu0 %3767
      %3769 = vrot.lane.b32.xlu0 %v3693, 67
      %v3770 = vpop.permute.xlu0 %3769
      %3771 = vrot.lane.b32.xlu0 %v3694, 67
      %v3772 = vpop.permute.xlu0 %3771
      %3773 = vrot.lane.b32.xlu0 %v3688, 67
      %v3774 = vpop.permute.xlu0 %3773
      %3775 = vrot.lane.b32.xlu0 %v3359, 67
      %v3776 = vpop.permute.xlu0 %3775
      %3777 = vrot.lane.b32.xlu0 %v3360, 67
      %v3778 = vpop.permute.xlu0 %3777
      %3779 = vrot.lane.b32.xlu0 %v3361, 67
      %v3780 = vpop.permute.xlu0 %3779
      %3781 = vrot.lane.b32.xlu0 %v3350, 67
      %v3782 = vpop.permute.xlu0 %3781
      %3783 = vrot.lane.b32.xlu0 %v3362, 67
      %v3784 = vpop.permute.xlu0 %3783
      %3785 = vrot.lane.b32.xlu0 %v3363, 67
      %v3786 = vpop.permute.xlu0 %3785
      %3787 = vrot.lane.b32.xlu0 %v3364, 67
      %v3788 = vpop.permute.xlu0 %3787
      %3789 = vrot.lane.b32.xlu0 %v3358, 67
      %v3790 = vpop.permute.xlu0 %3789
      %3791 = vrot.lane.b32.xlu0 %v3389, 67
      %v3792 = vpop.permute.xlu0 %3791
      %3793 = vrot.lane.b32.xlu0 %v3390, 67
      %v3794 = vpop.permute.xlu0 %3793
      %3795 = vrot.lane.b32.xlu0 %v3391, 67
      %v3796 = vpop.permute.xlu0 %3795
      %3797 = vrot.lane.b32.xlu0 %v3380, 67
      %v3798 = vpop.permute.xlu0 %3797
      %3799 = vrot.lane.b32.xlu0 %v3392, 67
      %v3800 = vpop.permute.xlu0 %3799
      %3801 = vrot.lane.b32.xlu0 %v3393, 67
      %v3802 = vpop.permute.xlu0 %3801
      %3803 = vrot.lane.b32.xlu0 %v3394, 67
      %v3804 = vpop.permute.xlu0 %3803
      %3805 = vrot.lane.b32.xlu0 %v3388, 67
      %v3806 = vpop.permute.xlu0 %3805
      %3807 = vrot.lane.b32.xlu0 %v3419, 67
      %v3808 = vpop.permute.xlu0 %3807
      %3809 = vrot.lane.b32.xlu0 %v3420, 67
      %v3810 = vpop.permute.xlu0 %3809
      %3811 = vrot.lane.b32.xlu0 %v3421, 67
      %v3812 = vpop.permute.xlu0 %3811
      %3813 = vrot.lane.b32.xlu0 %v3410, 67
      %v3814 = vpop.permute.xlu0 %3813
      %3815 = vrot.lane.b32.xlu0 %v3422, 67
      %v3816 = vpop.permute.xlu0 %3815
      %3817 = vrot.lane.b32.xlu0 %v3423, 67
      %v3818 = vpop.permute.xlu0 %3817
      %3819 = vrot.lane.b32.xlu0 %v3424, 67
      %v3820 = vpop.permute.xlu0 %3819
      %3821 = vrot.lane.b32.xlu0 %v3418, 67
      %v3822 = vpop.permute.xlu0 %3821
      %3823 = vrot.lane.b32.xlu0 %v3449, 67
      %v3824 = vpop.permute.xlu0 %3823
      %3825 = vrot.lane.b32.xlu0 %v3450, 67
      %v3826 = vpop.permute.xlu0 %3825
      %3827 = vrot.lane.b32.xlu0 %v3451, 67
      %v3828 = vpop.permute.xlu0 %3827
      %3829 = vrot.lane.b32.xlu0 %v3440, 67
      %v3830 = vpop.permute.xlu0 %3829
      %3831 = vrot.lane.b32.xlu0 %v3452, 67
      %v3832 = vpop.permute.xlu0 %3831
      %3833 = vrot.lane.b32.xlu0 %v3453, 67
      %v3834 = vpop.permute.xlu0 %3833
      %3835 = vrot.lane.b32.xlu0 %v3454, 67
      %v3836 = vpop.permute.xlu0 %3835
      %3837 = vrot.lane.b32.xlu0 %v3448, 67
      %v3838 = vpop.permute.xlu0 %3837
      %v3839 = vsel %vm899, %v3696, %v3698
      %v3840 = vsel %vm899, %v3698, %v3700
      %v3841 = vsel %vm899, %v3700, %v3702
      %v3842 = vsel %vm899, %v3704, %v3706
      %v3843 = vsel %vm899, %v3706, %v3708
      %v3844 = vsel %vm899, %v3708, %v3710
      %v3845 = vsel %vm899, %v3712, %v3714
      %v3846 = vsel %vm899, %v3714, %v3716
      %v3847 = vsel %vm899, %v3716, %v3718
      %v3848 = vsel %vm899, %v3720, %v3722
      %v3849 = vsel %vm899, %v3722, %v3724
      %v3850 = vsel %vm899, %v3724, %v3726
      %v3851 = vsel %vm899, %v3728, %v3730
      %v3852 = vsel %vm899, %v3730, %v3732
      %v3853 = vsel %vm899, %v3732, %v3734
      %v3854 = vsel %vm899, %v3736, %v3738
      %v3855 = vsel %vm899, %v3738, %v3740
      %v3856 = vsel %vm899, %v3740, %v3742
      %v3857 = vsel %vm899, %v3744, %v3746
      %v3858 = vsel %vm899, %v3746, %v3748
      %v3859 = vsel %vm899, %v3748, %v3750
      %v3860 = vsel %vm899, %v3752, %v3754
      %v3861 = vsel %vm899, %v3754, %v3756
      %v3862 = vsel %vm899, %v3756, %v3758
      %v3863 = vsel %vm899, %v3760, %v3762
      %v3864 = vsel %vm899, %v3762, %v3764
      %v3865 = vsel %vm899, %v3764, %v3766
      %v3866 = vsel %vm899, %v3768, %v3770
      %v3867 = vsel %vm899, %v3770, %v3772
      %v3868 = vsel %vm899, %v3772, %v3774
      %v3869 = vsel %vm899, %v3776, %v3778
      %v3870 = vsel %vm899, %v3778, %v3780
      %v3871 = vsel %vm899, %v3780, %v3782
      %v3872 = vsel %vm899, %v3784, %v3786
      %v3873 = vsel %vm899, %v3786, %v3788
      %v3874 = vsel %vm899, %v3788, %v3790
      %v3875 = vsel %vm899, %v3792, %v3794
      %v3876 = vsel %vm899, %v3794, %v3796
      %v3877 = vsel %vm899, %v3796, %v3798
      %v3878 = vsel %vm899, %v3800, %v3802
      %v3879 = vsel %vm899, %v3802, %v3804
      %v3880 = vsel %vm899, %v3804, %v3806
      %v3881 = vsel %vm899, %v3808, %v3810
      %v3882 = vsel %vm899, %v3810, %v3812
      %v3883 = vsel %vm899, %v3812, %v3814
      %v3884 = vsel %vm899, %v3816, %v3818
      %v3885 = vsel %vm899, %v3818, %v3820
      %v3886 = vsel %vm899, %v3820, %v3822
      %v3887 = vsel %vm899, %v3824, %v3826
      %v3888 = vsel %vm899, %v3826, %v3828
      %v3889 = vsel %vm899, %v3828, %v3830
      %v3890 = vsel %vm899, %v3832, %v3834
      %v3891 = vsel %vm899, %v3834, %v3836
      %v3892 = vsel %vm899, %v3836, %v3838
      %s3965 = scalar_lea.vmem %s1, 224
      %v3966 = vld [vmem:[%s3965] sm:$0xff]
      %v3967 = vld [vmem:[%s3965 + $0x8] sm:$0xff]
      %v3968 = vld [vmem:[%s3965 + $0x10] sm:$0xff]
      %v3969 = vld [vmem:[%s3965 + $0x18] sm:$0xf]
      %v3970 = vld [vmem:[%s3965 + $0x1c] sm:$0xff]
      %v3971 = vld [vmem:[%s3965 + $0x24] sm:$0xff]
      %v3972 = vld [vmem:[%s3965 + $0x2c] sm:$0xff]
      %v3973 = vld [vmem:[%s3965 + $0x34] sm:$0xf]
      %v3974 = vld [vmem:[%s3965 + $0x38] sm:$0xff]
      %v3975 = vld [vmem:[%s3965 + $0x40] sm:$0xff]
      %v3976 = vld [vmem:[%s3965 + $0x48] sm:$0xff]
      %v3977 = vld [vmem:[%s3965 + $0x50] sm:$0xf]
      %v3978 = vld [vmem:[%s3965 + $0x54] sm:$0xff]
      %v3979 = vld [vmem:[%s3965 + $0x5c] sm:$0xff]
      %v3980 = vld [vmem:[%s3965 + $0x64] sm:$0xff]
      %v3981 = vld [vmem:[%s3965 + $0x6c] sm:$0xf]
      %s3982 = scalar_lea.vmem %s2, 64
      %v3983 = vld [vmem:[%s3982] sm:$0xff]
      %v3984 = vld [vmem:[%s3982 + $0x8] sm:$0xff]
      %v3985 = vld [vmem:[%s3982 + $0x10] sm:$0xff]
      %v3986 = vld [vmem:[%s3982 + $0x18] sm:$0xff]
      %3988 = vset.pattern.permute.xlu0 0
      %3989 = vperm.xlu0 %3988, %v3983
      %v3990 = vpop.permute.xlu0 %3989
      %3993 = vset.pattern.permute.xlu0 0
      %3994 = vperm.xlu0 %3993, %v3984
      %v3995 = vpop.permute.xlu0 %3994
      %3998 = vset.pattern.permute.xlu0 0
      %3999 = vperm.xlu0 %3998, %v3985
      %v4000 = vpop.permute.xlu0 %3999
      %4003 = vset.pattern.permute.xlu0 0
      %4004 = vperm.xlu0 %4003, %v3986
      %v4005 = vpop.permute.xlu0 %4004
      %v4023 = vunpack.c.l.b16 %v3966
      %v4024 = vunpack.c.h.b16 %v3966
      %v4025 = vunpack.c.l.b16 %v3967
      %v4026 = vunpack.c.h.b16 %v3967
      %v4027 = vunpack.c.l.b16 %v3968
      %v4028 = vunpack.c.h.b16 %v3968
      %v4029 = vunpack.c.l.b16 %v3969
      %v4030 = vunpack.c.l.b16 %v3970
      %v4031 = vunpack.c.h.b16 %v3970
      %v4032 = vunpack.c.l.b16 %v3971
      %v4033 = vunpack.c.h.b16 %v3971
      %v4034 = vunpack.c.l.b16 %v3972
      %v4035 = vunpack.c.h.b16 %v3972
      %v4036 = vunpack.c.l.b16 %v3973
      %v4037 = vunpack.c.l.b16 %v3974
      %v4038 = vunpack.c.h.b16 %v3974
      %v4039 = vunpack.c.l.b16 %v3975
      %v4040 = vunpack.c.h.b16 %v3975
      %v4041 = vunpack.c.l.b16 %v3976
      %v4042 = vunpack.c.h.b16 %v3976
      %v4043 = vunpack.c.l.b16 %v3977
      %v4044 = vunpack.c.l.b16 %v3978
      %v4045 = vunpack.c.h.b16 %v3978
      %v4046 = vunpack.c.l.b16 %v3979
      %v4047 = vunpack.c.h.b16 %v3979
      %v4048 = vunpack.c.l.b16 %v3980
      %v4049 = vunpack.c.h.b16 %v3980
      %v4050 = vunpack.c.l.b16 %v3981
      %v4051 = vpack.c.b16 %v4030, %v4023
      %v4052 = vpack.c.b16 %v4031, %v4024
      %v4053 = vpack.c.b16 %v4032, %v4025
      %v4054 = vpack.c.b16 %v4033, %v4026
      %v4055 = vpack.c.b16 %v4034, %v4027
      %v4056 = vpack.c.b16 %v4035, %v4028
      %v4057 = vpack.c.b16 %v4036, %v4029
      %v4058 = vpack.c.b16 %v4044, %v4037
      %v4059 = vpack.c.b16 %v4045, %v4038
      %v4060 = vpack.c.b16 %v4046, %v4039
      %v4061 = vpack.c.b16 %v4047, %v4040
      %v4062 = vpack.c.b16 %v4048, %v4041
      %v4063 = vpack.c.b16 %v4049, %v4042
      %v4064 = vpack.c.b16 %v4050, %v4043
      %v4078 = vsel %vm1136, %v4057, 0
      %v4081 = vsel %vm1136, %v4064, 0
      %4083 = vmatprep.subr.bf16.mxu0 %v3303
      %4084 = vmatpush1.bf16.msra.mxu0 %v3302
      %4085 = vmatprep.subr.bf16.mxu0 %v3300
      %4086 = vmatpush1.bf16.msra.mxu0 %v3299
      %4087 = vmatprep.subr.bf16.mxu0 %v3273
      %4088 = vmatpush1.bf16.msra.mxu0 %v3272
      %4089 = vmatprep.subr.bf16.mxu0 %v3270
      %4090 = vmatpush1.bf16.msra.mxu0 %v3269
      %4091 = vmatprep.subr.bf16.mxu0 %v3243
      %4092 = vmatpush1.bf16.msra.mxu0 %v3242
      %4093 = vmatprep.subr.bf16.mxu0 %v3240
      %4094 = vmatpush1.bf16.msra.mxu0 %v3239
      %4095 = vmatprep.subr.bf16.mxu0 %v3212
      %4096 = vmatpush1.bf16.msra.mxu0 %v3211
      %4097 = vmatprep.subr.bf16.mxu0 %v3208
      %4098 = vmatpush1.bf16.msra.mxu0 %v3207
      %4099 = vmatprep.subr.bf16.mxu0 %v3423
      %4100 = vmatpush2.bf16.msra.mxu0 %v3422
      %4101 = vmatprep.subr.bf16.mxu0 %v3420
      %4102 = vmatpush2.bf16.msra.mxu0 %v3419
      %4103 = vmatprep.subr.bf16.mxu0 %v3393
      %4104 = vmatpush2.bf16.msra.mxu0 %v3392
      %4105 = vmatprep.subr.bf16.mxu0 %v3390
      %4106 = vmatpush2.bf16.msra.mxu0 %v3389
      %4107 = vmatprep.subr.bf16.mxu0 %v3363
      %4108 = vmatpush2.bf16.msra.mxu0 %v3362
      %4109 = vmatprep.subr.bf16.mxu0 %v3360
      %4110 = vmatpush2.bf16.msra.mxu0 %v3359
      %4111 = vmatprep.subr.bf16.mxu0 %v3333
      %4112 = vmatpush2.bf16.msra.mxu0 %v3332
      %4113 = vmatprep.subr.bf16.mxu0 %v3330
      %4114 = vmatpush2.bf16.msra.mxu0 %v3329
      %4115 = vmatprep.mubr.bf16.mxu0 %v4052
      %4116 = vmatmul.mubr.bf16.gmra.mxu0 %v4051
      %v4117 = vpop.f32.mrf.mxu0
      %v4118 = vadd.f32 %v3990, %v4117
      %v4119 = vpop.f32.mrf.mxu0
      %v4120 = vadd.f32 %v3990, %v4119
      %v4121 = vpop.f32.mrf.mxu0
      %v4122 = vadd.f32 %v3995, %v4121
      %v4123 = vpop.f32.mrf.mxu0
      %v4124 = vadd.f32 %v3995, %v4123
      %4125 = vmatprep.mubr.bf16.mxu0 %v4059
      %4126 = vmatmul.mubr.bf16.gmra.mxu0 %v4058
      %v4127 = vpop.f32.mrf.mxu0
      %v4128 = vadd.f32 %v4000, %v4127
      %v4129 = vpop.f32.mrf.mxu0
      %v4130 = vadd.f32 %v4000, %v4129
      %v4131 = vpop.f32.mrf.mxu0
      %v4132 = vadd.f32 %v4005, %v4131
      %v4133 = vpop.f32.mrf.mxu0
      %v4134 = vadd.f32 %v4005, %v4133
      %4135 = vdwg.mxu0
      %4136 = vmatprep.subr.bf16.mxu0 %v3543
      %4137 = vmatpush1.bf16.msra.mxu0 %v3542
      %4138 = vmatprep.subr.bf16.mxu0 %v3540
      %4139 = vmatpush1.bf16.msra.mxu0 %v3539
      %4140 = vmatprep.subr.bf16.mxu0 %v3513
      %4141 = vmatpush1.bf16.msra.mxu0 %v3512
      %4142 = vmatprep.subr.bf16.mxu0 %v3510
      %4143 = vmatpush1.bf16.msra.mxu0 %v3509
      %4144 = vmatprep.subr.bf16.mxu0 %v3483
      %4145 = vmatpush1.bf16.msra.mxu0 %v3482
      %4146 = vmatprep.subr.bf16.mxu0 %v3480
      %4147 = vmatpush1.bf16.msra.mxu0 %v3479
      %4148 = vmatprep.subr.bf16.mxu0 %v3453
      %4149 = vmatpush1.bf16.msra.mxu0 %v3452
      %4150 = vmatprep.subr.bf16.mxu0 %v3450
      %4151 = vmatpush1.bf16.msra.mxu0 %v3449
      %4152 = vmatprep.subr.bf16.mxu0 %v3663
      %4153 = vmatpush2.bf16.msra.mxu0 %v3662
      %4154 = vmatprep.subr.bf16.mxu0 %v3660
      %4155 = vmatpush2.bf16.msra.mxu0 %v3659
      %4156 = vmatprep.subr.bf16.mxu0 %v3633
      %4157 = vmatpush2.bf16.msra.mxu0 %v3632
      %4158 = vmatprep.subr.bf16.mxu0 %v3630
      %4159 = vmatpush2.bf16.msra.mxu0 %v3629
      %4160 = vmatprep.subr.bf16.mxu0 %v3603
      %4161 = vmatpush2.bf16.msra.mxu0 %v3602
      %4162 = vmatprep.subr.bf16.mxu0 %v3600
      %4163 = vmatpush2.bf16.msra.mxu0 %v3599
      %4164 = vmatprep.subr.bf16.mxu0 %v3573
      %4165 = vmatpush2.bf16.msra.mxu0 %v3572
      %4166 = vmatprep.subr.bf16.mxu0 %v3570
      %4167 = vmatpush2.bf16.msra.mxu0 %v3569
      %4168 = vmatprep.mubr.bf16.mxu0 %v4054
      %4169 = vmatmul.mubr.bf16.gmra.mxu0 %v4053
      %v4170 = vpop.f32.mrf.mxu0
      %v4171 = vadd.f32 %v4118, %v4170
      %v4172 = vpop.f32.mrf.mxu0
      %v4173 = vadd.f32 %v4120, %v4172
      %v4174 = vpop.f32.mrf.mxu0
      %v4175 = vadd.f32 %v4122, %v4174
      %v4176 = vpop.f32.mrf.mxu0
      %v4177 = vadd.f32 %v4124, %v4176
      %4178 = vmatprep.mubr.bf16.mxu0 %v4061
      %4179 = vmatmul.mubr.bf16.gmra.mxu0 %v4060
      %v4180 = vpop.f32.mrf.mxu0
      %v4181 = vadd.f32 %v4128, %v4180
      %v4182 = vpop.f32.mrf.mxu0
      %v4183 = vadd.f32 %v4130, %v4182
      %v4184 = vpop.f32.mrf.mxu0
      %v4185 = vadd.f32 %v4132, %v4184
      %v4186 = vpop.f32.mrf.mxu0
      %v4187 = vadd.f32 %v4134, %v4186
      %4188 = vdwg.mxu0
      %4189 = vmatprep.subr.bf16.mxu0 %v3861
      %4190 = vmatpush1.bf16.msra.mxu0 %v3860
      %4191 = vmatprep.subr.bf16.mxu0 %v3858
      %4192 = vmatpush1.bf16.msra.mxu0 %v3857
      %4193 = vmatprep.subr.bf16.mxu0 %v3855
      %4194 = vmatpush1.bf16.msra.mxu0 %v3854
      %4195 = vmatprep.subr.bf16.mxu0 %v3852
      %4196 = vmatpush1.bf16.msra.mxu0 %v3851
      %4197 = vmatprep.subr.bf16.mxu0 %v3849
      %4198 = vmatpush1.bf16.msra.mxu0 %v3848
      %4199 = vmatprep.subr.bf16.mxu0 %v3846
      %4200 = vmatpush1.bf16.msra.mxu0 %v3845
      %4201 = vmatprep.subr.bf16.mxu0 %v3843
      %4202 = vmatpush1.bf16.msra.mxu0 %v3842
      %4203 = vmatprep.subr.bf16.mxu0 %v3840
      %4204 = vmatpush1.bf16.msra.mxu0 %v3839
      %4205 = vmatprep.subr.bf16.mxu0 %v3885
      %4206 = vmatpush2.bf16.msra.mxu0 %v3884
      %4207 = vmatprep.subr.bf16.mxu0 %v3882
      %4208 = vmatpush2.bf16.msra.mxu0 %v3881
      %4209 = vmatprep.subr.bf16.mxu0 %v3879
      %4210 = vmatpush2.bf16.msra.mxu0 %v3878
      %4211 = vmatprep.subr.bf16.mxu0 %v3876
      %4212 = vmatpush2.bf16.msra.mxu0 %v3875
      %4213 = vmatprep.subr.bf16.mxu0 %v3873
      %4214 = vmatpush2.bf16.msra.mxu0 %v3872
      %4215 = vmatprep.subr.bf16.mxu0 %v3870
      %4216 = vmatpush2.bf16.msra.mxu0 %v3869
      %4217 = vmatprep.subr.bf16.mxu0 %v3867
      %4218 = vmatpush2.bf16.msra.mxu0 %v3866
      %4219 = vmatprep.subr.bf16.mxu0 %v3864
      %4220 = vmatpush2.bf16.msra.mxu0 %v3863
      %4221 = vmatprep.mubr.bf16.mxu0 %v4056
      %4222 = vmatmul.mubr.bf16.gmra.mxu0 %v4055
      %v4223 = vpop.f32.mrf.mxu0
      %v4224 = vadd.f32 %v4171, %v4223
      %v4225 = vpop.f32.mrf.mxu0
      %v4226 = vadd.f32 %v4173, %v4225
      %v4227 = vpop.f32.mrf.mxu0
      %v4228 = vadd.f32 %v4175, %v4227
      %v4229 = vpop.f32.mrf.mxu0
      %v4230 = vadd.f32 %v4177, %v4229
      %4231 = vmatprep.mubr.bf16.mxu0 %v4063
      %4232 = vmatmul.mubr.bf16.gmra.mxu0 %v4062
      %v4233 = vpop.f32.mrf.mxu0
      %v4234 = vadd.f32 %v4181, %v4233
      %v4235 = vpop.f32.mrf.mxu0
      %v4236 = vadd.f32 %v4183, %v4235
      %v4237 = vpop.f32.mrf.mxu0
      %v4238 = vadd.f32 %v4185, %v4237
      %v4239 = vpop.f32.mrf.mxu0
      %v4240 = vadd.f32 %v4187, %v4239
      %4241 = vdwg.mxu0
      %4242 = vmatprep.subr.bf16.mxu0 0
      %4243 = vmatpush1.bf16.msra.mxu0 0
      %4244 = vmatprep.subr.bf16.mxu0 0
      %4245 = vmatpush1.bf16.msra.mxu0 0
      %4246 = vmatprep.subr.bf16.mxu0 0
      %4247 = vmatpush1.bf16.msra.mxu0 0
      %4248 = vmatprep.subr.bf16.mxu0 0
      %4249 = vmatpush1.bf16.msra.mxu0 0
      %4250 = vmatprep.subr.bf16.mxu0 0
      %4251 = vmatpush1.bf16.msra.mxu0 0
      %4252 = vmatprep.subr.bf16.mxu0 0
      %4253 = vmatpush1.bf16.msra.mxu0 0
      %4254 = vmatprep.subr.bf16.mxu0 %v3891
      %4255 = vmatpush1.bf16.msra.mxu0 %v3890
      %4256 = vmatprep.subr.bf16.mxu0 %v3888
      %4257 = vmatpush1.bf16.msra.mxu0 %v3887
      %4258 = vmatprep.subr.bf16.mxu0 0
      %4259 = vmatpush2.bf16.msra.mxu0 0
      %4260 = vmatprep.subr.bf16.mxu0 0
      %4261 = vmatpush2.bf16.msra.mxu0 0
      %4262 = vmatprep.subr.bf16.mxu0 0
      %4263 = vmatpush2.bf16.msra.mxu0 0
      %4264 = vmatprep.subr.bf16.mxu0 0
      %4265 = vmatpush2.bf16.msra.mxu0 0
      %4266 = vmatprep.subr.bf16.mxu0 0
      %4267 = vmatpush2.bf16.msra.mxu0 0
      %4268 = vmatprep.subr.bf16.mxu0 0
      %4269 = vmatpush2.bf16.msra.mxu0 0
      %4270 = vmatprep.subr.bf16.mxu0 0
      %4271 = vmatpush2.bf16.msra.mxu0 0
      %4272 = vmatprep.subr.bf16.mxu0 0
      %4273 = vmatpush2.bf16.msra.mxu0 0
      %4274 = vmatprep.mubr.bf16.mxu0 0
      %4275 = vmatmul.mubr.bf16.gmra.mxu0 %v4078
      %v4276 = vpop.f32.mrf.mxu0
      %v4277 = vadd.f32 %v4224, %v4276
      %v4278 = vpop.f32.mrf.mxu0
      %v4279 = vadd.f32 %v4226, %v4278
      %v4280 = vpop.f32.mrf.mxu0
      %v4281 = vadd.f32 %v4228, %v4280
      %v4282 = vpop.f32.mrf.mxu0
      %v4283 = vadd.f32 %v4230, %v4282
      %4284 = vmatprep.mubr.bf16.mxu0 0
      %4285 = vmatmul.mubr.bf16.gmra.mxu0 %v4081
      %v4286 = vpop.f32.mrf.mxu0
      %v4287 = vadd.f32 %v4234, %v4286
      %v4288 = vpop.f32.mrf.mxu0
      %v4289 = vadd.f32 %v4236, %v4288
      %v4290 = vpop.f32.mrf.mxu0
      %v4291 = vadd.f32 %v4238, %v4290
      %v4292 = vpop.f32.mrf.mxu0
      %v4293 = vadd.f32 %v4240, %v4292
      %4294 = vdwg.mxu0
      %4295 = vmatprep.subr.bf16.mxu0 %v3298
      %4296 = vmatpush1.bf16.msra.mxu0 %v3304
      %4297 = vmatprep.subr.bf16.mxu0 %v3290
      %4298 = vmatpush1.bf16.msra.mxu0 %v3301
      %4299 = vmatprep.subr.bf16.mxu0 %v3268
      %4300 = vmatpush1.bf16.msra.mxu0 %v3274
      %4301 = vmatprep.subr.bf16.mxu0 %v3260
      %4302 = vmatpush1.bf16.msra.mxu0 %v3271
      %4303 = vmatprep.subr.bf16.mxu0 %v3238
      %4304 = vmatpush1.bf16.msra.mxu0 %v3244
      %4305 = vmatprep.subr.bf16.mxu0 %v3230
      %4306 = vmatpush1.bf16.msra.mxu0 %v3241
      %4307 = vmatprep.subr.bf16.mxu0 %v3214
      %4308 = vmatpush1.bf16.msra.mxu0 %v3213
      %4309 = vmatprep.subr.bf16.mxu0 %v3210
      %4310 = vmatpush1.bf16.msra.mxu0 %v3209
      %4311 = vmatprep.subr.bf16.mxu0 %v3418
      %4312 = vmatpush2.bf16.msra.mxu0 %v3424
      %4313 = vmatprep.subr.bf16.mxu0 %v3410
      %4314 = vmatpush2.bf16.msra.mxu0 %v3421
      %4315 = vmatprep.subr.bf16.mxu0 %v3388
      %4316 = vmatpush2.bf16.msra.mxu0 %v3394
      %4317 = vmatprep.subr.bf16.mxu0 %v3380
      %4318 = vmatpush2.bf16.msra.mxu0 %v3391
      %4319 = vmatprep.subr.bf16.mxu0 %v3358
      %4320 = vmatpush2.bf16.msra.mxu0 %v3364
      %4321 = vmatprep.subr.bf16.mxu0 %v3350
      %4322 = vmatpush2.bf16.msra.mxu0 %v3361
      %4323 = vmatprep.subr.bf16.mxu0 %v3328
      %4324 = vmatpush2.bf16.msra.mxu0 %v3334
      %4325 = vmatprep.subr.bf16.mxu0 %v3320
      %4326 = vmatpush2.bf16.msra.mxu0 %v3331
      %4327 = vmatprep.mubr.bf16.mxu0 %v4052
      %4328 = vmatmul.mubr.bf16.gmra.mxu0 %v4051
      %v4329 = vpop.f32.mrf.mxu0
      %v4330 = vadd.f32 %v3990, %v4329
      %v4331 = vpop.f32.mrf.mxu0
      %v4332 = vadd.f32 %v3990, %v4331
      %v4333 = vpop.f32.mrf.mxu0
      %v4334 = vadd.f32 %v3995, %v4333
      %v4335 = vpop.f32.mrf.mxu0
      %v4336 = vadd.f32 %v3995, %v4335
      %4337 = vmatprep.mubr.bf16.mxu0 %v4059
      %4338 = vmatmul.mubr.bf16.gmra.mxu0 %v4058
      %v4339 = vpop.f32.mrf.mxu0
      %v4340 = vadd.f32 %v4000, %v4339
      %v4341 = vpop.f32.mrf.mxu0
      %v4342 = vadd.f32 %v4000, %v4341
      %v4343 = vpop.f32.mrf.mxu0
      %v4344 = vadd.f32 %v4005, %v4343
      %v4345 = vpop.f32.mrf.mxu0
      %v4346 = vadd.f32 %v4005, %v4345
      %4347 = vdwg.mxu0
      %4348 = vmatprep.subr.bf16.mxu0 %v3538
      %4349 = vmatpush1.bf16.msra.mxu0 %v3544
      %4350 = vmatprep.subr.bf16.mxu0 %v3530
      %4351 = vmatpush1.bf16.msra.mxu0 %v3541
      %4352 = vmatprep.subr.bf16.mxu0 %v3508
      %4353 = vmatpush1.bf16.msra.mxu0 %v3514
      %4354 = vmatprep.subr.bf16.mxu0 %v3500
      %4355 = vmatpush1.bf16.msra.mxu0 %v3511
      %4356 = vmatprep.subr.bf16.mxu0 %v3478
      %4357 = vmatpush1.bf16.msra.mxu0 %v3484
      %4358 = vmatprep.subr.bf16.mxu0 %v3470
      %4359 = vmatpush1.bf16.msra.mxu0 %v3481
      %4360 = vmatprep.subr.bf16.mxu0 %v3448
      %4361 = vmatpush1.bf16.msra.mxu0 %v3454
      %4362 = vmatprep.subr.bf16.mxu0 %v3440
      %4363 = vmatpush1.bf16.msra.mxu0 %v3451
      %4364 = vmatprep.subr.bf16.mxu0 %v3658
      %4365 = vmatpush2.bf16.msra.mxu0 %v3664
      %4366 = vmatprep.subr.bf16.mxu0 %v3650
      %4367 = vmatpush2.bf16.msra.mxu0 %v3661
      %4368 = vmatprep.subr.bf16.mxu0 %v3628
      %4369 = vmatpush2.bf16.msra.mxu0 %v3634
      %4370 = vmatprep.subr.bf16.mxu0 %v3620
      %4371 = vmatpush2.bf16.msra.mxu0 %v3631
      %4372 = vmatprep.subr.bf16.mxu0 %v3598
      %4373 = vmatpush2.bf16.msra.mxu0 %v3604
      %4374 = vmatprep.subr.bf16.mxu0 %v3590
      %4375 = vmatpush2.bf16.msra.mxu0 %v3601
      %4376 = vmatprep.subr.bf16.mxu0 %v3568
      %4377 = vmatpush2.bf16.msra.mxu0 %v3574
      %4378 = vmatprep.subr.bf16.mxu0 %v3560
      %4379 = vmatpush2.bf16.msra.mxu0 %v3571
      %4380 = vmatprep.mubr.bf16.mxu0 %v4054
      %4381 = vmatmul.mubr.bf16.gmra.mxu0 %v4053
      %v4382 = vpop.f32.mrf.mxu0
      %v4383 = vadd.f32 %v4330, %v4382
      %v4384 = vpop.f32.mrf.mxu0
      %v4385 = vadd.f32 %v4332, %v4384
      %v4386 = vpop.f32.mrf.mxu0
      %v4387 = vadd.f32 %v4334, %v4386
      %v4388 = vpop.f32.mrf.mxu0
      %v4389 = vadd.f32 %v4336, %v4388
      %4390 = vmatprep.mubr.bf16.mxu0 %v4061
      %4391 = vmatmul.mubr.bf16.gmra.mxu0 %v4060
      %v4392 = vpop.f32.mrf.mxu0
      %v4393 = vadd.f32 %v4340, %v4392
      %v4394 = vpop.f32.mrf.mxu0
      %v4395 = vadd.f32 %v4342, %v4394
      %v4396 = vpop.f32.mrf.mxu0
      %v4397 = vadd.f32 %v4344, %v4396
      %v4398 = vpop.f32.mrf.mxu0
      %v4399 = vadd.f32 %v4346, %v4398
      %4400 = vdwg.mxu0
      %4401 = vmatprep.subr.bf16.mxu0 %v3758
      %4402 = vmatpush1.bf16.msra.mxu0 %v3862
      %4403 = vmatprep.subr.bf16.mxu0 %v3750
      %4404 = vmatpush1.bf16.msra.mxu0 %v3859
      %4405 = vmatprep.subr.bf16.mxu0 %v3742
      %4406 = vmatpush1.bf16.msra.mxu0 %v3856
      %4407 = vmatprep.subr.bf16.mxu0 %v3734
      %4408 = vmatpush1.bf16.msra.mxu0 %v3853
      %4409 = vmatprep.subr.bf16.mxu0 %v3726
      %4410 = vmatpush1.bf16.msra.mxu0 %v3850
      %4411 = vmatprep.subr.bf16.mxu0 %v3718
      %4412 = vmatpush1.bf16.msra.mxu0 %v3847
      %4413 = vmatprep.subr.bf16.mxu0 %v3710
      %4414 = vmatpush1.bf16.msra.mxu0 %v3844
      %4415 = vmatprep.subr.bf16.mxu0 %v3702
      %4416 = vmatpush1.bf16.msra.mxu0 %v3841
      %4417 = vmatprep.subr.bf16.mxu0 %v3822
      %4418 = vmatpush2.bf16.msra.mxu0 %v3886
      %4419 = vmatprep.subr.bf16.mxu0 %v3814
      %4420 = vmatpush2.bf16.msra.mxu0 %v3883
      %4421 = vmatprep.subr.bf16.mxu0 %v3806
      %4422 = vmatpush2.bf16.msra.mxu0 %v3880
      %4423 = vmatprep.subr.bf16.mxu0 %v3798
      %4424 = vmatpush2.bf16.msra.mxu0 %v3877
      %4425 = vmatprep.subr.bf16.mxu0 %v3790
      %4426 = vmatpush2.bf16.msra.mxu0 %v3874
      %4427 = vmatprep.subr.bf16.mxu0 %v3782
      %4428 = vmatpush2.bf16.msra.mxu0 %v3871
      %4429 = vmatprep.subr.bf16.mxu0 %v3774
      %4430 = vmatpush2.bf16.msra.mxu0 %v3868
      %4431 = vmatprep.subr.bf16.mxu0 %v3766
      %4432 = vmatpush2.bf16.msra.mxu0 %v3865
      %4433 = vmatprep.mubr.bf16.mxu0 %v4056
      %4434 = vmatmul.mubr.bf16.gmra.mxu0 %v4055
      %v4435 = vpop.f32.mrf.mxu0
      %v4436 = vadd.f32 %v4383, %v4435
      %v4437 = vpop.f32.mrf.mxu0
      %v4438 = vadd.f32 %v4385, %v4437
      %v4439 = vpop.f32.mrf.mxu0
      %v4440 = vadd.f32 %v4387, %v4439
      %v4441 = vpop.f32.mrf.mxu0
      %v4442 = vadd.f32 %v4389, %v4441
      %4443 = vmatprep.mubr.bf16.mxu0 %v4063
      %4444 = vmatmul.mubr.bf16.gmra.mxu0 %v4062
      %v4445 = vpop.f32.mrf.mxu0
      %v4446 = vadd.f32 %v4393, %v4445
      %v4447 = vpop.f32.mrf.mxu0
      %v4448 = vadd.f32 %v4395, %v4447
      %v4449 = vpop.f32.mrf.mxu0
      %v4450 = vadd.f32 %v4397, %v4449
      %v4451 = vpop.f32.mrf.mxu0
      %v4452 = vadd.f32 %v4399, %v4451
      %4453 = vdwg.mxu0
      %4454 = vmatprep.subr.bf16.mxu0 0
      %4455 = vmatpush1.bf16.msra.mxu0 0
      %4456 = vmatprep.subr.bf16.mxu0 0
      %4457 = vmatpush1.bf16.msra.mxu0 0
      %4458 = vmatprep.subr.bf16.mxu0 0
      %4459 = vmatpush1.bf16.msra.mxu0 0
      %4460 = vmatprep.subr.bf16.mxu0 0
      %4461 = vmatpush1.bf16.msra.mxu0 0
      %4462 = vmatprep.subr.bf16.mxu0 0
      %4463 = vmatpush1.bf16.msra.mxu0 0
      %4464 = vmatprep.subr.bf16.mxu0 0
      %4465 = vmatpush1.bf16.msra.mxu0 0
      %4466 = vmatprep.subr.bf16.mxu0 %v3838
      %4467 = vmatpush1.bf16.msra.mxu0 %v3892
      %4468 = vmatprep.subr.bf16.mxu0 %v3830
      %4469 = vmatpush1.bf16.msra.mxu0 %v3889
      %4470 = vmatprep.subr.bf16.mxu0 0
      %4471 = vmatpush2.bf16.msra.mxu0 0
      %4472 = vmatprep.subr.bf16.mxu0 0
      %4473 = vmatpush2.bf16.msra.mxu0 0
      %4474 = vmatprep.subr.bf16.mxu0 0
      %4475 = vmatpush2.bf16.msra.mxu0 0
      %4476 = vmatprep.subr.bf16.mxu0 0
      %4477 = vmatpush2.bf16.msra.mxu0 0
      %4478 = vmatprep.subr.bf16.mxu0 0
      %4479 = vmatpush2.bf16.msra.mxu0 0
      %4480 = vmatprep.subr.bf16.mxu0 0
      %4481 = vmatpush2.bf16.msra.mxu0 0
      %4482 = vmatprep.subr.bf16.mxu0 0
      %4483 = vmatpush2.bf16.msra.mxu0 0
      %4484 = vmatprep.subr.bf16.mxu0 0
      %4485 = vmatpush2.bf16.msra.mxu0 0
      %4486 = vmatprep.mubr.bf16.mxu0 0
      %4487 = vmatmul.mubr.bf16.gmra.mxu0 %v4078
      %v4488 = vpop.f32.mrf.mxu0
      %v4489 = vadd.f32 %v4436, %v4488
      %v4490 = vpop.f32.mrf.mxu0
      %v4491 = vadd.f32 %v4438, %v4490
      %v4492 = vpop.f32.mrf.mxu0
      %v4493 = vadd.f32 %v4440, %v4492
      %v4494 = vpop.f32.mrf.mxu0
      %v4495 = vadd.f32 %v4442, %v4494
      %4496 = vmatprep.mubr.bf16.mxu0 0
      %4497 = vmatmul.mubr.bf16.gmra.mxu0 %v4081
      %v4498 = vpop.f32.mrf.mxu0
      %v4499 = vadd.f32 %v4446, %v4498
      %v4500 = vpop.f32.mrf.mxu0
      %v4501 = vadd.f32 %v4448, %v4500
      %v4502 = vpop.f32.mrf.mxu0
      %v4503 = vadd.f32 %v4450, %v4502
      %v4504 = vpop.f32.mrf.mxu0
      %v4505 = vadd.f32 %v4452, %v4504
      %4506 = vdwg.mxu0
      %v4507 = vtanh.pop %v4277
      %v4508 = vtanh.pop %v4279
      %v4509 = vtanh.pop %v4489
      %v4510 = vtanh.pop %v4491
      %v4511 = vtanh.pop %v4281
      %v4512 = vtanh.pop %v4283
      %v4513 = vtanh.pop %v4493
      %v4514 = vtanh.pop %v4495
      %v4515 = vtanh.pop %v4287
      %v4516 = vtanh.pop %v4289
      %v4517 = vtanh.pop %v4499
      %v4518 = vtanh.pop %v4501
      %v4519 = vtanh.pop %v4291
      %v4520 = vtanh.pop %v4293
      %v4521 = vtanh.pop %v4503
      %v4522 = vtanh.pop %v4505
      %v4523 = vmul.f32 %v4507, %v1587
      %v4524 = vmul.f32 %v4508, %v1591
      %v4525 = vmul.f32 %v4509, %v1595
      %v4526 = vmul.f32 %v4510, %v1599
      %v4527 = vmul.f32 %v4511, %v1587
      %v4528 = vmul.f32 %v4512, %v1591
      %v4529 = vmul.f32 %v4513, %v1595
      %v4530 = vmul.f32 %v4514, %v1599
      %v4531 = vmul.f32 %v4515, %v1587
      %v4532 = vmul.f32 %v4516, %v1591
      %v4533 = vmul.f32 %v4517, %v1595
      %v4534 = vmul.f32 %v4518, %v1599
      %v4535 = vmul.f32 %v4519, %v1587
      %v4536 = vmul.f32 %v4520, %v1591
      %v4537 = vmul.f32 %v4521, %v1595
      %v4538 = vmul.f32 %v4522, %v1599
      %v4539 = vpack.c.bf16 %v4527, %v4523
      %v4540 = vpack.c.bf16 %v4528, %v4524
      %v4541 = vpack.c.bf16 %v4529, %v4525
      %v4542 = vpack.c.bf16 %v4530, %v4526
      %v4543 = vpack.c.bf16 %v4535, %v4531
      %v4544 = vpack.c.bf16 %v4536, %v4532
      %v4545 = vpack.c.bf16 %v4537, %v4533
      %v4546 = vpack.c.bf16 %v4538, %v4534
      %v4555 = vunpack.c.l.b16 %v4539
      %v4556 = vunpack.c.l.b16 %v4540
      %v4557 = vunpack.c.l.b16 %v4541
      %v4558 = vunpack.c.l.b16 %v4542
      %v4559 = vunpack.c.h.b16 %v4539
      %v4560 = vunpack.c.h.b16 %v4540
      %v4561 = vunpack.c.h.b16 %v4541
      %v4562 = vunpack.c.h.b16 %v4542
      %v4563 = vunpack.c.l.b16 %v4543
      %v4564 = vunpack.c.l.b16 %v4544
      %v4565 = vunpack.c.l.b16 %v4545
      %v4566 = vunpack.c.l.b16 %v4546
      %v4567 = vunpack.c.h.b16 %v4543
      %v4568 = vunpack.c.h.b16 %v4544
      %v4569 = vunpack.c.h.b16 %v4545
      %v4570 = vunpack.c.h.b16 %v4546
      %v4571 = vpack.c.b16 %v4556, %v4555
      %v4572 = vpack.c.b16 %v4558, %v4557
      %v4573 = vpack.c.b16 %v4560, %v4559
      %v4574 = vpack.c.b16 %v4562, %v4561
      %v4575 = vpack.c.b16 %v4564, %v4563
      %v4576 = vpack.c.b16 %v4566, %v4565
      %v4577 = vpack.c.b16 %v4568, %v4567
      %v4578 = vpack.c.b16 %v4570, %v4569
      %4579 = vrot.lane.b32.xlu0 %v4571, 42
      %v4580 = vpop.permute.xlu0 %4579
      %4581 = vrot.lane.b32.xlu0 %v4572, 42
      %v4582 = vpop.permute.xlu0 %4581
      %4583 = vrot.lane.b32.xlu0 %v4573, 42
      %v4584 = vpop.permute.xlu0 %4583
      %4585 = vrot.lane.b32.xlu0 %v4574, 42
      %v4586 = vpop.permute.xlu0 %4585
      %4587 = vrot.lane.b32.xlu0 %v4575, 42
      %v4588 = vpop.permute.xlu0 %4587
      %4589 = vrot.lane.b32.xlu0 %v4576, 42
      %v4590 = vpop.permute.xlu0 %4589
      %4591 = vrot.lane.b32.xlu0 %v4577, 42
      %v4592 = vpop.permute.xlu0 %4591
      %4593 = vrot.lane.b32.xlu0 %v4578, 42
      %v4594 = vpop.permute.xlu0 %4593
      %v4595 = vrot.slane %v4580, 4
      %v4596 = vrot.slane %v4582, 4
      %v4597 = vrot.slane %v4584, 4
      %v4598 = vrot.slane %v4586, 4
      %v4599 = vrot.slane %v4588, 4
      %v4600 = vrot.slane %v4590, 4
      %v4601 = vrot.slane %v4592, 4
      %v4602 = vrot.slane %v4594, 4
      %v4603 = vsel %vm1684, %v4595, %v4580
      %v4604 = vsel %vm1686, %v4595, %v4596
      %v4605 = vsel %vm1684, %v4604, %v4582
      %v4606 = vsel %vm1684, %v4597, %v4584
      %v4607 = vsel %vm1686, %v4597, %v4598
      %v4608 = vsel %vm1684, %v4607, %v4586
      %v4609 = vsel %vm1684, %v4599, %v4588
      %v4610 = vsel %vm1686, %v4599, %v4600
      %v4611 = vsel %vm1684, %v4610, %v4590
      %v4612 = vsel %vm1684, %v4601, %v4592
      %v4613 = vsel %vm1686, %v4601, %v4602
      %v4614 = vsel %vm1684, %v4613, %v4594
      %4623 = vst.msk [vmem:[#allocation2] sm:$0xff] %vm1708, %v4603
      %4624 = vst.msk [vmem:[#allocation2 + $0x8] sm:$0xff] %vm1711, %v4605
      %4625 = vst.msk [vmem:[#allocation2 + $0x10] sm:$0xff] %vm1708, %v4606
      %4626 = vst.msk [vmem:[#allocation2 + $0x18] sm:$0xff] %vm1711, %v4608
      %4627 = vst.msk [vmem:[#allocation2 + $0x20] sm:$0xff] %vm1708, %v4609
      %4628 = vst.msk [vmem:[#allocation2 + $0x28] sm:$0xff] %vm1711, %v4611
      %4629 = vst.msk [vmem:[#allocation2 + $0x30] sm:$0xff] %vm1708, %v4612
      %4630 = vst.msk [vmem:[#allocation2 + $0x38] sm:$0xff] %vm1711, %v4614
      %v4631 = vld [vmem:[#allocation2] sm:$0xff]
      %v4632 = vld [vmem:[#allocation2 + $0x8] sm:$0xff]
      %v4633 = vld [vmem:[#allocation2 + $0x10] sm:$0xff]
      %v4634 = vld [vmem:[#allocation2 + $0x18] sm:$0xff]
      %v4635 = vld [vmem:[#allocation2 + $0x20] sm:$0xff]
      %v4636 = vld [vmem:[#allocation2 + $0x28] sm:$0xff]
      %v4637 = vld [vmem:[#allocation2 + $0x30] sm:$0xff]
      %v4638 = vld [vmem:[#allocation2 + $0x38] sm:$0xff]
      %v4647 = vunpack.c.l.b16 %v4631
      %v4648 = vunpack.c.h.b16 %v4631
      %v4649 = vunpack.c.l.b16 %v4632
      %v4650 = vunpack.c.h.b16 %v4632
      %v4651 = vunpack.c.l.b16 %v4633
      %v4652 = vunpack.c.h.b16 %v4633
      %v4653 = vunpack.c.l.b16 %v4634
      %v4654 = vunpack.c.h.b16 %v4634
      %v4655 = vunpack.c.l.b16 %v4635
      %v4656 = vunpack.c.h.b16 %v4635
      %v4657 = vunpack.c.l.b16 %v4636
      %v4658 = vunpack.c.h.b16 %v4636
      %v4659 = vunpack.c.l.b16 %v4637
      %v4660 = vunpack.c.h.b16 %v4637
      %v4661 = vunpack.c.l.b16 %v4638
      %v4662 = vunpack.c.h.b16 %v4638
      %v4663 = vpack.c.b16 %v4651, %v4647
      %v4664 = vpack.c.b16 %v4652, %v4648
      %v4665 = vpack.c.b16 %v4653, %v4649
      %v4666 = vpack.c.b16 %v4654, %v4650
      %v4667 = vpack.c.b16 %v4659, %v4655
      %v4668 = vpack.c.b16 %v4660, %v4656
      %v4669 = vpack.c.b16 %v4661, %v4657
      %v4670 = vpack.c.b16 %v4662, %v4658
      %4679 = vrot.lane.b32.xlu0 %v4663, 127
      %v4680 = vpop.permute.xlu0 %4679
      %4681 = vrot.lane.b32.xlu0 %v4664, 127
      %v4682 = vpop.permute.xlu0 %4681
      %4683 = vrot.lane.b32.xlu0 %v4665, 127
      %v4684 = vpop.permute.xlu0 %4683
      %4685 = vrot.lane.b32.xlu0 %v4666, 127
      %v4686 = vpop.permute.xlu0 %4685
      %4687 = vrot.lane.b32.xlu0 %v4667, 127
      %v4688 = vpop.permute.xlu0 %4687
      %4689 = vrot.lane.b32.xlu0 %v4668, 127
      %v4690 = vpop.permute.xlu0 %4689
      %4691 = vrot.lane.b32.xlu0 %v4669, 127
      %v4692 = vpop.permute.xlu0 %4691
      %4693 = vrot.lane.b32.xlu0 %v4670, 127
      %v4694 = vpop.permute.xlu0 %4693
      %v4695 = vsel %vm283, %v4680, %v4682
      %v4696 = vsel %vm283, %v4682, %v4684
      %v4697 = vsel %vm283, %v4684, %v4686
      %v4698 = vsel %vm283, %v4688, %v4690
      %v4699 = vsel %vm283, %v4690, %v4692
      %v4700 = vsel %vm283, %v4692, %v4694
      %4709 = vrot.lane.b32.xlu0 %v4663, 126
      %v4710 = vpop.permute.xlu0 %4709
      %4711 = vrot.lane.b32.xlu0 %v4664, 126
      %v4712 = vpop.permute.xlu0 %4711
      %4713 = vrot.lane.b32.xlu0 %v4665, 126
      %v4714 = vpop.permute.xlu0 %4713
      %4715 = vrot.lane.b32.xlu0 %v4666, 126
      %v4716 = vpop.permute.xlu0 %4715
      %4717 = vrot.lane.b32.xlu0 %v4667, 126
      %v4718 = vpop.permute.xlu0 %4717
      %4719 = vrot.lane.b32.xlu0 %v4668, 126
      %v4720 = vpop.permute.xlu0 %4719
      %4721 = vrot.lane.b32.xlu0 %v4669, 126
      %v4722 = vpop.permute.xlu0 %4721
      %4723 = vrot.lane.b32.xlu0 %v4670, 126
      %v4724 = vpop.permute.xlu0 %4723
      %v4725 = vsel %vm314, %v4710, %v4712
      %v4726 = vsel %vm314, %v4712, %v4714
      %v4727 = vsel %vm314, %v4714, %v4716
      %v4728 = vsel %vm314, %v4718, %v4720
      %v4729 = vsel %vm314, %v4720, %v4722
      %v4730 = vsel %vm314, %v4722, %v4724
      %4739 = vrot.lane.b32.xlu0 %v4663, 125
      %v4740 = vpop.permute.xlu0 %4739
      %4741 = vrot.lane.b32.xlu0 %v4664, 125
      %v4742 = vpop.permute.xlu0 %4741
      %4743 = vrot.lane.b32.xlu0 %v4665, 125
      %v4744 = vpop.permute.xlu0 %4743
      %4745 = vrot.lane.b32.xlu0 %v4666, 125
      %v4746 = vpop.permute.xlu0 %4745
      %4747 = vrot.lane.b32.xlu0 %v4667, 125
      %v4748 = vpop.permute.xlu0 %4747
      %4749 = vrot.lane.b32.xlu0 %v4668, 125
      %v4750 = vpop.permute.xlu0 %4749
      %4751 = vrot.lane.b32.xlu0 %v4669, 125
      %v4752 = vpop.permute.xlu0 %4751
      %4753 = vrot.lane.b32.xlu0 %v4670, 125
      %v4754 = vpop.permute.xlu0 %4753
      %v4755 = vsel %vm345, %v4740, %v4742
      %v4756 = vsel %vm345, %v4742, %v4744
      %v4757 = vsel %vm345, %v4744, %v4746
      %v4758 = vsel %vm345, %v4748, %v4750
      %v4759 = vsel %vm345, %v4750, %v4752
      %v4760 = vsel %vm345, %v4752, %v4754
      %4769 = vrot.lane.b32.xlu0 %v4663, 124
      %v4770 = vpop.permute.xlu0 %4769
      %4771 = vrot.lane.b32.xlu0 %v4664, 124
      %v4772 = vpop.permute.xlu0 %4771
      %4773 = vrot.lane.b32.xlu0 %v4665, 124
      %v4774 = vpop.permute.xlu0 %4773
      %4775 = vrot.lane.b32.xlu0 %v4666, 124
      %v4776 = vpop.permute.xlu0 %4775
      %4777 = vrot.lane.b32.xlu0 %v4667, 124
      %v4778 = vpop.permute.xlu0 %4777
      %4779 = vrot.lane.b32.xlu0 %v4668, 124
      %v4780 = vpop.permute.xlu0 %4779
      %4781 = vrot.lane.b32.xlu0 %v4669, 124
      %v4782 = vpop.permute.xlu0 %4781
      %4783 = vrot.lane.b32.xlu0 %v4670, 124
      %v4784 = vpop.permute.xlu0 %4783
      %v4785 = vsel %vm376, %v4770, %v4772
      %v4786 = vsel %vm376, %v4772, %v4774
      %v4787 = vsel %vm376, %v4774, %v4776
      %v4788 = vsel %vm376, %v4778, %v4780
      %v4789 = vsel %vm376, %v4780, %v4782
      %v4790 = vsel %vm376, %v4782, %v4784
      %4799 = vrot.lane.b32.xlu0 %v4663, 108
      %v4800 = vpop.permute.xlu0 %4799
      %4801 = vrot.lane.b32.xlu0 %v4664, 108
      %v4802 = vpop.permute.xlu0 %4801
      %4803 = vrot.lane.b32.xlu0 %v4665, 108
      %v4804 = vpop.permute.xlu0 %4803
      %4805 = vrot.lane.b32.xlu0 %v4666, 108
      %v4806 = vpop.permute.xlu0 %4805
      %4807 = vrot.lane.b32.xlu0 %v4667, 108
      %v4808 = vpop.permute.xlu0 %4807
      %4809 = vrot.lane.b32.xlu0 %v4668, 108
      %v4810 = vpop.permute.xlu0 %4809
      %4811 = vrot.lane.b32.xlu0 %v4669, 108
      %v4812 = vpop.permute.xlu0 %4811
      %4813 = vrot.lane.b32.xlu0 %v4670, 108
      %v4814 = vpop.permute.xlu0 %4813
      %v4815 = vsel %vm407, %v4800, %v4802
      %v4816 = vsel %vm407, %v4802, %v4804
      %v4817 = vsel %vm407, %v4804, %v4806
      %v4818 = vsel %vm407, %v4808, %v4810
      %v4819 = vsel %vm407, %v4810, %v4812
      %v4820 = vsel %vm407, %v4812, %v4814
      %4829 = vrot.lane.b32.xlu0 %v4663, 107
      %v4830 = vpop.permute.xlu0 %4829
      %4831 = vrot.lane.b32.xlu0 %v4664, 107
      %v4832 = vpop.permute.xlu0 %4831
      %4833 = vrot.lane.b32.xlu0 %v4665, 107
      %v4834 = vpop.permute.xlu0 %4833
      %4835 = vrot.lane.b32.xlu0 %v4666, 107
      %v4836 = vpop.permute.xlu0 %4835
      %4837 = vrot.lane.b32.xlu0 %v4667, 107
      %v4838 = vpop.permute.xlu0 %4837
      %4839 = vrot.lane.b32.xlu0 %v4668, 107
      %v4840 = vpop.permute.xlu0 %4839
      %4841 = vrot.lane.b32.xlu0 %v4669, 107
      %v4842 = vpop.permute.xlu0 %4841
      %4843 = vrot.lane.b32.xlu0 %v4670, 107
      %v4844 = vpop.permute.xlu0 %4843
      %v4845 = vsel %vm438, %v4830, %v4832
      %v4846 = vsel %vm438, %v4832, %v4834
      %v4847 = vsel %vm438, %v4834, %v4836
      %v4848 = vsel %vm438, %v4838, %v4840
      %v4849 = vsel %vm438, %v4840, %v4842
      %v4850 = vsel %vm438, %v4842, %v4844
      %4859 = vrot.lane.b32.xlu0 %v4663, 106
      %v4860 = vpop.permute.xlu0 %4859
      %4861 = vrot.lane.b32.xlu0 %v4664, 106
      %v4862 = vpop.permute.xlu0 %4861
      %4863 = vrot.lane.b32.xlu0 %v4665, 106
      %v4864 = vpop.permute.xlu0 %4863
      %4865 = vrot.lane.b32.xlu0 %v4666, 106
      %v4866 = vpop.permute.xlu0 %4865
      %4867 = vrot.lane.b32.xlu0 %v4667, 106
      %v4868 = vpop.permute.xlu0 %4867
      %4869 = vrot.lane.b32.xlu0 %v4668, 106
      %v4870 = vpop.permute.xlu0 %4869
      %4871 = vrot.lane.b32.xlu0 %v4669, 106
      %v4872 = vpop.permute.xlu0 %4871
      %4873 = vrot.lane.b32.xlu0 %v4670, 106
      %v4874 = vpop.permute.xlu0 %4873
      %v4875 = vsel %vm469, %v4860, %v4862
      %v4876 = vsel %vm469, %v4862, %v4864
      %v4877 = vsel %vm469, %v4864, %v4866
      %v4878 = vsel %vm469, %v4868, %v4870
      %v4879 = vsel %vm469, %v4870, %v4872
      %v4880 = vsel %vm469, %v4872, %v4874
      %4889 = vrot.lane.b32.xlu0 %v4663, 105
      %v4890 = vpop.permute.xlu0 %4889
      %4891 = vrot.lane.b32.xlu0 %v4664, 105
      %v4892 = vpop.permute.xlu0 %4891
      %4893 = vrot.lane.b32.xlu0 %v4665, 105
      %v4894 = vpop.permute.xlu0 %4893
      %4895 = vrot.lane.b32.xlu0 %v4666, 105
      %v4896 = vpop.permute.xlu0 %4895
      %4897 = vrot.lane.b32.xlu0 %v4667, 105
      %v4898 = vpop.permute.xlu0 %4897
      %4899 = vrot.lane.b32.xlu0 %v4668, 105
      %v4900 = vpop.permute.xlu0 %4899
      %4901 = vrot.lane.b32.xlu0 %v4669, 105
      %v4902 = vpop.permute.xlu0 %4901
      %4903 = vrot.lane.b32.xlu0 %v4670, 105
      %v4904 = vpop.permute.xlu0 %4903
      %v4905 = vsel %vm500, %v4890, %v4892
      %v4906 = vsel %vm500, %v4892, %v4894
      %v4907 = vsel %vm500, %v4894, %v4896
      %v4908 = vsel %vm500, %v4898, %v4900
      %v4909 = vsel %vm500, %v4900, %v4902
      %v4910 = vsel %vm500, %v4902, %v4904
      %4919 = vrot.lane.b32.xlu0 %v4663, 104
      %v4920 = vpop.permute.xlu0 %4919
      %4921 = vrot.lane.b32.xlu0 %v4664, 104
      %v4922 = vpop.permute.xlu0 %4921
      %4923 = vrot.lane.b32.xlu0 %v4665, 104
      %v4924 = vpop.permute.xlu0 %4923
      %4925 = vrot.lane.b32.xlu0 %v4666, 104
      %v4926 = vpop.permute.xlu0 %4925
      %4927 = vrot.lane.b32.xlu0 %v4667, 104
      %v4928 = vpop.permute.xlu0 %4927
      %4929 = vrot.lane.b32.xlu0 %v4668, 104
      %v4930 = vpop.permute.xlu0 %4929
      %4931 = vrot.lane.b32.xlu0 %v4669, 104
      %v4932 = vpop.permute.xlu0 %4931
      %4933 = vrot.lane.b32.xlu0 %v4670, 104
      %v4934 = vpop.permute.xlu0 %4933
      %v4935 = vsel %vm531, %v4920, %v4922
      %v4936 = vsel %vm531, %v4922, %v4924
      %v4937 = vsel %vm531, %v4924, %v4926
      %v4938 = vsel %vm531, %v4928, %v4930
      %v4939 = vsel %vm531, %v4930, %v4932
      %v4940 = vsel %vm531, %v4932, %v4934
      %4949 = vrot.lane.b32.xlu0 %v4663, 88
      %v4950 = vpop.permute.xlu0 %4949
      %4951 = vrot.lane.b32.xlu0 %v4664, 88
      %v4952 = vpop.permute.xlu0 %4951
      %4953 = vrot.lane.b32.xlu0 %v4665, 88
      %v4954 = vpop.permute.xlu0 %4953
      %4955 = vrot.lane.b32.xlu0 %v4666, 88
      %v4956 = vpop.permute.xlu0 %4955
      %4957 = vrot.lane.b32.xlu0 %v4667, 88
      %v4958 = vpop.permute.xlu0 %4957
      %4959 = vrot.lane.b32.xlu0 %v4668, 88
      %v4960 = vpop.permute.xlu0 %4959
      %4961 = vrot.lane.b32.xlu0 %v4669, 88
      %v4962 = vpop.permute.xlu0 %4961
      %4963 = vrot.lane.b32.xlu0 %v4670, 88
      %v4964 = vpop.permute.xlu0 %4963
      %v4965 = vsel %vm562, %v4950, %v4952
      %v4966 = vsel %vm562, %v4952, %v4954
      %v4967 = vsel %vm562, %v4954, %v4956
      %v4968 = vsel %vm562, %v4958, %v4960
      %v4969 = vsel %vm562, %v4960, %v4962
      %v4970 = vsel %vm562, %v4962, %v4964
      %4979 = vrot.lane.b32.xlu0 %v4663, 87
      %v4980 = vpop.permute.xlu0 %4979
      %4981 = vrot.lane.b32.xlu0 %v4664, 87
      %v4982 = vpop.permute.xlu0 %4981
      %4983 = vrot.lane.b32.xlu0 %v4665, 87
      %v4984 = vpop.permute.xlu0 %4983
      %4985 = vrot.lane.b32.xlu0 %v4666, 87
      %v4986 = vpop.permute.xlu0 %4985
      %4987 = vrot.lane.b32.xlu0 %v4667, 87
      %v4988 = vpop.permute.xlu0 %4987
      %4989 = vrot.lane.b32.xlu0 %v4668, 87
      %v4990 = vpop.permute.xlu0 %4989
      %4991 = vrot.lane.b32.xlu0 %v4669, 87
      %v4992 = vpop.permute.xlu0 %4991
      %4993 = vrot.lane.b32.xlu0 %v4670, 87
      %v4994 = vpop.permute.xlu0 %4993
      %v4995 = vsel %vm593, %v4980, %v4982
      %v4996 = vsel %vm593, %v4982, %v4984
      %v4997 = vsel %vm593, %v4984, %v4986
      %v4998 = vsel %vm593, %v4988, %v4990
      %v4999 = vsel %vm593, %v4990, %v4992
      %v5000 = vsel %vm593, %v4992, %v4994
      %5009 = vrot.lane.b32.xlu0 %v4663, 86
      %v5010 = vpop.permute.xlu0 %5009
      %5011 = vrot.lane.b32.xlu0 %v4664, 86
      %v5012 = vpop.permute.xlu0 %5011
      %5013 = vrot.lane.b32.xlu0 %v4665, 86
      %v5014 = vpop.permute.xlu0 %5013
      %5015 = vrot.lane.b32.xlu0 %v4666, 86
      %v5016 = vpop.permute.xlu0 %5015
      %5017 = vrot.lane.b32.xlu0 %v4667, 86
      %v5018 = vpop.permute.xlu0 %5017
      %5019 = vrot.lane.b32.xlu0 %v4668, 86
      %v5020 = vpop.permute.xlu0 %5019
      %5021 = vrot.lane.b32.xlu0 %v4669, 86
      %v5022 = vpop.permute.xlu0 %5021
      %5023 = vrot.lane.b32.xlu0 %v4670, 86
      %v5024 = vpop.permute.xlu0 %5023
      %v5025 = vsel %vm624, %v5010, %v5012
      %v5026 = vsel %vm624, %v5012, %v5014
      %v5027 = vsel %vm624, %v5014, %v5016
      %v5028 = vsel %vm624, %v5018, %v5020
      %v5029 = vsel %vm624, %v5020, %v5022
      %v5030 = vsel %vm624, %v5022, %v5024
      %5039 = vrot.lane.b32.xlu0 %v4663, 85
      %v5040 = vpop.permute.xlu0 %5039
      %5041 = vrot.lane.b32.xlu0 %v4664, 85
      %v5042 = vpop.permute.xlu0 %5041
      %5043 = vrot.lane.b32.xlu0 %v4665, 85
      %v5044 = vpop.permute.xlu0 %5043
      %5045 = vrot.lane.b32.xlu0 %v4666, 85
      %v5046 = vpop.permute.xlu0 %5045
      %5047 = vrot.lane.b32.xlu0 %v4667, 85
      %v5048 = vpop.permute.xlu0 %5047
      %5049 = vrot.lane.b32.xlu0 %v4668, 85
      %v5050 = vpop.permute.xlu0 %5049
      %5051 = vrot.lane.b32.xlu0 %v4669, 85
      %v5052 = vpop.permute.xlu0 %5051
      %5053 = vrot.lane.b32.xlu0 %v4670, 85
      %v5054 = vpop.permute.xlu0 %5053
      %v5055 = vsel %vm655, %v5040, %v5042
      %v5056 = vsel %vm655, %v5042, %v5044
      %v5057 = vsel %vm655, %v5044, %v5046
      %v5058 = vsel %vm655, %v5048, %v5050
      %v5059 = vsel %vm655, %v5050, %v5052
      %v5060 = vsel %vm655, %v5052, %v5054
      %5069 = vrot.lane.b32.xlu0 %v4663, 84
      %v5070 = vpop.permute.xlu0 %5069
      %5071 = vrot.lane.b32.xlu0 %v4664, 84
      %v5072 = vpop.permute.xlu0 %5071
      %5073 = vrot.lane.b32.xlu0 %v4665, 84
      %v5074 = vpop.permute.xlu0 %5073
      %5075 = vrot.lane.b32.xlu0 %v4666, 84
      %v5076 = vpop.permute.xlu0 %5075
      %5077 = vrot.lane.b32.xlu0 %v4667, 84
      %v5078 = vpop.permute.xlu0 %5077
      %5079 = vrot.lane.b32.xlu0 %v4668, 84
      %v5080 = vpop.permute.xlu0 %5079
      %5081 = vrot.lane.b32.xlu0 %v4669, 84
      %v5082 = vpop.permute.xlu0 %5081
      %5083 = vrot.lane.b32.xlu0 %v4670, 84
      %v5084 = vpop.permute.xlu0 %5083
      %v5085 = vsel %vm686, %v5070, %v5072
      %v5086 = vsel %vm686, %v5072, %v5074
      %v5087 = vsel %vm686, %v5074, %v5076
      %v5088 = vsel %vm686, %v5078, %v5080
      %v5089 = vsel %vm686, %v5080, %v5082
      %v5090 = vsel %vm686, %v5082, %v5084
      %5099 = vrot.lane.b32.xlu0 %v4663, 68
      %v5100 = vpop.permute.xlu0 %5099
      %5101 = vrot.lane.b32.xlu0 %v4664, 68
      %v5102 = vpop.permute.xlu0 %5101
      %5103 = vrot.lane.b32.xlu0 %v4665, 68
      %v5104 = vpop.permute.xlu0 %5103
      %5105 = vrot.lane.b32.xlu0 %v4666, 68
      %v5106 = vpop.permute.xlu0 %5105
      %5107 = vrot.lane.b32.xlu0 %v4667, 68
      %v5108 = vpop.permute.xlu0 %5107
      %5109 = vrot.lane.b32.xlu0 %v4668, 68
      %v5110 = vpop.permute.xlu0 %5109
      %5111 = vrot.lane.b32.xlu0 %v4669, 68
      %v5112 = vpop.permute.xlu0 %5111
      %5113 = vrot.lane.b32.xlu0 %v4670, 68
      %v5114 = vpop.permute.xlu0 %5113
      %v5115 = vsel %vm717, %v5100, %v5102
      %v5116 = vsel %vm717, %v5102, %v5104
      %v5117 = vsel %vm717, %v5104, %v5106
      %v5118 = vsel %vm717, %v5108, %v5110
      %v5119 = vsel %vm717, %v5110, %v5112
      %v5120 = vsel %vm717, %v5112, %v5114
      %5129 = vrot.lane.b32.xlu0 %v4663, 109
      %v5130 = vpop.permute.xlu0 %5129
      %5131 = vrot.lane.b32.xlu0 %v4664, 109
      %v5132 = vpop.permute.xlu0 %5131
      %5133 = vrot.lane.b32.xlu0 %v4665, 109
      %v5134 = vpop.permute.xlu0 %5133
      %5135 = vrot.lane.b32.xlu0 %v4666, 109
      %v5136 = vpop.permute.xlu0 %5135
      %5137 = vrot.lane.b32.xlu0 %v4667, 109
      %v5138 = vpop.permute.xlu0 %5137
      %5139 = vrot.lane.b32.xlu0 %v4668, 109
      %v5140 = vpop.permute.xlu0 %5139
      %5141 = vrot.lane.b32.xlu0 %v4669, 109
      %v5142 = vpop.permute.xlu0 %5141
      %5143 = vrot.lane.b32.xlu0 %v4670, 109
      %v5144 = vpop.permute.xlu0 %5143
      %v5145 = vsel %vm748, %v5130, %v5132
      %v5146 = vsel %vm748, %v5132, %v5134
      %v5147 = vsel %vm748, %v5134, %v5136
      %v5148 = vsel %vm748, %v5138, %v5140
      %v5149 = vsel %vm748, %v5140, %v5142
      %v5150 = vsel %vm748, %v5142, %v5144
      %5151 = vrot.lane.b32.xlu0 %v4663, 67
      %v5152 = vpop.permute.xlu0 %5151
      %5153 = vrot.lane.b32.xlu0 %v4664, 67
      %v5154 = vpop.permute.xlu0 %5153
      %5155 = vrot.lane.b32.xlu0 %v4665, 67
      %v5156 = vpop.permute.xlu0 %5155
      %5157 = vrot.lane.b32.xlu0 %v4666, 67
      %v5158 = vpop.permute.xlu0 %5157
      %5159 = vrot.lane.b32.xlu0 %v4667, 67
      %v5160 = vpop.permute.xlu0 %5159
      %5161 = vrot.lane.b32.xlu0 %v4668, 67
      %v5162 = vpop.permute.xlu0 %5161
      %5163 = vrot.lane.b32.xlu0 %v4669, 67
      %v5164 = vpop.permute.xlu0 %5163
      %5165 = vrot.lane.b32.xlu0 %v4670, 67
      %v5166 = vpop.permute.xlu0 %5165
      %5167 = vrot.lane.b32.xlu0 %v4695, 67
      %v5168 = vpop.permute.xlu0 %5167
      %5169 = vrot.lane.b32.xlu0 %v4696, 67
      %v5170 = vpop.permute.xlu0 %5169
      %5171 = vrot.lane.b32.xlu0 %v4697, 67
      %v5172 = vpop.permute.xlu0 %5171
      %5173 = vrot.lane.b32.xlu0 %v4686, 67
      %v5174 = vpop.permute.xlu0 %5173
      %5175 = vrot.lane.b32.xlu0 %v4698, 67
      %v5176 = vpop.permute.xlu0 %5175
      %5177 = vrot.lane.b32.xlu0 %v4699, 67
      %v5178 = vpop.permute.xlu0 %5177
      %5179 = vrot.lane.b32.xlu0 %v4700, 67
      %v5180 = vpop.permute.xlu0 %5179
      %5181 = vrot.lane.b32.xlu0 %v4694, 67
      %v5182 = vpop.permute.xlu0 %5181
      %5183 = vrot.lane.b32.xlu0 %v4725, 67
      %v5184 = vpop.permute.xlu0 %5183
      %5185 = vrot.lane.b32.xlu0 %v4726, 67
      %v5186 = vpop.permute.xlu0 %5185
      %5187 = vrot.lane.b32.xlu0 %v4727, 67
      %v5188 = vpop.permute.xlu0 %5187
      %5189 = vrot.lane.b32.xlu0 %v4716, 67
      %v5190 = vpop.permute.xlu0 %5189
      %5191 = vrot.lane.b32.xlu0 %v4728, 67
      %v5192 = vpop.permute.xlu0 %5191
      %5193 = vrot.lane.b32.xlu0 %v4729, 67
      %v5194 = vpop.permute.xlu0 %5193
      %5195 = vrot.lane.b32.xlu0 %v4730, 67
      %v5196 = vpop.permute.xlu0 %5195
      %5197 = vrot.lane.b32.xlu0 %v4724, 67
      %v5198 = vpop.permute.xlu0 %5197
      %5199 = vrot.lane.b32.xlu0 %v4755, 67
      %v5200 = vpop.permute.xlu0 %5199
      %5201 = vrot.lane.b32.xlu0 %v4756, 67
      %v5202 = vpop.permute.xlu0 %5201
      %5203 = vrot.lane.b32.xlu0 %v4757, 67
      %v5204 = vpop.permute.xlu0 %5203
      %5205 = vrot.lane.b32.xlu0 %v4746, 67
      %v5206 = vpop.permute.xlu0 %5205
      %5207 = vrot.lane.b32.xlu0 %v4758, 67
      %v5208 = vpop.permute.xlu0 %5207
      %5209 = vrot.lane.b32.xlu0 %v4759, 67
      %v5210 = vpop.permute.xlu0 %5209
      %5211 = vrot.lane.b32.xlu0 %v4760, 67
      %v5212 = vpop.permute.xlu0 %5211
      %5213 = vrot.lane.b32.xlu0 %v4754, 67
      %v5214 = vpop.permute.xlu0 %5213
      %5215 = vrot.lane.b32.xlu0 %v5145, 67
      %v5216 = vpop.permute.xlu0 %5215
      %5217 = vrot.lane.b32.xlu0 %v5146, 67
      %v5218 = vpop.permute.xlu0 %5217
      %5219 = vrot.lane.b32.xlu0 %v5147, 67
      %v5220 = vpop.permute.xlu0 %5219
      %5221 = vrot.lane.b32.xlu0 %v5136, 67
      %v5222 = vpop.permute.xlu0 %5221
      %5223 = vrot.lane.b32.xlu0 %v5148, 67
      %v5224 = vpop.permute.xlu0 %5223
      %5225 = vrot.lane.b32.xlu0 %v5149, 67
      %v5226 = vpop.permute.xlu0 %5225
      %5227 = vrot.lane.b32.xlu0 %v5150, 67
      %v5228 = vpop.permute.xlu0 %5227
      %5229 = vrot.lane.b32.xlu0 %v5144, 67
      %v5230 = vpop.permute.xlu0 %5229
      %5231 = vrot.lane.b32.xlu0 %v4815, 67
      %v5232 = vpop.permute.xlu0 %5231
      %5233 = vrot.lane.b32.xlu0 %v4816, 67
      %v5234 = vpop.permute.xlu0 %5233
      %5235 = vrot.lane.b32.xlu0 %v4817, 67
      %v5236 = vpop.permute.xlu0 %5235
      %5237 = vrot.lane.b32.xlu0 %v4806, 67
      %v5238 = vpop.permute.xlu0 %5237
      %5239 = vrot.lane.b32.xlu0 %v4818, 67
      %v5240 = vpop.permute.xlu0 %5239
      %5241 = vrot.lane.b32.xlu0 %v4819, 67
      %v5242 = vpop.permute.xlu0 %5241
      %5243 = vrot.lane.b32.xlu0 %v4820, 67
      %v5244 = vpop.permute.xlu0 %5243
      %5245 = vrot.lane.b32.xlu0 %v4814, 67
      %v5246 = vpop.permute.xlu0 %5245
      %5247 = vrot.lane.b32.xlu0 %v4845, 67
      %v5248 = vpop.permute.xlu0 %5247
      %5249 = vrot.lane.b32.xlu0 %v4846, 67
      %v5250 = vpop.permute.xlu0 %5249
      %5251 = vrot.lane.b32.xlu0 %v4847, 67
      %v5252 = vpop.permute.xlu0 %5251
      %5253 = vrot.lane.b32.xlu0 %v4836, 67
      %v5254 = vpop.permute.xlu0 %5253
      %5255 = vrot.lane.b32.xlu0 %v4848, 67
      %v5256 = vpop.permute.xlu0 %5255
      %5257 = vrot.lane.b32.xlu0 %v4849, 67
      %v5258 = vpop.permute.xlu0 %5257
      %5259 = vrot.lane.b32.xlu0 %v4850, 67
      %v5260 = vpop.permute.xlu0 %5259
      %5261 = vrot.lane.b32.xlu0 %v4844, 67
      %v5262 = vpop.permute.xlu0 %5261
      %5263 = vrot.lane.b32.xlu0 %v4875, 67
      %v5264 = vpop.permute.xlu0 %5263
      %5265 = vrot.lane.b32.xlu0 %v4876, 67
      %v5266 = vpop.permute.xlu0 %5265
      %5267 = vrot.lane.b32.xlu0 %v4877, 67
      %v5268 = vpop.permute.xlu0 %5267
      %5269 = vrot.lane.b32.xlu0 %v4866, 67
      %v5270 = vpop.permute.xlu0 %5269
      %5271 = vrot.lane.b32.xlu0 %v4878, 67
      %v5272 = vpop.permute.xlu0 %5271
      %5273 = vrot.lane.b32.xlu0 %v4879, 67
      %v5274 = vpop.permute.xlu0 %5273
      %5275 = vrot.lane.b32.xlu0 %v4880, 67
      %v5276 = vpop.permute.xlu0 %5275
      %5277 = vrot.lane.b32.xlu0 %v4874, 67
      %v5278 = vpop.permute.xlu0 %5277
      %5279 = vrot.lane.b32.xlu0 %v4905, 67
      %v5280 = vpop.permute.xlu0 %5279
      %5281 = vrot.lane.b32.xlu0 %v4906, 67
      %v5282 = vpop.permute.xlu0 %5281
      %5283 = vrot.lane.b32.xlu0 %v4907, 67
      %v5284 = vpop.permute.xlu0 %5283
      %5285 = vrot.lane.b32.xlu0 %v4896, 67
      %v5286 = vpop.permute.xlu0 %5285
      %5287 = vrot.lane.b32.xlu0 %v4908, 67
      %v5288 = vpop.permute.xlu0 %5287
      %5289 = vrot.lane.b32.xlu0 %v4909, 67
      %v5290 = vpop.permute.xlu0 %5289
      %5291 = vrot.lane.b32.xlu0 %v4910, 67
      %v5292 = vpop.permute.xlu0 %5291
      %5293 = vrot.lane.b32.xlu0 %v4904, 67
      %v5294 = vpop.permute.xlu0 %5293
      %v5295 = vsel %vm899, %v5152, %v5154
      %v5296 = vsel %vm899, %v5154, %v5156
      %v5297 = vsel %vm899, %v5156, %v5158
      %v5298 = vsel %vm899, %v5160, %v5162
      %v5299 = vsel %vm899, %v5162, %v5164
      %v5300 = vsel %vm899, %v5164, %v5166
      %v5301 = vsel %vm899, %v5168, %v5170
      %v5302 = vsel %vm899, %v5170, %v5172
      %v5303 = vsel %vm899, %v5172, %v5174
      %v5304 = vsel %vm899, %v5176, %v5178
      %v5305 = vsel %vm899, %v5178, %v5180
      %v5306 = vsel %vm899, %v5180, %v5182
      %v5307 = vsel %vm899, %v5184, %v5186
      %v5308 = vsel %vm899, %v5186, %v5188
      %v5309 = vsel %vm899, %v5188, %v5190
      %v5310 = vsel %vm899, %v5192, %v5194
      %v5311 = vsel %vm899, %v5194, %v5196
      %v5312 = vsel %vm899, %v5196, %v5198
      %v5313 = vsel %vm899, %v5200, %v5202
      %v5314 = vsel %vm899, %v5202, %v5204
      %v5315 = vsel %vm899, %v5204, %v5206
      %v5316 = vsel %vm899, %v5208, %v5210
      %v5317 = vsel %vm899, %v5210, %v5212
      %v5318 = vsel %vm899, %v5212, %v5214
      %v5319 = vsel %vm899, %v5216, %v5218
      %v5320 = vsel %vm899, %v5218, %v5220
      %v5321 = vsel %vm899, %v5220, %v5222
      %v5322 = vsel %vm899, %v5224, %v5226
      %v5323 = vsel %vm899, %v5226, %v5228
      %v5324 = vsel %vm899, %v5228, %v5230
      %v5325 = vsel %vm899, %v5232, %v5234
      %v5326 = vsel %vm899, %v5234, %v5236
      %v5327 = vsel %vm899, %v5236, %v5238
      %v5328 = vsel %vm899, %v5240, %v5242
      %v5329 = vsel %vm899, %v5242, %v5244
      %v5330 = vsel %vm899, %v5244, %v5246
      %v5331 = vsel %vm899, %v5248, %v5250
      %v5332 = vsel %vm899, %v5250, %v5252
      %v5333 = vsel %vm899, %v5252, %v5254
      %v5334 = vsel %vm899, %v5256, %v5258
      %v5335 = vsel %vm899, %v5258, %v5260
      %v5336 = vsel %vm899, %v5260, %v5262
      %v5337 = vsel %vm899, %v5264, %v5266
      %v5338 = vsel %vm899, %v5266, %v5268
      %v5339 = vsel %vm899, %v5268, %v5270
      %v5340 = vsel %vm899, %v5272, %v5274
      %v5341 = vsel %vm899, %v5274, %v5276
      %v5342 = vsel %vm899, %v5276, %v5278
      %v5343 = vsel %vm899, %v5280, %v5282
      %v5344 = vsel %vm899, %v5282, %v5284
      %v5345 = vsel %vm899, %v5284, %v5286
      %v5346 = vsel %vm899, %v5288, %v5290
      %v5347 = vsel %vm899, %v5290, %v5292
      %v5348 = vsel %vm899, %v5292, %v5294
      %s5421 = scalar_lea.vmem %s1, 336
      %v5422 = vld [vmem:[%s5421] sm:$0xff]
      %v5423 = vld [vmem:[%s5421 + $0x8] sm:$0xff]
      %v5424 = vld [vmem:[%s5421 + $0x10] sm:$0xff]
      %v5425 = vld [vmem:[%s5421 + $0x18] sm:$0xf]
      %v5426 = vld [vmem:[%s5421 + $0x1c] sm:$0xff]
      %v5427 = vld [vmem:[%s5421 + $0x24] sm:$0xff]
      %v5428 = vld [vmem:[%s5421 + $0x2c] sm:$0xff]
      %v5429 = vld [vmem:[%s5421 + $0x34] sm:$0xf]
      %v5430 = vld [vmem:[%s5421 + $0x38] sm:$0xff]
      %v5431 = vld [vmem:[%s5421 + $0x40] sm:$0xff]
      %v5432 = vld [vmem:[%s5421 + $0x48] sm:$0xff]
      %v5433 = vld [vmem:[%s5421 + $0x50] sm:$0xf]
      %v5434 = vld [vmem:[%s5421 + $0x54] sm:$0xff]
      %v5435 = vld [vmem:[%s5421 + $0x5c] sm:$0xff]
      %v5436 = vld [vmem:[%s5421 + $0x64] sm:$0xff]
      %v5437 = vld [vmem:[%s5421 + $0x6c] sm:$0xf]
      %s5438 = scalar_lea.vmem %s2, 96
      %v5439 = vld [vmem:[%s5438] sm:$0xff]
      %v5440 = vld [vmem:[%s5438 + $0x8] sm:$0xff]
      %v5441 = vld [vmem:[%s5438 + $0x10] sm:$0xff]
      %v5442 = vld [vmem:[%s5438 + $0x18] sm:$0xff]
      %5444 = vset.pattern.permute.xlu0 0
      %5445 = vperm.xlu0 %5444, %v5439
      %v5446 = vpop.permute.xlu0 %5445
      %5449 = vset.pattern.permute.xlu0 0
      %5450 = vperm.xlu0 %5449, %v5440
      %v5451 = vpop.permute.xlu0 %5450
      %5454 = vset.pattern.permute.xlu0 0
      %5455 = vperm.xlu0 %5454, %v5441
      %v5456 = vpop.permute.xlu0 %5455
      %5459 = vset.pattern.permute.xlu0 0
      %5460 = vperm.xlu0 %5459, %v5442
      %v5461 = vpop.permute.xlu0 %5460
      %v5479 = vunpack.c.l.b16 %v5422
      %v5480 = vunpack.c.h.b16 %v5422
      %v5481 = vunpack.c.l.b16 %v5423
      %v5482 = vunpack.c.h.b16 %v5423
      %v5483 = vunpack.c.l.b16 %v5424
      %v5484 = vunpack.c.h.b16 %v5424
      %v5485 = vunpack.c.l.b16 %v5425
      %v5486 = vunpack.c.l.b16 %v5426
      %v5487 = vunpack.c.h.b16 %v5426
      %v5488 = vunpack.c.l.b16 %v5427
      %v5489 = vunpack.c.h.b16 %v5427
      %v5490 = vunpack.c.l.b16 %v5428
      %v5491 = vunpack.c.h.b16 %v5428
      %v5492 = vunpack.c.l.b16 %v5429
      %v5493 = vunpack.c.l.b16 %v5430
      %v5494 = vunpack.c.h.b16 %v5430
      %v5495 = vunpack.c.l.b16 %v5431
      %v5496 = vunpack.c.h.b16 %v5431
      %v5497 = vunpack.c.l.b16 %v5432
      %v5498 = vunpack.c.h.b16 %v5432
      %v5499 = vunpack.c.l.b16 %v5433
      %v5500 = vunpack.c.l.b16 %v5434
      %v5501 = vunpack.c.h.b16 %v5434
      %v5502 = vunpack.c.l.b16 %v5435
      %v5503 = vunpack.c.h.b16 %v5435
      %v5504 = vunpack.c.l.b16 %v5436
      %v5505 = vunpack.c.h.b16 %v5436
      %v5506 = vunpack.c.l.b16 %v5437
      %v5507 = vpack.c.b16 %v5486, %v5479
      %v5508 = vpack.c.b16 %v5487, %v5480
      %v5509 = vpack.c.b16 %v5488, %v5481
      %v5510 = vpack.c.b16 %v5489, %v5482
      %v5511 = vpack.c.b16 %v5490, %v5483
      %v5512 = vpack.c.b16 %v5491, %v5484
      %v5513 = vpack.c.b16 %v5492, %v5485
      %v5514 = vpack.c.b16 %v5500, %v5493
      %v5515 = vpack.c.b16 %v5501, %v5494
      %v5516 = vpack.c.b16 %v5502, %v5495
      %v5517 = vpack.c.b16 %v5503, %v5496
      %v5518 = vpack.c.b16 %v5504, %v5497
      %v5519 = vpack.c.b16 %v5505, %v5498
      %v5520 = vpack.c.b16 %v5506, %v5499
      %v5534 = vsel %vm1136, %v5513, 0
      %v5537 = vsel %vm1136, %v5520, 0
      %5539 = vmatprep.subr.bf16.mxu0 %v4759
      %5540 = vmatpush1.bf16.msra.mxu0 %v4758
      %5541 = vmatprep.subr.bf16.mxu0 %v4756
      %5542 = vmatpush1.bf16.msra.mxu0 %v4755
      %5543 = vmatprep.subr.bf16.mxu0 %v4729
      %5544 = vmatpush1.bf16.msra.mxu0 %v4728
      %5545 = vmatprep.subr.bf16.mxu0 %v4726
      %5546 = vmatpush1.bf16.msra.mxu0 %v4725
      %5547 = vmatprep.subr.bf16.mxu0 %v4699
      %5548 = vmatpush1.bf16.msra.mxu0 %v4698
      %5549 = vmatprep.subr.bf16.mxu0 %v4696
      %5550 = vmatpush1.bf16.msra.mxu0 %v4695
      %5551 = vmatprep.subr.bf16.mxu0 %v4668
      %5552 = vmatpush1.bf16.msra.mxu0 %v4667
      %5553 = vmatprep.subr.bf16.mxu0 %v4664
      %5554 = vmatpush1.bf16.msra.mxu0 %v4663
      %5555 = vmatprep.subr.bf16.mxu0 %v4879
      %5556 = vmatpush2.bf16.msra.mxu0 %v4878
      %5557 = vmatprep.subr.bf16.mxu0 %v4876
      %5558 = vmatpush2.bf16.msra.mxu0 %v4875
      %5559 = vmatprep.subr.bf16.mxu0 %v4849
      %5560 = vmatpush2.bf16.msra.mxu0 %v4848
      %5561 = vmatprep.subr.bf16.mxu0 %v4846
      %5562 = vmatpush2.bf16.msra.mxu0 %v4845
      %5563 = vmatprep.subr.bf16.mxu0 %v4819
      %5564 = vmatpush2.bf16.msra.mxu0 %v4818
      %5565 = vmatprep.subr.bf16.mxu0 %v4816
      %5566 = vmatpush2.bf16.msra.mxu0 %v4815
      %5567 = vmatprep.subr.bf16.mxu0 %v4789
      %5568 = vmatpush2.bf16.msra.mxu0 %v4788
      %5569 = vmatprep.subr.bf16.mxu0 %v4786
      %5570 = vmatpush2.bf16.msra.mxu0 %v4785
      %5571 = vmatprep.mubr.bf16.mxu0 %v5508
      %5572 = vmatmul.mubr.bf16.gmra.mxu0 %v5507
      %v5573 = vpop.f32.mrf.mxu0
      %v5574 = vadd.f32 %v5446, %v5573
      %v5575 = vpop.f32.mrf.mxu0
      %v5576 = vadd.f32 %v5446, %v5575
      %v5577 = vpop.f32.mrf.mxu0
      %v5578 = vadd.f32 %v5451, %v5577
      %v5579 = vpop.f32.mrf.mxu0
      %v5580 = vadd.f32 %v5451, %v5579
      %5581 = vmatprep.mubr.bf16.mxu0 %v5515
      %5582 = vmatmul.mubr.bf16.gmra.mxu0 %v5514
      %v5583 = vpop.f32.mrf.mxu0
      %v5584 = vadd.f32 %v5456, %v5583
      %v5585 = vpop.f32.mrf.mxu0
      %v5586 = vadd.f32 %v5456, %v5585
      %v5587 = vpop.f32.mrf.mxu0
      %v5588 = vadd.f32 %v5461, %v5587
      %v5589 = vpop.f32.mrf.mxu0
      %v5590 = vadd.f32 %v5461, %v5589
      %5591 = vdwg.mxu0
      %5592 = vmatprep.subr.bf16.mxu0 %v4999
      %5593 = vmatpush1.bf16.msra.mxu0 %v4998
      %5594 = vmatprep.subr.bf16.mxu0 %v4996
      %5595 = vmatpush1.bf16.msra.mxu0 %v4995
      %5596 = vmatprep.subr.bf16.mxu0 %v4969
      %5597 = vmatpush1.bf16.msra.mxu0 %v4968
      %5598 = vmatprep.subr.bf16.mxu0 %v4966
      %5599 = vmatpush1.bf16.msra.mxu0 %v4965
      %5600 = vmatprep.subr.bf16.mxu0 %v4939
      %5601 = vmatpush1.bf16.msra.mxu0 %v4938
      %5602 = vmatprep.subr.bf16.mxu0 %v4936
      %5603 = vmatpush1.bf16.msra.mxu0 %v4935
      %5604 = vmatprep.subr.bf16.mxu0 %v4909
      %5605 = vmatpush1.bf16.msra.mxu0 %v4908
      %5606 = vmatprep.subr.bf16.mxu0 %v4906
      %5607 = vmatpush1.bf16.msra.mxu0 %v4905
      %5608 = vmatprep.subr.bf16.mxu0 %v5119
      %5609 = vmatpush2.bf16.msra.mxu0 %v5118
      %5610 = vmatprep.subr.bf16.mxu0 %v5116
      %5611 = vmatpush2.bf16.msra.mxu0 %v5115
      %5612 = vmatprep.subr.bf16.mxu0 %v5089
      %5613 = vmatpush2.bf16.msra.mxu0 %v5088
      %5614 = vmatprep.subr.bf16.mxu0 %v5086
      %5615 = vmatpush2.bf16.msra.mxu0 %v5085
      %5616 = vmatprep.subr.bf16.mxu0 %v5059
      %5617 = vmatpush2.bf16.msra.mxu0 %v5058
      %5618 = vmatprep.subr.bf16.mxu0 %v5056
      %5619 = vmatpush2.bf16.msra.mxu0 %v5055
      %5620 = vmatprep.subr.bf16.mxu0 %v5029
      %5621 = vmatpush2.bf16.msra.mxu0 %v5028
      %5622 = vmatprep.subr.bf16.mxu0 %v5026
      %5623 = vmatpush2.bf16.msra.mxu0 %v5025
      %5624 = vmatprep.mubr.bf16.mxu0 %v5510
      %5625 = vmatmul.mubr.bf16.gmra.mxu0 %v5509
      %v5626 = vpop.f32.mrf.mxu0
      %v5627 = vadd.f32 %v5574, %v5626
      %v5628 = vpop.f32.mrf.mxu0
      %v5629 = vadd.f32 %v5576, %v5628
      %v5630 = vpop.f32.mrf.mxu0
      %v5631 = vadd.f32 %v5578, %v5630
      %v5632 = vpop.f32.mrf.mxu0
      %v5633 = vadd.f32 %v5580, %v5632
      %5634 = vmatprep.mubr.bf16.mxu0 %v5517
      %5635 = vmatmul.mubr.bf16.gmra.mxu0 %v5516
      %v5636 = vpop.f32.mrf.mxu0
      %v5637 = vadd.f32 %v5584, %v5636
      %v5638 = vpop.f32.mrf.mxu0
      %v5639 = vadd.f32 %v5586, %v5638
      %v5640 = vpop.f32.mrf.mxu0
      %v5641 = vadd.f32 %v5588, %v5640
      %v5642 = vpop.f32.mrf.mxu0
      %v5643 = vadd.f32 %v5590, %v5642
      %5644 = vdwg.mxu0
      %5645 = vmatprep.subr.bf16.mxu0 %v5317
      %5646 = vmatpush1.bf16.msra.mxu0 %v5316
      %5647 = vmatprep.subr.bf16.mxu0 %v5314
      %5648 = vmatpush1.bf16.msra.mxu0 %v5313
      %5649 = vmatprep.subr.bf16.mxu0 %v5311
      %5650 = vmatpush1.bf16.msra.mxu0 %v5310
      %5651 = vmatprep.subr.bf16.mxu0 %v5308
      %5652 = vmatpush1.bf16.msra.mxu0 %v5307
      %5653 = vmatprep.subr.bf16.mxu0 %v5305
      %5654 = vmatpush1.bf16.msra.mxu0 %v5304
      %5655 = vmatprep.subr.bf16.mxu0 %v5302
      %5656 = vmatpush1.bf16.msra.mxu0 %v5301
      %5657 = vmatprep.subr.bf16.mxu0 %v5299
      %5658 = vmatpush1.bf16.msra.mxu0 %v5298
      %5659 = vmatprep.subr.bf16.mxu0 %v5296
      %5660 = vmatpush1.bf16.msra.mxu0 %v5295
      %5661 = vmatprep.subr.bf16.mxu0 %v5341
      %5662 = vmatpush2.bf16.msra.mxu0 %v5340
      %5663 = vmatprep.subr.bf16.mxu0 %v5338
      %5664 = vmatpush2.bf16.msra.mxu0 %v5337
      %5665 = vmatprep.subr.bf16.mxu0 %v5335
      %5666 = vmatpush2.bf16.msra.mxu0 %v5334
      %5667 = vmatprep.subr.bf16.mxu0 %v5332
      %5668 = vmatpush2.bf16.msra.mxu0 %v5331
      %5669 = vmatprep.subr.bf16.mxu0 %v5329
      %5670 = vmatpush2.bf16.msra.mxu0 %v5328
      %5671 = vmatprep.subr.bf16.mxu0 %v5326
      %5672 = vmatpush2.bf16.msra.mxu0 %v5325
      %5673 = vmatprep.subr.bf16.mxu0 %v5323
      %5674 = vmatpush2.bf16.msra.mxu0 %v5322
      %5675 = vmatprep.subr.bf16.mxu0 %v5320
      %5676 = vmatpush2.bf16.msra.mxu0 %v5319
      %5677 = vmatprep.mubr.bf16.mxu0 %v5512
      %5678 = vmatmul.mubr.bf16.gmra.mxu0 %v5511
      %v5679 = vpop.f32.mrf.mxu0
      %v5680 = vadd.f32 %v5627, %v5679
      %v5681 = vpop.f32.mrf.mxu0
      %v5682 = vadd.f32 %v5629, %v5681
      %v5683 = vpop.f32.mrf.mxu0
      %v5684 = vadd.f32 %v5631, %v5683
      %v5685 = vpop.f32.mrf.mxu0
      %v5686 = vadd.f32 %v5633, %v5685
      %5687 = vmatprep.mubr.bf16.mxu0 %v5519
      %5688 = vmatmul.mubr.bf16.gmra.mxu0 %v5518
      %v5689 = vpop.f32.mrf.mxu0
      %v5690 = vadd.f32 %v5637, %v5689
      %v5691 = vpop.f32.mrf.mxu0
      %v5692 = vadd.f32 %v5639, %v5691
      %v5693 = vpop.f32.mrf.mxu0
      %v5694 = vadd.f32 %v5641, %v5693
      %v5695 = vpop.f32.mrf.mxu0
      %v5696 = vadd.f32 %v5643, %v5695
      %5697 = vdwg.mxu0
      %5698 = vmatprep.subr.bf16.mxu0 0
      %5699 = vmatpush1.bf16.msra.mxu0 0
      %5700 = vmatprep.subr.bf16.mxu0 0
      %5701 = vmatpush1.bf16.msra.mxu0 0
      %5702 = vmatprep.subr.bf16.mxu0 0
      %5703 = vmatpush1.bf16.msra.mxu0 0
      %5704 = vmatprep.subr.bf16.mxu0 0
      %5705 = vmatpush1.bf16.msra.mxu0 0
      %5706 = vmatprep.subr.bf16.mxu0 0
      %5707 = vmatpush1.bf16.msra.mxu0 0
      %5708 = vmatprep.subr.bf16.mxu0 0
      %5709 = vmatpush1.bf16.msra.mxu0 0
      %5710 = vmatprep.subr.bf16.mxu0 %v5347
      %5711 = vmatpush1.bf16.msra.mxu0 %v5346
      %5712 = vmatprep.subr.bf16.mxu0 %v5344
      %5713 = vmatpush1.bf16.msra.mxu0 %v5343
      %5714 = vmatprep.subr.bf16.mxu0 0
      %5715 = vmatpush2.bf16.msra.mxu0 0
      %5716 = vmatprep.subr.bf16.mxu0 0
      %5717 = vmatpush2.bf16.msra.mxu0 0
      %5718 = vmatprep.subr.bf16.mxu0 0
      %5719 = vmatpush2.bf16.msra.mxu0 0
      %5720 = vmatprep.subr.bf16.mxu0 0
      %5721 = vmatpush2.bf16.msra.mxu0 0
      %5722 = vmatprep.subr.bf16.mxu0 0
      %5723 = vmatpush2.bf16.msra.mxu0 0
      %5724 = vmatprep.subr.bf16.mxu0 0
      %5725 = vmatpush2.bf16.msra.mxu0 0
      %5726 = vmatprep.subr.bf16.mxu0 0
      %5727 = vmatpush2.bf16.msra.mxu0 0
      %5728 = vmatprep.subr.bf16.mxu0 0
      %5729 = vmatpush2.bf16.msra.mxu0 0
      %5730 = vmatprep.mubr.bf16.mxu0 0
      %5731 = vmatmul.mubr.bf16.gmra.mxu0 %v5534
      %v5732 = vpop.f32.mrf.mxu0
      %v5733 = vadd.f32 %v5680, %v5732
      %v5734 = vpop.f32.mrf.mxu0
      %v5735 = vadd.f32 %v5682, %v5734
      %v5736 = vpop.f32.mrf.mxu0
      %v5737 = vadd.f32 %v5684, %v5736
      %v5738 = vpop.f32.mrf.mxu0
      %v5739 = vadd.f32 %v5686, %v5738
      %5740 = vmatprep.mubr.bf16.mxu0 0
      %5741 = vmatmul.mubr.bf16.gmra.mxu0 %v5537
      %v5742 = vpop.f32.mrf.mxu0
      %v5743 = vadd.f32 %v5690, %v5742
      %v5744 = vpop.f32.mrf.mxu0
      %v5745 = vadd.f32 %v5692, %v5744
      %v5746 = vpop.f32.mrf.mxu0
      %v5747 = vadd.f32 %v5694, %v5746
      %v5748 = vpop.f32.mrf.mxu0
      %v5749 = vadd.f32 %v5696, %v5748
      %5750 = vdwg.mxu0
      %5751 = vmatprep.subr.bf16.mxu0 %v4754
      %5752 = vmatpush1.bf16.msra.mxu0 %v4760
      %5753 = vmatprep.subr.bf16.mxu0 %v4746
      %5754 = vmatpush1.bf16.msra.mxu0 %v4757
      %5755 = vmatprep.subr.bf16.mxu0 %v4724
      %5756 = vmatpush1.bf16.msra.mxu0 %v4730
      %5757 = vmatprep.subr.bf16.mxu0 %v4716
      %5758 = vmatpush1.bf16.msra.mxu0 %v4727
      %5759 = vmatprep.subr.bf16.mxu0 %v4694
      %5760 = vmatpush1.bf16.msra.mxu0 %v4700
      %5761 = vmatprep.subr.bf16.mxu0 %v4686
      %5762 = vmatpush1.bf16.msra.mxu0 %v4697
      %5763 = vmatprep.subr.bf16.mxu0 %v4670
      %5764 = vmatpush1.bf16.msra.mxu0 %v4669
      %5765 = vmatprep.subr.bf16.mxu0 %v4666
      %5766 = vmatpush1.bf16.msra.mxu0 %v4665
      %5767 = vmatprep.subr.bf16.mxu0 %v4874
      %5768 = vmatpush2.bf16.msra.mxu0 %v4880
      %5769 = vmatprep.subr.bf16.mxu0 %v4866
      %5770 = vmatpush2.bf16.msra.mxu0 %v4877
      %5771 = vmatprep.subr.bf16.mxu0 %v4844
      %5772 = vmatpush2.bf16.msra.mxu0 %v4850
      %5773 = vmatprep.subr.bf16.mxu0 %v4836
      %5774 = vmatpush2.bf16.msra.mxu0 %v4847
      %5775 = vmatprep.subr.bf16.mxu0 %v4814
      %5776 = vmatpush2.bf16.msra.mxu0 %v4820
      %5777 = vmatprep.subr.bf16.mxu0 %v4806
      %5778 = vmatpush2.bf16.msra.mxu0 %v4817
      %5779 = vmatprep.subr.bf16.mxu0 %v4784
      %5780 = vmatpush2.bf16.msra.mxu0 %v4790
      %5781 = vmatprep.subr.bf16.mxu0 %v4776
      %5782 = vmatpush2.bf16.msra.mxu0 %v4787
      %5783 = vmatprep.mubr.bf16.mxu0 %v5508
      %5784 = vmatmul.mubr.bf16.gmra.mxu0 %v5507
      %v5785 = vpop.f32.mrf.mxu0
      %v5786 = vadd.f32 %v5446, %v5785
      %v5787 = vpop.f32.mrf.mxu0
      %v5788 = vadd.f32 %v5446, %v5787
      %v5789 = vpop.f32.mrf.mxu0
      %v5790 = vadd.f32 %v5451, %v5789
      %v5791 = vpop.f32.mrf.mxu0
      %v5792 = vadd.f32 %v5451, %v5791
      %5793 = vmatprep.mubr.bf16.mxu0 %v5515
      %5794 = vmatmul.mubr.bf16.gmra.mxu0 %v5514
      %v5795 = vpop.f32.mrf.mxu0
      %v5796 = vadd.f32 %v5456, %v5795
      %v5797 = vpop.f32.mrf.mxu0
      %v5798 = vadd.f32 %v5456, %v5797
      %v5799 = vpop.f32.mrf.mxu0
      %v5800 = vadd.f32 %v5461, %v5799
      %v5801 = vpop.f32.mrf.mxu0
      %v5802 = vadd.f32 %v5461, %v5801
      %5803 = vdwg.mxu0
      %5804 = vmatprep.subr.bf16.mxu0 %v4994
      %5805 = vmatpush1.bf16.msra.mxu0 %v5000
      %5806 = vmatprep.subr.bf16.mxu0 %v4986
      %5807 = vmatpush1.bf16.msra.mxu0 %v4997
      %5808 = vmatprep.subr.bf16.mxu0 %v4964
      %5809 = vmatpush1.bf16.msra.mxu0 %v4970
      %5810 = vmatprep.subr.bf16.mxu0 %v4956
      %5811 = vmatpush1.bf16.msra.mxu0 %v4967
      %5812 = vmatprep.subr.bf16.mxu0 %v4934
      %5813 = vmatpush1.bf16.msra.mxu0 %v4940
      %5814 = vmatprep.subr.bf16.mxu0 %v4926
      %5815 = vmatpush1.bf16.msra.mxu0 %v4937
      %5816 = vmatprep.subr.bf16.mxu0 %v4904
      %5817 = vmatpush1.bf16.msra.mxu0 %v4910
      %5818 = vmatprep.subr.bf16.mxu0 %v4896
      %5819 = vmatpush1.bf16.msra.mxu0 %v4907
      %5820 = vmatprep.subr.bf16.mxu0 %v5114
      %5821 = vmatpush2.bf16.msra.mxu0 %v5120
      %5822 = vmatprep.subr.bf16.mxu0 %v5106
      %5823 = vmatpush2.bf16.msra.mxu0 %v5117
      %5824 = vmatprep.subr.bf16.mxu0 %v5084
      %5825 = vmatpush2.bf16.msra.mxu0 %v5090
      %5826 = vmatprep.subr.bf16.mxu0 %v5076
      %5827 = vmatpush2.bf16.msra.mxu0 %v5087
      %5828 = vmatprep.subr.bf16.mxu0 %v5054
      %5829 = vmatpush2.bf16.msra.mxu0 %v5060
      %5830 = vmatprep.subr.bf16.mxu0 %v5046
      %5831 = vmatpush2.bf16.msra.mxu0 %v5057
      %5832 = vmatprep.subr.bf16.mxu0 %v5024
      %5833 = vmatpush2.bf16.msra.mxu0 %v5030
      %5834 = vmatprep.subr.bf16.mxu0 %v5016
      %5835 = vmatpush2.bf16.msra.mxu0 %v5027
      %5836 = vmatprep.mubr.bf16.mxu0 %v5510
      %5837 = vmatmul.mubr.bf16.gmra.mxu0 %v5509
      %v5838 = vpop.f32.mrf.mxu0
      %v5839 = vadd.f32 %v5786, %v5838
      %v5840 = vpop.f32.mrf.mxu0
      %v5841 = vadd.f32 %v5788, %v5840
      %v5842 = vpop.f32.mrf.mxu0
      %v5843 = vadd.f32 %v5790, %v5842
      %v5844 = vpop.f32.mrf.mxu0
      %v5845 = vadd.f32 %v5792, %v5844
      %5846 = vmatprep.mubr.bf16.mxu0 %v5517
      %5847 = vmatmul.mubr.bf16.gmra.mxu0 %v5516
      %v5848 = vpop.f32.mrf.mxu0
      %v5849 = vadd.f32 %v5796, %v5848
      %v5850 = vpop.f32.mrf.mxu0
      %v5851 = vadd.f32 %v5798, %v5850
      %v5852 = vpop.f32.mrf.mxu0
      %v5853 = vadd.f32 %v5800, %v5852
      %v5854 = vpop.f32.mrf.mxu0
      %v5855 = vadd.f32 %v5802, %v5854
      %5856 = vdwg.mxu0
      %5857 = vmatprep.subr.bf16.mxu0 %v5214
      %5858 = vmatpush1.bf16.msra.mxu0 %v5318
      %5859 = vmatprep.subr.bf16.mxu0 %v5206
      %5860 = vmatpush1.bf16.msra.mxu0 %v5315
      %5861 = vmatprep.subr.bf16.mxu0 %v5198
      %5862 = vmatpush1.bf16.msra.mxu0 %v5312
      %5863 = vmatprep.subr.bf16.mxu0 %v5190
      %5864 = vmatpush1.bf16.msra.mxu0 %v5309
      %5865 = vmatprep.subr.bf16.mxu0 %v5182
      %5866 = vmatpush1.bf16.msra.mxu0 %v5306
      %5867 = vmatprep.subr.bf16.mxu0 %v5174
      %5868 = vmatpush1.bf16.msra.mxu0 %v5303
      %5869 = vmatprep.subr.bf16.mxu0 %v5166
      %5870 = vmatpush1.bf16.msra.mxu0 %v5300
      %5871 = vmatprep.subr.bf16.mxu0 %v5158
      %5872 = vmatpush1.bf16.msra.mxu0 %v5297
      %5873 = vmatprep.subr.bf16.mxu0 %v5278
      %5874 = vmatpush2.bf16.msra.mxu0 %v5342
      %5875 = vmatprep.subr.bf16.mxu0 %v5270
      %5876 = vmatpush2.bf16.msra.mxu0 %v5339
      %5877 = vmatprep.subr.bf16.mxu0 %v5262
      %5878 = vmatpush2.bf16.msra.mxu0 %v5336
      %5879 = vmatprep.subr.bf16.mxu0 %v5254
      %5880 = vmatpush2.bf16.msra.mxu0 %v5333
      %5881 = vmatprep.subr.bf16.mxu0 %v5246
      %5882 = vmatpush2.bf16.msra.mxu0 %v5330
      %5883 = vmatprep.subr.bf16.mxu0 %v5238
      %5884 = vmatpush2.bf16.msra.mxu0 %v5327
      %5885 = vmatprep.subr.bf16.mxu0 %v5230
      %5886 = vmatpush2.bf16.msra.mxu0 %v5324
      %5887 = vmatprep.subr.bf16.mxu0 %v5222
      %5888 = vmatpush2.bf16.msra.mxu0 %v5321
      %5889 = vmatprep.mubr.bf16.mxu0 %v5512
      %5890 = vmatmul.mubr.bf16.gmra.mxu0 %v5511
      %v5891 = vpop.f32.mrf.mxu0
      %v5892 = vadd.f32 %v5839, %v5891
      %v5893 = vpop.f32.mrf.mxu0
      %v5894 = vadd.f32 %v5841, %v5893
      %v5895 = vpop.f32.mrf.mxu0
      %v5896 = vadd.f32 %v5843, %v5895
      %v5897 = vpop.f32.mrf.mxu0
      %v5898 = vadd.f32 %v5845, %v5897
      %5899 = vmatprep.mubr.bf16.mxu0 %v5519
      %5900 = vmatmul.mubr.bf16.gmra.mxu0 %v5518
      %v5901 = vpop.f32.mrf.mxu0
      %v5902 = vadd.f32 %v5849, %v5901
      %v5903 = vpop.f32.mrf.mxu0
      %v5904 = vadd.f32 %v5851, %v5903
      %v5905 = vpop.f32.mrf.mxu0
      %v5906 = vadd.f32 %v5853, %v5905
      %v5907 = vpop.f32.mrf.mxu0
      %v5908 = vadd.f32 %v5855, %v5907
      %5909 = vdwg.mxu0
      %5910 = vmatprep.subr.bf16.mxu0 0
      %5911 = vmatpush1.bf16.msra.mxu0 0
      %5912 = vmatprep.subr.bf16.mxu0 0
      %5913 = vmatpush1.bf16.msra.mxu0 0
      %5914 = vmatprep.subr.bf16.mxu0 0
      %5915 = vmatpush1.bf16.msra.mxu0 0
      %5916 = vmatprep.subr.bf16.mxu0 0
      %5917 = vmatpush1.bf16.msra.mxu0 0
      %5918 = vmatprep.subr.bf16.mxu0 0
      %5919 = vmatpush1.bf16.msra.mxu0 0
      %5920 = vmatprep.subr.bf16.mxu0 0
      %5921 = vmatpush1.bf16.msra.mxu0 0
      %5922 = vmatprep.subr.bf16.mxu0 %v5294
      %5923 = vmatpush1.bf16.msra.mxu0 %v5348
      %5924 = vmatprep.subr.bf16.mxu0 %v5286
      %5925 = vmatpush1.bf16.msra.mxu0 %v5345
      %5926 = vmatprep.subr.bf16.mxu0 0
      %5927 = vmatpush2.bf16.msra.mxu0 0
      %5928 = vmatprep.subr.bf16.mxu0 0
      %5929 = vmatpush2.bf16.msra.mxu0 0
      %5930 = vmatprep.subr.bf16.mxu0 0
      %5931 = vmatpush2.bf16.msra.mxu0 0
      %5932 = vmatprep.subr.bf16.mxu0 0
      %5933 = vmatpush2.bf16.msra.mxu0 0
      %5934 = vmatprep.subr.bf16.mxu0 0
      %5935 = vmatpush2.bf16.msra.mxu0 0
      %5936 = vmatprep.subr.bf16.mxu0 0
      %5937 = vmatpush2.bf16.msra.mxu0 0
      %5938 = vmatprep.subr.bf16.mxu0 0
      %5939 = vmatpush2.bf16.msra.mxu0 0
      %5940 = vmatprep.subr.bf16.mxu0 0
      %5941 = vmatpush2.bf16.msra.mxu0 0
      %5942 = vmatprep.mubr.bf16.mxu0 0
      %5943 = vmatmul.mubr.bf16.gmra.mxu0 %v5534
      %v5944 = vpop.f32.mrf.mxu0
      %v5945 = vadd.f32 %v5892, %v5944
      %v5946 = vpop.f32.mrf.mxu0
      %v5947 = vadd.f32 %v5894, %v5946
      %v5948 = vpop.f32.mrf.mxu0
      %v5949 = vadd.f32 %v5896, %v5948
      %v5950 = vpop.f32.mrf.mxu0
      %v5951 = vadd.f32 %v5898, %v5950
      %5952 = vmatprep.mubr.bf16.mxu0 0
      %5953 = vmatmul.mubr.bf16.gmra.mxu0 %v5537
      %v5954 = vpop.f32.mrf.mxu0
      %v5955 = vadd.f32 %v5902, %v5954
      %v5956 = vpop.f32.mrf.mxu0
      %v5957 = vadd.f32 %v5904, %v5956
      %v5958 = vpop.f32.mrf.mxu0
      %v5959 = vadd.f32 %v5906, %v5958
      %v5960 = vpop.f32.mrf.mxu0
      %v5961 = vadd.f32 %v5908, %v5960
      %5962 = vdwg.mxu0
      %v5963 = vtanh.pop %v5733
      %v5964 = vtanh.pop %v5735
      %v5965 = vtanh.pop %v5945
      %v5966 = vtanh.pop %v5947
      %v5967 = vtanh.pop %v5737
      %v5968 = vtanh.pop %v5739
      %v5969 = vtanh.pop %v5949
      %v5970 = vtanh.pop %v5951
      %v5971 = vtanh.pop %v5743
      %v5972 = vtanh.pop %v5745
      %v5973 = vtanh.pop %v5955
      %v5974 = vtanh.pop %v5957
      %v5975 = vtanh.pop %v5747
      %v5976 = vtanh.pop %v5749
      %v5977 = vtanh.pop %v5959
      %v5978 = vtanh.pop %v5961
      %v5979 = vmul.f32 %v5963, %v1587
      %v5980 = vmul.f32 %v5964, %v1591
      %v5981 = vmul.f32 %v5965, %v1595
      %v5982 = vmul.f32 %v5966, %v1599
      %v5983 = vmul.f32 %v5967, %v1587
      %v5984 = vmul.f32 %v5968, %v1591
      %v5985 = vmul.f32 %v5969, %v1595
      %v5986 = vmul.f32 %v5970, %v1599
      %v5987 = vmul.f32 %v5971, %v1587
      %v5988 = vmul.f32 %v5972, %v1591
      %v5989 = vmul.f32 %v5973, %v1595
      %v5990 = vmul.f32 %v5974, %v1599
      %v5991 = vmul.f32 %v5975, %v1587
      %v5992 = vmul.f32 %v5976, %v1591
      %v5993 = vmul.f32 %v5977, %v1595
      %v5994 = vmul.f32 %v5978, %v1599
      %v5995 = vpack.c.bf16 %v5983, %v5979
      %v5996 = vpack.c.bf16 %v5984, %v5980
      %v5997 = vpack.c.bf16 %v5985, %v5981
      %v5998 = vpack.c.bf16 %v5986, %v5982
      %v5999 = vpack.c.bf16 %v5991, %v5987
      %v6000 = vpack.c.bf16 %v5992, %v5988
      %v6001 = vpack.c.bf16 %v5993, %v5989
      %v6002 = vpack.c.bf16 %v5994, %v5990
      %v6011 = vunpack.c.l.b16 %v5995
      %v6012 = vunpack.c.l.b16 %v5996
      %v6013 = vunpack.c.l.b16 %v5997
      %v6014 = vunpack.c.l.b16 %v5998
      %v6015 = vunpack.c.h.b16 %v5995
      %v6016 = vunpack.c.h.b16 %v5996
      %v6017 = vunpack.c.h.b16 %v5997
      %v6018 = vunpack.c.h.b16 %v5998
      %v6019 = vunpack.c.l.b16 %v5999
      %v6020 = vunpack.c.l.b16 %v6000
      %v6021 = vunpack.c.l.b16 %v6001
      %v6022 = vunpack.c.l.b16 %v6002
      %v6023 = vunpack.c.h.b16 %v5999
      %v6024 = vunpack.c.h.b16 %v6000
      %v6025 = vunpack.c.h.b16 %v6001
      %v6026 = vunpack.c.h.b16 %v6002
      %v6027 = vpack.c.b16 %v6012, %v6011
      %v6028 = vpack.c.b16 %v6014, %v6013
      %v6029 = vpack.c.b16 %v6016, %v6015
      %v6030 = vpack.c.b16 %v6018, %v6017
      %v6031 = vpack.c.b16 %v6020, %v6019
      %v6032 = vpack.c.b16 %v6022, %v6021
      %v6033 = vpack.c.b16 %v6024, %v6023
      %v6034 = vpack.c.b16 %v6026, %v6025
      %6035 = vrot.lane.b32.xlu0 %v6027, 42
      %v6036 = vpop.permute.xlu0 %6035
      %6037 = vrot.lane.b32.xlu0 %v6028, 42
      %v6038 = vpop.permute.xlu0 %6037
      %6039 = vrot.lane.b32.xlu0 %v6029, 42
      %v6040 = vpop.permute.xlu0 %6039
      %6041 = vrot.lane.b32.xlu0 %v6030, 42
      %v6042 = vpop.permute.xlu0 %6041
      %6043 = vrot.lane.b32.xlu0 %v6031, 42
      %v6044 = vpop.permute.xlu0 %6043
      %6045 = vrot.lane.b32.xlu0 %v6032, 42
      %v6046 = vpop.permute.xlu0 %6045
      %6047 = vrot.lane.b32.xlu0 %v6033, 42
      %v6048 = vpop.permute.xlu0 %6047
      %6049 = vrot.lane.b32.xlu0 %v6034, 42
      %v6050 = vpop.permute.xlu0 %6049
      %v6051 = vrot.slane %v6036, 4
      %v6052 = vrot.slane %v6038, 4
      %v6053 = vrot.slane %v6040, 4
      %v6054 = vrot.slane %v6042, 4
      %v6055 = vrot.slane %v6044, 4
      %v6056 = vrot.slane %v6046, 4
      %v6057 = vrot.slane %v6048, 4
      %v6058 = vrot.slane %v6050, 4
      %v6059 = vsel %vm1684, %v6051, %v6036
      %v6060 = vsel %vm1686, %v6051, %v6052
      %v6061 = vsel %vm1684, %v6060, %v6038
      %v6062 = vsel %vm1684, %v6053, %v6040
      %v6063 = vsel %vm1686, %v6053, %v6054
      %v6064 = vsel %vm1684, %v6063, %v6042
      %v6065 = vsel %vm1684, %v6055, %v6044
      %v6066 = vsel %vm1686, %v6055, %v6056
      %v6067 = vsel %vm1684, %v6066, %v6046
      %v6068 = vsel %vm1684, %v6057, %v6048
      %v6069 = vsel %vm1686, %v6057, %v6058
      %v6070 = vsel %vm1684, %v6069, %v6050
      %6079 = vst.msk [vmem:[#allocation2] sm:$0xff] %vm1708, %v6059
      %6080 = vst.msk [vmem:[#allocation2 + $0x8] sm:$0xff] %vm1711, %v6061
      %6081 = vst.msk [vmem:[#allocation2 + $0x10] sm:$0xff] %vm1708, %v6062
      %6082 = vst.msk [vmem:[#allocation2 + $0x18] sm:$0xff] %vm1711, %v6064
      %6083 = vst.msk [vmem:[#allocation2 + $0x20] sm:$0xff] %vm1708, %v6065
      %6084 = vst.msk [vmem:[#allocation2 + $0x28] sm:$0xff] %vm1711, %v6067
      %6085 = vst.msk [vmem:[#allocation2 + $0x30] sm:$0xff] %vm1708, %v6068
      %6086 = vst.msk [vmem:[#allocation2 + $0x38] sm:$0xff] %vm1711, %v6070
      %v6087 = vld [vmem:[#allocation2] sm:$0xff]
      %v6088 = vld [vmem:[#allocation2 + $0x8] sm:$0xff]
      %v6089 = vld [vmem:[#allocation2 + $0x10] sm:$0xff]
      %v6090 = vld [vmem:[#allocation2 + $0x18] sm:$0xff]
      %v6091 = vld [vmem:[#allocation2 + $0x20] sm:$0xff]
      %v6092 = vld [vmem:[#allocation2 + $0x28] sm:$0xff]
      %v6093 = vld [vmem:[#allocation2 + $0x30] sm:$0xff]
      %v6094 = vld [vmem:[#allocation2 + $0x38] sm:$0xff]
      %v6103 = vunpack.c.l.b16 %v6087
      %v6104 = vunpack.c.h.b16 %v6087
      %v6105 = vunpack.c.l.b16 %v6088
      %v6106 = vunpack.c.h.b16 %v6088
      %v6107 = vunpack.c.l.b16 %v6089
      %v6108 = vunpack.c.h.b16 %v6089
      %v6109 = vunpack.c.l.b16 %v6090
      %v6110 = vunpack.c.h.b16 %v6090
      %v6111 = vunpack.c.l.b16 %v6091
      %v6112 = vunpack.c.h.b16 %v6091
      %v6113 = vunpack.c.l.b16 %v6092
      %v6114 = vunpack.c.h.b16 %v6092
      %v6115 = vunpack.c.l.b16 %v6093
      %v6116 = vunpack.c.h.b16 %v6093
      %v6117 = vunpack.c.l.b16 %v6094
      %v6118 = vunpack.c.h.b16 %v6094
      %v6119 = vpack.c.b16 %v6107, %v6103
      %v6120 = vpack.c.b16 %v6108, %v6104
      %v6121 = vpack.c.b16 %v6109, %v6105
      %v6122 = vpack.c.b16 %v6110, %v6106
      %v6123 = vpack.c.b16 %v6115, %v6111
      %v6124 = vpack.c.b16 %v6116, %v6112
      %v6125 = vpack.c.b16 %v6117, %v6113
      %v6126 = vpack.c.b16 %v6118, %v6114
      %6135 = vrot.lane.b32.xlu0 %v6119, 127
      %v6136 = vpop.permute.xlu0 %6135
      %6137 = vrot.lane.b32.xlu0 %v6120, 127
      %v6138 = vpop.permute.xlu0 %6137
      %6139 = vrot.lane.b32.xlu0 %v6121, 127
      %v6140 = vpop.permute.xlu0 %6139
      %6141 = vrot.lane.b32.xlu0 %v6122, 127
      %v6142 = vpop.permute.xlu0 %6141
      %6143 = vrot.lane.b32.xlu0 %v6123, 127
      %v6144 = vpop.permute.xlu0 %6143
      %6145 = vrot.lane.b32.xlu0 %v6124, 127
      %v6146 = vpop.permute.xlu0 %6145
      %6147 = vrot.lane.b32.xlu0 %v6125, 127
      %v6148 = vpop.permute.xlu0 %6147
      %6149 = vrot.lane.b32.xlu0 %v6126, 127
      %v6150 = vpop.permute.xlu0 %6149
      %v6151 = vsel %vm283, %v6136, %v6138
      %v6152 = vsel %vm283, %v6138, %v6140
      %v6153 = vsel %vm283, %v6140, %v6142
      %v6154 = vsel %vm283, %v6144, %v6146
      %v6155 = vsel %vm283, %v6146, %v6148
      %v6156 = vsel %vm283, %v6148, %v6150
      %6165 = vrot.lane.b32.xlu0 %v6119, 126
      %v6166 = vpop.permute.xlu0 %6165
      %6167 = vrot.lane.b32.xlu0 %v6120, 126
      %v6168 = vpop.permute.xlu0 %6167
      %6169 = vrot.lane.b32.xlu0 %v6121, 126
      %v6170 = vpop.permute.xlu0 %6169
      %6171 = vrot.lane.b32.xlu0 %v6122, 126
      %v6172 = vpop.permute.xlu0 %6171
      %6173 = vrot.lane.b32.xlu0 %v6123, 126
      %v6174 = vpop.permute.xlu0 %6173
      %6175 = vrot.lane.b32.xlu0 %v6124, 126
      %v6176 = vpop.permute.xlu0 %6175
      %6177 = vrot.lane.b32.xlu0 %v6125, 126
      %v6178 = vpop.permute.xlu0 %6177
      %6179 = vrot.lane.b32.xlu0 %v6126, 126
      %v6180 = vpop.permute.xlu0 %6179
      %v6181 = vsel %vm314, %v6166, %v6168
      %v6182 = vsel %vm314, %v6168, %v6170
      %v6183 = vsel %vm314, %v6170, %v6172
      %v6184 = vsel %vm314, %v6174, %v6176
      %v6185 = vsel %vm314, %v6176, %v6178
      %v6186 = vsel %vm314, %v6178, %v6180
      %6195 = vrot.lane.b32.xlu0 %v6119, 125
      %v6196 = vpop.permute.xlu0 %6195
      %6197 = vrot.lane.b32.xlu0 %v6120, 125
      %v6198 = vpop.permute.xlu0 %6197
      %6199 = vrot.lane.b32.xlu0 %v6121, 125
      %v6200 = vpop.permute.xlu0 %6199
      %6201 = vrot.lane.b32.xlu0 %v6122, 125
      %v6202 = vpop.permute.xlu0 %6201
      %6203 = vrot.lane.b32.xlu0 %v6123, 125
      %v6204 = vpop.permute.xlu0 %6203
      %6205 = vrot.lane.b32.xlu0 %v6124, 125
      %v6206 = vpop.permute.xlu0 %6205
      %6207 = vrot.lane.b32.xlu0 %v6125, 125
      %v6208 = vpop.permute.xlu0 %6207
      %6209 = vrot.lane.b32.xlu0 %v6126, 125
      %v6210 = vpop.permute.xlu0 %6209
      %v6211 = vsel %vm345, %v6196, %v6198
      %v6212 = vsel %vm345, %v6198, %v6200
      %v6213 = vsel %vm345, %v6200, %v6202
      %v6214 = vsel %vm345, %v6204, %v6206
      %v6215 = vsel %vm345, %v6206, %v6208
      %v6216 = vsel %vm345, %v6208, %v6210
      %6225 = vrot.lane.b32.xlu0 %v6119, 124
      %v6226 = vpop.permute.xlu0 %6225
      %6227 = vrot.lane.b32.xlu0 %v6120, 124
      %v6228 = vpop.permute.xlu0 %6227
      %6229 = vrot.lane.b32.xlu0 %v6121, 124
      %v6230 = vpop.permute.xlu0 %6229
      %6231 = vrot.lane.b32.xlu0 %v6122, 124
      %v6232 = vpop.permute.xlu0 %6231
      %6233 = vrot.lane.b32.xlu0 %v6123, 124
      %v6234 = vpop.permute.xlu0 %6233
      %6235 = vrot.lane.b32.xlu0 %v6124, 124
      %v6236 = vpop.permute.xlu0 %6235
      %6237 = vrot.lane.b32.xlu0 %v6125, 124
      %v6238 = vpop.permute.xlu0 %6237
      %6239 = vrot.lane.b32.xlu0 %v6126, 124
      %v6240 = vpop.permute.xlu0 %6239
      %v6241 = vsel %vm376, %v6226, %v6228
      %v6242 = vsel %vm376, %v6228, %v6230
      %v6243 = vsel %vm376, %v6230, %v6232
      %v6244 = vsel %vm376, %v6234, %v6236
      %v6245 = vsel %vm376, %v6236, %v6238
      %v6246 = vsel %vm376, %v6238, %v6240
      %6255 = vrot.lane.b32.xlu0 %v6119, 108
      %v6256 = vpop.permute.xlu0 %6255
      %6257 = vrot.lane.b32.xlu0 %v6120, 108
      %v6258 = vpop.permute.xlu0 %6257
      %6259 = vrot.lane.b32.xlu0 %v6121, 108
      %v6260 = vpop.permute.xlu0 %6259
      %6261 = vrot.lane.b32.xlu0 %v6122, 108
      %v6262 = vpop.permute.xlu0 %6261
      %6263 = vrot.lane.b32.xlu0 %v6123, 108
      %v6264 = vpop.permute.xlu0 %6263
      %6265 = vrot.lane.b32.xlu0 %v6124, 108
      %v6266 = vpop.permute.xlu0 %6265
      %6267 = vrot.lane.b32.xlu0 %v6125, 108
      %v6268 = vpop.permute.xlu0 %6267
      %6269 = vrot.lane.b32.xlu0 %v6126, 108
      %v6270 = vpop.permute.xlu0 %6269
      %v6271 = vsel %vm407, %v6256, %v6258
      %v6272 = vsel %vm407, %v6258, %v6260
      %v6273 = vsel %vm407, %v6260, %v6262
      %v6274 = vsel %vm407, %v6264, %v6266
      %v6275 = vsel %vm407, %v6266, %v6268
      %v6276 = vsel %vm407, %v6268, %v6270
      %6285 = vrot.lane.b32.xlu0 %v6119, 107
      %v6286 = vpop.permute.xlu0 %6285
      %6287 = vrot.lane.b32.xlu0 %v6120, 107
      %v6288 = vpop.permute.xlu0 %6287
      %6289 = vrot.lane.b32.xlu0 %v6121, 107
      %v6290 = vpop.permute.xlu0 %6289
      %6291 = vrot.lane.b32.xlu0 %v6122, 107
      %v6292 = vpop.permute.xlu0 %6291
      %6293 = vrot.lane.b32.xlu0 %v6123, 107
      %v6294 = vpop.permute.xlu0 %6293
      %6295 = vrot.lane.b32.xlu0 %v6124, 107
      %v6296 = vpop.permute.xlu0 %6295
      %6297 = vrot.lane.b32.xlu0 %v6125, 107
      %v6298 = vpop.permute.xlu0 %6297
      %6299 = vrot.lane.b32.xlu0 %v6126, 107
      %v6300 = vpop.permute.xlu0 %6299
      %v6301 = vsel %vm438, %v6286, %v6288
      %v6302 = vsel %vm438, %v6288, %v6290
      %v6303 = vsel %vm438, %v6290, %v6292
      %v6304 = vsel %vm438, %v6294, %v6296
      %v6305 = vsel %vm438, %v6296, %v6298
      %v6306 = vsel %vm438, %v6298, %v6300
      %6315 = vrot.lane.b32.xlu0 %v6119, 106
      %v6316 = vpop.permute.xlu0 %6315
      %6317 = vrot.lane.b32.xlu0 %v6120, 106
      %v6318 = vpop.permute.xlu0 %6317
      %6319 = vrot.lane.b32.xlu0 %v6121, 106
      %v6320 = vpop.permute.xlu0 %6319
      %6321 = vrot.lane.b32.xlu0 %v6122, 106
      %v6322 = vpop.permute.xlu0 %6321
      %6323 = vrot.lane.b32.xlu0 %v6123, 106
      %v6324 = vpop.permute.xlu0 %6323
      %6325 = vrot.lane.b32.xlu0 %v6124, 106
      %v6326 = vpop.permute.xlu0 %6325
      %6327 = vrot.lane.b32.xlu0 %v6125, 106
      %v6328 = vpop.permute.xlu0 %6327
      %6329 = vrot.lane.b32.xlu0 %v6126, 106
      %v6330 = vpop.permute.xlu0 %6329
      %v6331 = vsel %vm469, %v6316, %v6318
      %v6332 = vsel %vm469, %v6318, %v6320
      %v6333 = vsel %vm469, %v6320, %v6322
      %v6334 = vsel %vm469, %v6324, %v6326
      %v6335 = vsel %vm469, %v6326, %v6328
      %v6336 = vsel %vm469, %v6328, %v6330
      %6345 = vrot.lane.b32.xlu0 %v6119, 105
      %v6346 = vpop.permute.xlu0 %6345
      %6347 = vrot.lane.b32.xlu0 %v6120, 105
      %v6348 = vpop.permute.xlu0 %6347
      %6349 = vrot.lane.b32.xlu0 %v6121, 105
      %v6350 = vpop.permute.xlu0 %6349
      %6351 = vrot.lane.b32.xlu0 %v6122, 105
      %v6352 = vpop.permute.xlu0 %6351
      %6353 = vrot.lane.b32.xlu0 %v6123, 105
      %v6354 = vpop.permute.xlu0 %6353
      %6355 = vrot.lane.b32.xlu0 %v6124, 105
      %v6356 = vpop.permute.xlu0 %6355
      %6357 = vrot.lane.b32.xlu0 %v6125, 105
      %v6358 = vpop.permute.xlu0 %6357
      %6359 = vrot.lane.b32.xlu0 %v6126, 105
      %v6360 = vpop.permute.xlu0 %6359
      %v6361 = vsel %vm500, %v6346, %v6348
      %v6362 = vsel %vm500, %v6348, %v6350
      %v6363 = vsel %vm500, %v6350, %v6352
      %v6364 = vsel %vm500, %v6354, %v6356
      %v6365 = vsel %vm500, %v6356, %v6358
      %v6366 = vsel %vm500, %v6358, %v6360
      %6375 = vrot.lane.b32.xlu0 %v6119, 104
      %v6376 = vpop.permute.xlu0 %6375
      %6377 = vrot.lane.b32.xlu0 %v6120, 104
      %v6378 = vpop.permute.xlu0 %6377
      %6379 = vrot.lane.b32.xlu0 %v6121, 104
      %v6380 = vpop.permute.xlu0 %6379
      %6381 = vrot.lane.b32.xlu0 %v6122, 104
      %v6382 = vpop.permute.xlu0 %6381
      %6383 = vrot.lane.b32.xlu0 %v6123, 104
      %v6384 = vpop.permute.xlu0 %6383
      %6385 = vrot.lane.b32.xlu0 %v6124, 104
      %v6386 = vpop.permute.xlu0 %6385
      %6387 = vrot.lane.b32.xlu0 %v6125, 104
      %v6388 = vpop.permute.xlu0 %6387
      %6389 = vrot.lane.b32.xlu0 %v6126, 104
      %v6390 = vpop.permute.xlu0 %6389
      %v6391 = vsel %vm531, %v6376, %v6378
      %v6392 = vsel %vm531, %v6378, %v6380
      %v6393 = vsel %vm531, %v6380, %v6382
      %v6394 = vsel %vm531, %v6384, %v6386
      %v6395 = vsel %vm531, %v6386, %v6388
      %v6396 = vsel %vm531, %v6388, %v6390
      %6405 = vrot.lane.b32.xlu0 %v6119, 88
      %v6406 = vpop.permute.xlu0 %6405
      %6407 = vrot.lane.b32.xlu0 %v6120, 88
      %v6408 = vpop.permute.xlu0 %6407
      %6409 = vrot.lane.b32.xlu0 %v6121, 88
      %v6410 = vpop.permute.xlu0 %6409
      %6411 = vrot.lane.b32.xlu0 %v6122, 88
      %v6412 = vpop.permute.xlu0 %6411
      %6413 = vrot.lane.b32.xlu0 %v6123, 88
      %v6414 = vpop.permute.xlu0 %6413
      %6415 = vrot.lane.b32.xlu0 %v6124, 88
      %v6416 = vpop.permute.xlu0 %6415
      %6417 = vrot.lane.b32.xlu0 %v6125, 88
      %v6418 = vpop.permute.xlu0 %6417
      %6419 = vrot.lane.b32.xlu0 %v6126, 88
      %v6420 = vpop.permute.xlu0 %6419
      %v6421 = vsel %vm562, %v6406, %v6408
      %v6422 = vsel %vm562, %v6408, %v6410
      %v6423 = vsel %vm562, %v6410, %v6412
      %v6424 = vsel %vm562, %v6414, %v6416
      %v6425 = vsel %vm562, %v6416, %v6418
      %v6426 = vsel %vm562, %v6418, %v6420
      %6435 = vrot.lane.b32.xlu0 %v6119, 87
      %v6436 = vpop.permute.xlu0 %6435
      %6437 = vrot.lane.b32.xlu0 %v6120, 87
      %v6438 = vpop.permute.xlu0 %6437
      %6439 = vrot.lane.b32.xlu0 %v6121, 87
      %v6440 = vpop.permute.xlu0 %6439
      %6441 = vrot.lane.b32.xlu0 %v6122, 87
      %v6442 = vpop.permute.xlu0 %6441
      %6443 = vrot.lane.b32.xlu0 %v6123, 87
      %v6444 = vpop.permute.xlu0 %6443
      %6445 = vrot.lane.b32.xlu0 %v6124, 87
      %v6446 = vpop.permute.xlu0 %6445
      %6447 = vrot.lane.b32.xlu0 %v6125, 87
      %v6448 = vpop.permute.xlu0 %6447
      %6449 = vrot.lane.b32.xlu0 %v6126, 87
      %v6450 = vpop.permute.xlu0 %6449
      %v6451 = vsel %vm593, %v6436, %v6438
      %v6452 = vsel %vm593, %v6438, %v6440
      %v6453 = vsel %vm593, %v6440, %v6442
      %v6454 = vsel %vm593, %v6444, %v6446
      %v6455 = vsel %vm593, %v6446, %v6448
      %v6456 = vsel %vm593, %v6448, %v6450
      %6465 = vrot.lane.b32.xlu0 %v6119, 86
      %v6466 = vpop.permute.xlu0 %6465
      %6467 = vrot.lane.b32.xlu0 %v6120, 86
      %v6468 = vpop.permute.xlu0 %6467
      %6469 = vrot.lane.b32.xlu0 %v6121, 86
      %v6470 = vpop.permute.xlu0 %6469
      %6471 = vrot.lane.b32.xlu0 %v6122, 86
      %v6472 = vpop.permute.xlu0 %6471
      %6473 = vrot.lane.b32.xlu0 %v6123, 86
      %v6474 = vpop.permute.xlu0 %6473
      %6475 = vrot.lane.b32.xlu0 %v6124, 86
      %v6476 = vpop.permute.xlu0 %6475
      %6477 = vrot.lane.b32.xlu0 %v6125, 86
      %v6478 = vpop.permute.xlu0 %6477
      %6479 = vrot.lane.b32.xlu0 %v6126, 86
      %v6480 = vpop.permute.xlu0 %6479
      %v6481 = vsel %vm624, %v6466, %v6468
      %v6482 = vsel %vm624, %v6468, %v6470
      %v6483 = vsel %vm624, %v6470, %v6472
      %v6484 = vsel %vm624, %v6474, %v6476
      %v6485 = vsel %vm624, %v6476, %v6478
      %v6486 = vsel %vm624, %v6478, %v6480
      %6495 = vrot.lane.b32.xlu0 %v6119, 85
      %v6496 = vpop.permute.xlu0 %6495
      %6497 = vrot.lane.b32.xlu0 %v6120, 85
      %v6498 = vpop.permute.xlu0 %6497
      %6499 = vrot.lane.b32.xlu0 %v6121, 85
      %v6500 = vpop.permute.xlu0 %6499
      %6501 = vrot.lane.b32.xlu0 %v6122, 85
      %v6502 = vpop.permute.xlu0 %6501
      %6503 = vrot.lane.b32.xlu0 %v6123, 85
      %v6504 = vpop.permute.xlu0 %6503
      %6505 = vrot.lane.b32.xlu0 %v6124, 85
      %v6506 = vpop.permute.xlu0 %6505
      %6507 = vrot.lane.b32.xlu0 %v6125, 85
      %v6508 = vpop.permute.xlu0 %6507
      %6509 = vrot.lane.b32.xlu0 %v6126, 85
      %v6510 = vpop.permute.xlu0 %6509
      %v6511 = vsel %vm655, %v6496, %v6498
      %v6512 = vsel %vm655, %v6498, %v6500
      %v6513 = vsel %vm655, %v6500, %v6502
      %v6514 = vsel %vm655, %v6504, %v6506
      %v6515 = vsel %vm655, %v6506, %v6508
      %v6516 = vsel %vm655, %v6508, %v6510
      %6525 = vrot.lane.b32.xlu0 %v6119, 84
      %v6526 = vpop.permute.xlu0 %6525
      %6527 = vrot.lane.b32.xlu0 %v6120, 84
      %v6528 = vpop.permute.xlu0 %6527
      %6529 = vrot.lane.b32.xlu0 %v6121, 84
      %v6530 = vpop.permute.xlu0 %6529
      %6531 = vrot.lane.b32.xlu0 %v6122, 84
      %v6532 = vpop.permute.xlu0 %6531
      %6533 = vrot.lane.b32.xlu0 %v6123, 84
      %v6534 = vpop.permute.xlu0 %6533
      %6535 = vrot.lane.b32.xlu0 %v6124, 84
      %v6536 = vpop.permute.xlu0 %6535
      %6537 = vrot.lane.b32.xlu0 %v6125, 84
      %v6538 = vpop.permute.xlu0 %6537
      %6539 = vrot.lane.b32.xlu0 %v6126, 84
      %v6540 = vpop.permute.xlu0 %6539
      %v6541 = vsel %vm686, %v6526, %v6528
      %v6542 = vsel %vm686, %v6528, %v6530
      %v6543 = vsel %vm686, %v6530, %v6532
      %v6544 = vsel %vm686, %v6534, %v6536
      %v6545 = vsel %vm686, %v6536, %v6538
      %v6546 = vsel %vm686, %v6538, %v6540
      %6555 = vrot.lane.b32.xlu0 %v6119, 68
      %v6556 = vpop.permute.xlu0 %6555
      %6557 = vrot.lane.b32.xlu0 %v6120, 68
      %v6558 = vpop.permute.xlu0 %6557
      %6559 = vrot.lane.b32.xlu0 %v6121, 68
      %v6560 = vpop.permute.xlu0 %6559
      %6561 = vrot.lane.b32.xlu0 %v6122, 68
      %v6562 = vpop.permute.xlu0 %6561
      %6563 = vrot.lane.b32.xlu0 %v6123, 68
      %v6564 = vpop.permute.xlu0 %6563
      %6565 = vrot.lane.b32.xlu0 %v6124, 68
      %v6566 = vpop.permute.xlu0 %6565
      %6567 = vrot.lane.b32.xlu0 %v6125, 68
      %v6568 = vpop.permute.xlu0 %6567
      %6569 = vrot.lane.b32.xlu0 %v6126, 68
      %v6570 = vpop.permute.xlu0 %6569
      %v6571 = vsel %vm717, %v6556, %v6558
      %v6572 = vsel %vm717, %v6558, %v6560
      %v6573 = vsel %vm717, %v6560, %v6562
      %v6574 = vsel %vm717, %v6564, %v6566
      %v6575 = vsel %vm717, %v6566, %v6568
      %v6576 = vsel %vm717, %v6568, %v6570
      %6585 = vrot.lane.b32.xlu0 %v6119, 109
      %v6586 = vpop.permute.xlu0 %6585
      %6587 = vrot.lane.b32.xlu0 %v6120, 109
      %v6588 = vpop.permute.xlu0 %6587
      %6589 = vrot.lane.b32.xlu0 %v6121, 109
      %v6590 = vpop.permute.xlu0 %6589
      %6591 = vrot.lane.b32.xlu0 %v6122, 109
      %v6592 = vpop.permute.xlu0 %6591
      %6593 = vrot.lane.b32.xlu0 %v6123, 109
      %v6594 = vpop.permute.xlu0 %6593
      %6595 = vrot.lane.b32.xlu0 %v6124, 109
      %v6596 = vpop.permute.xlu0 %6595
      %6597 = vrot.lane.b32.xlu0 %v6125, 109
      %v6598 = vpop.permute.xlu0 %6597
      %6599 = vrot.lane.b32.xlu0 %v6126, 109
      %v6600 = vpop.permute.xlu0 %6599
      %v6601 = vsel %vm748, %v6586, %v6588
      %v6602 = vsel %vm748, %v6588, %v6590
      %v6603 = vsel %vm748, %v6590, %v6592
      %v6604 = vsel %vm748, %v6594, %v6596
      %v6605 = vsel %vm748, %v6596, %v6598
      %v6606 = vsel %vm748, %v6598, %v6600
      %6607 = vrot.lane.b32.xlu0 %v6119, 67
      %v6608 = vpop.permute.xlu0 %6607
      %6609 = vrot.lane.b32.xlu0 %v6120, 67
      %v6610 = vpop.permute.xlu0 %6609
      %6611 = vrot.lane.b32.xlu0 %v6121, 67
      %v6612 = vpop.permute.xlu0 %6611
      %6613 = vrot.lane.b32.xlu0 %v6122, 67
      %v6614 = vpop.permute.xlu0 %6613
      %6615 = vrot.lane.b32.xlu0 %v6123, 67
      %v6616 = vpop.permute.xlu0 %6615
      %6617 = vrot.lane.b32.xlu0 %v6124, 67
      %v6618 = vpop.permute.xlu0 %6617
      %6619 = vrot.lane.b32.xlu0 %v6125, 67
      %v6620 = vpop.permute.xlu0 %6619
      %6621 = vrot.lane.b32.xlu0 %v6126, 67
      %v6622 = vpop.permute.xlu0 %6621
      %6623 = vrot.lane.b32.xlu0 %v6151, 67
      %v6624 = vpop.permute.xlu0 %6623
      %6625 = vrot.lane.b32.xlu0 %v6152, 67
      %v6626 = vpop.permute.xlu0 %6625
      %6627 = vrot.lane.b32.xlu0 %v6153, 67
      %v6628 = vpop.permute.xlu0 %6627
      %6629 = vrot.lane.b32.xlu0 %v6142, 67
      %v6630 = vpop.permute.xlu0 %6629
      %6631 = vrot.lane.b32.xlu0 %v6154, 67
      %v6632 = vpop.permute.xlu0 %6631
      %6633 = vrot.lane.b32.xlu0 %v6155, 67
      %v6634 = vpop.permute.xlu0 %6633
      %6635 = vrot.lane.b32.xlu0 %v6156, 67
      %v6636 = vpop.permute.xlu0 %6635
      %6637 = vrot.lane.b32.xlu0 %v6150, 67
      %v6638 = vpop.permute.xlu0 %6637
      %6639 = vrot.lane.b32.xlu0 %v6181, 67
      %v6640 = vpop.permute.xlu0 %6639
      %6641 = vrot.lane.b32.xlu0 %v6182, 67
      %v6642 = vpop.permute.xlu0 %6641
      %6643 = vrot.lane.b32.xlu0 %v6183, 67
      %v6644 = vpop.permute.xlu0 %6643
      %6645 = vrot.lane.b32.xlu0 %v6172, 67
      %v6646 = vpop.permute.xlu0 %6645
      %6647 = vrot.lane.b32.xlu0 %v6184, 67
      %v6648 = vpop.permute.xlu0 %6647
      %6649 = vrot.lane.b32.xlu0 %v6185, 67
      %v6650 = vpop.permute.xlu0 %6649
      %6651 = vrot.lane.b32.xlu0 %v6186, 67
      %v6652 = vpop.permute.xlu0 %6651
      %6653 = vrot.lane.b32.xlu0 %v6180, 67
      %v6654 = vpop.permute.xlu0 %6653
      %6655 = vrot.lane.b32.xlu0 %v6211, 67
      %v6656 = vpop.permute.xlu0 %6655
      %6657 = vrot.lane.b32.xlu0 %v6212, 67
      %v6658 = vpop.permute.xlu0 %6657
      %6659 = vrot.lane.b32.xlu0 %v6213, 67
      %v6660 = vpop.permute.xlu0 %6659
      %6661 = vrot.lane.b32.xlu0 %v6202, 67
      %v6662 = vpop.permute.xlu0 %6661
      %6663 = vrot.lane.b32.xlu0 %v6214, 67
      %v6664 = vpop.permute.xlu0 %6663
      %6665 = vrot.lane.b32.xlu0 %v6215, 67
      %v6666 = vpop.permute.xlu0 %6665
      %6667 = vrot.lane.b32.xlu0 %v6216, 67
      %v6668 = vpop.permute.xlu0 %6667
      %6669 = vrot.lane.b32.xlu0 %v6210, 67
      %v6670 = vpop.permute.xlu0 %6669
      %6671 = vrot.lane.b32.xlu0 %v6601, 67
      %v6672 = vpop.permute.xlu0 %6671
      %6673 = vrot.lane.b32.xlu0 %v6602, 67
      %v6674 = vpop.permute.xlu0 %6673
      %6675 = vrot.lane.b32.xlu0 %v6603, 67
      %v6676 = vpop.permute.xlu0 %6675
      %6677 = vrot.lane.b32.xlu0 %v6592, 67
      %v6678 = vpop.permute.xlu0 %6677
      %6679 = vrot.lane.b32.xlu0 %v6604, 67
      %v6680 = vpop.permute.xlu0 %6679
      %6681 = vrot.lane.b32.xlu0 %v6605, 67
      %v6682 = vpop.permute.xlu0 %6681
      %6683 = vrot.lane.b32.xlu0 %v6606, 67
      %v6684 = vpop.permute.xlu0 %6683
      %6685 = vrot.lane.b32.xlu0 %v6600, 67
      %v6686 = vpop.permute.xlu0 %6685
      %6687 = vrot.lane.b32.xlu0 %v6271, 67
      %v6688 = vpop.permute.xlu0 %6687
      %6689 = vrot.lane.b32.xlu0 %v6272, 67
      %v6690 = vpop.permute.xlu0 %6689
      %6691 = vrot.lane.b32.xlu0 %v6273, 67
      %v6692 = vpop.permute.xlu0 %6691
      %6693 = vrot.lane.b32.xlu0 %v6262, 67
      %v6694 = vpop.permute.xlu0 %6693
      %6695 = vrot.lane.b32.xlu0 %v6274, 67
      %v6696 = vpop.permute.xlu0 %6695
      %6697 = vrot.lane.b32.xlu0 %v6275, 67
      %v6698 = vpop.permute.xlu0 %6697
      %6699 = vrot.lane.b32.xlu0 %v6276, 67
      %v6700 = vpop.permute.xlu0 %6699
      %6701 = vrot.lane.b32.xlu0 %v6270, 67
      %v6702 = vpop.permute.xlu0 %6701
      %6703 = vrot.lane.b32.xlu0 %v6301, 67
      %v6704 = vpop.permute.xlu0 %6703
      %6705 = vrot.lane.b32.xlu0 %v6302, 67
      %v6706 = vpop.permute.xlu0 %6705
      %6707 = vrot.lane.b32.xlu0 %v6303, 67
      %v6708 = vpop.permute.xlu0 %6707
      %6709 = vrot.lane.b32.xlu0 %v6292, 67
      %v6710 = vpop.permute.xlu0 %6709
      %6711 = vrot.lane.b32.xlu0 %v6304, 67
      %v6712 = vpop.permute.xlu0 %6711
      %6713 = vrot.lane.b32.xlu0 %v6305, 67
      %v6714 = vpop.permute.xlu0 %6713
      %6715 = vrot.lane.b32.xlu0 %v6306, 67
      %v6716 = vpop.permute.xlu0 %6715
      %6717 = vrot.lane.b32.xlu0 %v6300, 67
      %v6718 = vpop.permute.xlu0 %6717
      %6719 = vrot.lane.b32.xlu0 %v6331, 67
      %v6720 = vpop.permute.xlu0 %6719
      %6721 = vrot.lane.b32.xlu0 %v6332, 67
      %v6722 = vpop.permute.xlu0 %6721
      %6723 = vrot.lane.b32.xlu0 %v6333, 67
      %v6724 = vpop.permute.xlu0 %6723
      %6725 = vrot.lane.b32.xlu0 %v6322, 67
      %v6726 = vpop.permute.xlu0 %6725
      %6727 = vrot.lane.b32.xlu0 %v6334, 67
      %v6728 = vpop.permute.xlu0 %6727
      %6729 = vrot.lane.b32.xlu0 %v6335, 67
      %v6730 = vpop.permute.xlu0 %6729
      %6731 = vrot.lane.b32.xlu0 %v6336, 67
      %v6732 = vpop.permute.xlu0 %6731
      %6733 = vrot.lane.b32.xlu0 %v6330, 67
      %v6734 = vpop.permute.xlu0 %6733
      %6735 = vrot.lane.b32.xlu0 %v6361, 67
      %v6736 = vpop.permute.xlu0 %6735
      %6737 = vrot.lane.b32.xlu0 %v6362, 67
      %v6738 = vpop.permute.xlu0 %6737
      %6739 = vrot.lane.b32.xlu0 %v6363, 67
      %v6740 = vpop.permute.xlu0 %6739
      %6741 = vrot.lane.b32.xlu0 %v6352, 67
      %v6742 = vpop.permute.xlu0 %6741
      %6743 = vrot.lane.b32.xlu0 %v6364, 67
      %v6744 = vpop.permute.xlu0 %6743
      %6745 = vrot.lane.b32.xlu0 %v6365, 67
      %v6746 = vpop.permute.xlu0 %6745
      %6747 = vrot.lane.b32.xlu0 %v6366, 67
      %v6748 = vpop.permute.xlu0 %6747
      %6749 = vrot.lane.b32.xlu0 %v6360, 67
      %v6750 = vpop.permute.xlu0 %6749
      %v6751 = vsel %vm899, %v6608, %v6610
      %v6752 = vsel %vm899, %v6610, %v6612
      %v6753 = vsel %vm899, %v6612, %v6614
      %v6754 = vsel %vm899, %v6616, %v6618
      %v6755 = vsel %vm899, %v6618, %v6620
      %v6756 = vsel %vm899, %v6620, %v6622
      %v6757 = vsel %vm899, %v6624, %v6626
      %v6758 = vsel %vm899, %v6626, %v6628
      %v6759 = vsel %vm899, %v6628, %v6630
      %v6760 = vsel %vm899, %v6632, %v6634
      %v6761 = vsel %vm899, %v6634, %v6636
      %v6762 = vsel %vm899, %v6636, %v6638
      %v6763 = vsel %vm899, %v6640, %v6642
      %v6764 = vsel %vm899, %v6642, %v6644
      %v6765 = vsel %vm899, %v6644, %v6646
      %v6766 = vsel %vm899, %v6648, %v6650
      %v6767 = vsel %vm899, %v6650, %v6652
      %v6768 = vsel %vm899, %v6652, %v6654
      %v6769 = vsel %vm899, %v6656, %v6658
      %v6770 = vsel %vm899, %v6658, %v6660
      %v6771 = vsel %vm899, %v6660, %v6662
      %v6772 = vsel %vm899, %v6664, %v6666
      %v6773 = vsel %vm899, %v6666, %v6668
      %v6774 = vsel %vm899, %v6668, %v6670
      %v6775 = vsel %vm899, %v6672, %v6674
      %v6776 = vsel %vm899, %v6674, %v6676
      %v6777 = vsel %vm899, %v6676, %v6678
      %v6778 = vsel %vm899, %v6680, %v6682
      %v6779 = vsel %vm899, %v6682, %v6684
      %v6780 = vsel %vm899, %v6684, %v6686
      %v6781 = vsel %vm899, %v6688, %v6690
      %v6782 = vsel %vm899, %v6690, %v6692
      %v6783 = vsel %vm899, %v6692, %v6694
      %v6784 = vsel %vm899, %v6696, %v6698
      %v6785 = vsel %vm899, %v6698, %v6700
      %v6786 = vsel %vm899, %v6700, %v6702
      %v6787 = vsel %vm899, %v6704, %v6706
      %v6788 = vsel %vm899, %v6706, %v6708
      %v6789 = vsel %vm899, %v6708, %v6710
      %v6790 = vsel %vm899, %v6712, %v6714
      %v6791 = vsel %vm899, %v6714, %v6716
      %v6792 = vsel %vm899, %v6716, %v6718
      %v6793 = vsel %vm899, %v6720, %v6722
      %v6794 = vsel %vm899, %v6722, %v6724
      %v6795 = vsel %vm899, %v6724, %v6726
      %v6796 = vsel %vm899, %v6728, %v6730
      %v6797 = vsel %vm899, %v6730, %v6732
      %v6798 = vsel %vm899, %v6732, %v6734
      %v6799 = vsel %vm899, %v6736, %v6738
      %v6800 = vsel %vm899, %v6738, %v6740
      %v6801 = vsel %vm899, %v6740, %v6742
      %v6802 = vsel %vm899, %v6744, %v6746
      %v6803 = vsel %vm899, %v6746, %v6748
      %v6804 = vsel %vm899, %v6748, %v6750
      %s6877 = scalar_lea.vmem %s1, 448
      %v6878 = vld [vmem:[%s6877] sm:$0xff]
      %v6879 = vld [vmem:[%s6877 + $0x8] sm:$0xff]
      %v6880 = vld [vmem:[%s6877 + $0x10] sm:$0xff]
      %v6881 = vld [vmem:[%s6877 + $0x18] sm:$0xf]
      %v6882 = vld [vmem:[%s6877 + $0x1c] sm:$0xff]
      %v6883 = vld [vmem:[%s6877 + $0x24] sm:$0xff]
      %v6884 = vld [vmem:[%s6877 + $0x2c] sm:$0xff]
      %v6885 = vld [vmem:[%s6877 + $0x34] sm:$0xf]
      %v6886 = vld [vmem:[%s6877 + $0x38] sm:$0xff]
      %v6887 = vld [vmem:[%s6877 + $0x40] sm:$0xff]
      %v6888 = vld [vmem:[%s6877 + $0x48] sm:$0xff]
      %v6889 = vld [vmem:[%s6877 + $0x50] sm:$0xf]
      %v6890 = vld [vmem:[%s6877 + $0x54] sm:$0xff]
      %v6891 = vld [vmem:[%s6877 + $0x5c] sm:$0xff]
      %v6892 = vld [vmem:[%s6877 + $0x64] sm:$0xff]
      %v6893 = vld [vmem:[%s6877 + $0x6c] sm:$0xf]
      %s6894 = scalar_lea.vmem %s2, 128
      %v6895 = vld [vmem:[%s6894] sm:$0xff]
      %v6896 = vld [vmem:[%s6894 + $0x8] sm:$0xff]
      %v6897 = vld [vmem:[%s6894 + $0x10] sm:$0xff]
      %v6898 = vld [vmem:[%s6894 + $0x18] sm:$0xff]
      %6900 = vset.pattern.permute.xlu0 0
      %6901 = vperm.xlu0 %6900, %v6895
      %v6902 = vpop.permute.xlu0 %6901
      %6905 = vset.pattern.permute.xlu0 0
      %6906 = vperm.xlu0 %6905, %v6896
      %v6907 = vpop.permute.xlu0 %6906
      %6910 = vset.pattern.permute.xlu0 0
      %6911 = vperm.xlu0 %6910, %v6897
      %v6912 = vpop.permute.xlu0 %6911
      %6915 = vset.pattern.permute.xlu0 0
      %6916 = vperm.xlu0 %6915, %v6898
      %v6917 = vpop.permute.xlu0 %6916
      %v6935 = vunpack.c.l.b16 %v6878
      %v6936 = vunpack.c.h.b16 %v6878
      %v6937 = vunpack.c.l.b16 %v6879
      %v6938 = vunpack.c.h.b16 %v6879
      %v6939 = vunpack.c.l.b16 %v6880
      %v6940 = vunpack.c.h.b16 %v6880
      %v6941 = vunpack.c.l.b16 %v6881
      %v6942 = vunpack.c.l.b16 %v6882
      %v6943 = vunpack.c.h.b16 %v6882
      %v6944 = vunpack.c.l.b16 %v6883
      %v6945 = vunpack.c.h.b16 %v6883
      %v6946 = vunpack.c.l.b16 %v6884
      %v6947 = vunpack.c.h.b16 %v6884
      %v6948 = vunpack.c.l.b16 %v6885
      %v6949 = vunpack.c.l.b16 %v6886
      %v6950 = vunpack.c.h.b16 %v6886
      %v6951 = vunpack.c.l.b16 %v6887
      %v6952 = vunpack.c.h.b16 %v6887
      %v6953 = vunpack.c.l.b16 %v6888
      %v6954 = vunpack.c.h.b16 %v6888
      %v6955 = vunpack.c.l.b16 %v6889
      %v6956 = vunpack.c.l.b16 %v6890
      %v6957 = vunpack.c.h.b16 %v6890
      %v6958 = vunpack.c.l.b16 %v6891
      %v6959 = vunpack.c.h.b16 %v6891
      %v6960 = vunpack.c.l.b16 %v6892
      %v6961 = vunpack.c.h.b16 %v6892
      %v6962 = vunpack.c.l.b16 %v6893
      %v6963 = vpack.c.b16 %v6942, %v6935
      %v6964 = vpack.c.b16 %v6943, %v6936
      %v6965 = vpack.c.b16 %v6944, %v6937
      %v6966 = vpack.c.b16 %v6945, %v6938
      %v6967 = vpack.c.b16 %v6946, %v6939
      %v6968 = vpack.c.b16 %v6947, %v6940
      %v6969 = vpack.c.b16 %v6948, %v6941
      %v6970 = vpack.c.b16 %v6956, %v6949
      %v6971 = vpack.c.b16 %v6957, %v6950
      %v6972 = vpack.c.b16 %v6958, %v6951
      %v6973 = vpack.c.b16 %v6959, %v6952
      %v6974 = vpack.c.b16 %v6960, %v6953
      %v6975 = vpack.c.b16 %v6961, %v6954
      %v6976 = vpack.c.b16 %v6962, %v6955
      %v6990 = vsel %vm1136, %v6969, 0
      %v6993 = vsel %vm1136, %v6976, 0
      %6995 = vmatprep.subr.bf16.mxu0 %v6215
      %6996 = vmatpush1.bf16.msra.mxu0 %v6214
      %6997 = vmatprep.subr.bf16.mxu0 %v6212
      %6998 = vmatpush1.bf16.msra.mxu0 %v6211
      %6999 = vmatprep.subr.bf16.mxu0 %v6185
      %7000 = vmatpush1.bf16.msra.mxu0 %v6184
      %7001 = vmatprep.subr.bf16.mxu0 %v6182
      %7002 = vmatpush1.bf16.msra.mxu0 %v6181
      %7003 = vmatprep.subr.bf16.mxu0 %v6155
      %7004 = vmatpush1.bf16.msra.mxu0 %v6154
      %7005 = vmatprep.subr.bf16.mxu0 %v6152
      %7006 = vmatpush1.bf16.msra.mxu0 %v6151
      %7007 = vmatprep.subr.bf16.mxu0 %v6124
      %7008 = vmatpush1.bf16.msra.mxu0 %v6123
      %7009 = vmatprep.subr.bf16.mxu0 %v6120
      %7010 = vmatpush1.bf16.msra.mxu0 %v6119
      %7011 = vmatprep.subr.bf16.mxu0 %v6335
      %7012 = vmatpush2.bf16.msra.mxu0 %v6334
      %7013 = vmatprep.subr.bf16.mxu0 %v6332
      %7014 = vmatpush2.bf16.msra.mxu0 %v6331
      %7015 = vmatprep.subr.bf16.mxu0 %v6305
      %7016 = vmatpush2.bf16.msra.mxu0 %v6304
      %7017 = vmatprep.subr.bf16.mxu0 %v6302
      %7018 = vmatpush2.bf16.msra.mxu0 %v6301
      %7019 = vmatprep.subr.bf16.mxu0 %v6275
      %7020 = vmatpush2.bf16.msra.mxu0 %v6274
      %7021 = vmatprep.subr.bf16.mxu0 %v6272
      %7022 = vmatpush2.bf16.msra.mxu0 %v6271
      %7023 = vmatprep.subr.bf16.mxu0 %v6245
      %7024 = vmatpush2.bf16.msra.mxu0 %v6244
      %7025 = vmatprep.subr.bf16.mxu0 %v6242
      %7026 = vmatpush2.bf16.msra.mxu0 %v6241
      %7027 = vmatprep.mubr.bf16.mxu0 %v6964
      %7028 = vmatmul.mubr.bf16.gmra.mxu0 %v6963
      %v7029 = vpop.f32.mrf.mxu0
      %v7030 = vadd.f32 %v6902, %v7029
      %v7031 = vpop.f32.mrf.mxu0
      %v7032 = vadd.f32 %v6902, %v7031
      %v7033 = vpop.f32.mrf.mxu0
      %v7034 = vadd.f32 %v6907, %v7033
      %v7035 = vpop.f32.mrf.mxu0
      %v7036 = vadd.f32 %v6907, %v7035
      %7037 = vmatprep.mubr.bf16.mxu0 %v6971
      %7038 = vmatmul.mubr.bf16.gmra.mxu0 %v6970
      %v7039 = vpop.f32.mrf.mxu0
      %v7040 = vadd.f32 %v6912, %v7039
      %v7041 = vpop.f32.mrf.mxu0
      %v7042 = vadd.f32 %v6912, %v7041
      %v7043 = vpop.f32.mrf.mxu0
      %v7044 = vadd.f32 %v6917, %v7043
      %v7045 = vpop.f32.mrf.mxu0
      %v7046 = vadd.f32 %v6917, %v7045
      %7047 = vdwg.mxu0
      %7048 = vmatprep.subr.bf16.mxu0 %v6455
      %7049 = vmatpush1.bf16.msra.mxu0 %v6454
      %7050 = vmatprep.subr.bf16.mxu0 %v6452
      %7051 = vmatpush1.bf16.msra.mxu0 %v6451
      %7052 = vmatprep.subr.bf16.mxu0 %v6425
      %7053 = vmatpush1.bf16.msra.mxu0 %v6424
      %7054 = vmatprep.subr.bf16.mxu0 %v6422
      %7055 = vmatpush1.bf16.msra.mxu0 %v6421
      %7056 = vmatprep.subr.bf16.mxu0 %v6395
      %7057 = vmatpush1.bf16.msra.mxu0 %v6394
      %7058 = vmatprep.subr.bf16.mxu0 %v6392
      %7059 = vmatpush1.bf16.msra.mxu0 %v6391
      %7060 = vmatprep.subr.bf16.mxu0 %v6365
      %7061 = vmatpush1.bf16.msra.mxu0 %v6364
      %7062 = vmatprep.subr.bf16.mxu0 %v6362
      %7063 = vmatpush1.bf16.msra.mxu0 %v6361
      %7064 = vmatprep.subr.bf16.mxu0 %v6575
      %7065 = vmatpush2.bf16.msra.mxu0 %v6574
      %7066 = vmatprep.subr.bf16.mxu0 %v6572
      %7067 = vmatpush2.bf16.msra.mxu0 %v6571
      %7068 = vmatprep.subr.bf16.mxu0 %v6545
      %7069 = vmatpush2.bf16.msra.mxu0 %v6544
      %7070 = vmatprep.subr.bf16.mxu0 %v6542
      %7071 = vmatpush2.bf16.msra.mxu0 %v6541
      %7072 = vmatprep.subr.bf16.mxu0 %v6515
      %7073 = vmatpush2.bf16.msra.mxu0 %v6514
      %7074 = vmatprep.subr.bf16.mxu0 %v6512
      %7075 = vmatpush2.bf16.msra.mxu0 %v6511
      %7076 = vmatprep.subr.bf16.mxu0 %v6485
      %7077 = vmatpush2.bf16.msra.mxu0 %v6484
      %7078 = vmatprep.subr.bf16.mxu0 %v6482
      %7079 = vmatpush2.bf16.msra.mxu0 %v6481
      %7080 = vmatprep.mubr.bf16.mxu0 %v6966
      %7081 = vmatmul.mubr.bf16.gmra.mxu0 %v6965
      %v7082 = vpop.f32.mrf.mxu0
      %v7083 = vadd.f32 %v7030, %v7082
      %v7084 = vpop.f32.mrf.mxu0
      %v7085 = vadd.f32 %v7032, %v7084
      %v7086 = vpop.f32.mrf.mxu0
      %v7087 = vadd.f32 %v7034, %v7086
      %v7088 = vpop.f32.mrf.mxu0
      %v7089 = vadd.f32 %v7036, %v7088
      %7090 = vmatprep.mubr.bf16.mxu0 %v6973
      %7091 = vmatmul.mubr.bf16.gmra.mxu0 %v6972
      %v7092 = vpop.f32.mrf.mxu0
      %v7093 = vadd.f32 %v7040, %v7092
      %v7094 = vpop.f32.mrf.mxu0
      %v7095 = vadd.f32 %v7042, %v7094
      %v7096 = vpop.f32.mrf.mxu0
      %v7097 = vadd.f32 %v7044, %v7096
      %v7098 = vpop.f32.mrf.mxu0
      %v7099 = vadd.f32 %v7046, %v7098
      %7100 = vdwg.mxu0
      %7101 = vmatprep.subr.bf16.mxu0 %v6773
      %7102 = vmatpush1.bf16.msra.mxu0 %v6772
      %7103 = vmatprep.subr.bf16.mxu0 %v6770
      %7104 = vmatpush1.bf16.msra.mxu0 %v6769
      %7105 = vmatprep.subr.bf16.mxu0 %v6767
      %7106 = vmatpush1.bf16.msra.mxu0 %v6766
      %7107 = vmatprep.subr.bf16.mxu0 %v6764
      %7108 = vmatpush1.bf16.msra.mxu0 %v6763
      %7109 = vmatprep.subr.bf16.mxu0 %v6761
      %7110 = vmatpush1.bf16.msra.mxu0 %v6760
      %7111 = vmatprep.subr.bf16.mxu0 %v6758
      %7112 = vmatpush1.bf16.msra.mxu0 %v6757
      %7113 = vmatprep.subr.bf16.mxu0 %v6755
      %7114 = vmatpush1.bf16.msra.mxu0 %v6754
      %7115 = vmatprep.subr.bf16.mxu0 %v6752
      %7116 = vmatpush1.bf16.msra.mxu0 %v6751
      %7117 = vmatprep.subr.bf16.mxu0 %v6797
      %7118 = vmatpush2.bf16.msra.mxu0 %v6796
      %7119 = vmatprep.subr.bf16.mxu0 %v6794
      %7120 = vmatpush2.bf16.msra.mxu0 %v6793
      %7121 = vmatprep.subr.bf16.mxu0 %v6791
      %7122 = vmatpush2.bf16.msra.mxu0 %v6790
      %7123 = vmatprep.subr.bf16.mxu0 %v6788
      %7124 = vmatpush2.bf16.msra.mxu0 %v6787
      %7125 = vmatprep.subr.bf16.mxu0 %v6785
      %7126 = vmatpush2.bf16.msra.mxu0 %v6784
      %7127 = vmatprep.subr.bf16.mxu0 %v6782
      %7128 = vmatpush2.bf16.msra.mxu0 %v6781
      %7129 = vmatprep.subr.bf16.mxu0 %v6779
      %7130 = vmatpush2.bf16.msra.mxu0 %v6778
      %7131 = vmatprep.subr.bf16.mxu0 %v6776
      %7132 = vmatpush2.bf16.msra.mxu0 %v6775
      %7133 = vmatprep.mubr.bf16.mxu0 %v6968
      %7134 = vmatmul.mubr.bf16.gmra.mxu0 %v6967
      %v7135 = vpop.f32.mrf.mxu0
      %v7136 = vadd.f32 %v7083, %v7135
      %v7137 = vpop.f32.mrf.mxu0
      %v7138 = vadd.f32 %v7085, %v7137
      %v7139 = vpop.f32.mrf.mxu0
      %v7140 = vadd.f32 %v7087, %v7139
      %v7141 = vpop.f32.mrf.mxu0
      %v7142 = vadd.f32 %v7089, %v7141
      %7143 = vmatprep.mubr.bf16.mxu0 %v6975
      %7144 = vmatmul.mubr.bf16.gmra.mxu0 %v6974
      %v7145 = vpop.f32.mrf.mxu0
      %v7146 = vadd.f32 %v7093, %v7145
      %v7147 = vpop.f32.mrf.mxu0
      %v7148 = vadd.f32 %v7095, %v7147
      %v7149 = vpop.f32.mrf.mxu0
      %v7150 = vadd.f32 %v7097, %v7149
      %v7151 = vpop.f32.mrf.mxu0
      %v7152 = vadd.f32 %v7099, %v7151
      %7153 = vdwg.mxu0
      %7154 = vmatprep.subr.bf16.mxu0 0
      %7155 = vmatpush1.bf16.msra.mxu0 0
      %7156 = vmatprep.subr.bf16.mxu0 0
      %7157 = vmatpush1.bf16.msra.mxu0 0
      %7158 = vmatprep.subr.bf16.mxu0 0
      %7159 = vmatpush1.bf16.msra.mxu0 0
      %7160 = vmatprep.subr.bf16.mxu0 0
      %7161 = vmatpush1.bf16.msra.mxu0 0
      %7162 = vmatprep.subr.bf16.mxu0 0
      %7163 = vmatpush1.bf16.msra.mxu0 0
      %7164 = vmatprep.subr.bf16.mxu0 0
      %7165 = vmatpush1.bf16.msra.mxu0 0
      %7166 = vmatprep.subr.bf16.mxu0 %v6803
      %7167 = vmatpush1.bf16.msra.mxu0 %v6802
      %7168 = vmatprep.subr.bf16.mxu0 %v6800
      %7169 = vmatpush1.bf16.msra.mxu0 %v6799
      %7170 = vmatprep.subr.bf16.mxu0 0
      %7171 = vmatpush2.bf16.msra.mxu0 0
      %7172 = vmatprep.subr.bf16.mxu0 0
      %7173 = vmatpush2.bf16.msra.mxu0 0
      %7174 = vmatprep.subr.bf16.mxu0 0
      %7175 = vmatpush2.bf16.msra.mxu0 0
      %7176 = vmatprep.subr.bf16.mxu0 0
      %7177 = vmatpush2.bf16.msra.mxu0 0
      %7178 = vmatprep.subr.bf16.mxu0 0
      %7179 = vmatpush2.bf16.msra.mxu0 0
      %7180 = vmatprep.subr.bf16.mxu0 0
      %7181 = vmatpush2.bf16.msra.mxu0 0
      %7182 = vmatprep.subr.bf16.mxu0 0
      %7183 = vmatpush2.bf16.msra.mxu0 0
      %7184 = vmatprep.subr.bf16.mxu0 0
      %7185 = vmatpush2.bf16.msra.mxu0 0
      %7186 = vmatprep.mubr.bf16.mxu0 0
      %7187 = vmatmul.mubr.bf16.gmra.mxu0 %v6990
      %v7188 = vpop.f32.mrf.mxu0
      %v7189 = vadd.f32 %v7136, %v7188
      %v7190 = vpop.f32.mrf.mxu0
      %v7191 = vadd.f32 %v7138, %v7190
      %v7192 = vpop.f32.mrf.mxu0
      %v7193 = vadd.f32 %v7140, %v7192
      %v7194 = vpop.f32.mrf.mxu0
      %v7195 = vadd.f32 %v7142, %v7194
      %7196 = vmatprep.mubr.bf16.mxu0 0
      %7197 = vmatmul.mubr.bf16.gmra.mxu0 %v6993
      %v7198 = vpop.f32.mrf.mxu0
      %v7199 = vadd.f32 %v7146, %v7198
      %v7200 = vpop.f32.mrf.mxu0
      %v7201 = vadd.f32 %v7148, %v7200
      %v7202 = vpop.f32.mrf.mxu0
      %v7203 = vadd.f32 %v7150, %v7202
      %v7204 = vpop.f32.mrf.mxu0
      %v7205 = vadd.f32 %v7152, %v7204
      %7206 = vdwg.mxu0
      %7207 = vmatprep.subr.bf16.mxu0 %v6210
      %7208 = vmatpush1.bf16.msra.mxu0 %v6216
      %7209 = vmatprep.subr.bf16.mxu0 %v6202
      %7210 = vmatpush1.bf16.msra.mxu0 %v6213
      %7211 = vmatprep.subr.bf16.mxu0 %v6180
      %7212 = vmatpush1.bf16.msra.mxu0 %v6186
      %7213 = vmatprep.subr.bf16.mxu0 %v6172
      %7214 = vmatpush1.bf16.msra.mxu0 %v6183
      %7215 = vmatprep.subr.bf16.mxu0 %v6150
      %7216 = vmatpush1.bf16.msra.mxu0 %v6156
      %7217 = vmatprep.subr.bf16.mxu0 %v6142
      %7218 = vmatpush1.bf16.msra.mxu0 %v6153
      %7219 = vmatprep.subr.bf16.mxu0 %v6126
      %7220 = vmatpush1.bf16.msra.mxu0 %v6125
      %7221 = vmatprep.subr.bf16.mxu0 %v6122
      %7222 = vmatpush1.bf16.msra.mxu0 %v6121
      %7223 = vmatprep.subr.bf16.mxu0 %v6330
      %7224 = vmatpush2.bf16.msra.mxu0 %v6336
      %7225 = vmatprep.subr.bf16.mxu0 %v6322
      %7226 = vmatpush2.bf16.msra.mxu0 %v6333
      %7227 = vmatprep.subr.bf16.mxu0 %v6300
      %7228 = vmatpush2.bf16.msra.mxu0 %v6306
      %7229 = vmatprep.subr.bf16.mxu0 %v6292
      %7230 = vmatpush2.bf16.msra.mxu0 %v6303
      %7231 = vmatprep.subr.bf16.mxu0 %v6270
      %7232 = vmatpush2.bf16.msra.mxu0 %v6276
      %7233 = vmatprep.subr.bf16.mxu0 %v6262
      %7234 = vmatpush2.bf16.msra.mxu0 %v6273
      %7235 = vmatprep.subr.bf16.mxu0 %v6240
      %7236 = vmatpush2.bf16.msra.mxu0 %v6246
      %7237 = vmatprep.subr.bf16.mxu0 %v6232
      %7238 = vmatpush2.bf16.msra.mxu0 %v6243
      %7239 = vmatprep.mubr.bf16.mxu0 %v6964
      %7240 = vmatmul.mubr.bf16.gmra.mxu0 %v6963
      %v7241 = vpop.f32.mrf.mxu0
      %v7242 = vadd.f32 %v6902, %v7241
      %v7243 = vpop.f32.mrf.mxu0
      %v7244 = vadd.f32 %v6902, %v7243
      %v7245 = vpop.f32.mrf.mxu0
      %v7246 = vadd.f32 %v6907, %v7245
      %v7247 = vpop.f32.mrf.mxu0
      %v7248 = vadd.f32 %v6907, %v7247
      %7249 = vmatprep.mubr.bf16.mxu0 %v6971
      %7250 = vmatmul.mubr.bf16.gmra.mxu0 %v6970
      %v7251 = vpop.f32.mrf.mxu0
      %v7252 = vadd.f32 %v6912, %v7251
      %v7253 = vpop.f32.mrf.mxu0
      %v7254 = vadd.f32 %v6912, %v7253
      %v7255 = vpop.f32.mrf.mxu0
      %v7256 = vadd.f32 %v6917, %v7255
      %v7257 = vpop.f32.mrf.mxu0
      %v7258 = vadd.f32 %v6917, %v7257
      %7259 = vdwg.mxu0
      %7260 = vmatprep.subr.bf16.mxu0 %v6450
      %7261 = vmatpush1.bf16.msra.mxu0 %v6456
      %7262 = vmatprep.subr.bf16.mxu0 %v6442
      %7263 = vmatpush1.bf16.msra.mxu0 %v6453
      %7264 = vmatprep.subr.bf16.mxu0 %v6420
      %7265 = vmatpush1.bf16.msra.mxu0 %v6426
      %7266 = vmatprep.subr.bf16.mxu0 %v6412
      %7267 = vmatpush1.bf16.msra.mxu0 %v6423
      %7268 = vmatprep.subr.bf16.mxu0 %v6390
      %7269 = vmatpush1.bf16.msra.mxu0 %v6396
      %7270 = vmatprep.subr.bf16.mxu0 %v6382
      %7271 = vmatpush1.bf16.msra.mxu0 %v6393
      %7272 = vmatprep.subr.bf16.mxu0 %v6360
      %7273 = vmatpush1.bf16.msra.mxu0 %v6366
      %7274 = vmatprep.subr.bf16.mxu0 %v6352
      %7275 = vmatpush1.bf16.msra.mxu0 %v6363
      %7276 = vmatprep.subr.bf16.mxu0 %v6570
      %7277 = vmatpush2.bf16.msra.mxu0 %v6576
      %7278 = vmatprep.subr.bf16.mxu0 %v6562
      %7279 = vmatpush2.bf16.msra.mxu0 %v6573
      %7280 = vmatprep.subr.bf16.mxu0 %v6540
      %7281 = vmatpush2.bf16.msra.mxu0 %v6546
      %7282 = vmatprep.subr.bf16.mxu0 %v6532
      %7283 = vmatpush2.bf16.msra.mxu0 %v6543
      %7284 = vmatprep.subr.bf16.mxu0 %v6510
      %7285 = vmatpush2.bf16.msra.mxu0 %v6516
      %7286 = vmatprep.subr.bf16.mxu0 %v6502
      %7287 = vmatpush2.bf16.msra.mxu0 %v6513
      %7288 = vmatprep.subr.bf16.mxu0 %v6480
      %7289 = vmatpush2.bf16.msra.mxu0 %v6486
      %7290 = vmatprep.subr.bf16.mxu0 %v6472
      %7291 = vmatpush2.bf16.msra.mxu0 %v6483
      %7292 = vmatprep.mubr.bf16.mxu0 %v6966
      %7293 = vmatmul.mubr.bf16.gmra.mxu0 %v6965
      %v7294 = vpop.f32.mrf.mxu0
      %v7295 = vadd.f32 %v7242, %v7294
      %v7296 = vpop.f32.mrf.mxu0
      %v7297 = vadd.f32 %v7244, %v7296
      %v7298 = vpop.f32.mrf.mxu0
      %v7299 = vadd.f32 %v7246, %v7298
      %v7300 = vpop.f32.mrf.mxu0
      %v7301 = vadd.f32 %v7248, %v7300
      %7302 = vmatprep.mubr.bf16.mxu0 %v6973
      %7303 = vmatmul.mubr.bf16.gmra.mxu0 %v6972
      %v7304 = vpop.f32.mrf.mxu0
      %v7305 = vadd.f32 %v7252, %v7304
      %v7306 = vpop.f32.mrf.mxu0
      %v7307 = vadd.f32 %v7254, %v7306
      %v7308 = vpop.f32.mrf.mxu0
      %v7309 = vadd.f32 %v7256, %v7308
      %v7310 = vpop.f32.mrf.mxu0
      %v7311 = vadd.f32 %v7258, %v7310
      %7312 = vdwg.mxu0
      %7313 = vmatprep.subr.bf16.mxu0 %v6670
      %7314 = vmatpush1.bf16.msra.mxu0 %v6774
      %7315 = vmatprep.subr.bf16.mxu0 %v6662
      %7316 = vmatpush1.bf16.msra.mxu0 %v6771
      %7317 = vmatprep.subr.bf16.mxu0 %v6654
      %7318 = vmatpush1.bf16.msra.mxu0 %v6768
      %7319 = vmatprep.subr.bf16.mxu0 %v6646
      %7320 = vmatpush1.bf16.msra.mxu0 %v6765
      %7321 = vmatprep.subr.bf16.mxu0 %v6638
      %7322 = vmatpush1.bf16.msra.mxu0 %v6762
      %7323 = vmatprep.subr.bf16.mxu0 %v6630
      %7324 = vmatpush1.bf16.msra.mxu0 %v6759
      %7325 = vmatprep.subr.bf16.mxu0 %v6622
      %7326 = vmatpush1.bf16.msra.mxu0 %v6756
      %7327 = vmatprep.subr.bf16.mxu0 %v6614
      %7328 = vmatpush1.bf16.msra.mxu0 %v6753
      %7329 = vmatprep.subr.bf16.mxu0 %v6734
      %7330 = vmatpush2.bf16.msra.mxu0 %v6798
      %7331 = vmatprep.subr.bf16.mxu0 %v6726
      %7332 = vmatpush2.bf16.msra.mxu0 %v6795
      %7333 = vmatprep.subr.bf16.mxu0 %v6718
      %7334 = vmatpush2.bf16.msra.mxu0 %v6792
      %7335 = vmatprep.subr.bf16.mxu0 %v6710
      %7336 = vmatpush2.bf16.msra.mxu0 %v6789
      %7337 = vmatprep.subr.bf16.mxu0 %v6702
      %7338 = vmatpush2.bf16.msra.mxu0 %v6786
      %7339 = vmatprep.subr.bf16.mxu0 %v6694
      %7340 = vmatpush2.bf16.msra.mxu0 %v6783
      %7341 = vmatprep.subr.bf16.mxu0 %v6686
      %7342 = vmatpush2.bf16.msra.mxu0 %v6780
      %7343 = vmatprep.subr.bf16.mxu0 %v6678
      %7344 = vmatpush2.bf16.msra.mxu0 %v6777
      %7345 = vmatprep.mubr.bf16.mxu0 %v6968
      %7346 = vmatmul.mubr.bf16.gmra.mxu0 %v6967
      %v7347 = vpop.f32.mrf.mxu0
      %v7348 = vadd.f32 %v7295, %v7347
      %v7349 = vpop.f32.mrf.mxu0
      %v7350 = vadd.f32 %v7297, %v7349
      %v7351 = vpop.f32.mrf.mxu0
      %v7352 = vadd.f32 %v7299, %v7351
      %v7353 = vpop.f32.mrf.mxu0
      %v7354 = vadd.f32 %v7301, %v7353
      %7355 = vmatprep.mubr.bf16.mxu0 %v6975
      %7356 = vmatmul.mubr.bf16.gmra.mxu0 %v6974
      %v7357 = vpop.f32.mrf.mxu0
      %v7358 = vadd.f32 %v7305, %v7357
      %v7359 = vpop.f32.mrf.mxu0
      %v7360 = vadd.f32 %v7307, %v7359
      %v7361 = vpop.f32.mrf.mxu0
      %v7362 = vadd.f32 %v7309, %v7361
      %v7363 = vpop.f32.mrf.mxu0
      %v7364 = vadd.f32 %v7311, %v7363
      %7365 = vdwg.mxu0
      %7366 = vmatprep.subr.bf16.mxu0 0
      %7367 = vmatpush1.bf16.msra.mxu0 0
      %7368 = vmatprep.subr.bf16.mxu0 0
      %7369 = vmatpush1.bf16.msra.mxu0 0
      %7370 = vmatprep.subr.bf16.mxu0 0
      %7371 = vmatpush1.bf16.msra.mxu0 0
      %7372 = vmatprep.subr.bf16.mxu0 0
      %7373 = vmatpush1.bf16.msra.mxu0 0
      %7374 = vmatprep.subr.bf16.mxu0 0
      %7375 = vmatpush1.bf16.msra.mxu0 0
      %7376 = vmatprep.subr.bf16.mxu0 0
      %7377 = vmatpush1.bf16.msra.mxu0 0
      %7378 = vmatprep.subr.bf16.mxu0 %v6750
      %7379 = vmatpush1.bf16.msra.mxu0 %v6804
      %7380 = vmatprep.subr.bf16.mxu0 %v6742
      %7381 = vmatpush1.bf16.msra.mxu0 %v6801
      %7382 = vmatprep.subr.bf16.mxu0 0
      %7383 = vmatpush2.bf16.msra.mxu0 0
      %7384 = vmatprep.subr.bf16.mxu0 0
      %7385 = vmatpush2.bf16.msra.mxu0 0
      %7386 = vmatprep.subr.bf16.mxu0 0
      %7387 = vmatpush2.bf16.msra.mxu0 0
      %7388 = vmatprep.subr.bf16.mxu0 0
      %7389 = vmatpush2.bf16.msra.mxu0 0
      %7390 = vmatprep.subr.bf16.mxu0 0
      %7391 = vmatpush2.bf16.msra.mxu0 0
      %7392 = vmatprep.subr.bf16.mxu0 0
      %7393 = vmatpush2.bf16.msra.mxu0 0
      %7394 = vmatprep.subr.bf16.mxu0 0
      %7395 = vmatpush2.bf16.msra.mxu0 0
      %7396 = vmatprep.subr.bf16.mxu0 0
      %7397 = vmatpush2.bf16.msra.mxu0 0
      %7398 = vmatprep.mubr.bf16.mxu0 0
      %7399 = vmatmul.mubr.bf16.gmra.mxu0 %v6990
      %v7400 = vpop.f32.mrf.mxu0
      %v7401 = vadd.f32 %v7348, %v7400
      %v7402 = vpop.f32.mrf.mxu0
      %v7403 = vadd.f32 %v7350, %v7402
      %v7404 = vpop.f32.mrf.mxu0
      %v7405 = vadd.f32 %v7352, %v7404
      %v7406 = vpop.f32.mrf.mxu0
      %v7407 = vadd.f32 %v7354, %v7406
      %7408 = vmatprep.mubr.bf16.mxu0 0
      %7409 = vmatmul.mubr.bf16.gmra.mxu0 %v6993
      %v7410 = vpop.f32.mrf.mxu0
      %v7411 = vadd.f32 %v7358, %v7410
      %v7412 = vpop.f32.mrf.mxu0
      %v7413 = vadd.f32 %v7360, %v7412
      %v7414 = vpop.f32.mrf.mxu0
      %v7415 = vadd.f32 %v7362, %v7414
      %v7416 = vpop.f32.mrf.mxu0
      %v7417 = vadd.f32 %v7364, %v7416
      %7418 = vdwg.mxu0
      %v7419 = vtanh.pop %v7189
      %v7420 = vtanh.pop %v7191
      %v7421 = vtanh.pop %v7401
      %v7422 = vtanh.pop %v7403
      %v7423 = vtanh.pop %v7193
      %v7424 = vtanh.pop %v7195
      %v7425 = vtanh.pop %v7405
      %v7426 = vtanh.pop %v7407
      %v7427 = vtanh.pop %v7199
      %v7428 = vtanh.pop %v7201
      %v7429 = vtanh.pop %v7411
      %v7430 = vtanh.pop %v7413
      %v7431 = vtanh.pop %v7203
      %v7432 = vtanh.pop %v7205
      %v7433 = vtanh.pop %v7415
      %v7434 = vtanh.pop %v7417
      %v7435 = vmul.f32 %v7419, %v1587
      %v7436 = vmul.f32 %v7420, %v1591
      %v7437 = vmul.f32 %v7421, %v1595
      %v7438 = vmul.f32 %v7422, %v1599
      %v7439 = vmul.f32 %v7423, %v1587
      %v7440 = vmul.f32 %v7424, %v1591
      %v7441 = vmul.f32 %v7425, %v1595
      %v7442 = vmul.f32 %v7426, %v1599
      %v7443 = vmul.f32 %v7427, %v1587
      %v7444 = vmul.f32 %v7428, %v1591
      %v7445 = vmul.f32 %v7429, %v1595
      %v7446 = vmul.f32 %v7430, %v1599
      %v7447 = vmul.f32 %v7431, %v1587
      %v7448 = vmul.f32 %v7432, %v1591
      %v7449 = vmul.f32 %v7433, %v1595
      %v7450 = vmul.f32 %v7434, %v1599
      %v7451 = vpack.c.bf16 %v7439, %v7435
      %v7452 = vpack.c.bf16 %v7440, %v7436
      %v7453 = vpack.c.bf16 %v7441, %v7437
      %v7454 = vpack.c.bf16 %v7442, %v7438
      %v7455 = vpack.c.bf16 %v7447, %v7443
      %v7456 = vpack.c.bf16 %v7448, %v7444
      %v7457 = vpack.c.bf16 %v7449, %v7445
      %v7458 = vpack.c.bf16 %v7450, %v7446
      %v7467 = vunpack.c.l.b16 %v7451
      %v7468 = vunpack.c.l.b16 %v7452
      %v7469 = vunpack.c.l.b16 %v7453
      %v7470 = vunpack.c.l.b16 %v7454
      %v7471 = vunpack.c.h.b16 %v7451
      %v7472 = vunpack.c.h.b16 %v7452
      %v7473 = vunpack.c.h.b16 %v7453
      %v7474 = vunpack.c.h.b16 %v7454
      %v7475 = vunpack.c.l.b16 %v7455
      %v7476 = vunpack.c.l.b16 %v7456
      %v7477 = vunpack.c.l.b16 %v7457
      %v7478 = vunpack.c.l.b16 %v7458
      %v7479 = vunpack.c.h.b16 %v7455
      %v7480 = vunpack.c.h.b16 %v7456
      %v7481 = vunpack.c.h.b16 %v7457
      %v7482 = vunpack.c.h.b16 %v7458
      %v7483 = vpack.c.b16 %v7468, %v7467
      %v7484 = vpack.c.b16 %v7470, %v7469
      %v7485 = vpack.c.b16 %v7472, %v7471
      %v7486 = vpack.c.b16 %v7474, %v7473
      %v7487 = vpack.c.b16 %v7476, %v7475
      %v7488 = vpack.c.b16 %v7478, %v7477
      %v7489 = vpack.c.b16 %v7480, %v7479
      %v7490 = vpack.c.b16 %v7482, %v7481
      %7491 = vrot.lane.b32.xlu0 %v7483, 42
      %v7492 = vpop.permute.xlu0 %7491
      %7493 = vrot.lane.b32.xlu0 %v7484, 42
      %v7494 = vpop.permute.xlu0 %7493
      %7495 = vrot.lane.b32.xlu0 %v7485, 42
      %v7496 = vpop.permute.xlu0 %7495
      %7497 = vrot.lane.b32.xlu0 %v7486, 42
      %v7498 = vpop.permute.xlu0 %7497
      %7499 = vrot.lane.b32.xlu0 %v7487, 42
      %v7500 = vpop.permute.xlu0 %7499
      %7501 = vrot.lane.b32.xlu0 %v7488, 42
      %v7502 = vpop.permute.xlu0 %7501
      %7503 = vrot.lane.b32.xlu0 %v7489, 42
      %v7504 = vpop.permute.xlu0 %7503
      %7505 = vrot.lane.b32.xlu0 %v7490, 42
      %v7506 = vpop.permute.xlu0 %7505
      %v7507 = vrot.slane %v7492, 4
      %v7508 = vrot.slane %v7494, 4
      %v7509 = vrot.slane %v7496, 4
      %v7510 = vrot.slane %v7498, 4
      %v7511 = vrot.slane %v7500, 4
      %v7512 = vrot.slane %v7502, 4
      %v7513 = vrot.slane %v7504, 4
      %v7514 = vrot.slane %v7506, 4
      %v7515 = vsel %vm1684, %v7507, %v7492
      %v7516 = vsel %vm1686, %v7507, %v7508
      %v7517 = vsel %vm1684, %v7516, %v7494
      %v7518 = vsel %vm1684, %v7509, %v7496
      %v7519 = vsel %vm1686, %v7509, %v7510
      %v7520 = vsel %vm1684, %v7519, %v7498
      %v7521 = vsel %vm1684, %v7511, %v7500
      %v7522 = vsel %vm1686, %v7511, %v7512
      %v7523 = vsel %vm1684, %v7522, %v7502
      %v7524 = vsel %vm1684, %v7513, %v7504
      %v7525 = vsel %vm1686, %v7513, %v7514
      %v7526 = vsel %vm1684, %v7525, %v7506
      %7535 = vst.msk [vmem:[#allocation2] sm:$0xff] %vm1708, %v7515
      %7536 = vst.msk [vmem:[#allocation2 + $0x8] sm:$0xff] %vm1711, %v7517
      %7537 = vst.msk [vmem:[#allocation2 + $0x10] sm:$0xff] %vm1708, %v7518
      %7538 = vst.msk [vmem:[#allocation2 + $0x18] sm:$0xff] %vm1711, %v7520
      %7539 = vst.msk [vmem:[#allocation2 + $0x20] sm:$0xff] %vm1708, %v7521
      %7540 = vst.msk [vmem:[#allocation2 + $0x28] sm:$0xff] %vm1711, %v7523
      %7541 = vst.msk [vmem:[#allocation2 + $0x30] sm:$0xff] %vm1708, %v7524
      %7542 = vst.msk [vmem:[#allocation2 + $0x38] sm:$0xff] %vm1711, %v7526
      %v7543 = vld [vmem:[#allocation2] sm:$0xff]
      %v7544 = vld [vmem:[#allocation2 + $0x8] sm:$0xff]
      %v7545 = vld [vmem:[#allocation2 + $0x10] sm:$0xff]
      %v7546 = vld [vmem:[#allocation2 + $0x18] sm:$0xff]
      %v7547 = vld [vmem:[#allocation2 + $0x20] sm:$0xff]
      %v7548 = vld [vmem:[#allocation2 + $0x28] sm:$0xff]
      %v7549 = vld [vmem:[#allocation2 + $0x30] sm:$0xff]
      %v7550 = vld [vmem:[#allocation2 + $0x38] sm:$0xff]
      %v7559 = vunpack.c.l.b16 %v7543
      %v7560 = vunpack.c.h.b16 %v7543
      %v7561 = vunpack.c.l.b16 %v7544
      %v7562 = vunpack.c.h.b16 %v7544
      %v7563 = vunpack.c.l.b16 %v7545
      %v7564 = vunpack.c.h.b16 %v7545
      %v7565 = vunpack.c.l.b16 %v7546
      %v7566 = vunpack.c.h.b16 %v7546
      %v7567 = vunpack.c.l.b16 %v7547
      %v7568 = vunpack.c.h.b16 %v7547
      %v7569 = vunpack.c.l.b16 %v7548
      %v7570 = vunpack.c.h.b16 %v7548
      %v7571 = vunpack.c.l.b16 %v7549
      %v7572 = vunpack.c.h.b16 %v7549
      %v7573 = vunpack.c.l.b16 %v7550
      %v7574 = vunpack.c.h.b16 %v7550
      %v7575 = vpack.c.b16 %v7563, %v7559
      %v7576 = vpack.c.b16 %v7564, %v7560
      %v7577 = vpack.c.b16 %v7565, %v7561
      %v7578 = vpack.c.b16 %v7566, %v7562
      %v7579 = vpack.c.b16 %v7571, %v7567
      %v7580 = vpack.c.b16 %v7572, %v7568
      %v7581 = vpack.c.b16 %v7573, %v7569
      %v7582 = vpack.c.b16 %v7574, %v7570
      %7591 = vrot.lane.b32.xlu0 %v7575, 127
      %v7592 = vpop.permute.xlu0 %7591
      %7593 = vrot.lane.b32.xlu0 %v7576, 127
      %v7594 = vpop.permute.xlu0 %7593
      %7595 = vrot.lane.b32.xlu0 %v7577, 127
      %v7596 = vpop.permute.xlu0 %7595
      %7597 = vrot.lane.b32.xlu0 %v7578, 127
      %v7598 = vpop.permute.xlu0 %7597
      %7599 = vrot.lane.b32.xlu0 %v7579, 127
      %v7600 = vpop.permute.xlu0 %7599
      %7601 = vrot.lane.b32.xlu0 %v7580, 127
      %v7602 = vpop.permute.xlu0 %7601
      %7603 = vrot.lane.b32.xlu0 %v7581, 127
      %v7604 = vpop.permute.xlu0 %7603
      %7605 = vrot.lane.b32.xlu0 %v7582, 127
      %v7606 = vpop.permute.xlu0 %7605
      %v7607 = vsel %vm283, %v7592, %v7594
      %v7608 = vsel %vm283, %v7594, %v7596
      %v7609 = vsel %vm283, %v7596, %v7598
      %v7610 = vsel %vm283, %v7600, %v7602
      %v7611 = vsel %vm283, %v7602, %v7604
      %v7612 = vsel %vm283, %v7604, %v7606
      %7621 = vrot.lane.b32.xlu0 %v7575, 126
      %v7622 = vpop.permute.xlu0 %7621
      %7623 = vrot.lane.b32.xlu0 %v7576, 126
      %v7624 = vpop.permute.xlu0 %7623
      %7625 = vrot.lane.b32.xlu0 %v7577, 126
      %v7626 = vpop.permute.xlu0 %7625
      %7627 = vrot.lane.b32.xlu0 %v7578, 126
      %v7628 = vpop.permute.xlu0 %7627
      %7629 = vrot.lane.b32.xlu0 %v7579, 126
      %v7630 = vpop.permute.xlu0 %7629
      %7631 = vrot.lane.b32.xlu0 %v7580, 126
      %v7632 = vpop.permute.xlu0 %7631
      %7633 = vrot.lane.b32.xlu0 %v7581, 126
      %v7634 = vpop.permute.xlu0 %7633
      %7635 = vrot.lane.b32.xlu0 %v7582, 126
      %v7636 = vpop.permute.xlu0 %7635
      %v7637 = vsel %vm314, %v7622, %v7624
      %v7638 = vsel %vm314, %v7624, %v7626
      %v7639 = vsel %vm314, %v7626, %v7628
      %v7640 = vsel %vm314, %v7630, %v7632
      %v7641 = vsel %vm314, %v7632, %v7634
      %v7642 = vsel %vm314, %v7634, %v7636
      %7651 = vrot.lane.b32.xlu0 %v7575, 125
      %v7652 = vpop.permute.xlu0 %7651
      %7653 = vrot.lane.b32.xlu0 %v7576, 125
      %v7654 = vpop.permute.xlu0 %7653
      %7655 = vrot.lane.b32.xlu0 %v7577, 125
      %v7656 = vpop.permute.xlu0 %7655
      %7657 = vrot.lane.b32.xlu0 %v7578, 125
      %v7658 = vpop.permute.xlu0 %7657
      %7659 = vrot.lane.b32.xlu0 %v7579, 125
      %v7660 = vpop.permute.xlu0 %7659
      %7661 = vrot.lane.b32.xlu0 %v7580, 125
      %v7662 = vpop.permute.xlu0 %7661
      %7663 = vrot.lane.b32.xlu0 %v7581, 125
      %v7664 = vpop.permute.xlu0 %7663
      %7665 = vrot.lane.b32.xlu0 %v7582, 125
      %v7666 = vpop.permute.xlu0 %7665
      %v7667 = vsel %vm345, %v7652, %v7654
      %v7668 = vsel %vm345, %v7654, %v7656
      %v7669 = vsel %vm345, %v7656, %v7658
      %v7670 = vsel %vm345, %v7660, %v7662
      %v7671 = vsel %vm345, %v7662, %v7664
      %v7672 = vsel %vm345, %v7664, %v7666
      %7681 = vrot.lane.b32.xlu0 %v7575, 124
      %v7682 = vpop.permute.xlu0 %7681
      %7683 = vrot.lane.b32.xlu0 %v7576, 124
      %v7684 = vpop.permute.xlu0 %7683
      %7685 = vrot.lane.b32.xlu0 %v7577, 124
      %v7686 = vpop.permute.xlu0 %7685
      %7687 = vrot.lane.b32.xlu0 %v7578, 124
      %v7688 = vpop.permute.xlu0 %7687
      %7689 = vrot.lane.b32.xlu0 %v7579, 124
      %v7690 = vpop.permute.xlu0 %7689
      %7691 = vrot.lane.b32.xlu0 %v7580, 124
      %v7692 = vpop.permute.xlu0 %7691
      %7693 = vrot.lane.b32.xlu0 %v7581, 124
      %v7694 = vpop.permute.xlu0 %7693
      %7695 = vrot.lane.b32.xlu0 %v7582, 124
      %v7696 = vpop.permute.xlu0 %7695
      %v7697 = vsel %vm376, %v7682, %v7684
      %v7698 = vsel %vm376, %v7684, %v7686
      %v7699 = vsel %vm376, %v7686, %v7688
      %v7700 = vsel %vm376, %v7690, %v7692
      %v7701 = vsel %vm376, %v7692, %v7694
      %v7702 = vsel %vm376, %v7694, %v7696
      %7711 = vrot.lane.b32.xlu0 %v7575, 108
      %v7712 = vpop.permute.xlu0 %7711
      %7713 = vrot.lane.b32.xlu0 %v7576, 108
      %v7714 = vpop.permute.xlu0 %7713
      %7715 = vrot.lane.b32.xlu0 %v7577, 108
      %v7716 = vpop.permute.xlu0 %7715
      %7717 = vrot.lane.b32.xlu0 %v7578, 108
      %v7718 = vpop.permute.xlu0 %7717
      %7719 = vrot.lane.b32.xlu0 %v7579, 108
      %v7720 = vpop.permute.xlu0 %7719
      %7721 = vrot.lane.b32.xlu0 %v7580, 108
      %v7722 = vpop.permute.xlu0 %7721
      %7723 = vrot.lane.b32.xlu0 %v7581, 108
      %v7724 = vpop.permute.xlu0 %7723
      %7725 = vrot.lane.b32.xlu0 %v7582, 108
      %v7726 = vpop.permute.xlu0 %7725
      %v7727 = vsel %vm407, %v7712, %v7714
      %v7728 = vsel %vm407, %v7714, %v7716
      %v7729 = vsel %vm407, %v7716, %v7718
      %v7730 = vsel %vm407, %v7720, %v7722
      %v7731 = vsel %vm407, %v7722, %v7724
      %v7732 = vsel %vm407, %v7724, %v7726
      %7741 = vrot.lane.b32.xlu0 %v7575, 107
      %v7742 = vpop.permute.xlu0 %7741
      %7743 = vrot.lane.b32.xlu0 %v7576, 107
      %v7744 = vpop.permute.xlu0 %7743
      %7745 = vrot.lane.b32.xlu0 %v7577, 107
      %v7746 = vpop.permute.xlu0 %7745
      %7747 = vrot.lane.b32.xlu0 %v7578, 107
      %v7748 = vpop.permute.xlu0 %7747
      %7749 = vrot.lane.b32.xlu0 %v7579, 107
      %v7750 = vpop.permute.xlu0 %7749
      %7751 = vrot.lane.b32.xlu0 %v7580, 107
      %v7752 = vpop.permute.xlu0 %7751
      %7753 = vrot.lane.b32.xlu0 %v7581, 107
      %v7754 = vpop.permute.xlu0 %7753
      %7755 = vrot.lane.b32.xlu0 %v7582, 107
      %v7756 = vpop.permute.xlu0 %7755
      %v7757 = vsel %vm438, %v7742, %v7744
      %v7758 = vsel %vm438, %v7744, %v7746
      %v7759 = vsel %vm438, %v7746, %v7748
      %v7760 = vsel %vm438, %v7750, %v7752
      %v7761 = vsel %vm438, %v7752, %v7754
      %v7762 = vsel %vm438, %v7754, %v7756
      %7771 = vrot.lane.b32.xlu0 %v7575, 106
      %v7772 = vpop.permute.xlu0 %7771
      %7773 = vrot.lane.b32.xlu0 %v7576, 106
      %v7774 = vpop.permute.xlu0 %7773
      %7775 = vrot.lane.b32.xlu0 %v7577, 106
      %v7776 = vpop.permute.xlu0 %7775
      %7777 = vrot.lane.b32.xlu0 %v7578, 106
      %v7778 = vpop.permute.xlu0 %7777
      %7779 = vrot.lane.b32.xlu0 %v7579, 106
      %v7780 = vpop.permute.xlu0 %7779
      %7781 = vrot.lane.b32.xlu0 %v7580, 106
      %v7782 = vpop.permute.xlu0 %7781
      %7783 = vrot.lane.b32.xlu0 %v7581, 106
      %v7784 = vpop.permute.xlu0 %7783
      %7785 = vrot.lane.b32.xlu0 %v7582, 106
      %v7786 = vpop.permute.xlu0 %7785
      %v7787 = vsel %vm469, %v7772, %v7774
      %v7788 = vsel %vm469, %v7774, %v7776
      %v7789 = vsel %vm469, %v7776, %v7778
      %v7790 = vsel %vm469, %v7780, %v7782
      %v7791 = vsel %vm469, %v7782, %v7784
      %v7792 = vsel %vm469, %v7784, %v7786
      %7801 = vrot.lane.b32.xlu0 %v7575, 105
      %v7802 = vpop.permute.xlu0 %7801
      %7803 = vrot.lane.b32.xlu0 %v7576, 105
      %v7804 = vpop.permute.xlu0 %7803
      %7805 = vrot.lane.b32.xlu0 %v7577, 105
      %v7806 = vpop.permute.xlu0 %7805
      %7807 = vrot.lane.b32.xlu0 %v7578, 105
      %v7808 = vpop.permute.xlu0 %7807
      %7809 = vrot.lane.b32.xlu0 %v7579, 105
      %v7810 = vpop.permute.xlu0 %7809
      %7811 = vrot.lane.b32.xlu0 %v7580, 105
      %v7812 = vpop.permute.xlu0 %7811
      %7813 = vrot.lane.b32.xlu0 %v7581, 105
      %v7814 = vpop.permute.xlu0 %7813
      %7815 = vrot.lane.b32.xlu0 %v7582, 105
      %v7816 = vpop.permute.xlu0 %7815
      %v7817 = vsel %vm500, %v7802, %v7804
      %v7818 = vsel %vm500, %v7804, %v7806
      %v7819 = vsel %vm500, %v7806, %v7808
      %v7820 = vsel %vm500, %v7810, %v7812
      %v7821 = vsel %vm500, %v7812, %v7814
      %v7822 = vsel %vm500, %v7814, %v7816
      %7831 = vrot.lane.b32.xlu0 %v7575, 104
      %v7832 = vpop.permute.xlu0 %7831
      %7833 = vrot.lane.b32.xlu0 %v7576, 104
      %v7834 = vpop.permute.xlu0 %7833
      %7835 = vrot.lane.b32.xlu0 %v7577, 104
      %v7836 = vpop.permute.xlu0 %7835
      %7837 = vrot.lane.b32.xlu0 %v7578, 104
      %v7838 = vpop.permute.xlu0 %7837
      %7839 = vrot.lane.b32.xlu0 %v7579, 104
      %v7840 = vpop.permute.xlu0 %7839
      %7841 = vrot.lane.b32.xlu0 %v7580, 104
      %v7842 = vpop.permute.xlu0 %7841
      %7843 = vrot.lane.b32.xlu0 %v7581, 104
      %v7844 = vpop.permute.xlu0 %7843
      %7845 = vrot.lane.b32.xlu0 %v7582, 104
      %v7846 = vpop.permute.xlu0 %7845
      %v7847 = vsel %vm531, %v7832, %v7834
      %v7848 = vsel %vm531, %v7834, %v7836
      %v7849 = vsel %vm531, %v7836, %v7838
      %v7850 = vsel %vm531, %v7840, %v7842
      %v7851 = vsel %vm531, %v7842, %v7844
      %v7852 = vsel %vm531, %v7844, %v7846
      %7861 = vrot.lane.b32.xlu0 %v7575, 88
      %v7862 = vpop.permute.xlu0 %7861
      %7863 = vrot.lane.b32.xlu0 %v7576, 88
      %v7864 = vpop.permute.xlu0 %7863
      %7865 = vrot.lane.b32.xlu0 %v7577, 88
      %v7866 = vpop.permute.xlu0 %7865
      %7867 = vrot.lane.b32.xlu0 %v7578, 88
      %v7868 = vpop.permute.xlu0 %7867
      %7869 = vrot.lane.b32.xlu0 %v7579, 88
      %v7870 = vpop.permute.xlu0 %7869
      %7871 = vrot.lane.b32.xlu0 %v7580, 88
      %v7872 = vpop.permute.xlu0 %7871
      %7873 = vrot.lane.b32.xlu0 %v7581, 88
      %v7874 = vpop.permute.xlu0 %7873
      %7875 = vrot.lane.b32.xlu0 %v7582, 88
      %v7876 = vpop.permute.xlu0 %7875
      %v7877 = vsel %vm562, %v7862, %v7864
      %v7878 = vsel %vm562, %v7864, %v7866
      %v7879 = vsel %vm562, %v7866, %v7868
      %v7880 = vsel %vm562, %v7870, %v7872
      %v7881 = vsel %vm562, %v7872, %v7874
      %v7882 = vsel %vm562, %v7874, %v7876
      %7891 = vrot.lane.b32.xlu0 %v7575, 87
      %v7892 = vpop.permute.xlu0 %7891
      %7893 = vrot.lane.b32.xlu0 %v7576, 87
      %v7894 = vpop.permute.xlu0 %7893
      %7895 = vrot.lane.b32.xlu0 %v7577, 87
      %v7896 = vpop.permute.xlu0 %7895
      %7897 = vrot.lane.b32.xlu0 %v7578, 87
      %v7898 = vpop.permute.xlu0 %7897
      %7899 = vrot.lane.b32.xlu0 %v7579, 87
      %v7900 = vpop.permute.xlu0 %7899
      %7901 = vrot.lane.b32.xlu0 %v7580, 87
      %v7902 = vpop.permute.xlu0 %7901
      %7903 = vrot.lane.b32.xlu0 %v7581, 87
      %v7904 = vpop.permute.xlu0 %7903
      %7905 = vrot.lane.b32.xlu0 %v7582, 87
      %v7906 = vpop.permute.xlu0 %7905
      %v7907 = vsel %vm593, %v7892, %v7894
      %v7908 = vsel %vm593, %v7894, %v7896
      %v7909 = vsel %vm593, %v7896, %v7898
      %v7910 = vsel %vm593, %v7900, %v7902
      %v7911 = vsel %vm593, %v7902, %v7904
      %v7912 = vsel %vm593, %v7904, %v7906
      %7921 = vrot.lane.b32.xlu0 %v7575, 86
      %v7922 = vpop.permute.xlu0 %7921
      %7923 = vrot.lane.b32.xlu0 %v7576, 86
      %v7924 = vpop.permute.xlu0 %7923
      %7925 = vrot.lane.b32.xlu0 %v7577, 86
      %v7926 = vpop.permute.xlu0 %7925
      %7927 = vrot.lane.b32.xlu0 %v7578, 86
      %v7928 = vpop.permute.xlu0 %7927
      %7929 = vrot.lane.b32.xlu0 %v7579, 86
      %v7930 = vpop.permute.xlu0 %7929
      %7931 = vrot.lane.b32.xlu0 %v7580, 86
      %v7932 = vpop.permute.xlu0 %7931
      %7933 = vrot.lane.b32.xlu0 %v7581, 86
      %v7934 = vpop.permute.xlu0 %7933
      %7935 = vrot.lane.b32.xlu0 %v7582, 86
      %v7936 = vpop.permute.xlu0 %7935
      %v7937 = vsel %vm624, %v7922, %v7924
      %v7938 = vsel %vm624, %v7924, %v7926
      %v7939 = vsel %vm624, %v7926, %v7928
      %v7940 = vsel %vm624, %v7930, %v7932
      %v7941 = vsel %vm624, %v7932, %v7934
      %v7942 = vsel %vm624, %v7934, %v7936
      %7951 = vrot.lane.b32.xlu0 %v7575, 85
      %v7952 = vpop.permute.xlu0 %7951
      %7953 = vrot.lane.b32.xlu0 %v7576, 85
      %v7954 = vpop.permute.xlu0 %7953
      %7955 = vrot.lane.b32.xlu0 %v7577, 85
      %v7956 = vpop.permute.xlu0 %7955
      %7957 = vrot.lane.b32.xlu0 %v7578, 85
      %v7958 = vpop.permute.xlu0 %7957
      %7959 = vrot.lane.b32.xlu0 %v7579, 85
      %v7960 = vpop.permute.xlu0 %7959
      %7961 = vrot.lane.b32.xlu0 %v7580, 85
      %v7962 = vpop.permute.xlu0 %7961
      %7963 = vrot.lane.b32.xlu0 %v7581, 85
      %v7964 = vpop.permute.xlu0 %7963
      %7965 = vrot.lane.b32.xlu0 %v7582, 85
      %v7966 = vpop.permute.xlu0 %7965
      %v7967 = vsel %vm655, %v7952, %v7954
      %v7968 = vsel %vm655, %v7954, %v7956
      %v7969 = vsel %vm655, %v7956, %v7958
      %v7970 = vsel %vm655, %v7960, %v7962
      %v7971 = vsel %vm655, %v7962, %v7964
      %v7972 = vsel %vm655, %v7964, %v7966
      %7981 = vrot.lane.b32.xlu0 %v7575, 84
      %v7982 = vpop.permute.xlu0 %7981
      %7983 = vrot.lane.b32.xlu0 %v7576, 84
      %v7984 = vpop.permute.xlu0 %7983
      %7985 = vrot.lane.b32.xlu0 %v7577, 84
      %v7986 = vpop.permute.xlu0 %7985
      %7987 = vrot.lane.b32.xlu0 %v7578, 84
      %v7988 = vpop.permute.xlu0 %7987
      %7989 = vrot.lane.b32.xlu0 %v7579, 84
      %v7990 = vpop.permute.xlu0 %7989
      %7991 = vrot.lane.b32.xlu0 %v7580, 84
      %v7992 = vpop.permute.xlu0 %7991
      %7993 = vrot.lane.b32.xlu0 %v7581, 84
      %v7994 = vpop.permute.xlu0 %7993
      %7995 = vrot.lane.b32.xlu0 %v7582, 84
      %v7996 = vpop.permute.xlu0 %7995
      %v7997 = vsel %vm686, %v7982, %v7984
      %v7998 = vsel %vm686, %v7984, %v7986
      %v7999 = vsel %vm686, %v7986, %v7988
      %v8000 = vsel %vm686, %v7990, %v7992
      %v8001 = vsel %vm686, %v7992, %v7994
      %v8002 = vsel %vm686, %v7994, %v7996
      %8011 = vrot.lane.b32.xlu0 %v7575, 68
      %v8012 = vpop.permute.xlu0 %8011
      %8013 = vrot.lane.b32.xlu0 %v7576, 68
      %v8014 = vpop.permute.xlu0 %8013
      %8015 = vrot.lane.b32.xlu0 %v7577, 68
      %v8016 = vpop.permute.xlu0 %8015
      %8017 = vrot.lane.b32.xlu0 %v7578, 68
      %v8018 = vpop.permute.xlu0 %8017
      %8019 = vrot.lane.b32.xlu0 %v7579, 68
      %v8020 = vpop.permute.xlu0 %8019
      %8021 = vrot.lane.b32.xlu0 %v7580, 68
      %v8022 = vpop.permute.xlu0 %8021
      %8023 = vrot.lane.b32.xlu0 %v7581, 68
      %v8024 = vpop.permute.xlu0 %8023
      %8025 = vrot.lane.b32.xlu0 %v7582, 68
      %v8026 = vpop.permute.xlu0 %8025
      %v8027 = vsel %vm717, %v8012, %v8014
      %v8028 = vsel %vm717, %v8014, %v8016
      %v8029 = vsel %vm717, %v8016, %v8018
      %v8030 = vsel %vm717, %v8020, %v8022
      %v8031 = vsel %vm717, %v8022, %v8024
      %v8032 = vsel %vm717, %v8024, %v8026
      %8041 = vrot.lane.b32.xlu0 %v7575, 109
      %v8042 = vpop.permute.xlu0 %8041
      %8043 = vrot.lane.b32.xlu0 %v7576, 109
      %v8044 = vpop.permute.xlu0 %8043
      %8045 = vrot.lane.b32.xlu0 %v7577, 109
      %v8046 = vpop.permute.xlu0 %8045
      %8047 = vrot.lane.b32.xlu0 %v7578, 109
      %v8048 = vpop.permute.xlu0 %8047
      %8049 = vrot.lane.b32.xlu0 %v7579, 109
      %v8050 = vpop.permute.xlu0 %8049
      %8051 = vrot.lane.b32.xlu0 %v7580, 109
      %v8052 = vpop.permute.xlu0 %8051
      %8053 = vrot.lane.b32.xlu0 %v7581, 109
      %v8054 = vpop.permute.xlu0 %8053
      %8055 = vrot.lane.b32.xlu0 %v7582, 109
      %v8056 = vpop.permute.xlu0 %8055
      %v8057 = vsel %vm748, %v8042, %v8044
      %v8058 = vsel %vm748, %v8044, %v8046
      %v8059 = vsel %vm748, %v8046, %v8048
      %v8060 = vsel %vm748, %v8050, %v8052
      %v8061 = vsel %vm748, %v8052, %v8054
      %v8062 = vsel %vm748, %v8054, %v8056
      %8063 = vrot.lane.b32.xlu0 %v7575, 67
      %v8064 = vpop.permute.xlu0 %8063
      %8065 = vrot.lane.b32.xlu0 %v7576, 67
      %v8066 = vpop.permute.xlu0 %8065
      %8067 = vrot.lane.b32.xlu0 %v7577, 67
      %v8068 = vpop.permute.xlu0 %8067
      %8069 = vrot.lane.b32.xlu0 %v7578, 67
      %v8070 = vpop.permute.xlu0 %8069
      %8071 = vrot.lane.b32.xlu0 %v7579, 67
      %v8072 = vpop.permute.xlu0 %8071
      %8073 = vrot.lane.b32.xlu0 %v7580, 67
      %v8074 = vpop.permute.xlu0 %8073
      %8075 = vrot.lane.b32.xlu0 %v7581, 67
      %v8076 = vpop.permute.xlu0 %8075
      %8077 = vrot.lane.b32.xlu0 %v7582, 67
      %v8078 = vpop.permute.xlu0 %8077
      %8079 = vrot.lane.b32.xlu0 %v7607, 67
      %v8080 = vpop.permute.xlu0 %8079
      %8081 = vrot.lane.b32.xlu0 %v7608, 67
      %v8082 = vpop.permute.xlu0 %8081
      %8083 = vrot.lane.b32.xlu0 %v7609, 67
      %v8084 = vpop.permute.xlu0 %8083
      %8085 = vrot.lane.b32.xlu0 %v7598, 67
      %v8086 = vpop.permute.xlu0 %8085
      %8087 = vrot.lane.b32.xlu0 %v7610, 67
      %v8088 = vpop.permute.xlu0 %8087
      %8089 = vrot.lane.b32.xlu0 %v7611, 67
      %v8090 = vpop.permute.xlu0 %8089
      %8091 = vrot.lane.b32.xlu0 %v7612, 67
      %v8092 = vpop.permute.xlu0 %8091
      %8093 = vrot.lane.b32.xlu0 %v7606, 67
      %v8094 = vpop.permute.xlu0 %8093
      %8095 = vrot.lane.b32.xlu0 %v7637, 67
      %v8096 = vpop.permute.xlu0 %8095
      %8097 = vrot.lane.b32.xlu0 %v7638, 67
      %v8098 = vpop.permute.xlu0 %8097
      %8099 = vrot.lane.b32.xlu0 %v7639, 67
      %v8100 = vpop.permute.xlu0 %8099
      %8101 = vrot.lane.b32.xlu0 %v7628, 67
      %v8102 = vpop.permute.xlu0 %8101
      %8103 = vrot.lane.b32.xlu0 %v7640, 67
      %v8104 = vpop.permute.xlu0 %8103
      %8105 = vrot.lane.b32.xlu0 %v7641, 67
      %v8106 = vpop.permute.xlu0 %8105
      %8107 = vrot.lane.b32.xlu0 %v7642, 67
      %v8108 = vpop.permute.xlu0 %8107
      %8109 = vrot.lane.b32.xlu0 %v7636, 67
      %v8110 = vpop.permute.xlu0 %8109
      %8111 = vrot.lane.b32.xlu0 %v7667, 67
      %v8112 = vpop.permute.xlu0 %8111
      %8113 = vrot.lane.b32.xlu0 %v7668, 67
      %v8114 = vpop.permute.xlu0 %8113
      %8115 = vrot.lane.b32.xlu0 %v7669, 67
      %v8116 = vpop.permute.xlu0 %8115
      %8117 = vrot.lane.b32.xlu0 %v7658, 67
      %v8118 = vpop.permute.xlu0 %8117
      %8119 = vrot.lane.b32.xlu0 %v7670, 67
      %v8120 = vpop.permute.xlu0 %8119
      %8121 = vrot.lane.b32.xlu0 %v7671, 67
      %v8122 = vpop.permute.xlu0 %8121
      %8123 = vrot.lane.b32.xlu0 %v7672, 67
      %v8124 = vpop.permute.xlu0 %8123
      %8125 = vrot.lane.b32.xlu0 %v7666, 67
      %v8126 = vpop.permute.xlu0 %8125
      %8127 = vrot.lane.b32.xlu0 %v8057, 67
      %v8128 = vpop.permute.xlu0 %8127
      %8129 = vrot.lane.b32.xlu0 %v8058, 67
      %v8130 = vpop.permute.xlu0 %8129
      %8131 = vrot.lane.b32.xlu0 %v8059, 67
      %v8132 = vpop.permute.xlu0 %8131
      %8133 = vrot.lane.b32.xlu0 %v8048, 67
      %v8134 = vpop.permute.xlu0 %8133
      %8135 = vrot.lane.b32.xlu0 %v8060, 67
      %v8136 = vpop.permute.xlu0 %8135
      %8137 = vrot.lane.b32.xlu0 %v8061, 67
      %v8138 = vpop.permute.xlu0 %8137
      %8139 = vrot.lane.b32.xlu0 %v8062, 67
      %v8140 = vpop.permute.xlu0 %8139
      %8141 = vrot.lane.b32.xlu0 %v8056, 67
      %v8142 = vpop.permute.xlu0 %8141
      %8143 = vrot.lane.b32.xlu0 %v7727, 67
      %v8144 = vpop.permute.xlu0 %8143
      %8145 = vrot.lane.b32.xlu0 %v7728, 67
      %v8146 = vpop.permute.xlu0 %8145
      %8147 = vrot.lane.b32.xlu0 %v7729, 67
      %v8148 = vpop.permute.xlu0 %8147
      %8149 = vrot.lane.b32.xlu0 %v7718, 67
      %v8150 = vpop.permute.xlu0 %8149
      %8151 = vrot.lane.b32.xlu0 %v7730, 67
      %v8152 = vpop.permute.xlu0 %8151
      %8153 = vrot.lane.b32.xlu0 %v7731, 67
      %v8154 = vpop.permute.xlu0 %8153
      %8155 = vrot.lane.b32.xlu0 %v7732, 67
      %v8156 = vpop.permute.xlu0 %8155
      %8157 = vrot.lane.b32.xlu0 %v7726, 67
      %v8158 = vpop.permute.xlu0 %8157
      %8159 = vrot.lane.b32.xlu0 %v7757, 67
      %v8160 = vpop.permute.xlu0 %8159
      %8161 = vrot.lane.b32.xlu0 %v7758, 67
      %v8162 = vpop.permute.xlu0 %8161
      %8163 = vrot.lane.b32.xlu0 %v7759, 67
      %v8164 = vpop.permute.xlu0 %8163
      %8165 = vrot.lane.b32.xlu0 %v7748, 67
      %v8166 = vpop.permute.xlu0 %8165
      %8167 = vrot.lane.b32.xlu0 %v7760, 67
      %v8168 = vpop.permute.xlu0 %8167
      %8169 = vrot.lane.b32.xlu0 %v7761, 67
      %v8170 = vpop.permute.xlu0 %8169
      %8171 = vrot.lane.b32.xlu0 %v7762, 67
      %v8172 = vpop.permute.xlu0 %8171
      %8173 = vrot.lane.b32.xlu0 %v7756, 67
      %v8174 = vpop.permute.xlu0 %8173
      %8175 = vrot.lane.b32.xlu0 %v7787, 67
      %v8176 = vpop.permute.xlu0 %8175
      %8177 = vrot.lane.b32.xlu0 %v7788, 67
      %v8178 = vpop.permute.xlu0 %8177
      %8179 = vrot.lane.b32.xlu0 %v7789, 67
      %v8180 = vpop.permute.xlu0 %8179
      %8181 = vrot.lane.b32.xlu0 %v7778, 67
      %v8182 = vpop.permute.xlu0 %8181
      %8183 = vrot.lane.b32.xlu0 %v7790, 67
      %v8184 = vpop.permute.xlu0 %8183
      %8185 = vrot.lane.b32.xlu0 %v7791, 67
      %v8186 = vpop.permute.xlu0 %8185
      %8187 = vrot.lane.b32.xlu0 %v7792, 67
      %v8188 = vpop.permute.xlu0 %8187
      %8189 = vrot.lane.b32.xlu0 %v7786, 67
      %v8190 = vpop.permute.xlu0 %8189
      %8191 = vrot.lane.b32.xlu0 %v7817, 67
      %v8192 = vpop.permute.xlu0 %8191
      %8193 = vrot.lane.b32.xlu0 %v7818, 67
      %v8194 = vpop.permute.xlu0 %8193
      %8195 = vrot.lane.b32.xlu0 %v7819, 67
      %v8196 = vpop.permute.xlu0 %8195
      %8197 = vrot.lane.b32.xlu0 %v7808, 67
      %v8198 = vpop.permute.xlu0 %8197
      %8199 = vrot.lane.b32.xlu0 %v7820, 67
      %v8200 = vpop.permute.xlu0 %8199
      %8201 = vrot.lane.b32.xlu0 %v7821, 67
      %v8202 = vpop.permute.xlu0 %8201
      %8203 = vrot.lane.b32.xlu0 %v7822, 67
      %v8204 = vpop.permute.xlu0 %8203
      %8205 = vrot.lane.b32.xlu0 %v7816, 67
      %v8206 = vpop.permute.xlu0 %8205
      %v8207 = vsel %vm899, %v8064, %v8066
      %v8208 = vsel %vm899, %v8066, %v8068
      %v8209 = vsel %vm899, %v8068, %v8070
      %v8210 = vsel %vm899, %v8072, %v8074
      %v8211 = vsel %vm899, %v8074, %v8076
      %v8212 = vsel %vm899, %v8076, %v8078
      %v8213 = vsel %vm899, %v8080, %v8082
      %v8214 = vsel %vm899, %v8082, %v8084
      %v8215 = vsel %vm899, %v8084, %v8086
      %v8216 = vsel %vm899, %v8088, %v8090
      %v8217 = vsel %vm899, %v8090, %v8092
      %v8218 = vsel %vm899, %v8092, %v8094
      %v8219 = vsel %vm899, %v8096, %v8098
      %v8220 = vsel %vm899, %v8098, %v8100
      %v8221 = vsel %vm899, %v8100, %v8102
      %v8222 = vsel %vm899, %v8104, %v8106
      %v8223 = vsel %vm899, %v8106, %v8108
      %v8224 = vsel %vm899, %v8108, %v8110
      %v8225 = vsel %vm899, %v8112, %v8114
      %v8226 = vsel %vm899, %v8114, %v8116
      %v8227 = vsel %vm899, %v8116, %v8118
      %v8228 = vsel %vm899, %v8120, %v8122
      %v8229 = vsel %vm899, %v8122, %v8124
      %v8230 = vsel %vm899, %v8124, %v8126
      %v8231 = vsel %vm899, %v8128, %v8130
      %v8232 = vsel %vm899, %v8130, %v8132
      %v8233 = vsel %vm899, %v8132, %v8134
      %v8234 = vsel %vm899, %v8136, %v8138
      %v8235 = vsel %vm899, %v8138, %v8140
      %v8236 = vsel %vm899, %v8140, %v8142
      %v8237 = vsel %vm899, %v8144, %v8146
      %v8238 = vsel %vm899, %v8146, %v8148
      %v8239 = vsel %vm899, %v8148, %v8150
      %v8240 = vsel %vm899, %v8152, %v8154
      %v8241 = vsel %vm899, %v8154, %v8156
      %v8242 = vsel %vm899, %v8156, %v8158
      %v8243 = vsel %vm899, %v8160, %v8162
      %v8244 = vsel %vm899, %v8162, %v8164
      %v8245 = vsel %vm899, %v8164, %v8166
      %v8246 = vsel %vm899, %v8168, %v8170
      %v8247 = vsel %vm899, %v8170, %v8172
      %v8248 = vsel %vm899, %v8172, %v8174
      %v8249 = vsel %vm899, %v8176, %v8178
      %v8250 = vsel %vm899, %v8178, %v8180
      %v8251 = vsel %vm899, %v8180, %v8182
      %v8252 = vsel %vm899, %v8184, %v8186
      %v8253 = vsel %vm899, %v8186, %v8188
      %v8254 = vsel %vm899, %v8188, %v8190
      %v8255 = vsel %vm899, %v8192, %v8194
      %v8256 = vsel %vm899, %v8194, %v8196
      %v8257 = vsel %vm899, %v8196, %v8198
      %v8258 = vsel %vm899, %v8200, %v8202
      %v8259 = vsel %vm899, %v8202, %v8204
      %v8260 = vsel %vm899, %v8204, %v8206
      %s8333 = scalar_lea.vmem %s1, 560
      %v8334 = vld [vmem:[%s8333] sm:$0xff]
      %v8335 = vld [vmem:[%s8333 + $0x8] sm:$0xff]
      %v8336 = vld [vmem:[%s8333 + $0x10] sm:$0xff]
      %v8337 = vld [vmem:[%s8333 + $0x18] sm:$0xf]
      %v8338 = vld [vmem:[%s8333 + $0x1c] sm:$0xff]
      %v8339 = vld [vmem:[%s8333 + $0x24] sm:$0xff]
      %v8340 = vld [vmem:[%s8333 + $0x2c] sm:$0xff]
      %v8341 = vld [vmem:[%s8333 + $0x34] sm:$0xf]
      %v8342 = vld [vmem:[%s8333 + $0x38] sm:$0xff]
      %v8343 = vld [vmem:[%s8333 + $0x40] sm:$0xff]
      %v8344 = vld [vmem:[%s8333 + $0x48] sm:$0xff]
      %v8345 = vld [vmem:[%s8333 + $0x50] sm:$0xf]
      %v8346 = vld [vmem:[%s8333 + $0x54] sm:$0xff]
      %v8347 = vld [vmem:[%s8333 + $0x5c] sm:$0xff]
      %v8348 = vld [vmem:[%s8333 + $0x64] sm:$0xff]
      %v8349 = vld [vmem:[%s8333 + $0x6c] sm:$0xf]
      %s8350 = scalar_lea.vmem %s2, 160
      %v8351 = vld [vmem:[%s8350] sm:$0xff]
      %v8352 = vld [vmem:[%s8350 + $0x8] sm:$0xff]
      %v8353 = vld [vmem:[%s8350 + $0x10] sm:$0xff]
      %v8354 = vld [vmem:[%s8350 + $0x18] sm:$0xff]
      %8356 = vset.pattern.permute.xlu0 0
      %8357 = vperm.xlu0 %8356, %v8351
      %v8358 = vpop.permute.xlu0 %8357
      %8361 = vset.pattern.permute.xlu0 0
      %8362 = vperm.xlu0 %8361, %v8352
      %v8363 = vpop.permute.xlu0 %8362
      %8366 = vset.pattern.permute.xlu0 0
      %8367 = vperm.xlu0 %8366, %v8353
      %v8368 = vpop.permute.xlu0 %8367
      %8371 = vset.pattern.permute.xlu0 0
      %8372 = vperm.xlu0 %8371, %v8354
      %v8373 = vpop.permute.xlu0 %8372
      %v8391 = vunpack.c.l.b16 %v8334
      %v8392 = vunpack.c.h.b16 %v8334
      %v8393 = vunpack.c.l.b16 %v8335
      %v8394 = vunpack.c.h.b16 %v8335
      %v8395 = vunpack.c.l.b16 %v8336
      %v8396 = vunpack.c.h.b16 %v8336
      %v8397 = vunpack.c.l.b16 %v8337
      %v8398 = vunpack.c.l.b16 %v8338
      %v8399 = vunpack.c.h.b16 %v8338
      %v8400 = vunpack.c.l.b16 %v8339
      %v8401 = vunpack.c.h.b16 %v8339
      %v8402 = vunpack.c.l.b16 %v8340
      %v8403 = vunpack.c.h.b16 %v8340
      %v8404 = vunpack.c.l.b16 %v8341
      %v8405 = vunpack.c.l.b16 %v8342
      %v8406 = vunpack.c.h.b16 %v8342
      %v8407 = vunpack.c.l.b16 %v8343
      %v8408 = vunpack.c.h.b16 %v8343
      %v8409 = vunpack.c.l.b16 %v8344
      %v8410 = vunpack.c.h.b16 %v8344
      %v8411 = vunpack.c.l.b16 %v8345
      %v8412 = vunpack.c.l.b16 %v8346
      %v8413 = vunpack.c.h.b16 %v8346
      %v8414 = vunpack.c.l.b16 %v8347
      %v8415 = vunpack.c.h.b16 %v8347
      %v8416 = vunpack.c.l.b16 %v8348
      %v8417 = vunpack.c.h.b16 %v8348
      %v8418 = vunpack.c.l.b16 %v8349
      %v8419 = vpack.c.b16 %v8398, %v8391
      %v8420 = vpack.c.b16 %v8399, %v8392
      %v8421 = vpack.c.b16 %v8400, %v8393
      %v8422 = vpack.c.b16 %v8401, %v8394
      %v8423 = vpack.c.b16 %v8402, %v8395
      %v8424 = vpack.c.b16 %v8403, %v8396
      %v8425 = vpack.c.b16 %v8404, %v8397
      %v8426 = vpack.c.b16 %v8412, %v8405
      %v8427 = vpack.c.b16 %v8413, %v8406
      %v8428 = vpack.c.b16 %v8414, %v8407
      %v8429 = vpack.c.b16 %v8415, %v8408
      %v8430 = vpack.c.b16 %v8416, %v8409
      %v8431 = vpack.c.b16 %v8417, %v8410
      %v8432 = vpack.c.b16 %v8418, %v8411
      %v8446 = vsel %vm1136, %v8425, 0
      %v8449 = vsel %vm1136, %v8432, 0
      %8451 = vmatprep.subr.bf16.mxu0 %v7671
      %8452 = vmatpush1.bf16.msra.mxu0 %v7670
      %8453 = vmatprep.subr.bf16.mxu0 %v7668
      %8454 = vmatpush1.bf16.msra.mxu0 %v7667
      %8455 = vmatprep.subr.bf16.mxu0 %v7641
      %8456 = vmatpush1.bf16.msra.mxu0 %v7640
      %8457 = vmatprep.subr.bf16.mxu0 %v7638
      %8458 = vmatpush1.bf16.msra.mxu0 %v7637
      %8459 = vmatprep.subr.bf16.mxu0 %v7611
      %8460 = vmatpush1.bf16.msra.mxu0 %v7610
      %8461 = vmatprep.subr.bf16.mxu0 %v7608
      %8462 = vmatpush1.bf16.msra.mxu0 %v7607
      %8463 = vmatprep.subr.bf16.mxu0 %v7580
      %8464 = vmatpush1.bf16.msra.mxu0 %v7579
      %8465 = vmatprep.subr.bf16.mxu0 %v7576
      %8466 = vmatpush1.bf16.msra.mxu0 %v7575
      %8467 = vmatprep.subr.bf16.mxu0 %v7791
      %8468 = vmatpush2.bf16.msra.mxu0 %v7790
      %8469 = vmatprep.subr.bf16.mxu0 %v7788
      %8470 = vmatpush2.bf16.msra.mxu0 %v7787
      %8471 = vmatprep.subr.bf16.mxu0 %v7761
      %8472 = vmatpush2.bf16.msra.mxu0 %v7760
      %8473 = vmatprep.subr.bf16.mxu0 %v7758
      %8474 = vmatpush2.bf16.msra.mxu0 %v7757
      %8475 = vmatprep.subr.bf16.mxu0 %v7731
      %8476 = vmatpush2.bf16.msra.mxu0 %v7730
      %8477 = vmatprep.subr.bf16.mxu0 %v7728
      %8478 = vmatpush2.bf16.msra.mxu0 %v7727
      %8479 = vmatprep.subr.bf16.mxu0 %v7701
      %8480 = vmatpush2.bf16.msra.mxu0 %v7700
      %8481 = vmatprep.subr.bf16.mxu0 %v7698
      %8482 = vmatpush2.bf16.msra.mxu0 %v7697
      %8483 = vmatprep.mubr.bf16.mxu0 %v8420
      %8484 = vmatmul.mubr.bf16.gmra.mxu0 %v8419
      %v8485 = vpop.f32.mrf.mxu0
      %v8486 = vadd.f32 %v8358, %v8485
      %v8487 = vpop.f32.mrf.mxu0
      %v8488 = vadd.f32 %v8358, %v8487
      %v8489 = vpop.f32.mrf.mxu0
      %v8490 = vadd.f32 %v8363, %v8489
      %v8491 = vpop.f32.mrf.mxu0
      %v8492 = vadd.f32 %v8363, %v8491
      %8493 = vmatprep.mubr.bf16.mxu0 %v8427
      %8494 = vmatmul.mubr.bf16.gmra.mxu0 %v8426
      %v8495 = vpop.f32.mrf.mxu0
      %v8496 = vadd.f32 %v8368, %v8495
      %v8497 = vpop.f32.mrf.mxu0
      %v8498 = vadd.f32 %v8368, %v8497
      %v8499 = vpop.f32.mrf.mxu0
      %v8500 = vadd.f32 %v8373, %v8499
      %v8501 = vpop.f32.mrf.mxu0
      %v8502 = vadd.f32 %v8373, %v8501
      %8503 = vdwg.mxu0
      %8504 = vmatprep.subr.bf16.mxu0 %v7911
      %8505 = vmatpush1.bf16.msra.mxu0 %v7910
      %8506 = vmatprep.subr.bf16.mxu0 %v7908
      %8507 = vmatpush1.bf16.msra.mxu0 %v7907
      %8508 = vmatprep.subr.bf16.mxu0 %v7881
      %8509 = vmatpush1.bf16.msra.mxu0 %v7880
      %8510 = vmatprep.subr.bf16.mxu0 %v7878
      %8511 = vmatpush1.bf16.msra.mxu0 %v7877
      %8512 = vmatprep.subr.bf16.mxu0 %v7851
      %8513 = vmatpush1.bf16.msra.mxu0 %v7850
      %8514 = vmatprep.subr.bf16.mxu0 %v7848
      %8515 = vmatpush1.bf16.msra.mxu0 %v7847
      %8516 = vmatprep.subr.bf16.mxu0 %v7821
      %8517 = vmatpush1.bf16.msra.mxu0 %v7820
      %8518 = vmatprep.subr.bf16.mxu0 %v7818
      %8519 = vmatpush1.bf16.msra.mxu0 %v7817
      %8520 = vmatprep.subr.bf16.mxu0 %v8031
      %8521 = vmatpush2.bf16.msra.mxu0 %v8030
      %8522 = vmatprep.subr.bf16.mxu0 %v8028
      %8523 = vmatpush2.bf16.msra.mxu0 %v8027
      %8524 = vmatprep.subr.bf16.mxu0 %v8001
      %8525 = vmatpush2.bf16.msra.mxu0 %v8000
      %8526 = vmatprep.subr.bf16.mxu0 %v7998
      %8527 = vmatpush2.bf16.msra.mxu0 %v7997
      %8528 = vmatprep.subr.bf16.mxu0 %v7971
      %8529 = vmatpush2.bf16.msra.mxu0 %v7970
      %8530 = vmatprep.subr.bf16.mxu0 %v7968
      %8531 = vmatpush2.bf16.msra.mxu0 %v7967
      %8532 = vmatprep.subr.bf16.mxu0 %v7941
      %8533 = vmatpush2.bf16.msra.mxu0 %v7940
      %8534 = vmatprep.subr.bf16.mxu0 %v7938
      %8535 = vmatpush2.bf16.msra.mxu0 %v7937
      %8536 = vmatprep.mubr.bf16.mxu0 %v8422
      %8537 = vmatmul.mubr.bf16.gmra.mxu0 %v8421
      %v8538 = vpop.f32.mrf.mxu0
      %v8539 = vadd.f32 %v8486, %v8538
      %v8540 = vpop.f32.mrf.mxu0
      %v8541 = vadd.f32 %v8488, %v8540
      %v8542 = vpop.f32.mrf.mxu0
      %v8543 = vadd.f32 %v8490, %v8542
      %v8544 = vpop.f32.mrf.mxu0
      %v8545 = vadd.f32 %v8492, %v8544
      %8546 = vmatprep.mubr.bf16.mxu0 %v8429
      %8547 = vmatmul.mubr.bf16.gmra.mxu0 %v8428
      %v8548 = vpop.f32.mrf.mxu0
      %v8549 = vadd.f32 %v8496, %v8548
      %v8550 = vpop.f32.mrf.mxu0
      %v8551 = vadd.f32 %v8498, %v8550
      %v8552 = vpop.f32.mrf.mxu0
      %v8553 = vadd.f32 %v8500, %v8552
      %v8554 = vpop.f32.mrf.mxu0
      %v8555 = vadd.f32 %v8502, %v8554
      %8556 = vdwg.mxu0
      %8557 = vmatprep.subr.bf16.mxu0 %v8229
      %8558 = vmatpush1.bf16.msra.mxu0 %v8228
      %8559 = vmatprep.subr.bf16.mxu0 %v8226
      %8560 = vmatpush1.bf16.msra.mxu0 %v8225
      %8561 = vmatprep.subr.bf16.mxu0 %v8223
      %8562 = vmatpush1.bf16.msra.mxu0 %v8222
      %8563 = vmatprep.subr.bf16.mxu0 %v8220
      %8564 = vmatpush1.bf16.msra.mxu0 %v8219
      %8565 = vmatprep.subr.bf16.mxu0 %v8217
      %8566 = vmatpush1.bf16.msra.mxu0 %v8216
      %8567 = vmatprep.subr.bf16.mxu0 %v8214
      %8568 = vmatpush1.bf16.msra.mxu0 %v8213
      %8569 = vmatprep.subr.bf16.mxu0 %v8211
      %8570 = vmatpush1.bf16.msra.mxu0 %v8210
      %8571 = vmatprep.subr.bf16.mxu0 %v8208
      %8572 = vmatpush1.bf16.msra.mxu0 %v8207
      %8573 = vmatprep.subr.bf16.mxu0 %v8253
      %8574 = vmatpush2.bf16.msra.mxu0 %v8252
      %8575 = vmatprep.subr.bf16.mxu0 %v8250
      %8576 = vmatpush2.bf16.msra.mxu0 %v8249
      %8577 = vmatprep.subr.bf16.mxu0 %v8247
      %8578 = vmatpush2.bf16.msra.mxu0 %v8246
      %8579 = vmatprep.subr.bf16.mxu0 %v8244
      %8580 = vmatpush2.bf16.msra.mxu0 %v8243
      %8581 = vmatprep.subr.bf16.mxu0 %v8241
      %8582 = vmatpush2.bf16.msra.mxu0 %v8240
      %8583 = vmatprep.subr.bf16.mxu0 %v8238
      %8584 = vmatpush2.bf16.msra.mxu0 %v8237
      %8585 = vmatprep.subr.bf16.mxu0 %v8235
      %8586 = vmatpush2.bf16.msra.mxu0 %v8234
      %8587 = vmatprep.subr.bf16.mxu0 %v8232
      %8588 = vmatpush2.bf16.msra.mxu0 %v8231
      %8589 = vmatprep.mubr.bf16.mxu0 %v8424
      %8590 = vmatmul.mubr.bf16.gmra.mxu0 %v8423
      %v8591 = vpop.f32.mrf.mxu0
      %v8592 = vadd.f32 %v8539, %v8591
      %v8593 = vpop.f32.mrf.mxu0
      %v8594 = vadd.f32 %v8541, %v8593
      %v8595 = vpop.f32.mrf.mxu0
      %v8596 = vadd.f32 %v8543, %v8595
      %v8597 = vpop.f32.mrf.mxu0
      %v8598 = vadd.f32 %v8545, %v8597
      %8599 = vmatprep.mubr.bf16.mxu0 %v8431
      %8600 = vmatmul.mubr.bf16.gmra.mxu0 %v8430
      %v8601 = vpop.f32.mrf.mxu0
      %v8602 = vadd.f32 %v8549, %v8601
      %v8603 = vpop.f32.mrf.mxu0
      %v8604 = vadd.f32 %v8551, %v8603
      %v8605 = vpop.f32.mrf.mxu0
      %v8606 = vadd.f32 %v8553, %v8605
      %v8607 = vpop.f32.mrf.mxu0
      %v8608 = vadd.f32 %v8555, %v8607
      %8609 = vdwg.mxu0
      %8610 = vmatprep.subr.bf16.mxu0 0
      %8611 = vmatpush1.bf16.msra.mxu0 0
      %8612 = vmatprep.subr.bf16.mxu0 0
      %8613 = vmatpush1.bf16.msra.mxu0 0
      %8614 = vmatprep.subr.bf16.mxu0 0
      %8615 = vmatpush1.bf16.msra.mxu0 0
      %8616 = vmatprep.subr.bf16.mxu0 0
      %8617 = vmatpush1.bf16.msra.mxu0 0
      %8618 = vmatprep.subr.bf16.mxu0 0
      %8619 = vmatpush1.bf16.msra.mxu0 0
      %8620 = vmatprep.subr.bf16.mxu0 0
      %8621 = vmatpush1.bf16.msra.mxu0 0
      %8622 = vmatprep.subr.bf16.mxu0 %v8259
      %8623 = vmatpush1.bf16.msra.mxu0 %v8258
      %8624 = vmatprep.subr.bf16.mxu0 %v8256
      %8625 = vmatpush1.bf16.msra.mxu0 %v8255
      %8626 = vmatprep.subr.bf16.mxu0 0
      %8627 = vmatpush2.bf16.msra.mxu0 0
      %8628 = vmatprep.subr.bf16.mxu0 0
      %8629 = vmatpush2.bf16.msra.mxu0 0
      %8630 = vmatprep.subr.bf16.mxu0 0
      %8631 = vmatpush2.bf16.msra.mxu0 0
      %8632 = vmatprep.subr.bf16.mxu0 0
      %8633 = vmatpush2.bf16.msra.mxu0 0
      %8634 = vmatprep.subr.bf16.mxu0 0
      %8635 = vmatpush2.bf16.msra.mxu0 0
      %8636 = vmatprep.subr.bf16.mxu0 0
      %8637 = vmatpush2.bf16.msra.mxu0 0
      %8638 = vmatprep.subr.bf16.mxu0 0
      %8639 = vmatpush2.bf16.msra.mxu0 0
      %8640 = vmatprep.subr.bf16.mxu0 0
      %8641 = vmatpush2.bf16.msra.mxu0 0
      %8642 = vmatprep.mubr.bf16.mxu0 0
      %8643 = vmatmul.mubr.bf16.gmra.mxu0 %v8446
      %v8644 = vpop.f32.mrf.mxu0
      %v8645 = vadd.f32 %v8592, %v8644
      %v8646 = vpop.f32.mrf.mxu0
      %v8647 = vadd.f32 %v8594, %v8646
      %v8648 = vpop.f32.mrf.mxu0
      %v8649 = vadd.f32 %v8596, %v8648
      %v8650 = vpop.f32.mrf.mxu0
      %v8651 = vadd.f32 %v8598, %v8650
      %8652 = vmatprep.mubr.bf16.mxu0 0
      %8653 = vmatmul.mubr.bf16.gmra.mxu0 %v8449
      %v8654 = vpop.f32.mrf.mxu0
      %v8655 = vadd.f32 %v8602, %v8654
      %v8656 = vpop.f32.mrf.mxu0
      %v8657 = vadd.f32 %v8604, %v8656
      %v8658 = vpop.f32.mrf.mxu0
      %v8659 = vadd.f32 %v8606, %v8658
      %v8660 = vpop.f32.mrf.mxu0
      %v8661 = vadd.f32 %v8608, %v8660
      %8662 = vdwg.mxu0
      %8663 = vmatprep.subr.bf16.mxu0 %v7666
      %8664 = vmatpush1.bf16.msra.mxu0 %v7672
      %8665 = vmatprep.subr.bf16.mxu0 %v7658
      %8666 = vmatpush1.bf16.msra.mxu0 %v7669
      %8667 = vmatprep.subr.bf16.mxu0 %v7636
      %8668 = vmatpush1.bf16.msra.mxu0 %v7642
      %8669 = vmatprep.subr.bf16.mxu0 %v7628
      %8670 = vmatpush1.bf16.msra.mxu0 %v7639
      %8671 = vmatprep.subr.bf16.mxu0 %v7606
      %8672 = vmatpush1.bf16.msra.mxu0 %v7612
      %8673 = vmatprep.subr.bf16.mxu0 %v7598
      %8674 = vmatpush1.bf16.msra.mxu0 %v7609
      %8675 = vmatprep.subr.bf16.mxu0 %v7582
      %8676 = vmatpush1.bf16.msra.mxu0 %v7581
      %8677 = vmatprep.subr.bf16.mxu0 %v7578
      %8678 = vmatpush1.bf16.msra.mxu0 %v7577
      %8679 = vmatprep.subr.bf16.mxu0 %v7786
      %8680 = vmatpush2.bf16.msra.mxu0 %v7792
      %8681 = vmatprep.subr.bf16.mxu0 %v7778
      %8682 = vmatpush2.bf16.msra.mxu0 %v7789
      %8683 = vmatprep.subr.bf16.mxu0 %v7756
      %8684 = vmatpush2.bf16.msra.mxu0 %v7762
      %8685 = vmatprep.subr.bf16.mxu0 %v7748
      %8686 = vmatpush2.bf16.msra.mxu0 %v7759
      %8687 = vmatprep.subr.bf16.mxu0 %v7726
      %8688 = vmatpush2.bf16.msra.mxu0 %v7732
      %8689 = vmatprep.subr.bf16.mxu0 %v7718
      %8690 = vmatpush2.bf16.msra.mxu0 %v7729
      %8691 = vmatprep.subr.bf16.mxu0 %v7696
      %8692 = vmatpush2.bf16.msra.mxu0 %v7702
      %8693 = vmatprep.subr.bf16.mxu0 %v7688
      %8694 = vmatpush2.bf16.msra.mxu0 %v7699
      %8695 = vmatprep.mubr.bf16.mxu0 %v8420
      %8696 = vmatmul.mubr.bf16.gmra.mxu0 %v8419
      %v8697 = vpop.f32.mrf.mxu0
      %v8698 = vadd.f32 %v8358, %v8697
      %v8699 = vpop.f32.mrf.mxu0
      %v8700 = vadd.f32 %v8358, %v8699
      %v8701 = vpop.f32.mrf.mxu0
      %v8702 = vadd.f32 %v8363, %v8701
      %v8703 = vpop.f32.mrf.mxu0
      %v8704 = vadd.f32 %v8363, %v8703
      %8705 = vmatprep.mubr.bf16.mxu0 %v8427
      %8706 = vmatmul.mubr.bf16.gmra.mxu0 %v8426
      %v8707 = vpop.f32.mrf.mxu0
      %v8708 = vadd.f32 %v8368, %v8707
      %v8709 = vpop.f32.mrf.mxu0
      %v8710 = vadd.f32 %v8368, %v8709
      %v8711 = vpop.f32.mrf.mxu0
      %v8712 = vadd.f32 %v8373, %v8711
      %v8713 = vpop.f32.mrf.mxu0
      %v8714 = vadd.f32 %v8373, %v8713
      %8715 = vdwg.mxu0
      %8716 = vmatprep.subr.bf16.mxu0 %v7906
      %8717 = vmatpush1.bf16.msra.mxu0 %v7912
      %8718 = vmatprep.subr.bf16.mxu0 %v7898
      %8719 = vmatpush1.bf16.msra.mxu0 %v7909
      %8720 = vmatprep.subr.bf16.mxu0 %v7876
      %8721 = vmatpush1.bf16.msra.mxu0 %v7882
      %8722 = vmatprep.subr.bf16.mxu0 %v7868
      %8723 = vmatpush1.bf16.msra.mxu0 %v7879
      %8724 = vmatprep.subr.bf16.mxu0 %v7846
      %8725 = vmatpush1.bf16.msra.mxu0 %v7852
      %8726 = vmatprep.subr.bf16.mxu0 %v7838
      %8727 = vmatpush1.bf16.msra.mxu0 %v7849
      %8728 = vmatprep.subr.bf16.mxu0 %v7816
      %8729 = vmatpush1.bf16.msra.mxu0 %v7822
      %8730 = vmatprep.subr.bf16.mxu0 %v7808
      %8731 = vmatpush1.bf16.msra.mxu0 %v7819
      %8732 = vmatprep.subr.bf16.mxu0 %v8026
      %8733 = vmatpush2.bf16.msra.mxu0 %v8032
      %8734 = vmatprep.subr.bf16.mxu0 %v8018
      %8735 = vmatpush2.bf16.msra.mxu0 %v8029
      %8736 = vmatprep.subr.bf16.mxu0 %v7996
      %8737 = vmatpush2.bf16.msra.mxu0 %v8002
      %8738 = vmatprep.subr.bf16.mxu0 %v7988
      %8739 = vmatpush2.bf16.msra.mxu0 %v7999
      %8740 = vmatprep.subr.bf16.mxu0 %v7966
      %8741 = vmatpush2.bf16.msra.mxu0 %v7972
      %8742 = vmatprep.subr.bf16.mxu0 %v7958
      %8743 = vmatpush2.bf16.msra.mxu0 %v7969
      %8744 = vmatprep.subr.bf16.mxu0 %v7936
      %8745 = vmatpush2.bf16.msra.mxu0 %v7942
      %8746 = vmatprep.subr.bf16.mxu0 %v7928
      %8747 = vmatpush2.bf16.msra.mxu0 %v7939
      %8748 = vmatprep.mubr.bf16.mxu0 %v8422
      %8749 = vmatmul.mubr.bf16.gmra.mxu0 %v8421
      %v8750 = vpop.f32.mrf.mxu0
      %v8751 = vadd.f32 %v8698, %v8750
      %v8752 = vpop.f32.mrf.mxu0
      %v8753 = vadd.f32 %v8700, %v8752
      %v8754 = vpop.f32.mrf.mxu0
      %v8755 = vadd.f32 %v8702, %v8754
      %v8756 = vpop.f32.mrf.mxu0
      %v8757 = vadd.f32 %v8704, %v8756
      %8758 = vmatprep.mubr.bf16.mxu0 %v8429
      %8759 = vmatmul.mubr.bf16.gmra.mxu0 %v8428
      %v8760 = vpop.f32.mrf.mxu0
      %v8761 = vadd.f32 %v8708, %v8760
      %v8762 = vpop.f32.mrf.mxu0
      %v8763 = vadd.f32 %v8710, %v8762
      %v8764 = vpop.f32.mrf.mxu0
      %v8765 = vadd.f32 %v8712, %v8764
      %v8766 = vpop.f32.mrf.mxu0
      %v8767 = vadd.f32 %v8714, %v8766
      %8768 = vdwg.mxu0
      %8769 = vmatprep.subr.bf16.mxu0 %v8126
      %8770 = vmatpush1.bf16.msra.mxu0 %v8230
      %8771 = vmatprep.subr.bf16.mxu0 %v8118
      %8772 = vmatpush1.bf16.msra.mxu0 %v8227
      %8773 = vmatprep.subr.bf16.mxu0 %v8110
      %8774 = vmatpush1.bf16.msra.mxu0 %v8224
      %8775 = vmatprep.subr.bf16.mxu0 %v8102
      %8776 = vmatpush1.bf16.msra.mxu0 %v8221
      %8777 = vmatprep.subr.bf16.mxu0 %v8094
      %8778 = vmatpush1.bf16.msra.mxu0 %v8218
      %8779 = vmatprep.subr.bf16.mxu0 %v8086
      %8780 = vmatpush1.bf16.msra.mxu0 %v8215
      %8781 = vmatprep.subr.bf16.mxu0 %v8078
      %8782 = vmatpush1.bf16.msra.mxu0 %v8212
      %8783 = vmatprep.subr.bf16.mxu0 %v8070
      %8784 = vmatpush1.bf16.msra.mxu0 %v8209
      %8785 = vmatprep.subr.bf16.mxu0 %v8190
      %8786 = vmatpush2.bf16.msra.mxu0 %v8254
      %8787 = vmatprep.subr.bf16.mxu0 %v8182
      %8788 = vmatpush2.bf16.msra.mxu0 %v8251
      %8789 = vmatprep.subr.bf16.mxu0 %v8174
      %8790 = vmatpush2.bf16.msra.mxu0 %v8248
      %8791 = vmatprep.subr.bf16.mxu0 %v8166
      %8792 = vmatpush2.bf16.msra.mxu0 %v8245
      %8793 = vmatprep.subr.bf16.mxu0 %v8158
      %8794 = vmatpush2.bf16.msra.mxu0 %v8242
      %8795 = vmatprep.subr.bf16.mxu0 %v8150
      %8796 = vmatpush2.bf16.msra.mxu0 %v8239
      %8797 = vmatprep.subr.bf16.mxu0 %v8142
      %8798 = vmatpush2.bf16.msra.mxu0 %v8236
      %8799 = vmatprep.subr.bf16.mxu0 %v8134
      %8800 = vmatpush2.bf16.msra.mxu0 %v8233
      %8801 = vmatprep.mubr.bf16.mxu0 %v8424
      %8802 = vmatmul.mubr.bf16.gmra.mxu0 %v8423
      %v8803 = vpop.f32.mrf.mxu0
      %v8804 = vadd.f32 %v8751, %v8803
      %v8805 = vpop.f32.mrf.mxu0
      %v8806 = vadd.f32 %v8753, %v8805
      %v8807 = vpop.f32.mrf.mxu0
      %v8808 = vadd.f32 %v8755, %v8807
      %v8809 = vpop.f32.mrf.mxu0
      %v8810 = vadd.f32 %v8757, %v8809
      %8811 = vmatprep.mubr.bf16.mxu0 %v8431
      %8812 = vmatmul.mubr.bf16.gmra.mxu0 %v8430
      %v8813 = vpop.f32.mrf.mxu0
      %v8814 = vadd.f32 %v8761, %v8813
      %v8815 = vpop.f32.mrf.mxu0
      %v8816 = vadd.f32 %v8763, %v8815
      %v8817 = vpop.f32.mrf.mxu0
      %v8818 = vadd.f32 %v8765, %v8817
      %v8819 = vpop.f32.mrf.mxu0
      %v8820 = vadd.f32 %v8767, %v8819
      %8821 = vdwg.mxu0
      %8822 = vmatprep.subr.bf16.mxu0 0
      %8823 = vmatpush1.bf16.msra.mxu0 0
      %8824 = vmatprep.subr.bf16.mxu0 0
      %8825 = vmatpush1.bf16.msra.mxu0 0
      %8826 = vmatprep.subr.bf16.mxu0 0
      %8827 = vmatpush1.bf16.msra.mxu0 0
      %8828 = vmatprep.subr.bf16.mxu0 0
      %8829 = vmatpush1.bf16.msra.mxu0 0
      %8830 = vmatprep.subr.bf16.mxu0 0
      %8831 = vmatpush1.bf16.msra.mxu0 0
      %8832 = vmatprep.subr.bf16.mxu0 0
      %8833 = vmatpush1.bf16.msra.mxu0 0
      %8834 = vmatprep.subr.bf16.mxu0 %v8206
      %8835 = vmatpush1.bf16.msra.mxu0 %v8260
      %8836 = vmatprep.subr.bf16.mxu0 %v8198
      %8837 = vmatpush1.bf16.msra.mxu0 %v8257
      %8838 = vmatprep.subr.bf16.mxu0 0
      %8839 = vmatpush2.bf16.msra.mxu0 0
      %8840 = vmatprep.subr.bf16.mxu0 0
      %8841 = vmatpush2.bf16.msra.mxu0 0
      %8842 = vmatprep.subr.bf16.mxu0 0
      %8843 = vmatpush2.bf16.msra.mxu0 0
      %8844 = vmatprep.subr.bf16.mxu0 0
      %8845 = vmatpush2.bf16.msra.mxu0 0
      %8846 = vmatprep.subr.bf16.mxu0 0
      %8847 = vmatpush2.bf16.msra.mxu0 0
      %8848 = vmatprep.subr.bf16.mxu0 0
      %8849 = vmatpush2.bf16.msra.mxu0 0
      %8850 = vmatprep.subr.bf16.mxu0 0
      %8851 = vmatpush2.bf16.msra.mxu0 0
      %8852 = vmatprep.subr.bf16.mxu0 0
      %8853 = vmatpush2.bf16.msra.mxu0 0
      %8854 = vmatprep.mubr.bf16.mxu0 0
      %8855 = vmatmul.mubr.bf16.gmra.mxu0 %v8446
      %v8856 = vpop.f32.mrf.mxu0
      %v8857 = vadd.f32 %v8804, %v8856
      %v8858 = vpop.f32.mrf.mxu0
      %v8859 = vadd.f32 %v8806, %v8858
      %v8860 = vpop.f32.mrf.mxu0
      %v8861 = vadd.f32 %v8808, %v8860
      %v8862 = vpop.f32.mrf.mxu0
      %v8863 = vadd.f32 %v8810, %v8862
      %8864 = vmatprep.mubr.bf16.mxu0 0
      %8865 = vmatmul.mubr.bf16.gmra.mxu0 %v8449
      %v8866 = vpop.f32.mrf.mxu0
      %v8867 = vadd.f32 %v8814, %v8866
      %v8868 = vpop.f32.mrf.mxu0
      %v8869 = vadd.f32 %v8816, %v8868
      %v8870 = vpop.f32.mrf.mxu0
      %v8871 = vadd.f32 %v8818, %v8870
      %v8872 = vpop.f32.mrf.mxu0
      %v8873 = vadd.f32 %v8820, %v8872
      %8874 = vdwg.mxu0
      %v8875 = vtanh.pop %v8645
      %v8876 = vtanh.pop %v8647
      %v8877 = vtanh.pop %v8857
      %v8878 = vtanh.pop %v8859
      %v8879 = vtanh.pop %v8649
      %v8880 = vtanh.pop %v8651
      %v8881 = vtanh.pop %v8861
      %v8882 = vtanh.pop %v8863
      %v8883 = vtanh.pop %v8655
      %v8884 = vtanh.pop %v8657
      %v8885 = vtanh.pop %v8867
      %v8886 = vtanh.pop %v8869
      %v8887 = vtanh.pop %v8659
      %v8888 = vtanh.pop %v8661
      %v8889 = vtanh.pop %v8871
      %v8890 = vtanh.pop %v8873
      %v8891 = vmul.f32 %v8875, %v1587
      %v8892 = vmul.f32 %v8876, %v1591
      %v8893 = vmul.f32 %v8877, %v1595
      %v8894 = vmul.f32 %v8878, %v1599
      %v8895 = vmul.f32 %v8879, %v1587
      %v8896 = vmul.f32 %v8880, %v1591
      %v8897 = vmul.f32 %v8881, %v1595
      %v8898 = vmul.f32 %v8882, %v1599
      %v8899 = vmul.f32 %v8883, %v1587
      %v8900 = vmul.f32 %v8884, %v1591
      %v8901 = vmul.f32 %v8885, %v1595
      %v8902 = vmul.f32 %v8886, %v1599
      %v8903 = vmul.f32 %v8887, %v1587
      %v8904 = vmul.f32 %v8888, %v1591
      %v8905 = vmul.f32 %v8889, %v1595
      %v8906 = vmul.f32 %v8890, %v1599
      %v8907 = vpack.c.bf16 %v8895, %v8891
      %v8908 = vpack.c.bf16 %v8896, %v8892
      %v8909 = vpack.c.bf16 %v8897, %v8893
      %v8910 = vpack.c.bf16 %v8898, %v8894
      %v8911 = vpack.c.bf16 %v8903, %v8899
      %v8912 = vpack.c.bf16 %v8904, %v8900
      %v8913 = vpack.c.bf16 %v8905, %v8901
      %v8914 = vpack.c.bf16 %v8906, %v8902
      %v8923 = vunpack.c.l.b16 %v8907
      %v8924 = vunpack.c.l.b16 %v8908
      %v8925 = vunpack.c.l.b16 %v8909
      %v8926 = vunpack.c.l.b16 %v8910
      %v8927 = vunpack.c.h.b16 %v8907
      %v8928 = vunpack.c.h.b16 %v8908
      %v8929 = vunpack.c.h.b16 %v8909
      %v8930 = vunpack.c.h.b16 %v8910
      %v8931 = vunpack.c.l.b16 %v8911
      %v8932 = vunpack.c.l.b16 %v8912
      %v8933 = vunpack.c.l.b16 %v8913
      %v8934 = vunpack.c.l.b16 %v8914
      %v8935 = vunpack.c.h.b16 %v8911
      %v8936 = vunpack.c.h.b16 %v8912
      %v8937 = vunpack.c.h.b16 %v8913
      %v8938 = vunpack.c.h.b16 %v8914
      %v8939 = vpack.c.b16 %v8924, %v8923
      %v8940 = vpack.c.b16 %v8926, %v8925
      %v8941 = vpack.c.b16 %v8928, %v8927
      %v8942 = vpack.c.b16 %v8930, %v8929
      %v8943 = vpack.c.b16 %v8932, %v8931
      %v8944 = vpack.c.b16 %v8934, %v8933
      %v8945 = vpack.c.b16 %v8936, %v8935
      %v8946 = vpack.c.b16 %v8938, %v8937
      %8947 = vrot.lane.b32.xlu0 %v8939, 42
      %v8948 = vpop.permute.xlu0 %8947
      %8949 = vrot.lane.b32.xlu0 %v8940, 42
      %v8950 = vpop.permute.xlu0 %8949
      %8951 = vrot.lane.b32.xlu0 %v8941, 42
      %v8952 = vpop.permute.xlu0 %8951
      %8953 = vrot.lane.b32.xlu0 %v8942, 42
      %v8954 = vpop.permute.xlu0 %8953
      %8955 = vrot.lane.b32.xlu0 %v8943, 42
      %v8956 = vpop.permute.xlu0 %8955
      %8957 = vrot.lane.b32.xlu0 %v8944, 42
      %v8958 = vpop.permute.xlu0 %8957
      %8959 = vrot.lane.b32.xlu0 %v8945, 42
      %v8960 = vpop.permute.xlu0 %8959
      %8961 = vrot.lane.b32.xlu0 %v8946, 42
      %v8962 = vpop.permute.xlu0 %8961
      %v8963 = vrot.slane %v8948, 4
      %v8964 = vrot.slane %v8950, 4
      %v8965 = vrot.slane %v8952, 4
      %v8966 = vrot.slane %v8954, 4
      %v8967 = vrot.slane %v8956, 4
      %v8968 = vrot.slane %v8958, 4
      %v8969 = vrot.slane %v8960, 4
      %v8970 = vrot.slane %v8962, 4
      %v8971 = vsel %vm1684, %v8963, %v8948
      %v8972 = vsel %vm1686, %v8963, %v8964
      %v8973 = vsel %vm1684, %v8972, %v8950
      %v8974 = vsel %vm1684, %v8965, %v8952
      %v8975 = vsel %vm1686, %v8965, %v8966
      %v8976 = vsel %vm1684, %v8975, %v8954
      %v8977 = vsel %vm1684, %v8967, %v8956
      %v8978 = vsel %vm1686, %v8967, %v8968
      %v8979 = vsel %vm1684, %v8978, %v8958
      %v8980 = vsel %vm1684, %v8969, %v8960
      %v8981 = vsel %vm1686, %v8969, %v8970
      %v8982 = vsel %vm1684, %v8981, %v8962
      %8991 = vst.msk [vmem:[#allocation2] sm:$0xff] %vm1708, %v8971
      %8992 = vst.msk [vmem:[#allocation2 + $0x8] sm:$0xff] %vm1711, %v8973
      %8993 = vst.msk [vmem:[#allocation2 + $0x10] sm:$0xff] %vm1708, %v8974
      %8994 = vst.msk [vmem:[#allocation2 + $0x18] sm:$0xff] %vm1711, %v8976
      %8995 = vst.msk [vmem:[#allocation2 + $0x20] sm:$0xff] %vm1708, %v8977
      %8996 = vst.msk [vmem:[#allocation2 + $0x28] sm:$0xff] %vm1711, %v8979
      %8997 = vst.msk [vmem:[#allocation2 + $0x30] sm:$0xff] %vm1708, %v8980
      %8998 = vst.msk [vmem:[#allocation2 + $0x38] sm:$0xff] %vm1711, %v8982
      %v8999 = vld [vmem:[#allocation2] sm:$0xff]
      %v9000 = vld [vmem:[#allocation2 + $0x8] sm:$0xff]
      %v9001 = vld [vmem:[#allocation2 + $0x10] sm:$0xff]
      %v9002 = vld [vmem:[#allocation2 + $0x18] sm:$0xff]
      %v9003 = vld [vmem:[#allocation2 + $0x20] sm:$0xff]
      %v9004 = vld [vmem:[#allocation2 + $0x28] sm:$0xff]
      %v9005 = vld [vmem:[#allocation2 + $0x30] sm:$0xff]
      %v9006 = vld [vmem:[#allocation2 + $0x38] sm:$0xff]
      %v9015 = vunpack.c.l.b16 %v8999
      %v9016 = vunpack.c.h.b16 %v8999
      %v9017 = vunpack.c.l.b16 %v9000
      %v9018 = vunpack.c.h.b16 %v9000
      %v9019 = vunpack.c.l.b16 %v9001
      %v9020 = vunpack.c.h.b16 %v9001
      %v9021 = vunpack.c.l.b16 %v9002
      %v9022 = vunpack.c.h.b16 %v9002
      %v9023 = vunpack.c.l.b16 %v9003
      %v9024 = vunpack.c.h.b16 %v9003
      %v9025 = vunpack.c.l.b16 %v9004
      %v9026 = vunpack.c.h.b16 %v9004
      %v9027 = vunpack.c.l.b16 %v9005
      %v9028 = vunpack.c.h.b16 %v9005
      %v9029 = vunpack.c.l.b16 %v9006
      %v9030 = vunpack.c.h.b16 %v9006
      %v9031 = vpack.c.b16 %v9019, %v9015
      %v9032 = vpack.c.b16 %v9020, %v9016
      %v9033 = vpack.c.b16 %v9021, %v9017
      %v9034 = vpack.c.b16 %v9022, %v9018
      %v9035 = vpack.c.b16 %v9027, %v9023
      %v9036 = vpack.c.b16 %v9028, %v9024
      %v9037 = vpack.c.b16 %v9029, %v9025
      %v9038 = vpack.c.b16 %v9030, %v9026
      %9047 = vrot.lane.b32.xlu0 %v9031, 127
      %v9048 = vpop.permute.xlu0 %9047
      %9049 = vrot.lane.b32.xlu0 %v9032, 127
      %v9050 = vpop.permute.xlu0 %9049
      %9051 = vrot.lane.b32.xlu0 %v9033, 127
      %v9052 = vpop.permute.xlu0 %9051
      %9053 = vrot.lane.b32.xlu0 %v9034, 127
      %v9054 = vpop.permute.xlu0 %9053
      %9055 = vrot.lane.b32.xlu0 %v9035, 127
      %v9056 = vpop.permute.xlu0 %9055
      %9057 = vrot.lane.b32.xlu0 %v9036, 127
      %v9058 = vpop.permute.xlu0 %9057
      %9059 = vrot.lane.b32.xlu0 %v9037, 127
      %v9060 = vpop.permute.xlu0 %9059
      %9061 = vrot.lane.b32.xlu0 %v9038, 127
      %v9062 = vpop.permute.xlu0 %9061
      %v9063 = vsel %vm283, %v9048, %v9050
      %v9064 = vsel %vm283, %v9050, %v9052
      %v9065 = vsel %vm283, %v9052, %v9054
      %v9066 = vsel %vm283, %v9056, %v9058
      %v9067 = vsel %vm283, %v9058, %v9060
      %v9068 = vsel %vm283, %v9060, %v9062
      %9077 = vrot.lane.b32.xlu0 %v9031, 126
      %v9078 = vpop.permute.xlu0 %9077
      %9079 = vrot.lane.b32.xlu0 %v9032, 126
      %v9080 = vpop.permute.xlu0 %9079
      %9081 = vrot.lane.b32.xlu0 %v9033, 126
      %v9082 = vpop.permute.xlu0 %9081
      %9083 = vrot.lane.b32.xlu0 %v9034, 126
      %v9084 = vpop.permute.xlu0 %9083
      %9085 = vrot.lane.b32.xlu0 %v9035, 126
      %v9086 = vpop.permute.xlu0 %9085
      %9087 = vrot.lane.b32.xlu0 %v9036, 126
      %v9088 = vpop.permute.xlu0 %9087
      %9089 = vrot.lane.b32.xlu0 %v9037, 126
      %v9090 = vpop.permute.xlu0 %9089
      %9091 = vrot.lane.b32.xlu0 %v9038, 126
      %v9092 = vpop.permute.xlu0 %9091
      %v9093 = vsel %vm314, %v9078, %v9080
      %v9094 = vsel %vm314, %v9080, %v9082
      %v9095 = vsel %vm314, %v9082, %v9084
      %v9096 = vsel %vm314, %v9086, %v9088
      %v9097 = vsel %vm314, %v9088, %v9090
      %v9098 = vsel %vm314, %v9090, %v9092
      %9107 = vrot.lane.b32.xlu0 %v9031, 125
      %v9108 = vpop.permute.xlu0 %9107
      %9109 = vrot.lane.b32.xlu0 %v9032, 125
      %v9110 = vpop.permute.xlu0 %9109
      %9111 = vrot.lane.b32.xlu0 %v9033, 125
      %v9112 = vpop.permute.xlu0 %9111
      %9113 = vrot.lane.b32.xlu0 %v9034, 125
      %v9114 = vpop.permute.xlu0 %9113
      %9115 = vrot.lane.b32.xlu0 %v9035, 125
      %v9116 = vpop.permute.xlu0 %9115
      %9117 = vrot.lane.b32.xlu0 %v9036, 125
      %v9118 = vpop.permute.xlu0 %9117
      %9119 = vrot.lane.b32.xlu0 %v9037, 125
      %v9120 = vpop.permute.xlu0 %9119
      %9121 = vrot.lane.b32.xlu0 %v9038, 125
      %v9122 = vpop.permute.xlu0 %9121
      %v9123 = vsel %vm345, %v9108, %v9110
      %v9124 = vsel %vm345, %v9110, %v9112
      %v9125 = vsel %vm345, %v9112, %v9114
      %v9126 = vsel %vm345, %v9116, %v9118
      %v9127 = vsel %vm345, %v9118, %v9120
      %v9128 = vsel %vm345, %v9120, %v9122
      %9137 = vrot.lane.b32.xlu0 %v9031, 124
      %v9138 = vpop.permute.xlu0 %9137
      %9139 = vrot.lane.b32.xlu0 %v9032, 124
      %v9140 = vpop.permute.xlu0 %9139
      %9141 = vrot.lane.b32.xlu0 %v9033, 124
      %v9142 = vpop.permute.xlu0 %9141
      %9143 = vrot.lane.b32.xlu0 %v9034, 124
      %v9144 = vpop.permute.xlu0 %9143
      %9145 = vrot.lane.b32.xlu0 %v9035, 124
      %v9146 = vpop.permute.xlu0 %9145
      %9147 = vrot.lane.b32.xlu0 %v9036, 124
      %v9148 = vpop.permute.xlu0 %9147
      %9149 = vrot.lane.b32.xlu0 %v9037, 124
      %v9150 = vpop.permute.xlu0 %9149
      %9151 = vrot.lane.b32.xlu0 %v9038, 124
      %v9152 = vpop.permute.xlu0 %9151
      %v9153 = vsel %vm376, %v9138, %v9140
      %v9154 = vsel %vm376, %v9140, %v9142
      %v9155 = vsel %vm376, %v9142, %v9144
      %v9156 = vsel %vm376, %v9146, %v9148
      %v9157 = vsel %vm376, %v9148, %v9150
      %v9158 = vsel %vm376, %v9150, %v9152
      %9167 = vrot.lane.b32.xlu0 %v9031, 108
      %v9168 = vpop.permute.xlu0 %9167
      %9169 = vrot.lane.b32.xlu0 %v9032, 108
      %v9170 = vpop.permute.xlu0 %9169
      %9171 = vrot.lane.b32.xlu0 %v9033, 108
      %v9172 = vpop.permute.xlu0 %9171
      %9173 = vrot.lane.b32.xlu0 %v9034, 108
      %v9174 = vpop.permute.xlu0 %9173
      %9175 = vrot.lane.b32.xlu0 %v9035, 108
      %v9176 = vpop.permute.xlu0 %9175
      %9177 = vrot.lane.b32.xlu0 %v9036, 108
      %v9178 = vpop.permute.xlu0 %9177
      %9179 = vrot.lane.b32.xlu0 %v9037, 108
      %v9180 = vpop.permute.xlu0 %9179
      %9181 = vrot.lane.b32.xlu0 %v9038, 108
      %v9182 = vpop.permute.xlu0 %9181
      %v9183 = vsel %vm407, %v9168, %v9170
      %v9184 = vsel %vm407, %v9170, %v9172
      %v9185 = vsel %vm407, %v9172, %v9174
      %v9186 = vsel %vm407, %v9176, %v9178
      %v9187 = vsel %vm407, %v9178, %v9180
      %v9188 = vsel %vm407, %v9180, %v9182
      %9197 = vrot.lane.b32.xlu0 %v9031, 107
      %v9198 = vpop.permute.xlu0 %9197
      %9199 = vrot.lane.b32.xlu0 %v9032, 107
      %v9200 = vpop.permute.xlu0 %9199
      %9201 = vrot.lane.b32.xlu0 %v9033, 107
      %v9202 = vpop.permute.xlu0 %9201
      %9203 = vrot.lane.b32.xlu0 %v9034, 107
      %v9204 = vpop.permute.xlu0 %9203
      %9205 = vrot.lane.b32.xlu0 %v9035, 107
      %v9206 = vpop.permute.xlu0 %9205
      %9207 = vrot.lane.b32.xlu0 %v9036, 107
      %v9208 = vpop.permute.xlu0 %9207
      %9209 = vrot.lane.b32.xlu0 %v9037, 107
      %v9210 = vpop.permute.xlu0 %9209
      %9211 = vrot.lane.b32.xlu0 %v9038, 107
      %v9212 = vpop.permute.xlu0 %9211
      %v9213 = vsel %vm438, %v9198, %v9200
      %v9214 = vsel %vm438, %v9200, %v9202
      %v9215 = vsel %vm438, %v9202, %v9204
      %v9216 = vsel %vm438, %v9206, %v9208
      %v9217 = vsel %vm438, %v9208, %v9210
      %v9218 = vsel %vm438, %v9210, %v9212
      %9227 = vrot.lane.b32.xlu0 %v9031, 106
      %v9228 = vpop.permute.xlu0 %9227
      %9229 = vrot.lane.b32.xlu0 %v9032, 106
      %v9230 = vpop.permute.xlu0 %9229
      %9231 = vrot.lane.b32.xlu0 %v9033, 106
      %v9232 = vpop.permute.xlu0 %9231
      %9233 = vrot.lane.b32.xlu0 %v9034, 106
      %v9234 = vpop.permute.xlu0 %9233
      %9235 = vrot.lane.b32.xlu0 %v9035, 106
      %v9236 = vpop.permute.xlu0 %9235
      %9237 = vrot.lane.b32.xlu0 %v9036, 106
      %v9238 = vpop.permute.xlu0 %9237
      %9239 = vrot.lane.b32.xlu0 %v9037, 106
      %v9240 = vpop.permute.xlu0 %9239
      %9241 = vrot.lane.b32.xlu0 %v9038, 106
      %v9242 = vpop.permute.xlu0 %9241
      %v9243 = vsel %vm469, %v9228, %v9230
      %v9244 = vsel %vm469, %v9230, %v9232
      %v9245 = vsel %vm469, %v9232, %v9234
      %v9246 = vsel %vm469, %v9236, %v9238
      %v9247 = vsel %vm469, %v9238, %v9240
      %v9248 = vsel %vm469, %v9240, %v9242
      %9257 = vrot.lane.b32.xlu0 %v9031, 105
      %v9258 = vpop.permute.xlu0 %9257
      %9259 = vrot.lane.b32.xlu0 %v9032, 105
      %v9260 = vpop.permute.xlu0 %9259
      %9261 = vrot.lane.b32.xlu0 %v9033, 105
      %v9262 = vpop.permute.xlu0 %9261
      %9263 = vrot.lane.b32.xlu0 %v9034, 105
      %v9264 = vpop.permute.xlu0 %9263
      %9265 = vrot.lane.b32.xlu0 %v9035, 105
      %v9266 = vpop.permute.xlu0 %9265
      %9267 = vrot.lane.b32.xlu0 %v9036, 105
      %v9268 = vpop.permute.xlu0 %9267
      %9269 = vrot.lane.b32.xlu0 %v9037, 105
      %v9270 = vpop.permute.xlu0 %9269
      %9271 = vrot.lane.b32.xlu0 %v9038, 105
      %v9272 = vpop.permute.xlu0 %9271
      %v9273 = vsel %vm500, %v9258, %v9260
      %v9274 = vsel %vm500, %v9260, %v9262
      %v9275 = vsel %vm500, %v9262, %v9264
      %v9276 = vsel %vm500, %v9266, %v9268
      %v9277 = vsel %vm500, %v9268, %v9270
      %v9278 = vsel %vm500, %v9270, %v9272
      %9287 = vrot.lane.b32.xlu0 %v9031, 104
      %v9288 = vpop.permute.xlu0 %9287
      %9289 = vrot.lane.b32.xlu0 %v9032, 104
      %v9290 = vpop.permute.xlu0 %9289
      %9291 = vrot.lane.b32.xlu0 %v9033, 104
      %v9292 = vpop.permute.xlu0 %9291
      %9293 = vrot.lane.b32.xlu0 %v9034, 104
      %v9294 = vpop.permute.xlu0 %9293
      %9295 = vrot.lane.b32.xlu0 %v9035, 104
      %v9296 = vpop.permute.xlu0 %9295
      %9297 = vrot.lane.b32.xlu0 %v9036, 104
      %v9298 = vpop.permute.xlu0 %9297
      %9299 = vrot.lane.b32.xlu0 %v9037, 104
      %v9300 = vpop.permute.xlu0 %9299
      %9301 = vrot.lane.b32.xlu0 %v9038, 104
      %v9302 = vpop.permute.xlu0 %9301
      %v9303 = vsel %vm531, %v9288, %v9290
      %v9304 = vsel %vm531, %v9290, %v9292
      %v9305 = vsel %vm531, %v9292, %v9294
      %v9306 = vsel %vm531, %v9296, %v9298
      %v9307 = vsel %vm531, %v9298, %v9300
      %v9308 = vsel %vm531, %v9300, %v9302
      %9317 = vrot.lane.b32.xlu0 %v9031, 88
      %v9318 = vpop.permute.xlu0 %9317
      %9319 = vrot.lane.b32.xlu0 %v9032, 88
      %v9320 = vpop.permute.xlu0 %9319
      %9321 = vrot.lane.b32.xlu0 %v9033, 88
      %v9322 = vpop.permute.xlu0 %9321
      %9323 = vrot.lane.b32.xlu0 %v9034, 88
      %v9324 = vpop.permute.xlu0 %9323
      %9325 = vrot.lane.b32.xlu0 %v9035, 88
      %v9326 = vpop.permute.xlu0 %9325
      %9327 = vrot.lane.b32.xlu0 %v9036, 88
      %v9328 = vpop.permute.xlu0 %9327
      %9329 = vrot.lane.b32.xlu0 %v9037, 88
      %v9330 = vpop.permute.xlu0 %9329
      %9331 = vrot.lane.b32.xlu0 %v9038, 88
      %v9332 = vpop.permute.xlu0 %9331
      %v9333 = vsel %vm562, %v9318, %v9320
      %v9334 = vsel %vm562, %v9320, %v9322
      %v9335 = vsel %vm562, %v9322, %v9324
      %v9336 = vsel %vm562, %v9326, %v9328
      %v9337 = vsel %vm562, %v9328, %v9330
      %v9338 = vsel %vm562, %v9330, %v9332
      %9347 = vrot.lane.b32.xlu0 %v9031, 87
      %v9348 = vpop.permute.xlu0 %9347
      %9349 = vrot.lane.b32.xlu0 %v9032, 87
      %v9350 = vpop.permute.xlu0 %9349
      %9351 = vrot.lane.b32.xlu0 %v9033, 87
      %v9352 = vpop.permute.xlu0 %9351
      %9353 = vrot.lane.b32.xlu0 %v9034, 87
      %v9354 = vpop.permute.xlu0 %9353
      %9355 = vrot.lane.b32.xlu0 %v9035, 87
      %v9356 = vpop.permute.xlu0 %9355
      %9357 = vrot.lane.b32.xlu0 %v9036, 87
      %v9358 = vpop.permute.xlu0 %9357
      %9359 = vrot.lane.b32.xlu0 %v9037, 87
      %v9360 = vpop.permute.xlu0 %9359
      %9361 = vrot.lane.b32.xlu0 %v9038, 87
      %v9362 = vpop.permute.xlu0 %9361
      %v9363 = vsel %vm593, %v9348, %v9350
      %v9364 = vsel %vm593, %v9350, %v9352
      %v9365 = vsel %vm593, %v9352, %v9354
      %v9366 = vsel %vm593, %v9356, %v9358
      %v9367 = vsel %vm593, %v9358, %v9360
      %v9368 = vsel %vm593, %v9360, %v9362
      %9377 = vrot.lane.b32.xlu0 %v9031, 86
      %v9378 = vpop.permute.xlu0 %9377
      %9379 = vrot.lane.b32.xlu0 %v9032, 86
      %v9380 = vpop.permute.xlu0 %9379
      %9381 = vrot.lane.b32.xlu0 %v9033, 86
      %v9382 = vpop.permute.xlu0 %9381
      %9383 = vrot.lane.b32.xlu0 %v9034, 86
      %v9384 = vpop.permute.xlu0 %9383
      %9385 = vrot.lane.b32.xlu0 %v9035, 86
      %v9386 = vpop.permute.xlu0 %9385
      %9387 = vrot.lane.b32.xlu0 %v9036, 86
      %v9388 = vpop.permute.xlu0 %9387
      %9389 = vrot.lane.b32.xlu0 %v9037, 86
      %v9390 = vpop.permute.xlu0 %9389
      %9391 = vrot.lane.b32.xlu0 %v9038, 86
      %v9392 = vpop.permute.xlu0 %9391
      %v9393 = vsel %vm624, %v9378, %v9380
      %v9394 = vsel %vm624, %v9380, %v9382
      %v9395 = vsel %vm624, %v9382, %v9384
      %v9396 = vsel %vm624, %v9386, %v9388
      %v9397 = vsel %vm624, %v9388, %v9390
      %v9398 = vsel %vm624, %v9390, %v9392
      %9407 = vrot.lane.b32.xlu0 %v9031, 85
      %v9408 = vpop.permute.xlu0 %9407
      %9409 = vrot.lane.b32.xlu0 %v9032, 85
      %v9410 = vpop.permute.xlu0 %9409
      %9411 = vrot.lane.b32.xlu0 %v9033, 85
      %v9412 = vpop.permute.xlu0 %9411
      %9413 = vrot.lane.b32.xlu0 %v9034, 85
      %v9414 = vpop.permute.xlu0 %9413
      %9415 = vrot.lane.b32.xlu0 %v9035, 85
      %v9416 = vpop.permute.xlu0 %9415
      %9417 = vrot.lane.b32.xlu0 %v9036, 85
      %v9418 = vpop.permute.xlu0 %9417
      %9419 = vrot.lane.b32.xlu0 %v9037, 85
      %v9420 = vpop.permute.xlu0 %9419
      %9421 = vrot.lane.b32.xlu0 %v9038, 85
      %v9422 = vpop.permute.xlu0 %9421
      %v9423 = vsel %vm655, %v9408, %v9410
      %v9424 = vsel %vm655, %v9410, %v9412
      %v9425 = vsel %vm655, %v9412, %v9414
      %v9426 = vsel %vm655, %v9416, %v9418
      %v9427 = vsel %vm655, %v9418, %v9420
      %v9428 = vsel %vm655, %v9420, %v9422
      %9437 = vrot.lane.b32.xlu0 %v9031, 84
      %v9438 = vpop.permute.xlu0 %9437
      %9439 = vrot.lane.b32.xlu0 %v9032, 84
      %v9440 = vpop.permute.xlu0 %9439
      %9441 = vrot.lane.b32.xlu0 %v9033, 84
      %v9442 = vpop.permute.xlu0 %9441
      %9443 = vrot.lane.b32.xlu0 %v9034, 84
      %v9444 = vpop.permute.xlu0 %9443
      %9445 = vrot.lane.b32.xlu0 %v9035, 84
      %v9446 = vpop.permute.xlu0 %9445
      %9447 = vrot.lane.b32.xlu0 %v9036, 84
      %v9448 = vpop.permute.xlu0 %9447
      %9449 = vrot.lane.b32.xlu0 %v9037, 84
      %v9450 = vpop.permute.xlu0 %9449
      %9451 = vrot.lane.b32.xlu0 %v9038, 84
      %v9452 = vpop.permute.xlu0 %9451
      %v9453 = vsel %vm686, %v9438, %v9440
      %v9454 = vsel %vm686, %v9440, %v9442
      %v9455 = vsel %vm686, %v9442, %v9444
      %v9456 = vsel %vm686, %v9446, %v9448
      %v9457 = vsel %vm686, %v9448, %v9450
      %v9458 = vsel %vm686, %v9450, %v9452
      %9467 = vrot.lane.b32.xlu0 %v9031, 68
      %v9468 = vpop.permute.xlu0 %9467
      %9469 = vrot.lane.b32.xlu0 %v9032, 68
      %v9470 = vpop.permute.xlu0 %9469
      %9471 = vrot.lane.b32.xlu0 %v9033, 68
      %v9472 = vpop.permute.xlu0 %9471
      %9473 = vrot.lane.b32.xlu0 %v9034, 68
      %v9474 = vpop.permute.xlu0 %9473
      %9475 = vrot.lane.b32.xlu0 %v9035, 68
      %v9476 = vpop.permute.xlu0 %9475
      %9477 = vrot.lane.b32.xlu0 %v9036, 68
      %v9478 = vpop.permute.xlu0 %9477
      %9479 = vrot.lane.b32.xlu0 %v9037, 68
      %v9480 = vpop.permute.xlu0 %9479
      %9481 = vrot.lane.b32.xlu0 %v9038, 68
      %v9482 = vpop.permute.xlu0 %9481
      %v9483 = vsel %vm717, %v9468, %v9470
      %v9484 = vsel %vm717, %v9470, %v9472
      %v9485 = vsel %vm717, %v9472, %v9474
      %v9486 = vsel %vm717, %v9476, %v9478
      %v9487 = vsel %vm717, %v9478, %v9480
      %v9488 = vsel %vm717, %v9480, %v9482
      %9497 = vrot.lane.b32.xlu0 %v9031, 109
      %v9498 = vpop.permute.xlu0 %9497
      %9499 = vrot.lane.b32.xlu0 %v9032, 109
      %v9500 = vpop.permute.xlu0 %9499
      %9501 = vrot.lane.b32.xlu0 %v9033, 109
      %v9502 = vpop.permute.xlu0 %9501
      %9503 = vrot.lane.b32.xlu0 %v9034, 109
      %v9504 = vpop.permute.xlu0 %9503
      %9505 = vrot.lane.b32.xlu0 %v9035, 109
      %v9506 = vpop.permute.xlu0 %9505
      %9507 = vrot.lane.b32.xlu0 %v9036, 109
      %v9508 = vpop.permute.xlu0 %9507
      %9509 = vrot.lane.b32.xlu0 %v9037, 109
      %v9510 = vpop.permute.xlu0 %9509
      %9511 = vrot.lane.b32.xlu0 %v9038, 109
      %v9512 = vpop.permute.xlu0 %9511
      %v9513 = vsel %vm748, %v9498, %v9500
      %v9514 = vsel %vm748, %v9500, %v9502
      %v9515 = vsel %vm748, %v9502, %v9504
      %v9516 = vsel %vm748, %v9506, %v9508
      %v9517 = vsel %vm748, %v9508, %v9510
      %v9518 = vsel %vm748, %v9510, %v9512
      %9519 = vrot.lane.b32.xlu0 %v9031, 67
      %v9520 = vpop.permute.xlu0 %9519
      %9521 = vrot.lane.b32.xlu0 %v9032, 67
      %v9522 = vpop.permute.xlu0 %9521
      %9523 = vrot.lane.b32.xlu0 %v9033, 67
      %v9524 = vpop.permute.xlu0 %9523
      %9525 = vrot.lane.b32.xlu0 %v9034, 67
      %v9526 = vpop.permute.xlu0 %9525
      %9527 = vrot.lane.b32.xlu0 %v9035, 67
      %v9528 = vpop.permute.xlu0 %9527
      %9529 = vrot.lane.b32.xlu0 %v9036, 67
      %v9530 = vpop.permute.xlu0 %9529
      %9531 = vrot.lane.b32.xlu0 %v9037, 67
      %v9532 = vpop.permute.xlu0 %9531
      %9533 = vrot.lane.b32.xlu0 %v9038, 67
      %v9534 = vpop.permute.xlu0 %9533
      %9535 = vrot.lane.b32.xlu0 %v9063, 67
      %v9536 = vpop.permute.xlu0 %9535
      %9537 = vrot.lane.b32.xlu0 %v9064, 67
      %v9538 = vpop.permute.xlu0 %9537
      %9539 = vrot.lane.b32.xlu0 %v9065, 67
      %v9540 = vpop.permute.xlu0 %9539
      %9541 = vrot.lane.b32.xlu0 %v9054, 67
      %v9542 = vpop.permute.xlu0 %9541
      %9543 = vrot.lane.b32.xlu0 %v9066, 67
      %v9544 = vpop.permute.xlu0 %9543
      %9545 = vrot.lane.b32.xlu0 %v9067, 67
      %v9546 = vpop.permute.xlu0 %9545
      %9547 = vrot.lane.b32.xlu0 %v9068, 67
      %v9548 = vpop.permute.xlu0 %9547
      %9549 = vrot.lane.b32.xlu0 %v9062, 67
      %v9550 = vpop.permute.xlu0 %9549
      %9551 = vrot.lane.b32.xlu0 %v9093, 67
      %v9552 = vpop.permute.xlu0 %9551
      %9553 = vrot.lane.b32.xlu0 %v9094, 67
      %v9554 = vpop.permute.xlu0 %9553
      %9555 = vrot.lane.b32.xlu0 %v9095, 67
      %v9556 = vpop.permute.xlu0 %9555
      %9557 = vrot.lane.b32.xlu0 %v9084, 67
      %v9558 = vpop.permute.xlu0 %9557
      %9559 = vrot.lane.b32.xlu0 %v9096, 67
      %v9560 = vpop.permute.xlu0 %9559
      %9561 = vrot.lane.b32.xlu0 %v9097, 67
      %v9562 = vpop.permute.xlu0 %9561
      %9563 = vrot.lane.b32.xlu0 %v9098, 67
      %v9564 = vpop.permute.xlu0 %9563
      %9565 = vrot.lane.b32.xlu0 %v9092, 67
      %v9566 = vpop.permute.xlu0 %9565
      %9567 = vrot.lane.b32.xlu0 %v9123, 67
      %v9568 = vpop.permute.xlu0 %9567
      %9569 = vrot.lane.b32.xlu0 %v9124, 67
      %v9570 = vpop.permute.xlu0 %9569
      %9571 = vrot.lane.b32.xlu0 %v9125, 67
      %v9572 = vpop.permute.xlu0 %9571
      %9573 = vrot.lane.b32.xlu0 %v9114, 67
      %v9574 = vpop.permute.xlu0 %9573
      %9575 = vrot.lane.b32.xlu0 %v9126, 67
      %v9576 = vpop.permute.xlu0 %9575
      %9577 = vrot.lane.b32.xlu0 %v9127, 67
      %v9578 = vpop.permute.xlu0 %9577
      %9579 = vrot.lane.b32.xlu0 %v9128, 67
      %v9580 = vpop.permute.xlu0 %9579
      %9581 = vrot.lane.b32.xlu0 %v9122, 67
      %v9582 = vpop.permute.xlu0 %9581
      %9583 = vrot.lane.b32.xlu0 %v9513, 67
      %v9584 = vpop.permute.xlu0 %9583
      %9585 = vrot.lane.b32.xlu0 %v9514, 67
      %v9586 = vpop.permute.xlu0 %9585
      %9587 = vrot.lane.b32.xlu0 %v9515, 67
      %v9588 = vpop.permute.xlu0 %9587
      %9589 = vrot.lane.b32.xlu0 %v9504, 67
      %v9590 = vpop.permute.xlu0 %9589
      %9591 = vrot.lane.b32.xlu0 %v9516, 67
      %v9592 = vpop.permute.xlu0 %9591
      %9593 = vrot.lane.b32.xlu0 %v9517, 67
      %v9594 = vpop.permute.xlu0 %9593
      %9595 = vrot.lane.b32.xlu0 %v9518, 67
      %v9596 = vpop.permute.xlu0 %9595
      %9597 = vrot.lane.b32.xlu0 %v9512, 67
      %v9598 = vpop.permute.xlu0 %9597
      %9599 = vrot.lane.b32.xlu0 %v9183, 67
      %v9600 = vpop.permute.xlu0 %9599
      %9601 = vrot.lane.b32.xlu0 %v9184, 67
      %v9602 = vpop.permute.xlu0 %9601
      %9603 = vrot.lane.b32.xlu0 %v9185, 67
      %v9604 = vpop.permute.xlu0 %9603
      %9605 = vrot.lane.b32.xlu0 %v9174, 67
      %v9606 = vpop.permute.xlu0 %9605
      %9607 = vrot.lane.b32.xlu0 %v9186, 67
      %v9608 = vpop.permute.xlu0 %9607
      %9609 = vrot.lane.b32.xlu0 %v9187, 67
      %v9610 = vpop.permute.xlu0 %9609
      %9611 = vrot.lane.b32.xlu0 %v9188, 67
      %v9612 = vpop.permute.xlu0 %9611
      %9613 = vrot.lane.b32.xlu0 %v9182, 67
      %v9614 = vpop.permute.xlu0 %9613
      %9615 = vrot.lane.b32.xlu0 %v9213, 67
      %v9616 = vpop.permute.xlu0 %9615
      %9617 = vrot.lane.b32.xlu0 %v9214, 67
      %v9618 = vpop.permute.xlu0 %9617
      %9619 = vrot.lane.b32.xlu0 %v9215, 67
      %v9620 = vpop.permute.xlu0 %9619
      %9621 = vrot.lane.b32.xlu0 %v9204, 67
      %v9622 = vpop.permute.xlu0 %9621
      %9623 = vrot.lane.b32.xlu0 %v9216, 67
      %v9624 = vpop.permute.xlu0 %9623
      %9625 = vrot.lane.b32.xlu0 %v9217, 67
      %v9626 = vpop.permute.xlu0 %9625
      %9627 = vrot.lane.b32.xlu0 %v9218, 67
      %v9628 = vpop.permute.xlu0 %9627
      %9629 = vrot.lane.b32.xlu0 %v9212, 67
      %v9630 = vpop.permute.xlu0 %9629
      %9631 = vrot.lane.b32.xlu0 %v9243, 67
      %v9632 = vpop.permute.xlu0 %9631
      %9633 = vrot.lane.b32.xlu0 %v9244, 67
      %v9634 = vpop.permute.xlu0 %9633
      %9635 = vrot.lane.b32.xlu0 %v9245, 67
      %v9636 = vpop.permute.xlu0 %9635
      %9637 = vrot.lane.b32.xlu0 %v9234, 67
      %v9638 = vpop.permute.xlu0 %9637
      %9639 = vrot.lane.b32.xlu0 %v9246, 67
      %v9640 = vpop.permute.xlu0 %9639
      %9641 = vrot.lane.b32.xlu0 %v9247, 67
      %v9642 = vpop.permute.xlu0 %9641
      %9643 = vrot.lane.b32.xlu0 %v9248, 67
      %v9644 = vpop.permute.xlu0 %9643
      %9645 = vrot.lane.b32.xlu0 %v9242, 67
      %v9646 = vpop.permute.xlu0 %9645
      %9647 = vrot.lane.b32.xlu0 %v9273, 67
      %v9648 = vpop.permute.xlu0 %9647
      %9649 = vrot.lane.b32.xlu0 %v9274, 67
      %v9650 = vpop.permute.xlu0 %9649
      %9651 = vrot.lane.b32.xlu0 %v9275, 67
      %v9652 = vpop.permute.xlu0 %9651
      %9653 = vrot.lane.b32.xlu0 %v9264, 67
      %v9654 = vpop.permute.xlu0 %9653
      %9655 = vrot.lane.b32.xlu0 %v9276, 67
      %v9656 = vpop.permute.xlu0 %9655
      %9657 = vrot.lane.b32.xlu0 %v9277, 67
      %v9658 = vpop.permute.xlu0 %9657
      %9659 = vrot.lane.b32.xlu0 %v9278, 67
      %v9660 = vpop.permute.xlu0 %9659
      %9661 = vrot.lane.b32.xlu0 %v9272, 67
      %v9662 = vpop.permute.xlu0 %9661
      %v9663 = vsel %vm899, %v9520, %v9522
      %v9664 = vsel %vm899, %v9522, %v9524
      %v9665 = vsel %vm899, %v9524, %v9526
      %v9666 = vsel %vm899, %v9528, %v9530
      %v9667 = vsel %vm899, %v9530, %v9532
      %v9668 = vsel %vm899, %v9532, %v9534
      %v9669 = vsel %vm899, %v9536, %v9538
      %v9670 = vsel %vm899, %v9538, %v9540
      %v9671 = vsel %vm899, %v9540, %v9542
      %v9672 = vsel %vm899, %v9544, %v9546
      %v9673 = vsel %vm899, %v9546, %v9548
      %v9674 = vsel %vm899, %v9548, %v9550
      %v9675 = vsel %vm899, %v9552, %v9554
      %v9676 = vsel %vm899, %v9554, %v9556
      %v9677 = vsel %vm899, %v9556, %v9558
      %v9678 = vsel %vm899, %v9560, %v9562
      %v9679 = vsel %vm899, %v9562, %v9564
      %v9680 = vsel %vm899, %v9564, %v9566
      %v9681 = vsel %vm899, %v9568, %v9570
      %v9682 = vsel %vm899, %v9570, %v9572
      %v9683 = vsel %vm899, %v9572, %v9574
      %v9684 = vsel %vm899, %v9576, %v9578
      %v9685 = vsel %vm899, %v9578, %v9580
      %v9686 = vsel %vm899, %v9580, %v9582
      %v9687 = vsel %vm899, %v9584, %v9586
      %v9688 = vsel %vm899, %v9586, %v9588
      %v9689 = vsel %vm899, %v9588, %v9590
      %v9690 = vsel %vm899, %v9592, %v9594
      %v9691 = vsel %vm899, %v9594, %v9596
      %v9692 = vsel %vm899, %v9596, %v9598
      %v9693 = vsel %vm899, %v9600, %v9602
      %v9694 = vsel %vm899, %v9602, %v9604
      %v9695 = vsel %vm899, %v9604, %v9606
      %v9696 = vsel %vm899, %v9608, %v9610
      %v9697 = vsel %vm899, %v9610, %v9612
      %v9698 = vsel %vm899, %v9612, %v9614
      %v9699 = vsel %vm899, %v9616, %v9618
      %v9700 = vsel %vm899, %v9618, %v9620
      %v9701 = vsel %vm899, %v9620, %v9622
      %v9702 = vsel %vm899, %v9624, %v9626
      %v9703 = vsel %vm899, %v9626, %v9628
      %v9704 = vsel %vm899, %v9628, %v9630
      %v9705 = vsel %vm899, %v9632, %v9634
      %v9706 = vsel %vm899, %v9634, %v9636
      %v9707 = vsel %vm899, %v9636, %v9638
      %v9708 = vsel %vm899, %v9640, %v9642
      %v9709 = vsel %vm899, %v9642, %v9644
      %v9710 = vsel %vm899, %v9644, %v9646
      %v9711 = vsel %vm899, %v9648, %v9650
      %v9712 = vsel %vm899, %v9650, %v9652
      %v9713 = vsel %vm899, %v9652, %v9654
      %v9714 = vsel %vm899, %v9656, %v9658
      %v9715 = vsel %vm899, %v9658, %v9660
      %v9716 = vsel %vm899, %v9660, %v9662
      %s9789 = scalar_lea.vmem %s1, 672
      %v9790 = vld [vmem:[%s9789] sm:$0xff]
      %v9791 = vld [vmem:[%s9789 + $0x8] sm:$0xff]
      %v9792 = vld [vmem:[%s9789 + $0x10] sm:$0xff]
      %v9793 = vld [vmem:[%s9789 + $0x18] sm:$0xf]
      %v9794 = vld [vmem:[%s9789 + $0x1c] sm:$0xff]
      %v9795 = vld [vmem:[%s9789 + $0x24] sm:$0xff]
      %v9796 = vld [vmem:[%s9789 + $0x2c] sm:$0xff]
      %v9797 = vld [vmem:[%s9789 + $0x34] sm:$0xf]
      %v9798 = vld [vmem:[%s9789 + $0x38] sm:$0xff]
      %v9799 = vld [vmem:[%s9789 + $0x40] sm:$0xff]
      %v9800 = vld [vmem:[%s9789 + $0x48] sm:$0xff]
      %v9801 = vld [vmem:[%s9789 + $0x50] sm:$0xf]
      %v9802 = vld [vmem:[%s9789 + $0x54] sm:$0xff]
      %v9803 = vld [vmem:[%s9789 + $0x5c] sm:$0xff]
      %v9804 = vld [vmem:[%s9789 + $0x64] sm:$0xff]
      %v9805 = vld [vmem:[%s9789 + $0x6c] sm:$0xf]
      %s9806 = scalar_lea.vmem %s2, 192
      %v9807 = vld [vmem:[%s9806] sm:$0xff]
      %v9808 = vld [vmem:[%s9806 + $0x8] sm:$0xff]
      %v9809 = vld [vmem:[%s9806 + $0x10] sm:$0xff]
      %v9810 = vld [vmem:[%s9806 + $0x18] sm:$0xff]
      %9812 = vset.pattern.permute.xlu0 0
      %9813 = vperm.xlu0 %9812, %v9807
      %v9814 = vpop.permute.xlu0 %9813
      %9817 = vset.pattern.permute.xlu0 0
      %9818 = vperm.xlu0 %9817, %v9808
      %v9819 = vpop.permute.xlu0 %9818
      %9822 = vset.pattern.permute.xlu0 0
      %9823 = vperm.xlu0 %9822, %v9809
      %v9824 = vpop.permute.xlu0 %9823
      %9827 = vset.pattern.permute.xlu0 0
      %9828 = vperm.xlu0 %9827, %v9810
      %v9829 = vpop.permute.xlu0 %9828
      %v9847 = vunpack.c.l.b16 %v9790
      %v9848 = vunpack.c.h.b16 %v9790
      %v9849 = vunpack.c.l.b16 %v9791
      %v9850 = vunpack.c.h.b16 %v9791
      %v9851 = vunpack.c.l.b16 %v9792
      %v9852 = vunpack.c.h.b16 %v9792
      %v9853 = vunpack.c.l.b16 %v9793
      %v9854 = vunpack.c.l.b16 %v9794
      %v9855 = vunpack.c.h.b16 %v9794
      %v9856 = vunpack.c.l.b16 %v9795
      %v9857 = vunpack.c.h.b16 %v9795
      %v9858 = vunpack.c.l.b16 %v9796
      %v9859 = vunpack.c.h.b16 %v9796
      %v9860 = vunpack.c.l.b16 %v9797
      %v9861 = vunpack.c.l.b16 %v9798
      %v9862 = vunpack.c.h.b16 %v9798
      %v9863 = vunpack.c.l.b16 %v9799
      %v9864 = vunpack.c.h.b16 %v9799
      %v9865 = vunpack.c.l.b16 %v9800
      %v9866 = vunpack.c.h.b16 %v9800
      %v9867 = vunpack.c.l.b16 %v9801
      %v9868 = vunpack.c.l.b16 %v9802
      %v9869 = vunpack.c.h.b16 %v9802
      %v9870 = vunpack.c.l.b16 %v9803
      %v9871 = vunpack.c.h.b16 %v9803
      %v9872 = vunpack.c.l.b16 %v9804
      %v9873 = vunpack.c.h.b16 %v9804
      %v9874 = vunpack.c.l.b16 %v9805
      %v9875 = vpack.c.b16 %v9854, %v9847
      %v9876 = vpack.c.b16 %v9855, %v9848
      %v9877 = vpack.c.b16 %v9856, %v9849
      %v9878 = vpack.c.b16 %v9857, %v9850
      %v9879 = vpack.c.b16 %v9858, %v9851
      %v9880 = vpack.c.b16 %v9859, %v9852
      %v9881 = vpack.c.b16 %v9860, %v9853
      %v9882 = vpack.c.b16 %v9868, %v9861
      %v9883 = vpack.c.b16 %v9869, %v9862
      %v9884 = vpack.c.b16 %v9870, %v9863
      %v9885 = vpack.c.b16 %v9871, %v9864
      %v9886 = vpack.c.b16 %v9872, %v9865
      %v9887 = vpack.c.b16 %v9873, %v9866
      %v9888 = vpack.c.b16 %v9874, %v9867
      %v9902 = vsel %vm1136, %v9881, 0
      %v9905 = vsel %vm1136, %v9888, 0
      %9907 = vmatprep.subr.bf16.mxu0 %v9127
      %9908 = vmatpush1.bf16.msra.mxu0 %v9126
      %9909 = vmatprep.subr.bf16.mxu0 %v9124
      %9910 = vmatpush1.bf16.msra.mxu0 %v9123
      %9911 = vmatprep.subr.bf16.mxu0 %v9097
      %9912 = vmatpush1.bf16.msra.mxu0 %v9096
      %9913 = vmatprep.subr.bf16.mxu0 %v9094
      %9914 = vmatpush1.bf16.msra.mxu0 %v9093
      %9915 = vmatprep.subr.bf16.mxu0 %v9067
      %9916 = vmatpush1.bf16.msra.mxu0 %v9066
      %9917 = vmatprep.subr.bf16.mxu0 %v9064
      %9918 = vmatpush1.bf16.msra.mxu0 %v9063
      %9919 = vmatprep.subr.bf16.mxu0 %v9036
      %9920 = vmatpush1.bf16.msra.mxu0 %v9035
      %9921 = vmatprep.subr.bf16.mxu0 %v9032
      %9922 = vmatpush1.bf16.msra.mxu0 %v9031
      %9923 = vmatprep.subr.bf16.mxu0 %v9247
      %9924 = vmatpush2.bf16.msra.mxu0 %v9246
      %9925 = vmatprep.subr.bf16.mxu0 %v9244
      %9926 = vmatpush2.bf16.msra.mxu0 %v9243
      %9927 = vmatprep.subr.bf16.mxu0 %v9217
      %9928 = vmatpush2.bf16.msra.mxu0 %v9216
      %9929 = vmatprep.subr.bf16.mxu0 %v9214
      %9930 = vmatpush2.bf16.msra.mxu0 %v9213
      %9931 = vmatprep.subr.bf16.mxu0 %v9187
      %9932 = vmatpush2.bf16.msra.mxu0 %v9186
      %9933 = vmatprep.subr.bf16.mxu0 %v9184
      %9934 = vmatpush2.bf16.msra.mxu0 %v9183
      %9935 = vmatprep.subr.bf16.mxu0 %v9157
      %9936 = vmatpush2.bf16.msra.mxu0 %v9156
      %9937 = vmatprep.subr.bf16.mxu0 %v9154
      %9938 = vmatpush2.bf16.msra.mxu0 %v9153
      %9939 = vmatprep.mubr.bf16.mxu0 %v9876
      %9940 = vmatmul.mubr.bf16.gmra.mxu0 %v9875
      %v9941 = vpop.f32.mrf.mxu0
      %v9942 = vadd.f32 %v9814, %v9941
      %v9943 = vpop.f32.mrf.mxu0
      %v9944 = vadd.f32 %v9814, %v9943
      %v9945 = vpop.f32.mrf.mxu0
      %v9946 = vadd.f32 %v9819, %v9945
      %v9947 = vpop.f32.mrf.mxu0
      %v9948 = vadd.f32 %v9819, %v9947
      %9949 = vmatprep.mubr.bf16.mxu0 %v9883
      %9950 = vmatmul.mubr.bf16.gmra.mxu0 %v9882
      %v9951 = vpop.f32.mrf.mxu0
      %v9952 = vadd.f32 %v9824, %v9951
      %v9953 = vpop.f32.mrf.mxu0
      %v9954 = vadd.f32 %v9824, %v9953
      %v9955 = vpop.f32.mrf.mxu0
      %v9956 = vadd.f32 %v9829, %v9955
      %v9957 = vpop.f32.mrf.mxu0
      %v9958 = vadd.f32 %v9829, %v9957
      %9959 = vdwg.mxu0
      %9960 = vmatprep.subr.bf16.mxu0 %v9367
      %9961 = vmatpush1.bf16.msra.mxu0 %v9366
      %9962 = vmatprep.subr.bf16.mxu0 %v9364
      %9963 = vmatpush1.bf16.msra.mxu0 %v9363
      %9964 = vmatprep.subr.bf16.mxu0 %v9337
      %9965 = vmatpush1.bf16.msra.mxu0 %v9336
      %9966 = vmatprep.subr.bf16.mxu0 %v9334
      %9967 = vmatpush1.bf16.msra.mxu0 %v9333
      %9968 = vmatprep.subr.bf16.mxu0 %v9307
      %9969 = vmatpush1.bf16.msra.mxu0 %v9306
      %9970 = vmatprep.subr.bf16.mxu0 %v9304
      %9971 = vmatpush1.bf16.msra.mxu0 %v9303
      %9972 = vmatprep.subr.bf16.mxu0 %v9277
      %9973 = vmatpush1.bf16.msra.mxu0 %v9276
      %9974 = vmatprep.subr.bf16.mxu0 %v9274
      %9975 = vmatpush1.bf16.msra.mxu0 %v9273
      %9976 = vmatprep.subr.bf16.mxu0 %v9487
      %9977 = vmatpush2.bf16.msra.mxu0 %v9486
      %9978 = vmatprep.subr.bf16.mxu0 %v9484
      %9979 = vmatpush2.bf16.msra.mxu0 %v9483
      %9980 = vmatprep.subr.bf16.mxu0 %v9457
      %9981 = vmatpush2.bf16.msra.mxu0 %v9456
      %9982 = vmatprep.subr.bf16.mxu0 %v9454
      %9983 = vmatpush2.bf16.msra.mxu0 %v9453
      %9984 = vmatprep.subr.bf16.mxu0 %v9427
      %9985 = vmatpush2.bf16.msra.mxu0 %v9426
      %9986 = vmatprep.subr.bf16.mxu0 %v9424
      %9987 = vmatpush2.bf16.msra.mxu0 %v9423
      %9988 = vmatprep.subr.bf16.mxu0 %v9397
      %9989 = vmatpush2.bf16.msra.mxu0 %v9396
      %9990 = vmatprep.subr.bf16.mxu0 %v9394
      %9991 = vmatpush2.bf16.msra.mxu0 %v9393
      %9992 = vmatprep.mubr.bf16.mxu0 %v9878
      %9993 = vmatmul.mubr.bf16.gmra.mxu0 %v9877
      %v9994 = vpop.f32.mrf.mxu0
      %v9995 = vadd.f32 %v9942, %v9994
      %v9996 = vpop.f32.mrf.mxu0
      %v9997 = vadd.f32 %v9944, %v9996
      %v9998 = vpop.f32.mrf.mxu0
      %v9999 = vadd.f32 %v9946, %v9998
      %v10000 = vpop.f32.mrf.mxu0
      %v10001 = vadd.f32 %v9948, %v10000
      %10002 = vmatprep.mubr.bf16.mxu0 %v9885
      %10003 = vmatmul.mubr.bf16.gmra.mxu0 %v9884
      %v10004 = vpop.f32.mrf.mxu0
      %v10005 = vadd.f32 %v9952, %v10004
      %v10006 = vpop.f32.mrf.mxu0
      %v10007 = vadd.f32 %v9954, %v10006
      %v10008 = vpop.f32.mrf.mxu0
      %v10009 = vadd.f32 %v9956, %v10008
      %v10010 = vpop.f32.mrf.mxu0
      %v10011 = vadd.f32 %v9958, %v10010
      %10012 = vdwg.mxu0
      %10013 = vmatprep.subr.bf16.mxu0 %v9685
      %10014 = vmatpush1.bf16.msra.mxu0 %v9684
      %10015 = vmatprep.subr.bf16.mxu0 %v9682
      %10016 = vmatpush1.bf16.msra.mxu0 %v9681
      %10017 = vmatprep.subr.bf16.mxu0 %v9679
      %10018 = vmatpush1.bf16.msra.mxu0 %v9678
      %10019 = vmatprep.subr.bf16.mxu0 %v9676
      %10020 = vmatpush1.bf16.msra.mxu0 %v9675
      %10021 = vmatprep.subr.bf16.mxu0 %v9673
      %10022 = vmatpush1.bf16.msra.mxu0 %v9672
      %10023 = vmatprep.subr.bf16.mxu0 %v9670
      %10024 = vmatpush1.bf16.msra.mxu0 %v9669
      %10025 = vmatprep.subr.bf16.mxu0 %v9667
      %10026 = vmatpush1.bf16.msra.mxu0 %v9666
      %10027 = vmatprep.subr.bf16.mxu0 %v9664
      %10028 = vmatpush1.bf16.msra.mxu0 %v9663
      %10029 = vmatprep.subr.bf16.mxu0 %v9709
      %10030 = vmatpush2.bf16.msra.mxu0 %v9708
      %10031 = vmatprep.subr.bf16.mxu0 %v9706
      %10032 = vmatpush2.bf16.msra.mxu0 %v9705
      %10033 = vmatprep.subr.bf16.mxu0 %v9703
      %10034 = vmatpush2.bf16.msra.mxu0 %v9702
      %10035 = vmatprep.subr.bf16.mxu0 %v9700
      %10036 = vmatpush2.bf16.msra.mxu0 %v9699
      %10037 = vmatprep.subr.bf16.mxu0 %v9697
      %10038 = vmatpush2.bf16.msra.mxu0 %v9696
      %10039 = vmatprep.subr.bf16.mxu0 %v9694
      %10040 = vmatpush2.bf16.msra.mxu0 %v9693
      %10041 = vmatprep.subr.bf16.mxu0 %v9691
      %10042 = vmatpush2.bf16.msra.mxu0 %v9690
      %10043 = vmatprep.subr.bf16.mxu0 %v9688
      %10044 = vmatpush2.bf16.msra.mxu0 %v9687
      %10045 = vmatprep.mubr.bf16.mxu0 %v9880
      %10046 = vmatmul.mubr.bf16.gmra.mxu0 %v9879
      %v10047 = vpop.f32.mrf.mxu0
      %v10048 = vadd.f32 %v9995, %v10047
      %v10049 = vpop.f32.mrf.mxu0
      %v10050 = vadd.f32 %v9997, %v10049
      %v10051 = vpop.f32.mrf.mxu0
      %v10052 = vadd.f32 %v9999, %v10051
      %v10053 = vpop.f32.mrf.mxu0
      %v10054 = vadd.f32 %v10001, %v10053
      %10055 = vmatprep.mubr.bf16.mxu0 %v9887
      %10056 = vmatmul.mubr.bf16.gmra.mxu0 %v9886
      %v10057 = vpop.f32.mrf.mxu0
      %v10058 = vadd.f32 %v10005, %v10057
      %v10059 = vpop.f32.mrf.mxu0
      %v10060 = vadd.f32 %v10007, %v10059
      %v10061 = vpop.f32.mrf.mxu0
      %v10062 = vadd.f32 %v10009, %v10061
      %v10063 = vpop.f32.mrf.mxu0
      %v10064 = vadd.f32 %v10011, %v10063
      %10065 = vdwg.mxu0
      %10066 = vmatprep.subr.bf16.mxu0 0
      %10067 = vmatpush1.bf16.msra.mxu0 0
      %10068 = vmatprep.subr.bf16.mxu0 0
      %10069 = vmatpush1.bf16.msra.mxu0 0
      %10070 = vmatprep.subr.bf16.mxu0 0
      %10071 = vmatpush1.bf16.msra.mxu0 0
      %10072 = vmatprep.subr.bf16.mxu0 0
      %10073 = vmatpush1.bf16.msra.mxu0 0
      %10074 = vmatprep.subr.bf16.mxu0 0
      %10075 = vmatpush1.bf16.msra.mxu0 0
      %10076 = vmatprep.subr.bf16.mxu0 0
      %10077 = vmatpush1.bf16.msra.mxu0 0
      %10078 = vmatprep.subr.bf16.mxu0 %v9715
      %10079 = vmatpush1.bf16.msra.mxu0 %v9714
      %10080 = vmatprep.subr.bf16.mxu0 %v9712
      %10081 = vmatpush1.bf16.msra.mxu0 %v9711
      %10082 = vmatprep.subr.bf16.mxu0 0
      %10083 = vmatpush2.bf16.msra.mxu0 0
      %10084 = vmatprep.subr.bf16.mxu0 0
      %10085 = vmatpush2.bf16.msra.mxu0 0
      %10086 = vmatprep.subr.bf16.mxu0 0
      %10087 = vmatpush2.bf16.msra.mxu0 0
      %10088 = vmatprep.subr.bf16.mxu0 0
      %10089 = vmatpush2.bf16.msra.mxu0 0
      %10090 = vmatprep.subr.bf16.mxu0 0
      %10091 = vmatpush2.bf16.msra.mxu0 0
      %10092 = vmatprep.subr.bf16.mxu0 0
      %10093 = vmatpush2.bf16.msra.mxu0 0
      %10094 = vmatprep.subr.bf16.mxu0 0
      %10095 = vmatpush2.bf16.msra.mxu0 0
      %10096 = vmatprep.subr.bf16.mxu0 0
      %10097 = vmatpush2.bf16.msra.mxu0 0
      %10098 = vmatprep.mubr.bf16.mxu0 0
      %10099 = vmatmul.mubr.bf16.gmra.mxu0 %v9902
      %v10100 = vpop.f32.mrf.mxu0
      %v10101 = vadd.f32 %v10048, %v10100
      %v10102 = vpop.f32.mrf.mxu0
      %v10103 = vadd.f32 %v10050, %v10102
      %v10104 = vpop.f32.mrf.mxu0
      %v10105 = vadd.f32 %v10052, %v10104
      %v10106 = vpop.f32.mrf.mxu0
      %v10107 = vadd.f32 %v10054, %v10106
      %10108 = vmatprep.mubr.bf16.mxu0 0
      %10109 = vmatmul.mubr.bf16.gmra.mxu0 %v9905
      %v10110 = vpop.f32.mrf.mxu0
      %v10111 = vadd.f32 %v10058, %v10110
      %v10112 = vpop.f32.mrf.mxu0
      %v10113 = vadd.f32 %v10060, %v10112
      %v10114 = vpop.f32.mrf.mxu0
      %v10115 = vadd.f32 %v10062, %v10114
      %v10116 = vpop.f32.mrf.mxu0
      %v10117 = vadd.f32 %v10064, %v10116
      %10118 = vdwg.mxu0
      %10119 = vmatprep.subr.bf16.mxu0 %v9122
      %10120 = vmatpush1.bf16.msra.mxu0 %v9128
      %10121 = vmatprep.subr.bf16.mxu0 %v9114
      %10122 = vmatpush1.bf16.msra.mxu0 %v9125
      %10123 = vmatprep.subr.bf16.mxu0 %v9092
      %10124 = vmatpush1.bf16.msra.mxu0 %v9098
      %10125 = vmatprep.subr.bf16.mxu0 %v9084
      %10126 = vmatpush1.bf16.msra.mxu0 %v9095
      %10127 = vmatprep.subr.bf16.mxu0 %v9062
      %10128 = vmatpush1.bf16.msra.mxu0 %v9068
      %10129 = vmatprep.subr.bf16.mxu0 %v9054
      %10130 = vmatpush1.bf16.msra.mxu0 %v9065
      %10131 = vmatprep.subr.bf16.mxu0 %v9038
      %10132 = vmatpush1.bf16.msra.mxu0 %v9037
      %10133 = vmatprep.subr.bf16.mxu0 %v9034
      %10134 = vmatpush1.bf16.msra.mxu0 %v9033
      %10135 = vmatprep.subr.bf16.mxu0 %v9242
      %10136 = vmatpush2.bf16.msra.mxu0 %v9248
      %10137 = vmatprep.subr.bf16.mxu0 %v9234
      %10138 = vmatpush2.bf16.msra.mxu0 %v9245
      %10139 = vmatprep.subr.bf16.mxu0 %v9212
      %10140 = vmatpush2.bf16.msra.mxu0 %v9218
      %10141 = vmatprep.subr.bf16.mxu0 %v9204
      %10142 = vmatpush2.bf16.msra.mxu0 %v9215
      %10143 = vmatprep.subr.bf16.mxu0 %v9182
      %10144 = vmatpush2.bf16.msra.mxu0 %v9188
      %10145 = vmatprep.subr.bf16.mxu0 %v9174
      %10146 = vmatpush2.bf16.msra.mxu0 %v9185
      %10147 = vmatprep.subr.bf16.mxu0 %v9152
      %10148 = vmatpush2.bf16.msra.mxu0 %v9158
      %10149 = vmatprep.subr.bf16.mxu0 %v9144
      %10150 = vmatpush2.bf16.msra.mxu0 %v9155
      %10151 = vmatprep.mubr.bf16.mxu0 %v9876
      %10152 = vmatmul.mubr.bf16.gmra.mxu0 %v9875
      %v10153 = vpop.f32.mrf.mxu0
      %v10154 = vadd.f32 %v9814, %v10153
      %v10155 = vpop.f32.mrf.mxu0
      %v10156 = vadd.f32 %v9814, %v10155
      %v10157 = vpop.f32.mrf.mxu0
      %v10158 = vadd.f32 %v9819, %v10157
      %v10159 = vpop.f32.mrf.mxu0
      %v10160 = vadd.f32 %v9819, %v10159
      %10161 = vmatprep.mubr.bf16.mxu0 %v9883
      %10162 = vmatmul.mubr.bf16.gmra.mxu0 %v9882
      %v10163 = vpop.f32.mrf.mxu0
      %v10164 = vadd.f32 %v9824, %v10163
      %v10165 = vpop.f32.mrf.mxu0
      %v10166 = vadd.f32 %v9824, %v10165
      %v10167 = vpop.f32.mrf.mxu0
      %v10168 = vadd.f32 %v9829, %v10167
      %v10169 = vpop.f32.mrf.mxu0
      %v10170 = vadd.f32 %v9829, %v10169
      %10171 = vdwg.mxu0
      %10172 = vmatprep.subr.bf16.mxu0 %v9362
      %10173 = vmatpush1.bf16.msra.mxu0 %v9368
      %10174 = vmatprep.subr.bf16.mxu0 %v9354
      %10175 = vmatpush1.bf16.msra.mxu0 %v9365
      %10176 = vmatprep.subr.bf16.mxu0 %v9332
      %10177 = vmatpush1.bf16.msra.mxu0 %v9338
      %10178 = vmatprep.subr.bf16.mxu0 %v9324
      %10179 = vmatpush1.bf16.msra.mxu0 %v9335
      %10180 = vmatprep.subr.bf16.mxu0 %v9302
      %10181 = vmatpush1.bf16.msra.mxu0 %v9308
      %10182 = vmatprep.subr.bf16.mxu0 %v9294
      %10183 = vmatpush1.bf16.msra.mxu0 %v9305
      %10184 = vmatprep.subr.bf16.mxu0 %v9272
      %10185 = vmatpush1.bf16.msra.mxu0 %v9278
      %10186 = vmatprep.subr.bf16.mxu0 %v9264
      %10187 = vmatpush1.bf16.msra.mxu0 %v9275
      %10188 = vmatprep.subr.bf16.mxu0 %v9482
      %10189 = vmatpush2.bf16.msra.mxu0 %v9488
      %10190 = vmatprep.subr.bf16.mxu0 %v9474
      %10191 = vmatpush2.bf16.msra.mxu0 %v9485
      %10192 = vmatprep.subr.bf16.mxu0 %v9452
      %10193 = vmatpush2.bf16.msra.mxu0 %v9458
      %10194 = vmatprep.subr.bf16.mxu0 %v9444
      %10195 = vmatpush2.bf16.msra.mxu0 %v9455
      %10196 = vmatprep.subr.bf16.mxu0 %v9422
      %10197 = vmatpush2.bf16.msra.mxu0 %v9428
      %10198 = vmatprep.subr.bf16.mxu0 %v9414
      %10199 = vmatpush2.bf16.msra.mxu0 %v9425
      %10200 = vmatprep.subr.bf16.mxu0 %v9392
      %10201 = vmatpush2.bf16.msra.mxu0 %v9398
      %10202 = vmatprep.subr.bf16.mxu0 %v9384
      %10203 = vmatpush2.bf16.msra.mxu0 %v9395
      %10204 = vmatprep.mubr.bf16.mxu0 %v9878
      %10205 = vmatmul.mubr.bf16.gmra.mxu0 %v9877
      %v10206 = vpop.f32.mrf.mxu0
      %v10207 = vadd.f32 %v10154, %v10206
      %v10208 = vpop.f32.mrf.mxu0
      %v10209 = vadd.f32 %v10156, %v10208
      %v10210 = vpop.f32.mrf.mxu0
      %v10211 = vadd.f32 %v10158, %v10210
      %v10212 = vpop.f32.mrf.mxu0
      %v10213 = vadd.f32 %v10160, %v10212
      %10214 = vmatprep.mubr.bf16.mxu0 %v9885
      %10215 = vmatmul.mubr.bf16.gmra.mxu0 %v9884
      %v10216 = vpop.f32.mrf.mxu0
      %v10217 = vadd.f32 %v10164, %v10216
      %v10218 = vpop.f32.mrf.mxu0
      %v10219 = vadd.f32 %v10166, %v10218
      %v10220 = vpop.f32.mrf.mxu0
      %v10221 = vadd.f32 %v10168, %v10220
      %v10222 = vpop.f32.mrf.mxu0
      %v10223 = vadd.f32 %v10170, %v10222
      %10224 = vdwg.mxu0
      %10225 = vmatprep.subr.bf16.mxu0 %v9582
      %10226 = vmatpush1.bf16.msra.mxu0 %v9686
      %10227 = vmatprep.subr.bf16.mxu0 %v9574
      %10228 = vmatpush1.bf16.msra.mxu0 %v9683
      %10229 = vmatprep.subr.bf16.mxu0 %v9566
      %10230 = vmatpush1.bf16.msra.mxu0 %v9680
      %10231 = vmatprep.subr.bf16.mxu0 %v9558
      %10232 = vmatpush1.bf16.msra.mxu0 %v9677
      %10233 = vmatprep.subr.bf16.mxu0 %v9550
      %10234 = vmatpush1.bf16.msra.mxu0 %v9674
      %10235 = vmatprep.subr.bf16.mxu0 %v9542
      %10236 = vmatpush1.bf16.msra.mxu0 %v9671
      %10237 = vmatprep.subr.bf16.mxu0 %v9534
      %10238 = vmatpush1.bf16.msra.mxu0 %v9668
      %10239 = vmatprep.subr.bf16.mxu0 %v9526
      %10240 = vmatpush1.bf16.msra.mxu0 %v9665
      %10241 = vmatprep.subr.bf16.mxu0 %v9646
      %10242 = vmatpush2.bf16.msra.mxu0 %v9710
      %10243 = vmatprep.subr.bf16.mxu0 %v9638
      %10244 = vmatpush2.bf16.msra.mxu0 %v9707
      %10245 = vmatprep.subr.bf16.mxu0 %v9630
      %10246 = vmatpush2.bf16.msra.mxu0 %v9704
      %10247 = vmatprep.subr.bf16.mxu0 %v9622
      %10248 = vmatpush2.bf16.msra.mxu0 %v9701
      %10249 = vmatprep.subr.bf16.mxu0 %v9614
      %10250 = vmatpush2.bf16.msra.mxu0 %v9698
      %10251 = vmatprep.subr.bf16.mxu0 %v9606
      %10252 = vmatpush2.bf16.msra.mxu0 %v9695
      %10253 = vmatprep.subr.bf16.mxu0 %v9598
      %10254 = vmatpush2.bf16.msra.mxu0 %v9692
      %10255 = vmatprep.subr.bf16.mxu0 %v9590
      %10256 = vmatpush2.bf16.msra.mxu0 %v9689
      %10257 = vmatprep.mubr.bf16.mxu0 %v9880
      %10258 = vmatmul.mubr.bf16.gmra.mxu0 %v9879
      %v10259 = vpop.f32.mrf.mxu0
      %v10260 = vadd.f32 %v10207, %v10259
      %v10261 = vpop.f32.mrf.mxu0
      %v10262 = vadd.f32 %v10209, %v10261
      %v10263 = vpop.f32.mrf.mxu0
      %v10264 = vadd.f32 %v10211, %v10263
      %v10265 = vpop.f32.mrf.mxu0
      %v10266 = vadd.f32 %v10213, %v10265
      %10267 = vmatprep.mubr.bf16.mxu0 %v9887
      %10268 = vmatmul.mubr.bf16.gmra.mxu0 %v9886
      %v10269 = vpop.f32.mrf.mxu0
      %v10270 = vadd.f32 %v10217, %v10269
      %v10271 = vpop.f32.mrf.mxu0
      %v10272 = vadd.f32 %v10219, %v10271
      %v10273 = vpop.f32.mrf.mxu0
      %v10274 = vadd.f32 %v10221, %v10273
      %v10275 = vpop.f32.mrf.mxu0
      %v10276 = vadd.f32 %v10223, %v10275
      %10277 = vdwg.mxu0
      %10278 = vmatprep.subr.bf16.mxu0 0
      %10279 = vmatpush1.bf16.msra.mxu0 0
      %10280 = vmatprep.subr.bf16.mxu0 0
      %10281 = vmatpush1.bf16.msra.mxu0 0
      %10282 = vmatprep.subr.bf16.mxu0 0
      %10283 = vmatpush1.bf16.msra.mxu0 0
      %10284 = vmatprep.subr.bf16.mxu0 0
      %10285 = vmatpush1.bf16.msra.mxu0 0
      %10286 = vmatprep.subr.bf16.mxu0 0
      %10287 = vmatpush1.bf16.msra.mxu0 0
      %10288 = vmatprep.subr.bf16.mxu0 0
      %10289 = vmatpush1.bf16.msra.mxu0 0
      %10290 = vmatprep.subr.bf16.mxu0 %v9662
      %10291 = vmatpush1.bf16.msra.mxu0 %v9716
      %10292 = vmatprep.subr.bf16.mxu0 %v9654
      %10293 = vmatpush1.bf16.msra.mxu0 %v9713
      %10294 = vmatprep.subr.bf16.mxu0 0
      %10295 = vmatpush2.bf16.msra.mxu0 0
      %10296 = vmatprep.subr.bf16.mxu0 0
      %10297 = vmatpush2.bf16.msra.mxu0 0
      %10298 = vmatprep.subr.bf16.mxu0 0
      %10299 = vmatpush2.bf16.msra.mxu0 0
      %10300 = vmatprep.subr.bf16.mxu0 0
      %10301 = vmatpush2.bf16.msra.mxu0 0
      %10302 = vmatprep.subr.bf16.mxu0 0
      %10303 = vmatpush2.bf16.msra.mxu0 0
      %10304 = vmatprep.subr.bf16.mxu0 0
      %10305 = vmatpush2.bf16.msra.mxu0 0
      %10306 = vmatprep.subr.bf16.mxu0 0
      %10307 = vmatpush2.bf16.msra.mxu0 0
      %10308 = vmatprep.subr.bf16.mxu0 0
      %10309 = vmatpush2.bf16.msra.mxu0 0
      %10310 = vmatprep.mubr.bf16.mxu0 0
      %10311 = vmatmul.mubr.bf16.gmra.mxu0 %v9902
      %v10312 = vpop.f32.mrf.mxu0
      %v10313 = vadd.f32 %v10260, %v10312
      %v10314 = vpop.f32.mrf.mxu0
      %v10315 = vadd.f32 %v10262, %v10314
      %v10316 = vpop.f32.mrf.mxu0
      %v10317 = vadd.f32 %v10264, %v10316
      %v10318 = vpop.f32.mrf.mxu0
      %v10319 = vadd.f32 %v10266, %v10318
      %10320 = vmatprep.mubr.bf16.mxu0 0
      %10321 = vmatmul.mubr.bf16.gmra.mxu0 %v9905
      %v10322 = vpop.f32.mrf.mxu0
      %v10323 = vadd.f32 %v10270, %v10322
      %v10324 = vpop.f32.mrf.mxu0
      %v10325 = vadd.f32 %v10272, %v10324
      %v10326 = vpop.f32.mrf.mxu0
      %v10327 = vadd.f32 %v10274, %v10326
      %v10328 = vpop.f32.mrf.mxu0
      %v10329 = vadd.f32 %v10276, %v10328
      %10330 = vdwg.mxu0
      %v10331 = vtanh.pop %v10101
      %v10332 = vtanh.pop %v10103
      %v10333 = vtanh.pop %v10313
      %v10334 = vtanh.pop %v10315
      %v10335 = vtanh.pop %v10105
      %v10336 = vtanh.pop %v10107
      %v10337 = vtanh.pop %v10317
      %v10338 = vtanh.pop %v10319
      %v10339 = vtanh.pop %v10111
      %v10340 = vtanh.pop %v10113
      %v10341 = vtanh.pop %v10323
      %v10342 = vtanh.pop %v10325
      %v10343 = vtanh.pop %v10115
      %v10344 = vtanh.pop %v10117
      %v10345 = vtanh.pop %v10327
      %v10346 = vtanh.pop %v10329
      %v10347 = vmul.f32 %v10331, %v1587
      %v10348 = vmul.f32 %v10332, %v1591
      %v10349 = vmul.f32 %v10333, %v1595
      %v10350 = vmul.f32 %v10334, %v1599
      %v10351 = vmul.f32 %v10335, %v1587
      %v10352 = vmul.f32 %v10336, %v1591
      %v10353 = vmul.f32 %v10337, %v1595
      %v10354 = vmul.f32 %v10338, %v1599
      %v10355 = vmul.f32 %v10339, %v1587
      %v10356 = vmul.f32 %v10340, %v1591
      %v10357 = vmul.f32 %v10341, %v1595
      %v10358 = vmul.f32 %v10342, %v1599
      %v10359 = vmul.f32 %v10343, %v1587
      %v10360 = vmul.f32 %v10344, %v1591
      %v10361 = vmul.f32 %v10345, %v1595
      %v10362 = vmul.f32 %v10346, %v1599
      %v10363 = vpack.c.bf16 %v10351, %v10347
      %v10364 = vpack.c.bf16 %v10352, %v10348
      %v10365 = vpack.c.bf16 %v10353, %v10349
      %v10366 = vpack.c.bf16 %v10354, %v10350
      %v10367 = vpack.c.bf16 %v10359, %v10355
      %v10368 = vpack.c.bf16 %v10360, %v10356
      %v10369 = vpack.c.bf16 %v10361, %v10357
      %v10370 = vpack.c.bf16 %v10362, %v10358
      %v10379 = vunpack.c.l.b16 %v10363
      %v10380 = vunpack.c.l.b16 %v10364
      %v10381 = vunpack.c.l.b16 %v10365
      %v10382 = vunpack.c.l.b16 %v10366
      %v10383 = vunpack.c.h.b16 %v10363
      %v10384 = vunpack.c.h.b16 %v10364
      %v10385 = vunpack.c.h.b16 %v10365
      %v10386 = vunpack.c.h.b16 %v10366
      %v10387 = vunpack.c.l.b16 %v10367
      %v10388 = vunpack.c.l.b16 %v10368
      %v10389 = vunpack.c.l.b16 %v10369
      %v10390 = vunpack.c.l.b16 %v10370
      %v10391 = vunpack.c.h.b16 %v10367
      %v10392 = vunpack.c.h.b16 %v10368
      %v10393 = vunpack.c.h.b16 %v10369
      %v10394 = vunpack.c.h.b16 %v10370
      %v10395 = vpack.c.b16 %v10380, %v10379
      %v10396 = vpack.c.b16 %v10382, %v10381
      %v10397 = vpack.c.b16 %v10384, %v10383
      %v10398 = vpack.c.b16 %v10386, %v10385
      %v10399 = vpack.c.b16 %v10388, %v10387
      %v10400 = vpack.c.b16 %v10390, %v10389
      %v10401 = vpack.c.b16 %v10392, %v10391
      %v10402 = vpack.c.b16 %v10394, %v10393
      %10403 = vrot.lane.b32.xlu0 %v10395, 42
      %v10404 = vpop.permute.xlu0 %10403
      %10405 = vrot.lane.b32.xlu0 %v10396, 42
      %v10406 = vpop.permute.xlu0 %10405
      %10407 = vrot.lane.b32.xlu0 %v10397, 42
      %v10408 = vpop.permute.xlu0 %10407
      %10409 = vrot.lane.b32.xlu0 %v10398, 42
      %v10410 = vpop.permute.xlu0 %10409
      %10411 = vrot.lane.b32.xlu0 %v10399, 42
      %v10412 = vpop.permute.xlu0 %10411
      %10413 = vrot.lane.b32.xlu0 %v10400, 42
      %v10414 = vpop.permute.xlu0 %10413
      %10415 = vrot.lane.b32.xlu0 %v10401, 42
      %v10416 = vpop.permute.xlu0 %10415
      %10417 = vrot.lane.b32.xlu0 %v10402, 42
      %v10418 = vpop.permute.xlu0 %10417
      %v10419 = vrot.slane %v10404, 4
      %v10420 = vrot.slane %v10406, 4
      %v10421 = vrot.slane %v10408, 4
      %v10422 = vrot.slane %v10410, 4
      %v10423 = vrot.slane %v10412, 4
      %v10424 = vrot.slane %v10414, 4
      %v10425 = vrot.slane %v10416, 4
      %v10426 = vrot.slane %v10418, 4
      %v10427 = vsel %vm1684, %v10419, %v10404
      %v10428 = vsel %vm1686, %v10419, %v10420
      %v10429 = vsel %vm1684, %v10428, %v10406
      %v10430 = vsel %vm1684, %v10421, %v10408
      %v10431 = vsel %vm1686, %v10421, %v10422
      %v10432 = vsel %vm1684, %v10431, %v10410
      %v10433 = vsel %vm1684, %v10423, %v10412
      %v10434 = vsel %vm1686, %v10423, %v10424
      %v10435 = vsel %vm1684, %v10434, %v10414
      %v10436 = vsel %vm1684, %v10425, %v10416
      %v10437 = vsel %vm1686, %v10425, %v10426
      %v10438 = vsel %vm1684, %v10437, %v10418
      %10447 = vst.msk [vmem:[#allocation2] sm:$0xff] %vm1708, %v10427
      %10448 = vst.msk [vmem:[#allocation2 + $0x8] sm:$0xff] %vm1711, %v10429
      %10449 = vst.msk [vmem:[#allocation2 + $0x10] sm:$0xff] %vm1708, %v10430
      %10450 = vst.msk [vmem:[#allocation2 + $0x18] sm:$0xff] %vm1711, %v10432
      %10451 = vst.msk [vmem:[#allocation2 + $0x20] sm:$0xff] %vm1708, %v10433
      %10452 = vst.msk [vmem:[#allocation2 + $0x28] sm:$0xff] %vm1711, %v10435
      %10453 = vst.msk [vmem:[#allocation2 + $0x30] sm:$0xff] %vm1708, %v10436
      %10454 = vst.msk [vmem:[#allocation2 + $0x38] sm:$0xff] %vm1711, %v10438
      %v10455 = vld [vmem:[#allocation2] sm:$0xff]
      %v10456 = vld [vmem:[#allocation2 + $0x8] sm:$0xff]
      %v10457 = vld [vmem:[#allocation2 + $0x10] sm:$0xff]
      %v10458 = vld [vmem:[#allocation2 + $0x18] sm:$0xff]
      %v10459 = vld [vmem:[#allocation2 + $0x20] sm:$0xff]
      %v10460 = vld [vmem:[#allocation2 + $0x28] sm:$0xff]
      %v10461 = vld [vmem:[#allocation2 + $0x30] sm:$0xff]
      %v10462 = vld [vmem:[#allocation2 + $0x38] sm:$0xff]
      %v10471 = vunpack.c.l.b16 %v10455
      %v10472 = vunpack.c.h.b16 %v10455
      %v10473 = vunpack.c.l.b16 %v10456
      %v10474 = vunpack.c.h.b16 %v10456
      %v10475 = vunpack.c.l.b16 %v10457
      %v10476 = vunpack.c.h.b16 %v10457
      %v10477 = vunpack.c.l.b16 %v10458
      %v10478 = vunpack.c.h.b16 %v10458
      %v10479 = vunpack.c.l.b16 %v10459
      %v10480 = vunpack.c.h.b16 %v10459
      %v10481 = vunpack.c.l.b16 %v10460
      %v10482 = vunpack.c.h.b16 %v10460
      %v10483 = vunpack.c.l.b16 %v10461
      %v10484 = vunpack.c.h.b16 %v10461
      %v10485 = vunpack.c.l.b16 %v10462
      %v10486 = vunpack.c.h.b16 %v10462
      %v10487 = vpack.c.b16 %v10475, %v10471
      %v10488 = vpack.c.b16 %v10476, %v10472
      %v10489 = vpack.c.b16 %v10477, %v10473
      %v10490 = vpack.c.b16 %v10478, %v10474
      %v10491 = vpack.c.b16 %v10483, %v10479
      %v10492 = vpack.c.b16 %v10484, %v10480
      %v10493 = vpack.c.b16 %v10485, %v10481
      %v10494 = vpack.c.b16 %v10486, %v10482
      %10503 = vrot.lane.b32.xlu0 %v10487, 127
      %v10504 = vpop.permute.xlu0 %10503
      %10505 = vrot.lane.b32.xlu0 %v10488, 127
      %v10506 = vpop.permute.xlu0 %10505
      %10507 = vrot.lane.b32.xlu0 %v10489, 127
      %v10508 = vpop.permute.xlu0 %10507
      %10509 = vrot.lane.b32.xlu0 %v10490, 127
      %v10510 = vpop.permute.xlu0 %10509
      %10511 = vrot.lane.b32.xlu0 %v10491, 127
      %v10512 = vpop.permute.xlu0 %10511
      %10513 = vrot.lane.b32.xlu0 %v10492, 127
      %v10514 = vpop.permute.xlu0 %10513
      %10515 = vrot.lane.b32.xlu0 %v10493, 127
      %v10516 = vpop.permute.xlu0 %10515
      %10517 = vrot.lane.b32.xlu0 %v10494, 127
      %v10518 = vpop.permute.xlu0 %10517
      %v10519 = vsel %vm283, %v10504, %v10506
      %v10520 = vsel %vm283, %v10506, %v10508
      %v10521 = vsel %vm283, %v10508, %v10510
      %v10522 = vsel %vm283, %v10512, %v10514
      %v10523 = vsel %vm283, %v10514, %v10516
      %v10524 = vsel %vm283, %v10516, %v10518
      %10533 = vrot.lane.b32.xlu0 %v10487, 126
      %v10534 = vpop.permute.xlu0 %10533
      %10535 = vrot.lane.b32.xlu0 %v10488, 126
      %v10536 = vpop.permute.xlu0 %10535
      %10537 = vrot.lane.b32.xlu0 %v10489, 126
      %v10538 = vpop.permute.xlu0 %10537
      %10539 = vrot.lane.b32.xlu0 %v10490, 126
      %v10540 = vpop.permute.xlu0 %10539
      %10541 = vrot.lane.b32.xlu0 %v10491, 126
      %v10542 = vpop.permute.xlu0 %10541
      %10543 = vrot.lane.b32.xlu0 %v10492, 126
      %v10544 = vpop.permute.xlu0 %10543
      %10545 = vrot.lane.b32.xlu0 %v10493, 126
      %v10546 = vpop.permute.xlu0 %10545
      %10547 = vrot.lane.b32.xlu0 %v10494, 126
      %v10548 = vpop.permute.xlu0 %10547
      %v10549 = vsel %vm314, %v10534, %v10536
      %v10550 = vsel %vm314, %v10536, %v10538
      %v10551 = vsel %vm314, %v10538, %v10540
      %v10552 = vsel %vm314, %v10542, %v10544
      %v10553 = vsel %vm314, %v10544, %v10546
      %v10554 = vsel %vm314, %v10546, %v10548
      %10563 = vrot.lane.b32.xlu0 %v10487, 125
      %v10564 = vpop.permute.xlu0 %10563
      %10565 = vrot.lane.b32.xlu0 %v10488, 125
      %v10566 = vpop.permute.xlu0 %10565
      %10567 = vrot.lane.b32.xlu0 %v10489, 125
      %v10568 = vpop.permute.xlu0 %10567
      %10569 = vrot.lane.b32.xlu0 %v10490, 125
      %v10570 = vpop.permute.xlu0 %10569
      %10571 = vrot.lane.b32.xlu0 %v10491, 125
      %v10572 = vpop.permute.xlu0 %10571
      %10573 = vrot.lane.b32.xlu0 %v10492, 125
      %v10574 = vpop.permute.xlu0 %10573
      %10575 = vrot.lane.b32.xlu0 %v10493, 125
      %v10576 = vpop.permute.xlu0 %10575
      %10577 = vrot.lane.b32.xlu0 %v10494, 125
      %v10578 = vpop.permute.xlu0 %10577
      %v10579 = vsel %vm345, %v10564, %v10566
      %v10580 = vsel %vm345, %v10566, %v10568
      %v10581 = vsel %vm345, %v10568, %v10570
      %v10582 = vsel %vm345, %v10572, %v10574
      %v10583 = vsel %vm345, %v10574, %v10576
      %v10584 = vsel %vm345, %v10576, %v10578
      %10593 = vrot.lane.b32.xlu0 %v10487, 124
      %v10594 = vpop.permute.xlu0 %10593
      %10595 = vrot.lane.b32.xlu0 %v10488, 124
      %v10596 = vpop.permute.xlu0 %10595
      %10597 = vrot.lane.b32.xlu0 %v10489, 124
      %v10598 = vpop.permute.xlu0 %10597
      %10599 = vrot.lane.b32.xlu0 %v10490, 124
      %v10600 = vpop.permute.xlu0 %10599
      %10601 = vrot.lane.b32.xlu0 %v10491, 124
      %v10602 = vpop.permute.xlu0 %10601
      %10603 = vrot.lane.b32.xlu0 %v10492, 124
      %v10604 = vpop.permute.xlu0 %10603
      %10605 = vrot.lane.b32.xlu0 %v10493, 124
      %v10606 = vpop.permute.xlu0 %10605
      %10607 = vrot.lane.b32.xlu0 %v10494, 124
      %v10608 = vpop.permute.xlu0 %10607
      %v10609 = vsel %vm376, %v10594, %v10596
      %v10610 = vsel %vm376, %v10596, %v10598
      %v10611 = vsel %vm376, %v10598, %v10600
      %v10612 = vsel %vm376, %v10602, %v10604
      %v10613 = vsel %vm376, %v10604, %v10606
      %v10614 = vsel %vm376, %v10606, %v10608
      %10623 = vrot.lane.b32.xlu0 %v10487, 108
      %v10624 = vpop.permute.xlu0 %10623
      %10625 = vrot.lane.b32.xlu0 %v10488, 108
      %v10626 = vpop.permute.xlu0 %10625
      %10627 = vrot.lane.b32.xlu0 %v10489, 108
      %v10628 = vpop.permute.xlu0 %10627
      %10629 = vrot.lane.b32.xlu0 %v10490, 108
      %v10630 = vpop.permute.xlu0 %10629
      %10631 = vrot.lane.b32.xlu0 %v10491, 108
      %v10632 = vpop.permute.xlu0 %10631
      %10633 = vrot.lane.b32.xlu0 %v10492, 108
      %v10634 = vpop.permute.xlu0 %10633
      %10635 = vrot.lane.b32.xlu0 %v10493, 108
      %v10636 = vpop.permute.xlu0 %10635
      %10637 = vrot.lane.b32.xlu0 %v10494, 108
      %v10638 = vpop.permute.xlu0 %10637
      %v10639 = vsel %vm407, %v10624, %v10626
      %v10640 = vsel %vm407, %v10626, %v10628
      %v10641 = vsel %vm407, %v10628, %v10630
      %v10642 = vsel %vm407, %v10632, %v10634
      %v10643 = vsel %vm407, %v10634, %v10636
      %v10644 = vsel %vm407, %v10636, %v10638
      %10653 = vrot.lane.b32.xlu0 %v10487, 107
      %v10654 = vpop.permute.xlu0 %10653
      %10655 = vrot.lane.b32.xlu0 %v10488, 107
      %v10656 = vpop.permute.xlu0 %10655
      %10657 = vrot.lane.b32.xlu0 %v10489, 107
      %v10658 = vpop.permute.xlu0 %10657
      %10659 = vrot.lane.b32.xlu0 %v10490, 107
      %v10660 = vpop.permute.xlu0 %10659
      %10661 = vrot.lane.b32.xlu0 %v10491, 107
      %v10662 = vpop.permute.xlu0 %10661
      %10663 = vrot.lane.b32.xlu0 %v10492, 107
      %v10664 = vpop.permute.xlu0 %10663
      %10665 = vrot.lane.b32.xlu0 %v10493, 107
      %v10666 = vpop.permute.xlu0 %10665
      %10667 = vrot.lane.b32.xlu0 %v10494, 107
      %v10668 = vpop.permute.xlu0 %10667
      %v10669 = vsel %vm438, %v10654, %v10656
      %v10670 = vsel %vm438, %v10656, %v10658
      %v10671 = vsel %vm438, %v10658, %v10660
      %v10672 = vsel %vm438, %v10662, %v10664
      %v10673 = vsel %vm438, %v10664, %v10666
      %v10674 = vsel %vm438, %v10666, %v10668
      %10683 = vrot.lane.b32.xlu0 %v10487, 106
      %v10684 = vpop.permute.xlu0 %10683
      %10685 = vrot.lane.b32.xlu0 %v10488, 106
      %v10686 = vpop.permute.xlu0 %10685
      %10687 = vrot.lane.b32.xlu0 %v10489, 106
      %v10688 = vpop.permute.xlu0 %10687
      %10689 = vrot.lane.b32.xlu0 %v10490, 106
      %v10690 = vpop.permute.xlu0 %10689
      %10691 = vrot.lane.b32.xlu0 %v10491, 106
      %v10692 = vpop.permute.xlu0 %10691
      %10693 = vrot.lane.b32.xlu0 %v10492, 106
      %v10694 = vpop.permute.xlu0 %10693
      %10695 = vrot.lane.b32.xlu0 %v10493, 106
      %v10696 = vpop.permute.xlu0 %10695
      %10697 = vrot.lane.b32.xlu0 %v10494, 106
      %v10698 = vpop.permute.xlu0 %10697
      %v10699 = vsel %vm469, %v10684, %v10686
      %v10700 = vsel %vm469, %v10686, %v10688
      %v10701 = vsel %vm469, %v10688, %v10690
      %v10702 = vsel %vm469, %v10692, %v10694
      %v10703 = vsel %vm469, %v10694, %v10696
      %v10704 = vsel %vm469, %v10696, %v10698
      %10713 = vrot.lane.b32.xlu0 %v10487, 105
      %v10714 = vpop.permute.xlu0 %10713
      %10715 = vrot.lane.b32.xlu0 %v10488, 105
      %v10716 = vpop.permute.xlu0 %10715
      %10717 = vrot.lane.b32.xlu0 %v10489, 105
      %v10718 = vpop.permute.xlu0 %10717
      %10719 = vrot.lane.b32.xlu0 %v10490, 105
      %v10720 = vpop.permute.xlu0 %10719
      %10721 = vrot.lane.b32.xlu0 %v10491, 105
      %v10722 = vpop.permute.xlu0 %10721
      %10723 = vrot.lane.b32.xlu0 %v10492, 105
      %v10724 = vpop.permute.xlu0 %10723
      %10725 = vrot.lane.b32.xlu0 %v10493, 105
      %v10726 = vpop.permute.xlu0 %10725
      %10727 = vrot.lane.b32.xlu0 %v10494, 105
      %v10728 = vpop.permute.xlu0 %10727
      %v10729 = vsel %vm500, %v10714, %v10716
      %v10730 = vsel %vm500, %v10716, %v10718
      %v10731 = vsel %vm500, %v10718, %v10720
      %v10732 = vsel %vm500, %v10722, %v10724
      %v10733 = vsel %vm500, %v10724, %v10726
      %v10734 = vsel %vm500, %v10726, %v10728
      %10743 = vrot.lane.b32.xlu0 %v10487, 104
      %v10744 = vpop.permute.xlu0 %10743
      %10745 = vrot.lane.b32.xlu0 %v10488, 104
      %v10746 = vpop.permute.xlu0 %10745
      %10747 = vrot.lane.b32.xlu0 %v10489, 104
      %v10748 = vpop.permute.xlu0 %10747
      %10749 = vrot.lane.b32.xlu0 %v10490, 104
      %v10750 = vpop.permute.xlu0 %10749
      %10751 = vrot.lane.b32.xlu0 %v10491, 104
      %v10752 = vpop.permute.xlu0 %10751
      %10753 = vrot.lane.b32.xlu0 %v10492, 104
      %v10754 = vpop.permute.xlu0 %10753
      %10755 = vrot.lane.b32.xlu0 %v10493, 104
      %v10756 = vpop.permute.xlu0 %10755
      %10757 = vrot.lane.b32.xlu0 %v10494, 104
      %v10758 = vpop.permute.xlu0 %10757
      %v10759 = vsel %vm531, %v10744, %v10746
      %v10760 = vsel %vm531, %v10746, %v10748
      %v10761 = vsel %vm531, %v10748, %v10750
      %v10762 = vsel %vm531, %v10752, %v10754
      %v10763 = vsel %vm531, %v10754, %v10756
      %v10764 = vsel %vm531, %v10756, %v10758
      %10773 = vrot.lane.b32.xlu0 %v10487, 88
      %v10774 = vpop.permute.xlu0 %10773
      %10775 = vrot.lane.b32.xlu0 %v10488, 88
      %v10776 = vpop.permute.xlu0 %10775
      %10777 = vrot.lane.b32.xlu0 %v10489, 88
      %v10778 = vpop.permute.xlu0 %10777
      %10779 = vrot.lane.b32.xlu0 %v10490, 88
      %v10780 = vpop.permute.xlu0 %10779
      %10781 = vrot.lane.b32.xlu0 %v10491, 88
      %v10782 = vpop.permute.xlu0 %10781
      %10783 = vrot.lane.b32.xlu0 %v10492, 88
      %v10784 = vpop.permute.xlu0 %10783
      %10785 = vrot.lane.b32.xlu0 %v10493, 88
      %v10786 = vpop.permute.xlu0 %10785
      %10787 = vrot.lane.b32.xlu0 %v10494, 88
      %v10788 = vpop.permute.xlu0 %10787
      %v10789 = vsel %vm562, %v10774, %v10776
      %v10790 = vsel %vm562, %v10776, %v10778
      %v10791 = vsel %vm562, %v10778, %v10780
      %v10792 = vsel %vm562, %v10782, %v10784
      %v10793 = vsel %vm562, %v10784, %v10786
      %v10794 = vsel %vm562, %v10786, %v10788
      %10803 = vrot.lane.b32.xlu0 %v10487, 87
      %v10804 = vpop.permute.xlu0 %10803
      %10805 = vrot.lane.b32.xlu0 %v10488, 87
      %v10806 = vpop.permute.xlu0 %10805
      %10807 = vrot.lane.b32.xlu0 %v10489, 87
      %v10808 = vpop.permute.xlu0 %10807
      %10809 = vrot.lane.b32.xlu0 %v10490, 87
      %v10810 = vpop.permute.xlu0 %10809
      %10811 = vrot.lane.b32.xlu0 %v10491, 87
      %v10812 = vpop.permute.xlu0 %10811
      %10813 = vrot.lane.b32.xlu0 %v10492, 87
      %v10814 = vpop.permute.xlu0 %10813
      %10815 = vrot.lane.b32.xlu0 %v10493, 87
      %v10816 = vpop.permute.xlu0 %10815
      %10817 = vrot.lane.b32.xlu0 %v10494, 87
      %v10818 = vpop.permute.xlu0 %10817
      %v10819 = vsel %vm593, %v10804, %v10806
      %v10820 = vsel %vm593, %v10806, %v10808
      %v10821 = vsel %vm593, %v10808, %v10810
      %v10822 = vsel %vm593, %v10812, %v10814
      %v10823 = vsel %vm593, %v10814, %v10816
      %v10824 = vsel %vm593, %v10816, %v10818
      %10833 = vrot.lane.b32.xlu0 %v10487, 86
      %v10834 = vpop.permute.xlu0 %10833
      %10835 = vrot.lane.b32.xlu0 %v10488, 86
      %v10836 = vpop.permute.xlu0 %10835
      %10837 = vrot.lane.b32.xlu0 %v10489, 86
      %v10838 = vpop.permute.xlu0 %10837
      %10839 = vrot.lane.b32.xlu0 %v10490, 86
      %v10840 = vpop.permute.xlu0 %10839
      %10841 = vrot.lane.b32.xlu0 %v10491, 86
      %v10842 = vpop.permute.xlu0 %10841
      %10843 = vrot.lane.b32.xlu0 %v10492, 86
      %v10844 = vpop.permute.xlu0 %10843
      %10845 = vrot.lane.b32.xlu0 %v10493, 86
      %v10846 = vpop.permute.xlu0 %10845
      %10847 = vrot.lane.b32.xlu0 %v10494, 86
      %v10848 = vpop.permute.xlu0 %10847
      %v10849 = vsel %vm624, %v10834, %v10836
      %v10850 = vsel %vm624, %v10836, %v10838
      %v10851 = vsel %vm624, %v10838, %v10840
      %v10852 = vsel %vm624, %v10842, %v10844
      %v10853 = vsel %vm624, %v10844, %v10846
      %v10854 = vsel %vm624, %v10846, %v10848
      %10863 = vrot.lane.b32.xlu0 %v10487, 85
      %v10864 = vpop.permute.xlu0 %10863
      %10865 = vrot.lane.b32.xlu0 %v10488, 85
      %v10866 = vpop.permute.xlu0 %10865
      %10867 = vrot.lane.b32.xlu0 %v10489, 85
      %v10868 = vpop.permute.xlu0 %10867
      %10869 = vrot.lane.b32.xlu0 %v10490, 85
      %v10870 = vpop.permute.xlu0 %10869
      %10871 = vrot.lane.b32.xlu0 %v10491, 85
      %v10872 = vpop.permute.xlu0 %10871
      %10873 = vrot.lane.b32.xlu0 %v10492, 85
      %v10874 = vpop.permute.xlu0 %10873
      %10875 = vrot.lane.b32.xlu0 %v10493, 85
      %v10876 = vpop.permute.xlu0 %10875
      %10877 = vrot.lane.b32.xlu0 %v10494, 85
      %v10878 = vpop.permute.xlu0 %10877
      %v10879 = vsel %vm655, %v10864, %v10866
      %v10880 = vsel %vm655, %v10866, %v10868
      %v10881 = vsel %vm655, %v10868, %v10870
      %v10882 = vsel %vm655, %v10872, %v10874
      %v10883 = vsel %vm655, %v10874, %v10876
      %v10884 = vsel %vm655, %v10876, %v10878
      %10893 = vrot.lane.b32.xlu0 %v10487, 84
      %v10894 = vpop.permute.xlu0 %10893
      %10895 = vrot.lane.b32.xlu0 %v10488, 84
      %v10896 = vpop.permute.xlu0 %10895
      %10897 = vrot.lane.b32.xlu0 %v10489, 84
      %v10898 = vpop.permute.xlu0 %10897
      %10899 = vrot.lane.b32.xlu0 %v10490, 84
      %v10900 = vpop.permute.xlu0 %10899
      %10901 = vrot.lane.b32.xlu0 %v10491, 84
      %v10902 = vpop.permute.xlu0 %10901
      %10903 = vrot.lane.b32.xlu0 %v10492, 84
      %v10904 = vpop.permute.xlu0 %10903
      %10905 = vrot.lane.b32.xlu0 %v10493, 84
      %v10906 = vpop.permute.xlu0 %10905
      %10907 = vrot.lane.b32.xlu0 %v10494, 84
      %v10908 = vpop.permute.xlu0 %10907
      %v10909 = vsel %vm686, %v10894, %v10896
      %v10910 = vsel %vm686, %v10896, %v10898
      %v10911 = vsel %vm686, %v10898, %v10900
      %v10912 = vsel %vm686, %v10902, %v10904
      %v10913 = vsel %vm686, %v10904, %v10906
      %v10914 = vsel %vm686, %v10906, %v10908
      %10923 = vrot.lane.b32.xlu0 %v10487, 68
      %v10924 = vpop.permute.xlu0 %10923
      %10925 = vrot.lane.b32.xlu0 %v10488, 68
      %v10926 = vpop.permute.xlu0 %10925
      %10927 = vrot.lane.b32.xlu0 %v10489, 68
      %v10928 = vpop.permute.xlu0 %10927
      %10929 = vrot.lane.b32.xlu0 %v10490, 68
      %v10930 = vpop.permute.xlu0 %10929
      %10931 = vrot.lane.b32.xlu0 %v10491, 68
      %v10932 = vpop.permute.xlu0 %10931
      %10933 = vrot.lane.b32.xlu0 %v10492, 68
      %v10934 = vpop.permute.xlu0 %10933
      %10935 = vrot.lane.b32.xlu0 %v10493, 68
      %v10936 = vpop.permute.xlu0 %10935
      %10937 = vrot.lane.b32.xlu0 %v10494, 68
      %v10938 = vpop.permute.xlu0 %10937
      %v10939 = vsel %vm717, %v10924, %v10926
      %v10940 = vsel %vm717, %v10926, %v10928
      %v10941 = vsel %vm717, %v10928, %v10930
      %v10942 = vsel %vm717, %v10932, %v10934
      %v10943 = vsel %vm717, %v10934, %v10936
      %v10944 = vsel %vm717, %v10936, %v10938
      %10953 = vrot.lane.b32.xlu0 %v10487, 109
      %v10954 = vpop.permute.xlu0 %10953
      %10955 = vrot.lane.b32.xlu0 %v10488, 109
      %v10956 = vpop.permute.xlu0 %10955
      %10957 = vrot.lane.b32.xlu0 %v10489, 109
      %v10958 = vpop.permute.xlu0 %10957
      %10959 = vrot.lane.b32.xlu0 %v10490, 109
      %v10960 = vpop.permute.xlu0 %10959
      %10961 = vrot.lane.b32.xlu0 %v10491, 109
      %v10962 = vpop.permute.xlu0 %10961
      %10963 = vrot.lane.b32.xlu0 %v10492, 109
      %v10964 = vpop.permute.xlu0 %10963
      %10965 = vrot.lane.b32.xlu0 %v10493, 109
      %v10966 = vpop.permute.xlu0 %10965
      %10967 = vrot.lane.b32.xlu0 %v10494, 109
      %v10968 = vpop.permute.xlu0 %10967
      %v10969 = vsel %vm748, %v10954, %v10956
      %v10970 = vsel %vm748, %v10956, %v10958
      %v10971 = vsel %vm748, %v10958, %v10960
      %v10972 = vsel %vm748, %v10962, %v10964
      %v10973 = vsel %vm748, %v10964, %v10966
      %v10974 = vsel %vm748, %v10966, %v10968
      %10975 = vrot.lane.b32.xlu0 %v10487, 67
      %v10976 = vpop.permute.xlu0 %10975
      %10977 = vrot.lane.b32.xlu0 %v10488, 67
      %v10978 = vpop.permute.xlu0 %10977
      %10979 = vrot.lane.b32.xlu0 %v10489, 67
      %v10980 = vpop.permute.xlu0 %10979
      %10981 = vrot.lane.b32.xlu0 %v10490, 67
      %v10982 = vpop.permute.xlu0 %10981
      %10983 = vrot.lane.b32.xlu0 %v10491, 67
      %v10984 = vpop.permute.xlu0 %10983
      %10985 = vrot.lane.b32.xlu0 %v10492, 67
      %v10986 = vpop.permute.xlu0 %10985
      %10987 = vrot.lane.b32.xlu0 %v10493, 67
      %v10988 = vpop.permute.xlu0 %10987
      %10989 = vrot.lane.b32.xlu0 %v10494, 67
      %v10990 = vpop.permute.xlu0 %10989
      %10991 = vrot.lane.b32.xlu0 %v10519, 67
      %v10992 = vpop.permute.xlu0 %10991
      %10993 = vrot.lane.b32.xlu0 %v10520, 67
      %v10994 = vpop.permute.xlu0 %10993
      %10995 = vrot.lane.b32.xlu0 %v10521, 67
      %v10996 = vpop.permute.xlu0 %10995
      %10997 = vrot.lane.b32.xlu0 %v10510, 67
      %v10998 = vpop.permute.xlu0 %10997
      %10999 = vrot.lane.b32.xlu0 %v10522, 67
      %v11000 = vpop.permute.xlu0 %10999
      %11001 = vrot.lane.b32.xlu0 %v10523, 67
      %v11002 = vpop.permute.xlu0 %11001
      %11003 = vrot.lane.b32.xlu0 %v10524, 67
      %v11004 = vpop.permute.xlu0 %11003
      %11005 = vrot.lane.b32.xlu0 %v10518, 67
      %v11006 = vpop.permute.xlu0 %11005
      %11007 = vrot.lane.b32.xlu0 %v10549, 67
      %v11008 = vpop.permute.xlu0 %11007
      %11009 = vrot.lane.b32.xlu0 %v10550, 67
      %v11010 = vpop.permute.xlu0 %11009
      %11011 = vrot.lane.b32.xlu0 %v10551, 67
      %v11012 = vpop.permute.xlu0 %11011
      %11013 = vrot.lane.b32.xlu0 %v10540, 67
      %v11014 = vpop.permute.xlu0 %11013
      %11015 = vrot.lane.b32.xlu0 %v10552, 67
      %v11016 = vpop.permute.xlu0 %11015
      %11017 = vrot.lane.b32.xlu0 %v10553, 67
      %v11018 = vpop.permute.xlu0 %11017
      %11019 = vrot.lane.b32.xlu0 %v10554, 67
      %v11020 = vpop.permute.xlu0 %11019
      %11021 = vrot.lane.b32.xlu0 %v10548, 67
      %v11022 = vpop.permute.xlu0 %11021
      %11023 = vrot.lane.b32.xlu0 %v10579, 67
      %v11024 = vpop.permute.xlu0 %11023
      %11025 = vrot.lane.b32.xlu0 %v10580, 67
      %v11026 = vpop.permute.xlu0 %11025
      %11027 = vrot.lane.b32.xlu0 %v10581, 67
      %v11028 = vpop.permute.xlu0 %11027
      %11029 = vrot.lane.b32.xlu0 %v10570, 67
      %v11030 = vpop.permute.xlu0 %11029
      %11031 = vrot.lane.b32.xlu0 %v10582, 67
      %v11032 = vpop.permute.xlu0 %11031
      %11033 = vrot.lane.b32.xlu0 %v10583, 67
      %v11034 = vpop.permute.xlu0 %11033
      %11035 = vrot.lane.b32.xlu0 %v10584, 67
      %v11036 = vpop.permute.xlu0 %11035
      %11037 = vrot.lane.b32.xlu0 %v10578, 67
      %v11038 = vpop.permute.xlu0 %11037
      %11039 = vrot.lane.b32.xlu0 %v10969, 67
      %v11040 = vpop.permute.xlu0 %11039
      %11041 = vrot.lane.b32.xlu0 %v10970, 67
      %v11042 = vpop.permute.xlu0 %11041
      %11043 = vrot.lane.b32.xlu0 %v10971, 67
      %v11044 = vpop.permute.xlu0 %11043
      %11045 = vrot.lane.b32.xlu0 %v10960, 67
      %v11046 = vpop.permute.xlu0 %11045
      %11047 = vrot.lane.b32.xlu0 %v10972, 67
      %v11048 = vpop.permute.xlu0 %11047
      %11049 = vrot.lane.b32.xlu0 %v10973, 67
      %v11050 = vpop.permute.xlu0 %11049
      %11051 = vrot.lane.b32.xlu0 %v10974, 67
      %v11052 = vpop.permute.xlu0 %11051
      %11053 = vrot.lane.b32.xlu0 %v10968, 67
      %v11054 = vpop.permute.xlu0 %11053
      %11055 = vrot.lane.b32.xlu0 %v10639, 67
      %v11056 = vpop.permute.xlu0 %11055
      %11057 = vrot.lane.b32.xlu0 %v10640, 67
      %v11058 = vpop.permute.xlu0 %11057
      %11059 = vrot.lane.b32.xlu0 %v10641, 67
      %v11060 = vpop.permute.xlu0 %11059
      %11061 = vrot.lane.b32.xlu0 %v10630, 67
      %v11062 = vpop.permute.xlu0 %11061
      %11063 = vrot.lane.b32.xlu0 %v10642, 67
      %v11064 = vpop.permute.xlu0 %11063
      %11065 = vrot.lane.b32.xlu0 %v10643, 67
      %v11066 = vpop.permute.xlu0 %11065
      %11067 = vrot.lane.b32.xlu0 %v10644, 67
      %v11068 = vpop.permute.xlu0 %11067
      %11069 = vrot.lane.b32.xlu0 %v10638, 67
      %v11070 = vpop.permute.xlu0 %11069
      %11071 = vrot.lane.b32.xlu0 %v10669, 67
      %v11072 = vpop.permute.xlu0 %11071
      %11073 = vrot.lane.b32.xlu0 %v10670, 67
      %v11074 = vpop.permute.xlu0 %11073
      %11075 = vrot.lane.b32.xlu0 %v10671, 67
      %v11076 = vpop.permute.xlu0 %11075
      %11077 = vrot.lane.b32.xlu0 %v10660, 67
      %v11078 = vpop.permute.xlu0 %11077
      %11079 = vrot.lane.b32.xlu0 %v10672, 67
      %v11080 = vpop.permute.xlu0 %11079
      %11081 = vrot.lane.b32.xlu0 %v10673, 67
      %v11082 = vpop.permute.xlu0 %11081
      %11083 = vrot.lane.b32.xlu0 %v10674, 67
      %v11084 = vpop.permute.xlu0 %11083
      %11085 = vrot.lane.b32.xlu0 %v10668, 67
      %v11086 = vpop.permute.xlu0 %11085
      %11087 = vrot.lane.b32.xlu0 %v10699, 67
      %v11088 = vpop.permute.xlu0 %11087
      %11089 = vrot.lane.b32.xlu0 %v10700, 67
      %v11090 = vpop.permute.xlu0 %11089
      %11091 = vrot.lane.b32.xlu0 %v10701, 67
      %v11092 = vpop.permute.xlu0 %11091
      %11093 = vrot.lane.b32.xlu0 %v10690, 67
      %v11094 = vpop.permute.xlu0 %11093
      %11095 = vrot.lane.b32.xlu0 %v10702, 67
      %v11096 = vpop.permute.xlu0 %11095
      %11097 = vrot.lane.b32.xlu0 %v10703, 67
      %v11098 = vpop.permute.xlu0 %11097
      %11099 = vrot.lane.b32.xlu0 %v10704, 67
      %v11100 = vpop.permute.xlu0 %11099
      %11101 = vrot.lane.b32.xlu0 %v10698, 67
      %v11102 = vpop.permute.xlu0 %11101
      %11103 = vrot.lane.b32.xlu0 %v10729, 67
      %v11104 = vpop.permute.xlu0 %11103
      %11105 = vrot.lane.b32.xlu0 %v10730, 67
      %v11106 = vpop.permute.xlu0 %11105
      %11107 = vrot.lane.b32.xlu0 %v10731, 67
      %v11108 = vpop.permute.xlu0 %11107
      %11109 = vrot.lane.b32.xlu0 %v10720, 67
      %v11110 = vpop.permute.xlu0 %11109
      %11111 = vrot.lane.b32.xlu0 %v10732, 67
      %v11112 = vpop.permute.xlu0 %11111
      %11113 = vrot.lane.b32.xlu0 %v10733, 67
      %v11114 = vpop.permute.xlu0 %11113
      %11115 = vrot.lane.b32.xlu0 %v10734, 67
      %v11116 = vpop.permute.xlu0 %11115
      %11117 = vrot.lane.b32.xlu0 %v10728, 67
      %v11118 = vpop.permute.xlu0 %11117
      %v11119 = vsel %vm899, %v10976, %v10978
      %v11120 = vsel %vm899, %v10978, %v10980
      %v11121 = vsel %vm899, %v10980, %v10982
      %v11122 = vsel %vm899, %v10984, %v10986
      %v11123 = vsel %vm899, %v10986, %v10988
      %v11124 = vsel %vm899, %v10988, %v10990
      %v11125 = vsel %vm899, %v10992, %v10994
      %v11126 = vsel %vm899, %v10994, %v10996
      %v11127 = vsel %vm899, %v10996, %v10998
      %v11128 = vsel %vm899, %v11000, %v11002
      %v11129 = vsel %vm899, %v11002, %v11004
      %v11130 = vsel %vm899, %v11004, %v11006
      %v11131 = vsel %vm899, %v11008, %v11010
      %v11132 = vsel %vm899, %v11010, %v11012
      %v11133 = vsel %vm899, %v11012, %v11014
      %v11134 = vsel %vm899, %v11016, %v11018
      %v11135 = vsel %vm899, %v11018, %v11020
      %v11136 = vsel %vm899, %v11020, %v11022
      %v11137 = vsel %vm899, %v11024, %v11026
      %v11138 = vsel %vm899, %v11026, %v11028
      %v11139 = vsel %vm899, %v11028, %v11030
      %v11140 = vsel %vm899, %v11032, %v11034
      %v11141 = vsel %vm899, %v11034, %v11036
      %v11142 = vsel %vm899, %v11036, %v11038
      %v11143 = vsel %vm899, %v11040, %v11042
      %v11144 = vsel %vm899, %v11042, %v11044
      %v11145 = vsel %vm899, %v11044, %v11046
      %v11146 = vsel %vm899, %v11048, %v11050
      %v11147 = vsel %vm899, %v11050, %v11052
      %v11148 = vsel %vm899, %v11052, %v11054
      %v11149 = vsel %vm899, %v11056, %v11058
      %v11150 = vsel %vm899, %v11058, %v11060
      %v11151 = vsel %vm899, %v11060, %v11062
      %v11152 = vsel %vm899, %v11064, %v11066
      %v11153 = vsel %vm899, %v11066, %v11068
      %v11154 = vsel %vm899, %v11068, %v11070
      %v11155 = vsel %vm899, %v11072, %v11074
      %v11156 = vsel %vm899, %v11074, %v11076
      %v11157 = vsel %vm899, %v11076, %v11078
      %v11158 = vsel %vm899, %v11080, %v11082
      %v11159 = vsel %vm899, %v11082, %v11084
      %v11160 = vsel %vm899, %v11084, %v11086
      %v11161 = vsel %vm899, %v11088, %v11090
      %v11162 = vsel %vm899, %v11090, %v11092
      %v11163 = vsel %vm899, %v11092, %v11094
      %v11164 = vsel %vm899, %v11096, %v11098
      %v11165 = vsel %vm899, %v11098, %v11100
      %v11166 = vsel %vm899, %v11100, %v11102
      %v11167 = vsel %vm899, %v11104, %v11106
      %v11168 = vsel %vm899, %v11106, %v11108
      %v11169 = vsel %vm899, %v11108, %v11110
      %v11170 = vsel %vm899, %v11112, %v11114
      %v11171 = vsel %vm899, %v11114, %v11116
      %v11172 = vsel %vm899, %v11116, %v11118
      %s11245 = scalar_lea.vmem %s1, 784
      %v11246 = vld [vmem:[%s11245] sm:$0xff]
      %v11247 = vld [vmem:[%s11245 + $0x8] sm:$0xff]
      %v11248 = vld [vmem:[%s11245 + $0x10] sm:$0xff]
      %v11249 = vld [vmem:[%s11245 + $0x18] sm:$0xf]
      %v11250 = vld [vmem:[%s11245 + $0x1c] sm:$0xff]
      %v11251 = vld [vmem:[%s11245 + $0x24] sm:$0xff]
      %v11252 = vld [vmem:[%s11245 + $0x2c] sm:$0xff]
      %v11253 = vld [vmem:[%s11245 + $0x34] sm:$0xf]
      %v11254 = vld [vmem:[%s11245 + $0x38] sm:$0xff]
      %v11255 = vld [vmem:[%s11245 + $0x40] sm:$0xff]
      %v11256 = vld [vmem:[%s11245 + $0x48] sm:$0xff]
      %v11257 = vld [vmem:[%s11245 + $0x50] sm:$0xf]
      %v11258 = vld [vmem:[%s11245 + $0x54] sm:$0xff]
      %v11259 = vld [vmem:[%s11245 + $0x5c] sm:$0xff]
      %v11260 = vld [vmem:[%s11245 + $0x64] sm:$0xff]
      %v11261 = vld [vmem:[%s11245 + $0x6c] sm:$0xf]
      %s11262 = scalar_lea.vmem %s2, 224
      %v11263 = vld [vmem:[%s11262] sm:$0xff]
      %v11264 = vld [vmem:[%s11262 + $0x8] sm:$0xff]
      %v11265 = vld [vmem:[%s11262 + $0x10] sm:$0xff]
      %v11266 = vld [vmem:[%s11262 + $0x18] sm:$0xff]
      %11268 = vset.pattern.permute.xlu0 0
      %11269 = vperm.xlu0 %11268, %v11263
      %v11270 = vpop.permute.xlu0 %11269
      %11273 = vset.pattern.permute.xlu0 0
      %11274 = vperm.xlu0 %11273, %v11264
      %v11275 = vpop.permute.xlu0 %11274
      %11278 = vset.pattern.permute.xlu0 0
      %11279 = vperm.xlu0 %11278, %v11265
      %v11280 = vpop.permute.xlu0 %11279
      %11283 = vset.pattern.permute.xlu0 0
      %11284 = vperm.xlu0 %11283, %v11266
      %v11285 = vpop.permute.xlu0 %11284
      %v11303 = vunpack.c.l.b16 %v11246
      %v11304 = vunpack.c.h.b16 %v11246
      %v11305 = vunpack.c.l.b16 %v11247
      %v11306 = vunpack.c.h.b16 %v11247
      %v11307 = vunpack.c.l.b16 %v11248
      %v11308 = vunpack.c.h.b16 %v11248
      %v11309 = vunpack.c.l.b16 %v11249
      %v11310 = vunpack.c.l.b16 %v11250
      %v11311 = vunpack.c.h.b16 %v11250
      %v11312 = vunpack.c.l.b16 %v11251
      %v11313 = vunpack.c.h.b16 %v11251
      %v11314 = vunpack.c.l.b16 %v11252
      %v11315 = vunpack.c.h.b16 %v11252
      %v11316 = vunpack.c.l.b16 %v11253
      %v11317 = vunpack.c.l.b16 %v11254
      %v11318 = vunpack.c.h.b16 %v11254
      %v11319 = vunpack.c.l.b16 %v11255
      %v11320 = vunpack.c.h.b16 %v11255
      %v11321 = vunpack.c.l.b16 %v11256
      %v11322 = vunpack.c.h.b16 %v11256
      %v11323 = vunpack.c.l.b16 %v11257
      %v11324 = vunpack.c.l.b16 %v11258
      %v11325 = vunpack.c.h.b16 %v11258
      %v11326 = vunpack.c.l.b16 %v11259
      %v11327 = vunpack.c.h.b16 %v11259
      %v11328 = vunpack.c.l.b16 %v11260
      %v11329 = vunpack.c.h.b16 %v11260
      %v11330 = vunpack.c.l.b16 %v11261
      %v11331 = vpack.c.b16 %v11310, %v11303
      %v11332 = vpack.c.b16 %v11311, %v11304
      %v11333 = vpack.c.b16 %v11312, %v11305
      %v11334 = vpack.c.b16 %v11313, %v11306
      %v11335 = vpack.c.b16 %v11314, %v11307
      %v11336 = vpack.c.b16 %v11315, %v11308
      %v11337 = vpack.c.b16 %v11316, %v11309
      %v11338 = vpack.c.b16 %v11324, %v11317
      %v11339 = vpack.c.b16 %v11325, %v11318
      %v11340 = vpack.c.b16 %v11326, %v11319
      %v11341 = vpack.c.b16 %v11327, %v11320
      %v11342 = vpack.c.b16 %v11328, %v11321
      %v11343 = vpack.c.b16 %v11329, %v11322
      %v11344 = vpack.c.b16 %v11330, %v11323
      %v11358 = vsel %vm1136, %v11337, 0
      %v11361 = vsel %vm1136, %v11344, 0
      %11363 = vmatprep.subr.bf16.mxu0 %v10583
      %11364 = vmatpush1.bf16.msra.mxu0 %v10582
      %11365 = vmatprep.subr.bf16.mxu0 %v10580
      %11366 = vmatpush1.bf16.msra.mxu0 %v10579
      %11367 = vmatprep.subr.bf16.mxu0 %v10553
      %11368 = vmatpush1.bf16.msra.mxu0 %v10552
      %11369 = vmatprep.subr.bf16.mxu0 %v10550
      %11370 = vmatpush1.bf16.msra.mxu0 %v10549
      %11371 = vmatprep.subr.bf16.mxu0 %v10523
      %11372 = vmatpush1.bf16.msra.mxu0 %v10522
      %11373 = vmatprep.subr.bf16.mxu0 %v10520
      %11374 = vmatpush1.bf16.msra.mxu0 %v10519
      %11375 = vmatprep.subr.bf16.mxu0 %v10492
      %11376 = vmatpush1.bf16.msra.mxu0 %v10491
      %11377 = vmatprep.subr.bf16.mxu0 %v10488
      %11378 = vmatpush1.bf16.msra.mxu0 %v10487
      %11379 = vmatprep.subr.bf16.mxu0 %v10703
      %11380 = vmatpush2.bf16.msra.mxu0 %v10702
      %11381 = vmatprep.subr.bf16.mxu0 %v10700
      %11382 = vmatpush2.bf16.msra.mxu0 %v10699
      %11383 = vmatprep.subr.bf16.mxu0 %v10673
      %11384 = vmatpush2.bf16.msra.mxu0 %v10672
      %11385 = vmatprep.subr.bf16.mxu0 %v10670
      %11386 = vmatpush2.bf16.msra.mxu0 %v10669
      %11387 = vmatprep.subr.bf16.mxu0 %v10643
      %11388 = vmatpush2.bf16.msra.mxu0 %v10642
      %11389 = vmatprep.subr.bf16.mxu0 %v10640
      %11390 = vmatpush2.bf16.msra.mxu0 %v10639
      %11391 = vmatprep.subr.bf16.mxu0 %v10613
      %11392 = vmatpush2.bf16.msra.mxu0 %v10612
      %11393 = vmatprep.subr.bf16.mxu0 %v10610
      %11394 = vmatpush2.bf16.msra.mxu0 %v10609
      %11395 = vmatprep.mubr.bf16.mxu0 %v11332
      %11396 = vmatmul.mubr.bf16.gmra.mxu0 %v11331
      %v11397 = vpop.f32.mrf.mxu0
      %v11398 = vadd.f32 %v11270, %v11397
      %v11399 = vpop.f32.mrf.mxu0
      %v11400 = vadd.f32 %v11270, %v11399
      %v11401 = vpop.f32.mrf.mxu0
      %v11402 = vadd.f32 %v11275, %v11401
      %v11403 = vpop.f32.mrf.mxu0
      %v11404 = vadd.f32 %v11275, %v11403
      %11405 = vmatprep.mubr.bf16.mxu0 %v11339
      %11406 = vmatmul.mubr.bf16.gmra.mxu0 %v11338
      %v11407 = vpop.f32.mrf.mxu0
      %v11408 = vadd.f32 %v11280, %v11407
      %v11409 = vpop.f32.mrf.mxu0
      %v11410 = vadd.f32 %v11280, %v11409
      %v11411 = vpop.f32.mrf.mxu0
      %v11412 = vadd.f32 %v11285, %v11411
      %v11413 = vpop.f32.mrf.mxu0
      %v11414 = vadd.f32 %v11285, %v11413
      %11415 = vdwg.mxu0
      %11416 = vmatprep.subr.bf16.mxu0 %v10823
      %11417 = vmatpush1.bf16.msra.mxu0 %v10822
      %11418 = vmatprep.subr.bf16.mxu0 %v10820
      %11419 = vmatpush1.bf16.msra.mxu0 %v10819
      %11420 = vmatprep.subr.bf16.mxu0 %v10793
      %11421 = vmatpush1.bf16.msra.mxu0 %v10792
      %11422 = vmatprep.subr.bf16.mxu0 %v10790
      %11423 = vmatpush1.bf16.msra.mxu0 %v10789
      %11424 = vmatprep.subr.bf16.mxu0 %v10763
      %11425 = vmatpush1.bf16.msra.mxu0 %v10762
      %11426 = vmatprep.subr.bf16.mxu0 %v10760
      %11427 = vmatpush1.bf16.msra.mxu0 %v10759
      %11428 = vmatprep.subr.bf16.mxu0 %v10733
      %11429 = vmatpush1.bf16.msra.mxu0 %v10732
      %11430 = vmatprep.subr.bf16.mxu0 %v10730
      %11431 = vmatpush1.bf16.msra.mxu0 %v10729
      %11432 = vmatprep.subr.bf16.mxu0 %v10943
      %11433 = vmatpush2.bf16.msra.mxu0 %v10942
      %11434 = vmatprep.subr.bf16.mxu0 %v10940
      %11435 = vmatpush2.bf16.msra.mxu0 %v10939
      %11436 = vmatprep.subr.bf16.mxu0 %v10913
      %11437 = vmatpush2.bf16.msra.mxu0 %v10912
      %11438 = vmatprep.subr.bf16.mxu0 %v10910
      %11439 = vmatpush2.bf16.msra.mxu0 %v10909
      %11440 = vmatprep.subr.bf16.mxu0 %v10883
      %11441 = vmatpush2.bf16.msra.mxu0 %v10882
      %11442 = vmatprep.subr.bf16.mxu0 %v10880
      %11443 = vmatpush2.bf16.msra.mxu0 %v10879
      %11444 = vmatprep.subr.bf16.mxu0 %v10853
      %11445 = vmatpush2.bf16.msra.mxu0 %v10852
      %11446 = vmatprep.subr.bf16.mxu0 %v10850
      %11447 = vmatpush2.bf16.msra.mxu0 %v10849
      %11448 = vmatprep.mubr.bf16.mxu0 %v11334
      %11449 = vmatmul.mubr.bf16.gmra.mxu0 %v11333
      %v11450 = vpop.f32.mrf.mxu0
      %v11451 = vadd.f32 %v11398, %v11450
      %v11452 = vpop.f32.mrf.mxu0
      %v11453 = vadd.f32 %v11400, %v11452
      %v11454 = vpop.f32.mrf.mxu0
      %v11455 = vadd.f32 %v11402, %v11454
      %v11456 = vpop.f32.mrf.mxu0
      %v11457 = vadd.f32 %v11404, %v11456
      %11458 = vmatprep.mubr.bf16.mxu0 %v11341
      %11459 = vmatmul.mubr.bf16.gmra.mxu0 %v11340
      %v11460 = vpop.f32.mrf.mxu0
      %v11461 = vadd.f32 %v11408, %v11460
      %v11462 = vpop.f32.mrf.mxu0
      %v11463 = vadd.f32 %v11410, %v11462
      %v11464 = vpop.f32.mrf.mxu0
      %v11465 = vadd.f32 %v11412, %v11464
      %v11466 = vpop.f32.mrf.mxu0
      %v11467 = vadd.f32 %v11414, %v11466
      %11468 = vdwg.mxu0
      %11469 = vmatprep.subr.bf16.mxu0 %v11141
      %11470 = vmatpush1.bf16.msra.mxu0 %v11140
      %11471 = vmatprep.subr.bf16.mxu0 %v11138
      %11472 = vmatpush1.bf16.msra.mxu0 %v11137
      %11473 = vmatprep.subr.bf16.mxu0 %v11135
      %11474 = vmatpush1.bf16.msra.mxu0 %v11134
      %11475 = vmatprep.subr.bf16.mxu0 %v11132
      %11476 = vmatpush1.bf16.msra.mxu0 %v11131
      %11477 = vmatprep.subr.bf16.mxu0 %v11129
      %11478 = vmatpush1.bf16.msra.mxu0 %v11128
      %11479 = vmatprep.subr.bf16.mxu0 %v11126
      %11480 = vmatpush1.bf16.msra.mxu0 %v11125
      %11481 = vmatprep.subr.bf16.mxu0 %v11123
      %11482 = vmatpush1.bf16.msra.mxu0 %v11122
      %11483 = vmatprep.subr.bf16.mxu0 %v11120
      %11484 = vmatpush1.bf16.msra.mxu0 %v11119
      %11485 = vmatprep.subr.bf16.mxu0 %v11165
      %11486 = vmatpush2.bf16.msra.mxu0 %v11164
      %11487 = vmatprep.subr.bf16.mxu0 %v11162
      %11488 = vmatpush2.bf16.msra.mxu0 %v11161
      %11489 = vmatprep.subr.bf16.mxu0 %v11159
      %11490 = vmatpush2.bf16.msra.mxu0 %v11158
      %11491 = vmatprep.subr.bf16.mxu0 %v11156
      %11492 = vmatpush2.bf16.msra.mxu0 %v11155
      %11493 = vmatprep.subr.bf16.mxu0 %v11153
      %11494 = vmatpush2.bf16.msra.mxu0 %v11152
      %11495 = vmatprep.subr.bf16.mxu0 %v11150
      %11496 = vmatpush2.bf16.msra.mxu0 %v11149
      %11497 = vmatprep.subr.bf16.mxu0 %v11147
      %11498 = vmatpush2.bf16.msra.mxu0 %v11146
      %11499 = vmatprep.subr.bf16.mxu0 %v11144
      %11500 = vmatpush2.bf16.msra.mxu0 %v11143
      %11501 = vmatprep.mubr.bf16.mxu0 %v11336
      %11502 = vmatmul.mubr.bf16.gmra.mxu0 %v11335
      %v11503 = vpop.f32.mrf.mxu0
      %v11504 = vadd.f32 %v11451, %v11503
      %v11505 = vpop.f32.mrf.mxu0
      %v11506 = vadd.f32 %v11453, %v11505
      %v11507 = vpop.f32.mrf.mxu0
      %v11508 = vadd.f32 %v11455, %v11507
      %v11509 = vpop.f32.mrf.mxu0
      %v11510 = vadd.f32 %v11457, %v11509
      %11511 = vmatprep.mubr.bf16.mxu0 %v11343
      %11512 = vmatmul.mubr.bf16.gmra.mxu0 %v11342
      %v11513 = vpop.f32.mrf.mxu0
      %v11514 = vadd.f32 %v11461, %v11513
      %v11515 = vpop.f32.mrf.mxu0
      %v11516 = vadd.f32 %v11463, %v11515
      %v11517 = vpop.f32.mrf.mxu0
      %v11518 = vadd.f32 %v11465, %v11517
      %v11519 = vpop.f32.mrf.mxu0
      %v11520 = vadd.f32 %v11467, %v11519
      %11521 = vdwg.mxu0
      %11522 = vmatprep.subr.bf16.mxu0 0
      %11523 = vmatpush1.bf16.msra.mxu0 0
      %11524 = vmatprep.subr.bf16.mxu0 0
      %11525 = vmatpush1.bf16.msra.mxu0 0
      %11526 = vmatprep.subr.bf16.mxu0 0
      %11527 = vmatpush1.bf16.msra.mxu0 0
      %11528 = vmatprep.subr.bf16.mxu0 0
      %11529 = vmatpush1.bf16.msra.mxu0 0
      %11530 = vmatprep.subr.bf16.mxu0 0
      %11531 = vmatpush1.bf16.msra.mxu0 0
      %11532 = vmatprep.subr.bf16.mxu0 0
      %11533 = vmatpush1.bf16.msra.mxu0 0
      %11534 = vmatprep.subr.bf16.mxu0 %v11171
      %11535 = vmatpush1.bf16.msra.mxu0 %v11170
      %11536 = vmatprep.subr.bf16.mxu0 %v11168
      %11537 = vmatpush1.bf16.msra.mxu0 %v11167
      %11538 = vmatprep.subr.bf16.mxu0 0
      %11539 = vmatpush2.bf16.msra.mxu0 0
      %11540 = vmatprep.subr.bf16.mxu0 0
      %11541 = vmatpush2.bf16.msra.mxu0 0
      %11542 = vmatprep.subr.bf16.mxu0 0
      %11543 = vmatpush2.bf16.msra.mxu0 0
      %11544 = vmatprep.subr.bf16.mxu0 0
      %11545 = vmatpush2.bf16.msra.mxu0 0
      %11546 = vmatprep.subr.bf16.mxu0 0
      %11547 = vmatpush2.bf16.msra.mxu0 0
      %11548 = vmatprep.subr.bf16.mxu0 0
      %11549 = vmatpush2.bf16.msra.mxu0 0
      %11550 = vmatprep.subr.bf16.mxu0 0
      %11551 = vmatpush2.bf16.msra.mxu0 0
      %11552 = vmatprep.subr.bf16.mxu0 0
      %11553 = vmatpush2.bf16.msra.mxu0 0
      %11554 = vmatprep.mubr.bf16.mxu0 0
      %11555 = vmatmul.mubr.bf16.gmra.mxu0 %v11358
      %v11556 = vpop.f32.mrf.mxu0
      %v11557 = vadd.f32 %v11504, %v11556
      %v11558 = vpop.f32.mrf.mxu0
      %v11559 = vadd.f32 %v11506, %v11558
      %v11560 = vpop.f32.mrf.mxu0
      %v11561 = vadd.f32 %v11508, %v11560
      %v11562 = vpop.f32.mrf.mxu0
      %v11563 = vadd.f32 %v11510, %v11562
      %11564 = vmatprep.mubr.bf16.mxu0 0
      %11565 = vmatmul.mubr.bf16.gmra.mxu0 %v11361
      %v11566 = vpop.f32.mrf.mxu0
      %v11567 = vadd.f32 %v11514, %v11566
      %v11568 = vpop.f32.mrf.mxu0
      %v11569 = vadd.f32 %v11516, %v11568
      %v11570 = vpop.f32.mrf.mxu0
      %v11571 = vadd.f32 %v11518, %v11570
      %v11572 = vpop.f32.mrf.mxu0
      %v11573 = vadd.f32 %v11520, %v11572
      %11574 = vdwg.mxu0
      %11575 = vmatprep.subr.bf16.mxu0 %v10578
      %11576 = vmatpush1.bf16.msra.mxu0 %v10584
      %11577 = vmatprep.subr.bf16.mxu0 %v10570
      %11578 = vmatpush1.bf16.msra.mxu0 %v10581
      %11579 = vmatprep.subr.bf16.mxu0 %v10548
      %11580 = vmatpush1.bf16.msra.mxu0 %v10554
      %11581 = vmatprep.subr.bf16.mxu0 %v10540
      %11582 = vmatpush1.bf16.msra.mxu0 %v10551
      %11583 = vmatprep.subr.bf16.mxu0 %v10518
      %11584 = vmatpush1.bf16.msra.mxu0 %v10524
      %11585 = vmatprep.subr.bf16.mxu0 %v10510
      %11586 = vmatpush1.bf16.msra.mxu0 %v10521
      %11587 = vmatprep.subr.bf16.mxu0 %v10494
      %11588 = vmatpush1.bf16.msra.mxu0 %v10493
      %11589 = vmatprep.subr.bf16.mxu0 %v10490
      %11590 = vmatpush1.bf16.msra.mxu0 %v10489
      %11591 = vmatprep.subr.bf16.mxu0 %v10698
      %11592 = vmatpush2.bf16.msra.mxu0 %v10704
      %11593 = vmatprep.subr.bf16.mxu0 %v10690
      %11594 = vmatpush2.bf16.msra.mxu0 %v10701
      %11595 = vmatprep.subr.bf16.mxu0 %v10668
      %11596 = vmatpush2.bf16.msra.mxu0 %v10674
      %11597 = vmatprep.subr.bf16.mxu0 %v10660
      %11598 = vmatpush2.bf16.msra.mxu0 %v10671
      %11599 = vmatprep.subr.bf16.mxu0 %v10638
      %11600 = vmatpush2.bf16.msra.mxu0 %v10644
      %11601 = vmatprep.subr.bf16.mxu0 %v10630
      %11602 = vmatpush2.bf16.msra.mxu0 %v10641
      %11603 = vmatprep.subr.bf16.mxu0 %v10608
      %11604 = vmatpush2.bf16.msra.mxu0 %v10614
      %11605 = vmatprep.subr.bf16.mxu0 %v10600
      %11606 = vmatpush2.bf16.msra.mxu0 %v10611
      %11607 = vmatprep.mubr.bf16.mxu0 %v11332
      %11608 = vmatmul.mubr.bf16.gmra.mxu0 %v11331
      %v11609 = vpop.f32.mrf.mxu0
      %v11610 = vadd.f32 %v11270, %v11609
      %v11611 = vpop.f32.mrf.mxu0
      %v11612 = vadd.f32 %v11270, %v11611
      %v11613 = vpop.f32.mrf.mxu0
      %v11614 = vadd.f32 %v11275, %v11613
      %v11615 = vpop.f32.mrf.mxu0
      %v11616 = vadd.f32 %v11275, %v11615
      %11617 = vmatprep.mubr.bf16.mxu0 %v11339
      %11618 = vmatmul.mubr.bf16.gmra.mxu0 %v11338
      %v11619 = vpop.f32.mrf.mxu0
      %v11620 = vadd.f32 %v11280, %v11619
      %v11621 = vpop.f32.mrf.mxu0
      %v11622 = vadd.f32 %v11280, %v11621
      %v11623 = vpop.f32.mrf.mxu0
      %v11624 = vadd.f32 %v11285, %v11623
      %v11625 = vpop.f32.mrf.mxu0
      %v11626 = vadd.f32 %v11285, %v11625
      %11627 = vdwg.mxu0
      %11628 = vmatprep.subr.bf16.mxu0 %v10818
      %11629 = vmatpush1.bf16.msra.mxu0 %v10824
      %11630 = vmatprep.subr.bf16.mxu0 %v10810
      %11631 = vmatpush1.bf16.msra.mxu0 %v10821
      %11632 = vmatprep.subr.bf16.mxu0 %v10788
      %11633 = vmatpush1.bf16.msra.mxu0 %v10794
      %11634 = vmatprep.subr.bf16.mxu0 %v10780
      %11635 = vmatpush1.bf16.msra.mxu0 %v10791
      %11636 = vmatprep.subr.bf16.mxu0 %v10758
      %11637 = vmatpush1.bf16.msra.mxu0 %v10764
      %11638 = vmatprep.subr.bf16.mxu0 %v10750
      %11639 = vmatpush1.bf16.msra.mxu0 %v10761
      %11640 = vmatprep.subr.bf16.mxu0 %v10728
      %11641 = vmatpush1.bf16.msra.mxu0 %v10734
      %11642 = vmatprep.subr.bf16.mxu0 %v10720
      %11643 = vmatpush1.bf16.msra.mxu0 %v10731
      %11644 = vmatprep.subr.bf16.mxu0 %v10938
      %11645 = vmatpush2.bf16.msra.mxu0 %v10944
      %11646 = vmatprep.subr.bf16.mxu0 %v10930
      %11647 = vmatpush2.bf16.msra.mxu0 %v10941
      %11648 = vmatprep.subr.bf16.mxu0 %v10908
      %11649 = vmatpush2.bf16.msra.mxu0 %v10914
      %11650 = vmatprep.subr.bf16.mxu0 %v10900
      %11651 = vmatpush2.bf16.msra.mxu0 %v10911
      %11652 = vmatprep.subr.bf16.mxu0 %v10878
      %11653 = vmatpush2.bf16.msra.mxu0 %v10884
      %11654 = vmatprep.subr.bf16.mxu0 %v10870
      %11655 = vmatpush2.bf16.msra.mxu0 %v10881
      %11656 = vmatprep.subr.bf16.mxu0 %v10848
      %11657 = vmatpush2.bf16.msra.mxu0 %v10854
      %11658 = vmatprep.subr.bf16.mxu0 %v10840
      %11659 = vmatpush2.bf16.msra.mxu0 %v10851
      %11660 = vmatprep.mubr.bf16.mxu0 %v11334
      %11661 = vmatmul.mubr.bf16.gmra.mxu0 %v11333
      %v11662 = vpop.f32.mrf.mxu0
      %v11663 = vadd.f32 %v11610, %v11662
      %v11664 = vpop.f32.mrf.mxu0
      %v11665 = vadd.f32 %v11612, %v11664
      %v11666 = vpop.f32.mrf.mxu0
      %v11667 = vadd.f32 %v11614, %v11666
      %v11668 = vpop.f32.mrf.mxu0
      %v11669 = vadd.f32 %v11616, %v11668
      %11670 = vmatprep.mubr.bf16.mxu0 %v11341
      %11671 = vmatmul.mubr.bf16.gmra.mxu0 %v11340
      %v11672 = vpop.f32.mrf.mxu0
      %v11673 = vadd.f32 %v11620, %v11672
      %v11674 = vpop.f32.mrf.mxu0
      %v11675 = vadd.f32 %v11622, %v11674
      %v11676 = vpop.f32.mrf.mxu0
      %v11677 = vadd.f32 %v11624, %v11676
      %v11678 = vpop.f32.mrf.mxu0
      %v11679 = vadd.f32 %v11626, %v11678
      %11680 = vdwg.mxu0
      %11681 = vmatprep.subr.bf16.mxu0 %v11038
      %11682 = vmatpush1.bf16.msra.mxu0 %v11142
      %11683 = vmatprep.subr.bf16.mxu0 %v11030
      %11684 = vmatpush1.bf16.msra.mxu0 %v11139
      %11685 = vmatprep.subr.bf16.mxu0 %v11022
      %11686 = vmatpush1.bf16.msra.mxu0 %v11136
      %11687 = vmatprep.subr.bf16.mxu0 %v11014
      %11688 = vmatpush1.bf16.msra.mxu0 %v11133
      %11689 = vmatprep.subr.bf16.mxu0 %v11006
      %11690 = vmatpush1.bf16.msra.mxu0 %v11130
      %11691 = vmatprep.subr.bf16.mxu0 %v10998
      %11692 = vmatpush1.bf16.msra.mxu0 %v11127
      %11693 = vmatprep.subr.bf16.mxu0 %v10990
      %11694 = vmatpush1.bf16.msra.mxu0 %v11124
      %11695 = vmatprep.subr.bf16.mxu0 %v10982
      %11696 = vmatpush1.bf16.msra.mxu0 %v11121
      %11697 = vmatprep.subr.bf16.mxu0 %v11102
      %11698 = vmatpush2.bf16.msra.mxu0 %v11166
      %11699 = vmatprep.subr.bf16.mxu0 %v11094
      %11700 = vmatpush2.bf16.msra.mxu0 %v11163
      %11701 = vmatprep.subr.bf16.mxu0 %v11086
      %11702 = vmatpush2.bf16.msra.mxu0 %v11160
      %11703 = vmatprep.subr.bf16.mxu0 %v11078
      %11704 = vmatpush2.bf16.msra.mxu0 %v11157
      %11705 = vmatprep.subr.bf16.mxu0 %v11070
      %11706 = vmatpush2.bf16.msra.mxu0 %v11154
      %11707 = vmatprep.subr.bf16.mxu0 %v11062
      %11708 = vmatpush2.bf16.msra.mxu0 %v11151
      %11709 = vmatprep.subr.bf16.mxu0 %v11054
      %11710 = vmatpush2.bf16.msra.mxu0 %v11148
      %11711 = vmatprep.subr.bf16.mxu0 %v11046
      %11712 = vmatpush2.bf16.msra.mxu0 %v11145
      %11713 = vmatprep.mubr.bf16.mxu0 %v11336
      %11714 = vmatmul.mubr.bf16.gmra.mxu0 %v11335
      %v11715 = vpop.f32.mrf.mxu0
      %v11716 = vadd.f32 %v11663, %v11715
      %v11717 = vpop.f32.mrf.mxu0
      %v11718 = vadd.f32 %v11665, %v11717
      %v11719 = vpop.f32.mrf.mxu0
      %v11720 = vadd.f32 %v11667, %v11719
      %v11721 = vpop.f32.mrf.mxu0
      %v11722 = vadd.f32 %v11669, %v11721
      %11723 = vmatprep.mubr.bf16.mxu0 %v11343
      %11724 = vmatmul.mubr.bf16.gmra.mxu0 %v11342
      %v11725 = vpop.f32.mrf.mxu0
      %v11726 = vadd.f32 %v11673, %v11725
      %v11727 = vpop.f32.mrf.mxu0
      %v11728 = vadd.f32 %v11675, %v11727
      %v11729 = vpop.f32.mrf.mxu0
      %v11730 = vadd.f32 %v11677, %v11729
      %v11731 = vpop.f32.mrf.mxu0
      %v11732 = vadd.f32 %v11679, %v11731
      %11733 = vdwg.mxu0
      %11734 = vmatprep.subr.bf16.mxu0 0
      %11735 = vmatpush1.bf16.msra.mxu0 0
      %11736 = vmatprep.subr.bf16.mxu0 0
      %11737 = vmatpush1.bf16.msra.mxu0 0
      %11738 = vmatprep.subr.bf16.mxu0 0
      %11739 = vmatpush1.bf16.msra.mxu0 0
      %11740 = vmatprep.subr.bf16.mxu0 0
      %11741 = vmatpush1.bf16.msra.mxu0 0
      %11742 = vmatprep.subr.bf16.mxu0 0
      %11743 = vmatpush1.bf16.msra.mxu0 0
      %11744 = vmatprep.subr.bf16.mxu0 0
      %11745 = vmatpush1.bf16.msra.mxu0 0
      %11746 = vmatprep.subr.bf16.mxu0 %v11118
      %11747 = vmatpush1.bf16.msra.mxu0 %v11172
      %11748 = vmatprep.subr.bf16.mxu0 %v11110
      %11749 = vmatpush1.bf16.msra.mxu0 %v11169
      %11750 = vmatprep.subr.bf16.mxu0 0
      %11751 = vmatpush2.bf16.msra.mxu0 0
      %11752 = vmatprep.subr.bf16.mxu0 0
      %11753 = vmatpush2.bf16.msra.mxu0 0
      %11754 = vmatprep.subr.bf16.mxu0 0
      %11755 = vmatpush2.bf16.msra.mxu0 0
      %11756 = vmatprep.subr.bf16.mxu0 0
      %11757 = vmatpush2.bf16.msra.mxu0 0
      %11758 = vmatprep.subr.bf16.mxu0 0
      %11759 = vmatpush2.bf16.msra.mxu0 0
      %11760 = vmatprep.subr.bf16.mxu0 0
      %11761 = vmatpush2.bf16.msra.mxu0 0
      %11762 = vmatprep.subr.bf16.mxu0 0
      %11763 = vmatpush2.bf16.msra.mxu0 0
      %11764 = vmatprep.subr.bf16.mxu0 0
      %11765 = vmatpush2.bf16.msra.mxu0 0
      %11766 = vmatprep.mubr.bf16.mxu0 0
      %11767 = vmatmul.mubr.bf16.gmra.mxu0 %v11358
      %v11768 = vpop.f32.mrf.mxu0
      %v11769 = vadd.f32 %v11716, %v11768
      %v11770 = vpop.f32.mrf.mxu0
      %v11771 = vadd.f32 %v11718, %v11770
      %v11772 = vpop.f32.mrf.mxu0
      %v11773 = vadd.f32 %v11720, %v11772
      %v11774 = vpop.f32.mrf.mxu0
      %v11775 = vadd.f32 %v11722, %v11774
      %11776 = vmatprep.mubr.bf16.mxu0 0
      %11777 = vmatmul.mubr.bf16.gmra.mxu0 %v11361
      %v11778 = vpop.f32.mrf.mxu0
      %v11779 = vadd.f32 %v11726, %v11778
      %v11780 = vpop.f32.mrf.mxu0
      %v11781 = vadd.f32 %v11728, %v11780
      %v11782 = vpop.f32.mrf.mxu0
      %v11783 = vadd.f32 %v11730, %v11782
      %v11784 = vpop.f32.mrf.mxu0
      %v11785 = vadd.f32 %v11732, %v11784
      %11786 = vdwg.mxu0
      %v11787 = vtanh.pop %v11557
      %v11788 = vtanh.pop %v11559
      %v11789 = vtanh.pop %v11769
      %v11790 = vtanh.pop %v11771
      %v11791 = vtanh.pop %v11561
      %v11792 = vtanh.pop %v11563
      %v11793 = vtanh.pop %v11773
      %v11794 = vtanh.pop %v11775
      %v11795 = vtanh.pop %v11567
      %v11796 = vtanh.pop %v11569
      %v11797 = vtanh.pop %v11779
      %v11798 = vtanh.pop %v11781
      %v11799 = vtanh.pop %v11571
      %v11800 = vtanh.pop %v11573
      %v11801 = vtanh.pop %v11783
      %v11802 = vtanh.pop %v11785
      %v11803 = vmul.f32 %v11787, %v1587
      %v11804 = vmul.f32 %v11788, %v1591
      %v11805 = vmul.f32 %v11789, %v1595
      %v11806 = vmul.f32 %v11790, %v1599
      %v11807 = vmul.f32 %v11791, %v1587
      %v11808 = vmul.f32 %v11792, %v1591
      %v11809 = vmul.f32 %v11793, %v1595
      %v11810 = vmul.f32 %v11794, %v1599
      %v11811 = vmul.f32 %v11795, %v1587
      %v11812 = vmul.f32 %v11796, %v1591
      %v11813 = vmul.f32 %v11797, %v1595
      %v11814 = vmul.f32 %v11798, %v1599
      %v11815 = vmul.f32 %v11799, %v1587
      %v11816 = vmul.f32 %v11800, %v1591
      %v11817 = vmul.f32 %v11801, %v1595
      %v11818 = vmul.f32 %v11802, %v1599
      %11819 = vst [vmem:[%s197] sm:$0xff] %v11803
      %11820 = vst [vmem:[%s197 + $0x8] sm:$0xff] %v11804
      %11821 = vst [vmem:[%s197 + $0x10] sm:$0xff] %v11805
      %vm11822 = vcmask 130048
      %11823 = vst.msk [vmem:[%s197 + $0x18] sm:$0xff] %vm11822, %v11806
      %11824 = vst [vmem:[%s197 + $0x20] sm:$0xff] %v11807
      %11825 = vst [vmem:[%s197 + $0x28] sm:$0xff] %v11808
      %11826 = vst [vmem:[%s197 + $0x30] sm:$0xff] %v11809
      %11827 = vst.msk [vmem:[%s197 + $0x38] sm:$0xff] %vm11822, %v11810
      %11828 = vst [vmem:[%s197 + $0x40] sm:$0xff] %v11811
      %11829 = vst [vmem:[%s197 + $0x48] sm:$0xff] %v11812
      %11830 = vst [vmem:[%s197 + $0x50] sm:$0xff] %v11813
      %11831 = vst.msk [vmem:[%s197 + $0x58] sm:$0xff] %vm11822, %v11814
      %11832 = vst [vmem:[%s197 + $0x60] sm:$0xff] %v11815
      %11833 = vst [vmem:[%s197 + $0x68] sm:$0xff] %v11816
      %11834 = vst [vmem:[%s197 + $0x70] sm:$0xff] %v11817
      %11835 = vst.msk [vmem:[%s197 + $0x78] sm:$0xff] %vm11822, %v11818
      %p11836 = scmp.lt.s32.totalorder %s15, 1
      %s11837 = scalar_select %p11836, %s15, 1
      %s11838 = smul.addr %s11837, 16
      %s11839 = smul.addr %s11838, 8
      %s11840 = scalar_lea.vmem %s4, %s11839
      // Predicated region
      $region37: #{net_forward.1} parent=35 // pred_check
        %p11841 = pneg %p122
      $region38: #{net_forward.1} parent=35 // pred_check_branch
        %11843 = sbr.rel (%p11841) target = $region40
      $region39: #{net_forward.1} parent=35 // pred_region
        _
      $region40: #{net_forward.1} parent=35 // pred_fallthru
        _
    $region36: #{net_forward.1} parent=5 // pred_fallthru
      _
    %p11844 = scmp.le.s32.totalorder 2, %s10
    // Predicated region
    $region41: #{net_forward.1} parent=5 // pred_check
      %p11845 = pneg %p11844
    $region42: #{net_forward.1} parent=5 // pred_check_branch
      %11847 = sbr.rel (%p11845) target = $region44
    $region43: #{net_forward.1} parent=5 // pred_region
      %s11848 = ssub.s32 %s10, 2
      // Predicated region
      $region45: #{net_forward.1} parent=43 // pred_check
        %p11849 = pneg %p128
      $region46: #{net_forward.1} parent=43 // pred_check_branch
        %11851 = sbr.rel (%p11849) target = $region48
      $region47: #{net_forward.1} parent=43 // pred_region
        %p11852 = scmp.lt.s32.totalorder %s16, 1
        %s11853 = scalar_select %p11852, %s16, 1
        %s11854 = smul.addr %s11853, 16
        %s11855 = smul.addr %s11854, 8
        %s11856 = scalar_lea.vmem %s4, %s11855
      $region48: #{net_forward.1} parent=43 // pred_fallthru
        _
    $region44: #{net_forward.1} parent=5 // pred_fallthru
      _
  $region6: #{net_forward.1} parent=0 // loop_footer
    %s14 = sadd.s32 1, %s10
  $region7: #{net_forward.1} parent=0 // loop_footer_branch
    %9 = sbr.rel target = $region3
  $region8: #{net_forward.1} parent=0 // loop_exit
    _

</llo_original>
